<compile_context>
chip_gen: v7x
topology: tpu7x:2x2x1
jax: 0.10.0
libtpu: 0.0.40
codegen_flags: <defaults>
</compile_context>

<pallas_src>
import numpy as np
import jax
import jax.numpy as jnp
from jax.experimental import pallas as pl
from jax.experimental.pallas import tpu as pltpu

F32 = jnp.float32


# ------------------------------ fused kernel ------------------------------- #

def _gt_kernel(x_ref, ea_ref, src_oh_ref, dst_oh_ref, pair_oh_ref,
               gsrc_ref, gdst_ref, tilepat_ref, blockmask_ref,
               node_w_ref, node_b_ref, edge_w_ref, edge_b_ref,
               wqkv_ref, bqkv_ref, we_ref, be_ref,
               bn1_g_ref, bn1_b_ref, bn2_g_ref, bn2_b_ref,
               fw1_ref, fb1_ref, fw2_ref, fb2_ref,
               cls_w_ref, cls_b_ref, out_ref):
    N = src_oh_ref.shape[1]          # num nodes (== hidden == heads == edges)
    E = src_oh_ref.shape[0]          # num edges
    D = node_w_ref.shape[1]          # hidden dim
    L = wqkv_ref.shape[0]            # num layers
    H = be_ref.shape[1] // L         # num heads

    def mm(a, b):
        return jnp.dot(a, b, preferred_element_type=jnp.float32)

    def leaky(z):                    # F.leaky_relu, default slope 0.01
        return jnp.where(z >= 0.0, z, 0.01 * z)

    def batch_norm(y3, g, b):
        # BatchNorm1d on a [B, C, L] tensor: channels = axis 1, training-mode
        # batch statistics, biased variance, eps = 1e-5.  Returns the canonical
        # 2-D [B*C, L] view (trailing dim preserved -> free reshape).
        mean = jnp.mean(jnp.mean(y3, axis=2, keepdims=True), axis=0, keepdims=True)
        var = jnp.mean(jnp.mean((y3 - mean) ** 2, axis=2, keepdims=True),
                       axis=0, keepdims=True)
        inv = jax.lax.rsqrt(var + 1e-5)
        out3 = (y3 - mean) * inv * g + b
        return out3.reshape(N * N, D)

    def dense_softmax(scores):
        # to_dense_adj scatter-add (duplicate edges summed) via pair_oh matmul,
        # squeeze(0), then softmax over dst (dim=1) incl. the zero entries.
        adj = mm(pair_oh_ref[...], scores).reshape(N, N, H)   # [src, dst, head]
        m = jnp.max(adj, axis=1, keepdims=True)
        p = jnp.exp(adj - m)
        return p / jnp.sum(p, axis=1, keepdims=True)          # exact division

    def ffn(x2, l):
        h = jnp.maximum(mm(x2, fw1_ref[l]) + fb1_ref[l], 0.0)
        return mm(h, fw2_ref[l]) + fb2_ref[l]

    # ------------------------------ embeddings ------------------------------ #
    x = mm(x_ref[...], node_w_ref[...]) + node_b_ref[...]        # [N, D]
    eattr = mm(ea_ref[...], edge_w_ref[...]) + edge_b_ref[...]   # [E, D]
    # Edge projections for ALL layers in one lane-packed matmul: [E, L*H].
    ef_all = mm(eattr, we_ref[...]) + be_ref[...]

    # --------------------------- layer 0 (x is 2-D) ------------------------- #
    qkv = mm(x, wqkv_ref[0]) + bqkv_ref[0]                       # packed [N, 3D]
    Q, K, V = qkv[:, :D], qkv[:, D:2 * D], qkv[:, 2 * D:]
    Qs = mm(src_oh_ref[...], Q)                                  # Q[edge_index[0]]
    Ks = mm(dst_oh_ref[...], K)                                  # K[edge_index[1]]
    # per-edge dot products; PyTorch .view(-1, H) collapses [E] -> [1, E] (E==H)
    rowdot = jnp.sum(jnp.transpose(Qs * Ks), axis=0, keepdims=True)   # [1, E]
    scores = leaky(rowdot + ef_all[:, :H])                       # [E, H]
    aw = dense_softmax(scores)                                   # [N, N, H]
    # torch.matmul([N,N,H], [N,D]) with H == N  ->  [N, N, D] (one matmul)
    x_new2 = mm(aw.reshape(N * N, H), V)                         # [N*N, D]
    x2 = batch_norm(x + x_new2.reshape(N, N, D), bn1_g_ref[0], bn1_b_ref[0])
    x2 = batch_norm((x2 + ffn(x2, 0)).reshape(N, N, D), bn2_g_ref[0], bn2_b_ref[0])

    # ------------------------ layers 1..L-1 (x is 3-D) ----------------------- #
    for l in range(1, L):
        qkv = mm(x2, wqkv_ref[l]) + bqkv_ref[l]                  # [N*N, 3D]
        Q2, K2, V2 = qkv[:, :D], qkv[:, D:2 * D], qkv[:, 2 * D:]
        # (Q[src] * K[dst]).sum(dim=1): ONE gather matmul per operand.
        Qg = mm(gsrc_ref[...], Q2)                               # [E*N, D]
        Kg = mm(gdst_ref[...], K2)                               # [E*N, D]
        s = jnp.sum((Qg * Kg).reshape(E, N, D), axis=1,
                    keepdims=True).reshape(E, D)                 # [E, D] (D == H)
        scores = leaky(s + ef_all[:, l * H:(l + 1) * H])         # [E, H]
        aw2 = dense_softmax(scores).reshape(N * N, H)            # [N*N, H]
        # torch.matmul([N,N,H], [N,N,D]) (batched over src, contract heads) as a
        # single block-diagonal MXU matmul: AW[i*N+j, i*N+h] = aw[i, j, h].
        AW = mm(aw2, tilepat_ref[...]) * blockmask_ref[...]      # [N*N, N*N]
        x_new2 = mm(AW, V2)                                      # [N*N, D]
        x2 = batch_norm((x2 + x_new2).reshape(N, N, D), bn1_g_ref[l], bn1_b_ref[l])
        x2 = batch_norm((x2 + ffn(x2, l)).reshape(N, N, D), bn2_g_ref[l], bn2_b_ref[l])

    # -------------------------------- readout -------------------------------- #
    xm = jnp.mean(x2.reshape(N, N, D), axis=0)                   # x.mean(dim=0) -> [N, D]
    out_ref[...] = mm(xm, cls_w_ref[...]) + cls_b_ref[...]       # [N, 1]


# ------------------------------- parameters --------------------------------- #

def _init_linear(key, fin, fout):
    kw, kb = jax.random.split(key)
    bound = 1.0 / (fin ** 0.5)
    w = jax.random.uniform(kw, (fin, fout), F32, -bound, bound)
    b = jax.random.uniform(kb, (1, fout), F32, -bound, bound)
    return w, b


def init_params(key, node_dim, edge_dim, hidden_dim, num_layers, num_heads):
    D, H, L = hidden_dim, num_heads, num_layers
    keys = jax.random.split(key, 3 + L)
    node_w, node_b = _init_linear(keys[0], node_dim, D)
    edge_w, edge_b = _init_linear(keys[1], edge_dim, D)
    cls_w, cls_b = _init_linear(keys[2], D, 1)
    wqkv, bqkv, we, be = [], [], [], []
    bn1g, bn1b, bn2g, bn2b = [], [], [], []
    fw1, fb1, fw2, fb2 = [], [], [], []
    for li in range(L):
        ks = jax.random.split(keys[3 + li], 6)
        wq, bq = _init_linear(ks[0], D, D)
        wk, bk = _init_linear(ks[1], D, D)
        wv, bv = _init_linear(ks[2], D, D)
        wqkv.append(jnp.concatenate([wq, wk, wv], axis=1))   # packed [D, 3D]
        bqkv.append(jnp.concatenate([bq, bk, bv], axis=1))   # packed [1, 3D]
        w_e, b_e = _init_linear(ks[3], edge_dim, H)
        we.append(w_e)
        be.append(b_e)
        bn1g.append(jnp.ones((D, 1), F32))
        bn1b.append(jnp.zeros((D, 1), F32))
        bn2g.append(jnp.ones((D, 1), F32))
        bn2b.append(jnp.zeros((D, 1), F32))
        w1, b1 = _init_linear(ks[4], D, 2 * D)
        w2, b2 = _init_linear(ks[5], 2 * D, D)
        fw1.append(w1)
        fb1.append(b1)
        fw2.append(w2)
        fb2.append(b2)
    stk = lambda xs: jnp.stack(xs, axis=0)
    return dict(node_w=node_w, node_b=node_b, edge_w=edge_w, edge_b=edge_b,
                cls_w=cls_w, cls_b=cls_b,
                wqkv=stk(wqkv), bqkv=stk(bqkv),
                # all layers' edge projections packed along lanes: [edge_dim, L*H]
                we=jnp.concatenate(we, axis=1), be=jnp.concatenate(be, axis=1),
                bn1_g=stk(bn1g), bn1_b=stk(bn1b), bn2_g=stk(bn2g), bn2_b=stk(bn2b),
                fw1=stk(fw1), fb1=stk(fb1), fw2=stk(fw2), fb2=stk(fb2))


# ------------------------- fixed-topology operators -------------------------- #

def build_graph_operators(edge_index, num_nodes):
    # Built ONCE on the host (numpy) for a fixed graph topology and reused
    # across calls: no per-call one_hot / transpose dispatches in the jit path.
    # TODO(synk): for large N/E switch to PrefetchScalarGridSpec + in-kernel
    # gathers instead of dense one-hot operators.
    src = np.asarray(edge_index[0], dtype=np.int64)
    dst = np.asarray(edge_index[1], dtype=np.int64)
    E, N = src.shape[0], num_nodes
    src_oh = np.zeros((E, N), np.float32)
    src_oh[np.arange(E), src] = 1.0
    dst_oh = np.zeros((E, N), np.float32)
    dst_oh[np.arange(E), dst] = 1.0
    pair_oh = np.zeros((N * N, E), np.float32)              # to_dense_adj scatter
    pair_oh[src * N + dst, np.arange(E)] = 1.0
    gsrc = np.zeros((E * N, N * N), np.float32)             # row (e,j) <- row (src_e, j)
    gdst = np.zeros((E * N, N * N), np.float32)
    for e in range(E):
        for j in range(N):
            gsrc[e * N + j, src[e] * N + j] = 1.0
            gdst[e * N + j, dst[e] * N + j] = 1.0
    tilepat = np.zeros((N, N * N), np.float32)               # lane-tile pattern
    blockmask = np.zeros((N * N, N * N), np.float32)         # block-diagonal mask
    for i in range(N):
        tilepat[:, i * N:(i + 1) * N] = np.eye(N, dtype=np.float32)
        blockmask[i * N:(i + 1) * N, i * N:(i + 1) * N] = 1.0
    return tuple(jnp.asarray(a) for a in
                 (src_oh, dst_oh, pair_oh, gsrc, gdst, tilepat, blockmask))


# ------------------------------ model forward -------------------------------- #

@jax.jit
def graph_transformer_forward(params, x_nodes, edge_attr_raw, graph_ops):
    N = x_nodes.shape[0]
    D = params['node_w'].shape[1]
    L = params['wqkv'].shape[0]
    H = params['be'].shape[1] // L
    E = graph_ops[0].shape[0]
    # The reference torch forward only type-checks under this constraint.
    assert N == E == D == H, "reference forward requires N == E == hidden == heads"

    ops = (x_nodes, edge_attr_raw) + tuple(graph_ops) + (
        params['node_w'], params['node_b'], params['edge_w'], params['edge_b'],
        params['wqkv'], params['bqkv'], params['we'], params['be'],
        params['bn1_g'], params['bn1_b'], params['bn2_g'], params['bn2_b'],
        params['fw1'], params['fb1'], params['fw2'], params['fb2'],
        params['cls_w'], params['cls_b'])

    vmem = pl.BlockSpec(memory_space=pltpu.MemorySpace.VMEM)
    # TODO(synk): batch B graphs along a leading "parallel" grid axis to fill
    # the 128/256-wide MXU lanes and use v7x's second TensorCore; a single
    # 8-wide graph cannot usefully occupy the MXU/VPU on any generation.
    return pl.pallas_call(
        _gt_kernel,
        out_shape=jax.ShapeDtypeStruct((N, 1), F32),
        in_specs=[vmem] * len(ops),
        out_specs=vmem,
    )(*ops)


# ---------------------------------- main ------------------------------------- #

if __name__ == "__main__":
    # Shapes forced by the module's own forward-pass constraints (see header).
    N_NODES = 8
    N_EDGES = 8
    NODE_DIM = 4
    EDGE_DIM = 8
    HIDDEN = 8
    NUM_HEADS = 8
    NUM_LAYERS = 4

    key = jax.random.PRNGKey(0)
    kp, kx, ke = jax.random.split(key, 3)

    params = init_params(kp, NODE_DIM, EDGE_DIM, HIDDEN, NUM_LAYERS, NUM_HEADS)

    x_nodes = jax.random.normal(kx, (N_NODES, NODE_DIM), F32)
    edge_attr = jax.random.normal(ke, (N_EDGES, EDGE_DIM), F32)
    # ring graph: covers node N-1 so to_dense_adj's inferred size matches N
    src = np.arange(N_EDGES, dtype=np.int32)
    dst = (src + 1) % N_NODES
    edge_index = np.stack([src, dst], axis=0)                 # [2, E]
    graph_ops = build_graph_operators(edge_index, N_NODES)    # host-built, once

    out = graph_transformer_forward(params, x_nodes, edge_attr, graph_ops)
    out = jax.block_until_ready(out)
    assert out.shape == (N_NODES, 1) and bool(jnp.all(jnp.isfinite(out)))
    print("KERNEL_OK")
</pallas_src>

<mosaic_0001>
module attributes {stable_mosaic.version = 11 : i64} {
  func.func @_gt_kernel(%arg0: memref<8x4xf32, #tpu.memory_space<vmem>>, %arg1: memref<8x8xf32, #tpu.memory_space<vmem>>, %arg2: memref<8x8xf32, #tpu.memory_space<vmem>>, %arg3: memref<8x8xf32, #tpu.memory_space<vmem>>, %arg4: memref<64x8xf32, #tpu.memory_space<vmem>>, %arg5: memref<64x64xf32, #tpu.memory_space<vmem>>, %arg6: memref<64x64xf32, #tpu.memory_space<vmem>>, %arg7: memref<8x64xf32, #tpu.memory_space<vmem>>, %arg8: memref<64x64xf32, #tpu.memory_space<vmem>>, %arg9: memref<4x8xf32, #tpu.memory_space<vmem>>, %arg10: memref<1x8xf32, #tpu.memory_space<vmem>>, %arg11: memref<8x8xf32, #tpu.memory_space<vmem>>, %arg12: memref<1x8xf32, #tpu.memory_space<vmem>>, %arg13: memref<4x8x24xf32, #tpu.memory_space<vmem>>, %arg14: memref<4x1x24xf32, #tpu.memory_space<vmem>>, %arg15: memref<8x32xf32, #tpu.memory_space<vmem>>, %arg16: memref<1x32xf32, #tpu.memory_space<vmem>>, %arg17: memref<4x8x1xf32, #tpu.memory_space<vmem>>, %arg18: memref<4x8x1xf32, #tpu.memory_space<vmem>>, %arg19: memref<4x8x1xf32, #tpu.memory_space<vmem>>, %arg20: memref<4x8x1xf32, #tpu.memory_space<vmem>>, %arg21: memref<4x8x16xf32, #tpu.memory_space<vmem>>, %arg22: memref<4x1x16xf32, #tpu.memory_space<vmem>>, %arg23: memref<4x16x8xf32, #tpu.memory_space<vmem>>, %arg24: memref<4x1x8xf32, #tpu.memory_space<vmem>>, %arg25: memref<8x1xf32, #tpu.memory_space<vmem>>, %arg26: memref<1x1xf32, #tpu.memory_space<vmem>>, %arg27: memref<8x1xf32, #tpu.memory_space<vmem>>) attributes {dimension_semantics = [], scalar_prefetch = 0 : i64, scratch_operands = 0 : i64, tpu.core_type = #tpu.core_type<tc>} {
    %c0 = arith.constant 0 : index
    %c0_0 = arith.constant 0 : index
    %0 = vector.load %arg0[%c0, %c0_0] : memref<8x4xf32, #tpu.memory_space<vmem>>, vector<8x4xf32>
    %c0_1 = arith.constant 0 : index
    %c0_2 = arith.constant 0 : index
    %1 = vector.load %arg9[%c0_1, %c0_2] : memref<4x8xf32, #tpu.memory_space<vmem>>, vector<4x8xf32>
    %cst = arith.constant dense<0.000000e+00> : vector<8x8xf32>
    %2 = tpu.matmul %0, %1, %cst {dimension_numbers = #tpu.dot_dimension_numbers<[1], [0], [0], [1], [0, 0, 1, 1], [], []>} : vector<8x4xf32>, vector<4x8xf32>, vector<8x8xf32> -> vector<8x8xf32>
    %c0_3 = arith.constant 0 : index
    %c0_4 = arith.constant 0 : index
    %3 = vector.load %arg10[%c0_3, %c0_4] : memref<1x8xf32, #tpu.memory_space<vmem>>, vector<1x8xf32>
    %4 = vector.broadcast %3 : vector<1x8xf32> to vector<8x8xf32>
    %5 = arith.addf %2, %4 : vector<8x8xf32>
    %c0_5 = arith.constant 0 : index
    %c0_6 = arith.constant 0 : index
    %6 = vector.load %arg1[%c0_5, %c0_6] : memref<8x8xf32, #tpu.memory_space<vmem>>, vector<8x8xf32>
    %c0_7 = arith.constant 0 : index
    %c0_8 = arith.constant 0 : index
    %7 = vector.load %arg11[%c0_7, %c0_8] : memref<8x8xf32, #tpu.memory_space<vmem>>, vector<8x8xf32>
    %cst_9 = arith.constant dense<0.000000e+00> : vector<8x8xf32>
    %8 = tpu.matmul %6, %7, %cst_9 {dimension_numbers = #tpu.dot_dimension_numbers<[1], [0], [0], [1], [0, 0, 1, 1], [], []>} : vector<8x8xf32>, vector<8x8xf32>, vector<8x8xf32> -> vector<8x8xf32>
    %c0_10 = arith.constant 0 : index
    %c0_11 = arith.constant 0 : index
    %9 = vector.load %arg12[%c0_10, %c0_11] : memref<1x8xf32, #tpu.memory_space<vmem>>, vector<1x8xf32>
    %10 = vector.broadcast %9 : vector<1x8xf32> to vector<8x8xf32>
    %11 = arith.addf %8, %10 : vector<8x8xf32>
    %c0_12 = arith.constant 0 : index
    %c0_13 = arith.constant 0 : index
    %12 = vector.load %arg15[%c0_12, %c0_13] : memref<8x32xf32, #tpu.memory_space<vmem>>, vector<8x32xf32>
    %cst_14 = arith.constant dense<0.000000e+00> : vector<8x32xf32>
    %13 = tpu.matmul %11, %12, %cst_14 {dimension_numbers = #tpu.dot_dimension_numbers<[1], [0], [0], [1], [0, 0, 1, 1], [], []>} : vector<8x8xf32>, vector<8x32xf32>, vector<8x32xf32> -> vector<8x32xf32>
    %c0_15 = arith.constant 0 : index
    %c0_16 = arith.constant 0 : index
    %14 = vector.load %arg16[%c0_15, %c0_16] : memref<1x32xf32, #tpu.memory_space<vmem>>, vector<1x32xf32>
    %15 = vector.broadcast %14 : vector<1x32xf32> to vector<8x32xf32>
    %16 = arith.addf %13, %15 : vector<8x32xf32>
    %c0_17 = arith.constant 0 : index
    %c0_18 = arith.constant 0 : index
    %c0_19 = arith.constant 0 : index
    %17 = vector.load %arg13[%c0_17, %c0_18, %c0_19] : memref<4x8x24xf32, #tpu.memory_space<vmem>>, vector<1x8x24xf32>
    %18 = vector.shape_cast %17 : vector<1x8x24xf32> to vector<8x24xf32>
    %cst_20 = arith.constant dense<0.000000e+00> : vector<8x24xf32>
    %19 = tpu.matmul %5, %18, %cst_20 {dimension_numbers = #tpu.dot_dimension_numbers<[1], [0], [0], [1], [0, 0, 1, 1], [], []>} : vector<8x8xf32>, vector<8x24xf32>, vector<8x24xf32> -> vector<8x24xf32>
    %c0_21 = arith.constant 0 : index
    %c0_22 = arith.constant 0 : index
    %c0_23 = arith.constant 0 : index
    %20 = vector.load %arg14[%c0_21, %c0_22, %c0_23] : memref<4x1x24xf32, #tpu.memory_space<vmem>>, vector<1x1x24xf32>
    %21 = vector.shape_cast %20 : vector<1x1x24xf32> to vector<1x24xf32>
    %22 = vector.broadcast %21 : vector<1x24xf32> to vector<8x24xf32>
    %23 = arith.addf %19, %22 : vector<8x24xf32>
    %24 = vector.extract_strided_slice %23 {offsets = [0, 0], sizes = [8, 8], strides = [1, 1]} : vector<8x24xf32> to vector<8x8xf32>
    %25 = vector.extract_strided_slice %23 {offsets = [0, 8], sizes = [8, 8], strides = [1, 1]} : vector<8x24xf32> to vector<8x8xf32>
    %26 = vector.extract_strided_slice %23 {offsets = [0, 16], sizes = [8, 8], strides = [1, 1]} : vector<8x24xf32> to vector<8x8xf32>
    %c0_24 = arith.constant 0 : index
    %c0_25 = arith.constant 0 : index
    %27 = vector.load %arg2[%c0_24, %c0_25] : memref<8x8xf32, #tpu.memory_space<vmem>>, vector<8x8xf32>
    %cst_26 = arith.constant dense<0.000000e+00> : vector<8x8xf32>
    %28 = tpu.matmul %27, %24, %cst_26 {dimension_numbers = #tpu.dot_dimension_numbers<[1], [0], [0], [1], [0, 0, 1, 1], [], []>} : vector<8x8xf32>, vector<8x8xf32>, vector<8x8xf32> -> vector<8x8xf32>
    %c0_27 = arith.constant 0 : index
    %c0_28 = arith.constant 0 : index
    %29 = vector.load %arg3[%c0_27, %c0_28] : memref<8x8xf32, #tpu.memory_space<vmem>>, vector<8x8xf32>
    %cst_29 = arith.constant dense<0.000000e+00> : vector<8x8xf32>
    %30 = tpu.matmul %29, %25, %cst_29 {dimension_numbers = #tpu.dot_dimension_numbers<[1], [0], [0], [1], [0, 0, 1, 1], [], []>} : vector<8x8xf32>, vector<8x8xf32>, vector<8x8xf32> -> vector<8x8xf32>
    %31 = arith.mulf %28, %30 : vector<8x8xf32>
    %32 = tpu.transpose %31, [1, 0] : vector<8x8xf32> -> vector<8x8xf32>
    %cst_30 = arith.constant dense<0.000000e+00> : vector<8xf32>
    %33 = vector.multi_reduction <add>, %32, %cst_30 [0] : vector<8x8xf32> to vector<8xf32>
    %34 = vector.shape_cast %33 : vector<8xf32> to vector<1x8xf32>
    %35 = vector.extract_strided_slice %16 {offsets = [0, 0], sizes = [8, 8], strides = [1, 1]} : vector<8x32xf32> to vector<8x8xf32>
    %36 = vector.broadcast %34 : vector<1x8xf32> to vector<8x8xf32>
    %37 = arith.addf %36, %35 : vector<8x8xf32>
    %cst_31 = arith.constant 0.000000e+00 : f32
    %38 = vector.broadcast %cst_31 : f32 to vector<8x8xf32>
    %39 = arith.cmpf oge, %37, %38 : vector<8x8xf32>
    %cst_32 = arith.constant 0.00999999977 : f32
    %40 = vector.broadcast %cst_32 : f32 to vector<8x8xf32>
    %41 = arith.mulf %40, %37 : vector<8x8xf32>
    %42 = arith.select %39, %37, %41 : vector<8x8xi1>, vector<8x8xf32>
    %c0_33 = arith.constant 0 : index
    %c0_34 = arith.constant 0 : index
    %43 = vector.load %arg4[%c0_33, %c0_34] : memref<64x8xf32, #tpu.memory_space<vmem>>, vector<64x8xf32>
    %cst_35 = arith.constant dense<0.000000e+00> : vector<64x8xf32>
    %44 = tpu.matmul %43, %42, %cst_35 {dimension_numbers = #tpu.dot_dimension_numbers<[1], [0], [0], [1], [0, 0, 1, 1], [], []>} : vector<64x8xf32>, vector<8x8xf32>, vector<64x8xf32> -> vector<64x8xf32>
    %45 = vector.shape_cast %44 : vector<64x8xf32> to vector<8x8x8xf32>
    %cst_36 = arith.constant dense<0xFF800000> : vector<8x8xf32>
    %46 = vector.multi_reduction <maximumf>, %45, %cst_36 [1] : vector<8x8x8xf32> to vector<8x8xf32>
    %47 = vector.shape_cast %46 : vector<8x8xf32> to vector<8x1x8xf32>
    %48 = vector.broadcast %47 : vector<8x1x8xf32> to vector<8x8x8xf32>
    %49 = arith.subf %45, %48 : vector<8x8x8xf32>
    %50 = math.exp %49 : vector<8x8x8xf32>
    %cst_37 = arith.constant dense<0.000000e+00> : vector<8x8xf32>
    %51 = vector.multi_reduction <add>, %50, %cst_37 [1] : vector<8x8x8xf32> to vector<8x8xf32>
    %52 = vector.shape_cast %51 : vector<8x8xf32> to vector<8x1x8xf32>
    %53 = vector.broadcast %52 : vector<8x1x8xf32> to vector<8x8x8xf32>
    %54 = arith.divf %50, %53 : vector<8x8x8xf32>
    %55 = vector.shape_cast %54 : vector<8x8x8xf32> to vector<64x8xf32>
    %cst_38 = arith.constant dense<0.000000e+00> : vector<64x8xf32>
    %56 = tpu.matmul %55, %26, %cst_38 {dimension_numbers = #tpu.dot_dimension_numbers<[1], [0], [0], [1], [0, 0, 1, 1], [], []>} : vector<64x8xf32>, vector<8x8xf32>, vector<64x8xf32> -> vector<64x8xf32>
    %57 = vector.shape_cast %56 : vector<64x8xf32> to vector<8x8x8xf32>
    %58 = vector.shape_cast %5 : vector<8x8xf32> to vector<1x8x8xf32>
    %59 = vector.broadcast %58 : vector<1x8x8xf32> to vector<8x8x8xf32>
    %60 = arith.addf %59, %57 : vector<8x8x8xf32>
    %c0_39 = arith.constant 0 : index
    %c0_40 = arith.constant 0 : index
    %c0_41 = arith.constant 0 : index
    %61 = vector.load %arg17[%c0_39, %c0_40, %c0_41] : memref<4x8x1xf32, #tpu.memory_space<vmem>>, vector<1x8x1xf32>
    %62 = vector.shape_cast %61 : vector<1x8x1xf32> to vector<8x1xf32>
    %c0_42 = arith.constant 0 : index
    %c0_43 = arith.constant 0 : index
    %c0_44 = arith.constant 0 : index
    %63 = vector.load %arg18[%c0_42, %c0_43, %c0_44] : memref<4x8x1xf32, #tpu.memory_space<vmem>>, vector<1x8x1xf32>
    %64 = vector.shape_cast %63 : vector<1x8x1xf32> to vector<8x1xf32>
    %cst_45 = arith.constant dense<0.000000e+00> : vector<8x8xf32>
    %65 = vector.multi_reduction <add>, %60, %cst_45 [2] : vector<8x8x8xf32> to vector<8x8xf32>
    %66 = vector.shape_cast %65 : vector<8x8xf32> to vector<8x8x1xf32>
    %cst_46 = arith.constant 8.000000e+00 : f32
    %67 = vector.broadcast %cst_46 : f32 to vector<8x8x1xf32>
    %68 = arith.divf %66, %67 : vector<8x8x1xf32>
    %cst_47 = arith.constant dense<0.000000e+00> : vector<8x1xf32>
    %69 = vector.multi_reduction <add>, %68, %cst_47 [0] : vector<8x8x1xf32> to vector<8x1xf32>
    %70 = vector.shape_cast %69 : vector<8x1xf32> to vector<1x8x1xf32>
    %cst_48 = arith.constant 8.000000e+00 : f32
    %71 = vector.broadcast %cst_48 : f32 to vector<1x8x1xf32>
    %72 = arith.divf %70, %71 : vector<1x8x1xf32>
    %73 = vector.broadcast %72 : vector<1x8x1xf32> to vector<8x8x8xf32>
    %74 = arith.subf %60, %73 : vector<8x8x8xf32>
    %75 = arith.mulf %74, %74 : vector<8x8x8xf32>
    %cst_49 = arith.constant dense<0.000000e+00> : vector<8x8xf32>
    %76 = vector.multi_reduction <add>, %75, %cst_49 [2] : vector<8x8x8xf32> to vector<8x8xf32>
    %77 = vector.shape_cast %76 : vector<8x8xf32> to vector<8x8x1xf32>
    %cst_50 = arith.constant 8.000000e+00 : f32
    %78 = vector.broadcast %cst_50 : f32 to vector<8x8x1xf32>
    %79 = arith.divf %77, %78 : vector<8x8x1xf32>
    %cst_51 = arith.constant dense<0.000000e+00> : vector<8x1xf32>
    %80 = vector.multi_reduction <add>, %79, %cst_51 [0] : vector<8x8x1xf32> to vector<8x1xf32>
    %81 = vector.shape_cast %80 : vector<8x1xf32> to vector<1x8x1xf32>
    %cst_52 = arith.constant 8.000000e+00 : f32
    %82 = vector.broadcast %cst_52 : f32 to vector<1x8x1xf32>
    %83 = arith.divf %81, %82 : vector<1x8x1xf32>
    %cst_53 = arith.constant 9.99999974E-6 : f32
    %84 = vector.broadcast %cst_53 : f32 to vector<1x8x1xf32>
    %85 = arith.addf %83, %84 : vector<1x8x1xf32>
    %86 = math.rsqrt %85 : vector<1x8x1xf32>
    %87 = vector.broadcast %72 : vector<1x8x1xf32> to vector<8x8x8xf32>
    %88 = arith.subf %60, %87 : vector<8x8x8xf32>
    %89 = vector.broadcast %86 : vector<1x8x1xf32> to vector<8x8x8xf32>
    %90 = arith.mulf %88, %89 : vector<8x8x8xf32>
    %91 = vector.shape_cast %62 : vector<8x1xf32> to vector<1x8x1xf32>
    %92 = vector.broadcast %91 : vector<1x8x1xf32> to vector<8x8x8xf32>
    %93 = arith.mulf %90, %92 : vector<8x8x8xf32>
    %94 = vector.shape_cast %64 : vector<8x1xf32> to vector<1x8x1xf32>
    %95 = vector.broadcast %94 : vector<1x8x1xf32> to vector<8x8x8xf32>
    %96 = arith.addf %93, %95 : vector<8x8x8xf32>
    %97 = vector.shape_cast %96 : vector<8x8x8xf32> to vector<64x8xf32>
    %c0_54 = arith.constant 0 : index
    %c0_55 = arith.constant 0 : index
    %c0_56 = arith.constant 0 : index
    %98 = vector.load %arg21[%c0_54, %c0_55, %c0_56] : memref<4x8x16xf32, #tpu.memory_space<vmem>>, vector<1x8x16xf32>
    %99 = vector.shape_cast %98 : vector<1x8x16xf32> to vector<8x16xf32>
    %cst_57 = arith.constant dense<0.000000e+00> : vector<64x16xf32>
    %100 = tpu.matmul %97, %99, %cst_57 {dimension_numbers = #tpu.dot_dimension_numbers<[1], [0], [0], [1], [0, 0, 1, 1], [], []>} : vector<64x8xf32>, vector<8x16xf32>, vector<64x16xf32> -> vector<64x16xf32>
    %c0_58 = arith.constant 0 : index
    %c0_59 = arith.constant 0 : index
    %c0_60 = arith.constant 0 : index
    %101 = vector.load %arg22[%c0_58, %c0_59, %c0_60] : memref<4x1x16xf32, #tpu.memory_space<vmem>>, vector<1x1x16xf32>
    %102 = vector.shape_cast %101 : vector<1x1x16xf32> to vector<1x16xf32>
    %103 = vector.broadcast %102 : vector<1x16xf32> to vector<64x16xf32>
    %104 = arith.addf %100, %103 : vector<64x16xf32>
    %cst_61 = arith.constant 0.000000e+00 : f32
    %105 = vector.broadcast %cst_61 : f32 to vector<64x16xf32>
    %106 = arith.maximumf %104, %105 : vector<64x16xf32>
    %c0_62 = arith.constant 0 : index
    %c0_63 = arith.constant 0 : index
    %c0_64 = arith.constant 0 : index
    %107 = vector.load %arg23[%c0_62, %c0_63, %c0_64] : memref<4x16x8xf32, #tpu.memory_space<vmem>>, vector<1x16x8xf32>
    %108 = vector.shape_cast %107 : vector<1x16x8xf32> to vector<16x8xf32>
    %cst_65 = arith.constant dense<0.000000e+00> : vector<64x8xf32>
    %109 = tpu.matmul %106, %108, %cst_65 {dimension_numbers = #tpu.dot_dimension_numbers<[1], [0], [0], [1], [0, 0, 1, 1], [], []>} : vector<64x16xf32>, vector<16x8xf32>, vector<64x8xf32> -> vector<64x8xf32>
    %c0_66 = arith.constant 0 : index
    %c0_67 = arith.constant 0 : index
    %c0_68 = arith.constant 0 : index
    %110 = vector.load %arg24[%c0_66, %c0_67, %c0_68] : memref<4x1x8xf32, #tpu.memory_space<vmem>>, vector<1x1x8xf32>
    %111 = vector.shape_cast %110 : vector<1x1x8xf32> to vector<1x8xf32>
    %112 = vector.broadcast %111 : vector<1x8xf32> to vector<64x8xf32>
    %113 = arith.addf %109, %112 : vector<64x8xf32>
    %114 = arith.addf %97, %113 : vector<64x8xf32>
    %115 = vector.shape_cast %114 : vector<64x8xf32> to vector<8x8x8xf32>
    %c0_69 = arith.constant 0 : index
    %c0_70 = arith.constant 0 : index
    %c0_71 = arith.constant 0 : index
    %116 = vector.load %arg19[%c0_69, %c0_70, %c0_71] : memref<4x8x1xf32, #tpu.memory_space<vmem>>, vector<1x8x1xf32>
    %117 = vector.shape_cast %116 : vector<1x8x1xf32> to vector<8x1xf32>
    %c0_72 = arith.constant 0 : index
    %c0_73 = arith.constant 0 : index
    %c0_74 = arith.constant 0 : index
    %118 = vector.load %arg20[%c0_72, %c0_73, %c0_74] : memref<4x8x1xf32, #tpu.memory_space<vmem>>, vector<1x8x1xf32>
    %119 = vector.shape_cast %118 : vector<1x8x1xf32> to vector<8x1xf32>
    %cst_75 = arith.constant dense<0.000000e+00> : vector<8x8xf32>
    %120 = vector.multi_reduction <add>, %115, %cst_75 [2] : vector<8x8x8xf32> to vector<8x8xf32>
    %121 = vector.shape_cast %120 : vector<8x8xf32> to vector<8x8x1xf32>
    %cst_76 = arith.constant 8.000000e+00 : f32
    %122 = vector.broadcast %cst_76 : f32 to vector<8x8x1xf32>
    %123 = arith.divf %121, %122 : vector<8x8x1xf32>
    %cst_77 = arith.constant dense<0.000000e+00> : vector<8x1xf32>
    %124 = vector.multi_reduction <add>, %123, %cst_77 [0] : vector<8x8x1xf32> to vector<8x1xf32>
    %125 = vector.shape_cast %124 : vector<8x1xf32> to vector<1x8x1xf32>
    %cst_78 = arith.constant 8.000000e+00 : f32
    %126 = vector.broadcast %cst_78 : f32 to vector<1x8x1xf32>
    %127 = arith.divf %125, %126 : vector<1x8x1xf32>
    %128 = vector.broadcast %127 : vector<1x8x1xf32> to vector<8x8x8xf32>
    %129 = arith.subf %115, %128 : vector<8x8x8xf32>
    %130 = arith.mulf %129, %129 : vector<8x8x8xf32>
    %cst_79 = arith.constant dense<0.000000e+00> : vector<8x8xf32>
    %131 = vector.multi_reduction <add>, %130, %cst_79 [2] : vector<8x8x8xf32> to vector<8x8xf32>
    %132 = vector.shape_cast %131 : vector<8x8xf32> to vector<8x8x1xf32>
    %cst_80 = arith.constant 8.000000e+00 : f32
    %133 = vector.broadcast %cst_80 : f32 to vector<8x8x1xf32>
    %134 = arith.divf %132, %133 : vector<8x8x1xf32>
    %cst_81 = arith.constant dense<0.000000e+00> : vector<8x1xf32>
    %135 = vector.multi_reduction <add>, %134, %cst_81 [0] : vector<8x8x1xf32> to vector<8x1xf32>
    %136 = vector.shape_cast %135 : vector<8x1xf32> to vector<1x8x1xf32>
    %cst_82 = arith.constant 8.000000e+00 : f32
    %137 = vector.broadcast %cst_82 : f32 to vector<1x8x1xf32>
    %138 = arith.divf %136, %137 : vector<1x8x1xf32>
    %cst_83 = arith.constant 9.99999974E-6 : f32
    %139 = vector.broadcast %cst_83 : f32 to vector<1x8x1xf32>
    %140 = arith.addf %138, %139 : vector<1x8x1xf32>
    %141 = math.rsqrt %140 : vector<1x8x1xf32>
    %142 = vector.broadcast %127 : vector<1x8x1xf32> to vector<8x8x8xf32>
    %143 = arith.subf %115, %142 : vector<8x8x8xf32>
    %144 = vector.broadcast %141 : vector<1x8x1xf32> to vector<8x8x8xf32>
    %145 = arith.mulf %143, %144 : vector<8x8x8xf32>
    %146 = vector.shape_cast %117 : vector<8x1xf32> to vector<1x8x1xf32>
    %147 = vector.broadcast %146 : vector<1x8x1xf32> to vector<8x8x8xf32>
    %148 = arith.mulf %145, %147 : vector<8x8x8xf32>
    %149 = vector.shape_cast %119 : vector<8x1xf32> to vector<1x8x1xf32>
    %150 = vector.broadcast %149 : vector<1x8x1xf32> to vector<8x8x8xf32>
    %151 = arith.addf %148, %150 : vector<8x8x8xf32>
    %152 = vector.shape_cast %151 : vector<8x8x8xf32> to vector<64x8xf32>
    %c1 = arith.constant 1 : index
    %c0_84 = arith.constant 0 : index
    %c0_85 = arith.constant 0 : index
    %153 = vector.load %arg13[%c1, %c0_84, %c0_85] : memref<4x8x24xf32, #tpu.memory_space<vmem>>, vector<1x8x24xf32>
    %154 = vector.shape_cast %153 : vector<1x8x24xf32> to vector<8x24xf32>
    %cst_86 = arith.constant dense<0.000000e+00> : vector<64x24xf32>
    %155 = tpu.matmul %152, %154, %cst_86 {dimension_numbers = #tpu.dot_dimension_numbers<[1], [0], [0], [1], [0, 0, 1, 1], [], []>} : vector<64x8xf32>, vector<8x24xf32>, vector<64x24xf32> -> vector<64x24xf32>
    %c1_87 = arith.constant 1 : index
    %c0_88 = arith.constant 0 : index
    %c0_89 = arith.constant 0 : index
    %156 = vector.load %arg14[%c1_87, %c0_88, %c0_89] : memref<4x1x24xf32, #tpu.memory_space<vmem>>, vector<1x1x24xf32>
    %157 = vector.shape_cast %156 : vector<1x1x24xf32> to vector<1x24xf32>
    %158 = vector.broadcast %157 : vector<1x24xf32> to vector<64x24xf32>
    %159 = arith.addf %155, %158 : vector<64x24xf32>
    %160 = vector.extract_strided_slice %159 {offsets = [0, 0], sizes = [64, 8], strides = [1, 1]} : vector<64x24xf32> to vector<64x8xf32>
    %161 = vector.extract_strided_slice %159 {offsets = [0, 8], sizes = [64, 8], strides = [1, 1]} : vector<64x24xf32> to vector<64x8xf32>
    %162 = vector.extract_strided_slice %159 {offsets = [0, 16], sizes = [64, 8], strides = [1, 1]} : vector<64x24xf32> to vector<64x8xf32>
    %c0_90 = arith.constant 0 : index
    %c0_91 = arith.constant 0 : index
    %163 = vector.load %arg5[%c0_90, %c0_91] : memref<64x64xf32, #tpu.memory_space<vmem>>, vector<64x64xf32>
    %cst_92 = arith.constant dense<0.000000e+00> : vector<64x8xf32>
    %164 = tpu.matmul %163, %160, %cst_92 {dimension_numbers = #tpu.dot_dimension_numbers<[1], [0], [0], [1], [0, 0, 1, 1], [], []>} : vector<64x64xf32>, vector<64x8xf32>, vector<64x8xf32> -> vector<64x8xf32>
    %c0_93 = arith.constant 0 : index
    %c0_94 = arith.constant 0 : index
    %165 = vector.load %arg6[%c0_93, %c0_94] : memref<64x64xf32, #tpu.memory_space<vmem>>, vector<64x64xf32>
    %cst_95 = arith.constant dense<0.000000e+00> : vector<64x8xf32>
    %166 = tpu.matmul %165, %161, %cst_95 {dimension_numbers = #tpu.dot_dimension_numbers<[1], [0], [0], [1], [0, 0, 1, 1], [], []>} : vector<64x64xf32>, vector<64x8xf32>, vector<64x8xf32> -> vector<64x8xf32>
    %167 = arith.mulf %164, %166 : vector<64x8xf32>
    %168 = vector.shape_cast %167 : vector<64x8xf32> to vector<8x8x8xf32>
    %cst_96 = arith.constant dense<0.000000e+00> : vector<8x8xf32>
    %169 = vector.multi_reduction <add>, %168, %cst_96 [1] : vector<8x8x8xf32> to vector<8x8xf32>
    %170 = vector.shape_cast %169 : vector<8x8xf32> to vector<8x1x8xf32>
    %171 = vector.shape_cast %170 : vector<8x1x8xf32> to vector<8x8xf32>
    %172 = vector.extract_strided_slice %16 {offsets = [0, 8], sizes = [8, 8], strides = [1, 1]} : vector<8x32xf32> to vector<8x8xf32>
    %173 = arith.addf %171, %172 : vector<8x8xf32>
    %cst_97 = arith.constant 0.000000e+00 : f32
    %174 = vector.broadcast %cst_97 : f32 to vector<8x8xf32>
    %175 = arith.cmpf oge, %173, %174 : vector<8x8xf32>
    %cst_98 = arith.constant 0.00999999977 : f32
    %176 = vector.broadcast %cst_98 : f32 to vector<8x8xf32>
    %177 = arith.mulf %176, %173 : vector<8x8xf32>
    %178 = arith.select %175, %173, %177 : vector<8x8xi1>, vector<8x8xf32>
    %c0_99 = arith.constant 0 : index
    %c0_100 = arith.constant 0 : index
    %179 = vector.load %arg4[%c0_99, %c0_100] : memref<64x8xf32, #tpu.memory_space<vmem>>, vector<64x8xf32>
    %cst_101 = arith.constant dense<0.000000e+00> : vector<64x8xf32>
    %180 = tpu.matmul %179, %178, %cst_101 {dimension_numbers = #tpu.dot_dimension_numbers<[1], [0], [0], [1], [0, 0, 1, 1], [], []>} : vector<64x8xf32>, vector<8x8xf32>, vector<64x8xf32> -> vector<64x8xf32>
    %181 = vector.shape_cast %180 : vector<64x8xf32> to vector<8x8x8xf32>
    %cst_102 = arith.constant dense<0xFF800000> : vector<8x8xf32>
    %182 = vector.multi_reduction <maximumf>, %181, %cst_102 [1] : vector<8x8x8xf32> to vector<8x8xf32>
    %183 = vector.shape_cast %182 : vector<8x8xf32> to vector<8x1x8xf32>
    %184 = vector.broadcast %183 : vector<8x1x8xf32> to vector<8x8x8xf32>
    %185 = arith.subf %181, %184 : vector<8x8x8xf32>
    %186 = math.exp %185 : vector<8x8x8xf32>
    %cst_103 = arith.constant dense<0.000000e+00> : vector<8x8xf32>
    %187 = vector.multi_reduction <add>, %186, %cst_103 [1] : vector<8x8x8xf32> to vector<8x8xf32>
    %188 = vector.shape_cast %187 : vector<8x8xf32> to vector<8x1x8xf32>
    %189 = vector.broadcast %188 : vector<8x1x8xf32> to vector<8x8x8xf32>
    %190 = arith.divf %186, %189 : vector<8x8x8xf32>
    %191 = vector.shape_cast %190 : vector<8x8x8xf32> to vector<64x8xf32>
    %c0_104 = arith.constant 0 : index
    %c0_105 = arith.constant 0 : index
    %192 = vector.load %arg7[%c0_104, %c0_105] : memref<8x64xf32, #tpu.memory_space<vmem>>, vector<8x64xf32>
    %cst_106 = arith.constant dense<0.000000e+00> : vector<64x64xf32>
    %193 = tpu.matmul %191, %192, %cst_106 {dimension_numbers = #tpu.dot_dimension_numbers<[1], [0], [0], [1], [0, 0, 1, 1], [], []>} : vector<64x8xf32>, vector<8x64xf32>, vector<64x64xf32> -> vector<64x64xf32>
    %c0_107 = arith.constant 0 : index
    %c0_108 = arith.constant 0 : index
    %194 = vector.load %arg8[%c0_107, %c0_108] : memref<64x64xf32, #tpu.memory_space<vmem>>, vector<64x64xf32>
    %195 = arith.mulf %193, %194 : vector<64x64xf32>
    %cst_109 = arith.constant dense<0.000000e+00> : vector<64x8xf32>
    %196 = tpu.matmul %195, %162, %cst_109 {dimension_numbers = #tpu.dot_dimension_numbers<[1], [0], [0], [1], [0, 0, 1, 1], [], []>} : vector<64x64xf32>, vector<64x8xf32>, vector<64x8xf32> -> vector<64x8xf32>
    %197 = arith.addf %152, %196 : vector<64x8xf32>
    %198 = vector.shape_cast %197 : vector<64x8xf32> to vector<8x8x8xf32>
    %c1_110 = arith.constant 1 : index
    %c0_111 = arith.constant 0 : index
    %c0_112 = arith.constant 0 : index
    %199 = vector.load %arg17[%c1_110, %c0_111, %c0_112] : memref<4x8x1xf32, #tpu.memory_space<vmem>>, vector<1x8x1xf32>
    %200 = vector.shape_cast %199 : vector<1x8x1xf32> to vector<8x1xf32>
    %c1_113 = arith.constant 1 : index
    %c0_114 = arith.constant 0 : index
    %c0_115 = arith.constant 0 : index
    %201 = vector.load %arg18[%c1_113, %c0_114, %c0_115] : memref<4x8x1xf32, #tpu.memory_space<vmem>>, vector<1x8x1xf32>
    %202 = vector.shape_cast %201 : vector<1x8x1xf32> to vector<8x1xf32>
    %cst_116 = arith.constant dense<0.000000e+00> : vector<8x8xf32>
    %203 = vector.multi_reduction <add>, %198, %cst_116 [2] : vector<8x8x8xf32> to vector<8x8xf32>
    %204 = vector.shape_cast %203 : vector<8x8xf32> to vector<8x8x1xf32>
    %cst_117 = arith.constant 8.000000e+00 : f32
    %205 = vector.broadcast %cst_117 : f32 to vector<8x8x1xf32>
    %206 = arith.divf %204, %205 : vector<8x8x1xf32>
    %cst_118 = arith.constant dense<0.000000e+00> : vector<8x1xf32>
    %207 = vector.multi_reduction <add>, %206, %cst_118 [0] : vector<8x8x1xf32> to vector<8x1xf32>
    %208 = vector.shape_cast %207 : vector<8x1xf32> to vector<1x8x1xf32>
    %cst_119 = arith.constant 8.000000e+00 : f32
    %209 = vector.broadcast %cst_119 : f32 to vector<1x8x1xf32>
    %210 = arith.divf %208, %209 : vector<1x8x1xf32>
    %211 = vector.broadcast %210 : vector<1x8x1xf32> to vector<8x8x8xf32>
    %212 = arith.subf %198, %211 : vector<8x8x8xf32>
    %213 = arith.mulf %212, %212 : vector<8x8x8xf32>
    %cst_120 = arith.constant dense<0.000000e+00> : vector<8x8xf32>
    %214 = vector.multi_reduction <add>, %213, %cst_120 [2] : vector<8x8x8xf32> to vector<8x8xf32>
    %215 = vector.shape_cast %214 : vector<8x8xf32> to vector<8x8x1xf32>
    %cst_121 = arith.constant 8.000000e+00 : f32
    %216 = vector.broadcast %cst_121 : f32 to vector<8x8x1xf32>
    %217 = arith.divf %215, %216 : vector<8x8x1xf32>
    %cst_122 = arith.constant dense<0.000000e+00> : vector<8x1xf32>
    %218 = vector.multi_reduction <add>, %217, %cst_122 [0] : vector<8x8x1xf32> to vector<8x1xf32>
    %219 = vector.shape_cast %218 : vector<8x1xf32> to vector<1x8x1xf32>
    %cst_123 = arith.constant 8.000000e+00 : f32
    %220 = vector.broadcast %cst_123 : f32 to vector<1x8x1xf32>
    %221 = arith.divf %219, %220 : vector<1x8x1xf32>
    %cst_124 = arith.constant 9.99999974E-6 : f32
    %222 = vector.broadcast %cst_124 : f32 to vector<1x8x1xf32>
    %223 = arith.addf %221, %222 : vector<1x8x1xf32>
    %224 = math.rsqrt %223 : vector<1x8x1xf32>
    %225 = vector.broadcast %210 : vector<1x8x1xf32> to vector<8x8x8xf32>
    %226 = arith.subf %198, %225 : vector<8x8x8xf32>
    %227 = vector.broadcast %224 : vector<1x8x1xf32> to vector<8x8x8xf32>
    %228 = arith.mulf %226, %227 : vector<8x8x8xf32>
    %229 = vector.shape_cast %200 : vector<8x1xf32> to vector<1x8x1xf32>
    %230 = vector.broadcast %229 : vector<1x8x1xf32> to vector<8x8x8xf32>
    %231 = arith.mulf %228, %230 : vector<8x8x8xf32>
    %232 = vector.shape_cast %202 : vector<8x1xf32> to vector<1x8x1xf32>
    %233 = vector.broadcast %232 : vector<1x8x1xf32> to vector<8x8x8xf32>
    %234 = arith.addf %231, %233 : vector<8x8x8xf32>
    %235 = vector.shape_cast %234 : vector<8x8x8xf32> to vector<64x8xf32>
    %c1_125 = arith.constant 1 : index
    %c0_126 = arith.constant 0 : index
    %c0_127 = arith.constant 0 : index
    %236 = vector.load %arg21[%c1_125, %c0_126, %c0_127] : memref<4x8x16xf32, #tpu.memory_space<vmem>>, vector<1x8x16xf32>
    %237 = vector.shape_cast %236 : vector<1x8x16xf32> to vector<8x16xf32>
    %cst_128 = arith.constant dense<0.000000e+00> : vector<64x16xf32>
    %238 = tpu.matmul %235, %237, %cst_128 {dimension_numbers = #tpu.dot_dimension_numbers<[1], [0], [0], [1], [0, 0, 1, 1], [], []>} : vector<64x8xf32>, vector<8x16xf32>, vector<64x16xf32> -> vector<64x16xf32>
    %c1_129 = arith.constant 1 : index
    %c0_130 = arith.constant 0 : index
    %c0_131 = arith.constant 0 : index
    %239 = vector.load %arg22[%c1_129, %c0_130, %c0_131] : memref<4x1x16xf32, #tpu.memory_space<vmem>>, vector<1x1x16xf32>
    %240 = vector.shape_cast %239 : vector<1x1x16xf32> to vector<1x16xf32>
    %241 = vector.broadcast %240 : vector<1x16xf32> to vector<64x16xf32>
    %242 = arith.addf %238, %241 : vector<64x16xf32>
    %cst_132 = arith.constant 0.000000e+00 : f32
    %243 = vector.broadcast %cst_132 : f32 to vector<64x16xf32>
    %244 = arith.maximumf %242, %243 : vector<64x16xf32>
    %c1_133 = arith.constant 1 : index
    %c0_134 = arith.constant 0 : index
    %c0_135 = arith.constant 0 : index
    %245 = vector.load %arg23[%c1_133, %c0_134, %c0_135] : memref<4x16x8xf32, #tpu.memory_space<vmem>>, vector<1x16x8xf32>
    %246 = vector.shape_cast %245 : vector<1x16x8xf32> to vector<16x8xf32>
    %cst_136 = arith.constant dense<0.000000e+00> : vector<64x8xf32>
    %247 = tpu.matmul %244, %246, %cst_136 {dimension_numbers = #tpu.dot_dimension_numbers<[1], [0], [0], [1], [0, 0, 1, 1], [], []>} : vector<64x16xf32>, vector<16x8xf32>, vector<64x8xf32> -> vector<64x8xf32>
    %c1_137 = arith.constant 1 : index
    %c0_138 = arith.constant 0 : index
    %c0_139 = arith.constant 0 : index
    %248 = vector.load %arg24[%c1_137, %c0_138, %c0_139] : memref<4x1x8xf32, #tpu.memory_space<vmem>>, vector<1x1x8xf32>
    %249 = vector.shape_cast %248 : vector<1x1x8xf32> to vector<1x8xf32>
    %250 = vector.broadcast %249 : vector<1x8xf32> to vector<64x8xf32>
    %251 = arith.addf %247, %250 : vector<64x8xf32>
    %252 = arith.addf %235, %251 : vector<64x8xf32>
    %253 = vector.shape_cast %252 : vector<64x8xf32> to vector<8x8x8xf32>
    %c1_140 = arith.constant 1 : index
    %c0_141 = arith.constant 0 : index
    %c0_142 = arith.constant 0 : index
    %254 = vector.load %arg19[%c1_140, %c0_141, %c0_142] : memref<4x8x1xf32, #tpu.memory_space<vmem>>, vector<1x8x1xf32>
    %255 = vector.shape_cast %254 : vector<1x8x1xf32> to vector<8x1xf32>
    %c1_143 = arith.constant 1 : index
    %c0_144 = arith.constant 0 : index
    %c0_145 = arith.constant 0 : index
    %256 = vector.load %arg20[%c1_143, %c0_144, %c0_145] : memref<4x8x1xf32, #tpu.memory_space<vmem>>, vector<1x8x1xf32>
    %257 = vector.shape_cast %256 : vector<1x8x1xf32> to vector<8x1xf32>
    %cst_146 = arith.constant dense<0.000000e+00> : vector<8x8xf32>
    %258 = vector.multi_reduction <add>, %253, %cst_146 [2] : vector<8x8x8xf32> to vector<8x8xf32>
    %259 = vector.shape_cast %258 : vector<8x8xf32> to vector<8x8x1xf32>
    %cst_147 = arith.constant 8.000000e+00 : f32
    %260 = vector.broadcast %cst_147 : f32 to vector<8x8x1xf32>
    %261 = arith.divf %259, %260 : vector<8x8x1xf32>
    %cst_148 = arith.constant dense<0.000000e+00> : vector<8x1xf32>
    %262 = vector.multi_reduction <add>, %261, %cst_148 [0] : vector<8x8x1xf32> to vector<8x1xf32>
    %263 = vector.shape_cast %262 : vector<8x1xf32> to vector<1x8x1xf32>
    %cst_149 = arith.constant 8.000000e+00 : f32
    %264 = vector.broadcast %cst_149 : f32 to vector<1x8x1xf32>
    %265 = arith.divf %263, %264 : vector<1x8x1xf32>
    %266 = vector.broadcast %265 : vector<1x8x1xf32> to vector<8x8x8xf32>
    %267 = arith.subf %253, %266 : vector<8x8x8xf32>
    %268 = arith.mulf %267, %267 : vector<8x8x8xf32>
    %cst_150 = arith.constant dense<0.000000e+00> : vector<8x8xf32>
    %269 = vector.multi_reduction <add>, %268, %cst_150 [2] : vector<8x8x8xf32> to vector<8x8xf32>
    %270 = vector.shape_cast %269 : vector<8x8xf32> to vector<8x8x1xf32>
    %cst_151 = arith.constant 8.000000e+00 : f32
    %271 = vector.broadcast %cst_151 : f32 to vector<8x8x1xf32>
    %272 = arith.divf %270, %271 : vector<8x8x1xf32>
    %cst_152 = arith.constant dense<0.000000e+00> : vector<8x1xf32>
    %273 = vector.multi_reduction <add>, %272, %cst_152 [0] : vector<8x8x1xf32> to vector<8x1xf32>
    %274 = vector.shape_cast %273 : vector<8x1xf32> to vector<1x8x1xf32>
    %cst_153 = arith.constant 8.000000e+00 : f32
    %275 = vector.broadcast %cst_153 : f32 to vector<1x8x1xf32>
    %276 = arith.divf %274, %275 : vector<1x8x1xf32>
    %cst_154 = arith.constant 9.99999974E-6 : f32
    %277 = vector.broadcast %cst_154 : f32 to vector<1x8x1xf32>
    %278 = arith.addf %276, %277 : vector<1x8x1xf32>
    %279 = math.rsqrt %278 : vector<1x8x1xf32>
    %280 = vector.broadcast %265 : vector<1x8x1xf32> to vector<8x8x8xf32>
    %281 = arith.subf %253, %280 : vector<8x8x8xf32>
    %282 = vector.broadcast %279 : vector<1x8x1xf32> to vector<8x8x8xf32>
    %283 = arith.mulf %281, %282 : vector<8x8x8xf32>
    %284 = vector.shape_cast %255 : vector<8x1xf32> to vector<1x8x1xf32>
    %285 = vector.broadcast %284 : vector<1x8x1xf32> to vector<8x8x8xf32>
    %286 = arith.mulf %283, %285 : vector<8x8x8xf32>
    %287 = vector.shape_cast %257 : vector<8x1xf32> to vector<1x8x1xf32>
    %288 = vector.broadcast %287 : vector<1x8x1xf32> to vector<8x8x8xf32>
    %289 = arith.addf %286, %288 : vector<8x8x8xf32>
    %290 = vector.shape_cast %289 : vector<8x8x8xf32> to vector<64x8xf32>
    %c2 = arith.constant 2 : index
    %c0_155 = arith.constant 0 : index
    %c0_156 = arith.constant 0 : index
    %291 = vector.load %arg13[%c2, %c0_155, %c0_156] : memref<4x8x24xf32, #tpu.memory_space<vmem>>, vector<1x8x24xf32>
    %292 = vector.shape_cast %291 : vector<1x8x24xf32> to vector<8x24xf32>
    %cst_157 = arith.constant dense<0.000000e+00> : vector<64x24xf32>
    %293 = tpu.matmul %290, %292, %cst_157 {dimension_numbers = #tpu.dot_dimension_numbers<[1], [0], [0], [1], [0, 0, 1, 1], [], []>} : vector<64x8xf32>, vector<8x24xf32>, vector<64x24xf32> -> vector<64x24xf32>
    %c2_158 = arith.constant 2 : index
    %c0_159 = arith.constant 0 : index
    %c0_160 = arith.constant 0 : index
    %294 = vector.load %arg14[%c2_158, %c0_159, %c0_160] : memref<4x1x24xf32, #tpu.memory_space<vmem>>, vector<1x1x24xf32>
    %295 = vector.shape_cast %294 : vector<1x1x24xf32> to vector<1x24xf32>
    %296 = vector.broadcast %295 : vector<1x24xf32> to vector<64x24xf32>
    %297 = arith.addf %293, %296 : vector<64x24xf32>
    %298 = vector.extract_strided_slice %297 {offsets = [0, 0], sizes = [64, 8], strides = [1, 1]} : vector<64x24xf32> to vector<64x8xf32>
    %299 = vector.extract_strided_slice %297 {offsets = [0, 8], sizes = [64, 8], strides = [1, 1]} : vector<64x24xf32> to vector<64x8xf32>
    %300 = vector.extract_strided_slice %297 {offsets = [0, 16], sizes = [64, 8], strides = [1, 1]} : vector<64x24xf32> to vector<64x8xf32>
    %c0_161 = arith.constant 0 : index
    %c0_162 = arith.constant 0 : index
    %301 = vector.load %arg5[%c0_161, %c0_162] : memref<64x64xf32, #tpu.memory_space<vmem>>, vector<64x64xf32>
    %cst_163 = arith.constant dense<0.000000e+00> : vector<64x8xf32>
    %302 = tpu.matmul %301, %298, %cst_163 {dimension_numbers = #tpu.dot_dimension_numbers<[1], [0], [0], [1], [0, 0, 1, 1], [], []>} : vector<64x64xf32>, vector<64x8xf32>, vector<64x8xf32> -> vector<64x8xf32>
    %c0_164 = arith.constant 0 : index
    %c0_165 = arith.constant 0 : index
    %303 = vector.load %arg6[%c0_164, %c0_165] : memref<64x64xf32, #tpu.memory_space<vmem>>, vector<64x64xf32>
    %cst_166 = arith.constant dense<0.000000e+00> : vector<64x8xf32>
    %304 = tpu.matmul %303, %299, %cst_166 {dimension_numbers = #tpu.dot_dimension_numbers<[1], [0], [0], [1], [0, 0, 1, 1], [], []>} : vector<64x64xf32>, vector<64x8xf32>, vector<64x8xf32> -> vector<64x8xf32>
    %305 = arith.mulf %302, %304 : vector<64x8xf32>
    %306 = vector.shape_cast %305 : vector<64x8xf32> to vector<8x8x8xf32>
    %cst_167 = arith.constant dense<0.000000e+00> : vector<8x8xf32>
    %307 = vector.multi_reduction <add>, %306, %cst_167 [1] : vector<8x8x8xf32> to vector<8x8xf32>
    %308 = vector.shape_cast %307 : vector<8x8xf32> to vector<8x1x8xf32>
    %309 = vector.shape_cast %308 : vector<8x1x8xf32> to vector<8x8xf32>
    %310 = vector.extract_strided_slice %16 {offsets = [0, 16], sizes = [8, 8], strides = [1, 1]} : vector<8x32xf32> to vector<8x8xf32>
    %311 = arith.addf %309, %310 : vector<8x8xf32>
    %cst_168 = arith.constant 0.000000e+00 : f32
    %312 = vector.broadcast %cst_168 : f32 to vector<8x8xf32>
    %313 = arith.cmpf oge, %311, %312 : vector<8x8xf32>
    %cst_169 = arith.constant 0.00999999977 : f32
    %314 = vector.broadcast %cst_169 : f32 to vector<8x8xf32>
    %315 = arith.mulf %314, %311 : vector<8x8xf32>
    %316 = arith.select %313, %311, %315 : vector<8x8xi1>, vector<8x8xf32>
    %c0_170 = arith.constant 0 : index
    %c0_171 = arith.constant 0 : index
    %317 = vector.load %arg4[%c0_170, %c0_171] : memref<64x8xf32, #tpu.memory_space<vmem>>, vector<64x8xf32>
    %cst_172 = arith.constant dense<0.000000e+00> : vector<64x8xf32>
    %318 = tpu.matmul %317, %316, %cst_172 {dimension_numbers = #tpu.dot_dimension_numbers<[1], [0], [0], [1], [0, 0, 1, 1], [], []>} : vector<64x8xf32>, vector<8x8xf32>, vector<64x8xf32> -> vector<64x8xf32>
    %319 = vector.shape_cast %318 : vector<64x8xf32> to vector<8x8x8xf32>
    %cst_173 = arith.constant dense<0xFF800000> : vector<8x8xf32>
    %320 = vector.multi_reduction <maximumf>, %319, %cst_173 [1] : vector<8x8x8xf32> to vector<8x8xf32>
    %321 = vector.shape_cast %320 : vector<8x8xf32> to vector<8x1x8xf32>
    %322 = vector.broadcast %321 : vector<8x1x8xf32> to vector<8x8x8xf32>
    %323 = arith.subf %319, %322 : vector<8x8x8xf32>
    %324 = math.exp %323 : vector<8x8x8xf32>
    %cst_174 = arith.constant dense<0.000000e+00> : vector<8x8xf32>
    %325 = vector.multi_reduction <add>, %324, %cst_174 [1] : vector<8x8x8xf32> to vector<8x8xf32>
    %326 = vector.shape_cast %325 : vector<8x8xf32> to vector<8x1x8xf32>
    %327 = vector.broadcast %326 : vector<8x1x8xf32> to vector<8x8x8xf32>
    %328 = arith.divf %324, %327 : vector<8x8x8xf32>
    %329 = vector.shape_cast %328 : vector<8x8x8xf32> to vector<64x8xf32>
    %c0_175 = arith.constant 0 : index
    %c0_176 = arith.constant 0 : index
    %330 = vector.load %arg7[%c0_175, %c0_176] : memref<8x64xf32, #tpu.memory_space<vmem>>, vector<8x64xf32>
    %cst_177 = arith.constant dense<0.000000e+00> : vector<64x64xf32>
    %331 = tpu.matmul %329, %330, %cst_177 {dimension_numbers = #tpu.dot_dimension_numbers<[1], [0], [0], [1], [0, 0, 1, 1], [], []>} : vector<64x8xf32>, vector<8x64xf32>, vector<64x64xf32> -> vector<64x64xf32>
    %c0_178 = arith.constant 0 : index
    %c0_179 = arith.constant 0 : index
    %332 = vector.load %arg8[%c0_178, %c0_179] : memref<64x64xf32, #tpu.memory_space<vmem>>, vector<64x64xf32>
    %333 = arith.mulf %331, %332 : vector<64x64xf32>
    %cst_180 = arith.constant dense<0.000000e+00> : vector<64x8xf32>
    %334 = tpu.matmul %333, %300, %cst_180 {dimension_numbers = #tpu.dot_dimension_numbers<[1], [0], [0], [1], [0, 0, 1, 1], [], []>} : vector<64x64xf32>, vector<64x8xf32>, vector<64x8xf32> -> vector<64x8xf32>
    %335 = arith.addf %290, %334 : vector<64x8xf32>
    %336 = vector.shape_cast %335 : vector<64x8xf32> to vector<8x8x8xf32>
    %c2_181 = arith.constant 2 : index
    %c0_182 = arith.constant 0 : index
    %c0_183 = arith.constant 0 : index
    %337 = vector.load %arg17[%c2_181, %c0_182, %c0_183] : memref<4x8x1xf32, #tpu.memory_space<vmem>>, vector<1x8x1xf32>
    %338 = vector.shape_cast %337 : vector<1x8x1xf32> to vector<8x1xf32>
    %c2_184 = arith.constant 2 : index
    %c0_185 = arith.constant 0 : index
    %c0_186 = arith.constant 0 : index
    %339 = vector.load %arg18[%c2_184, %c0_185, %c0_186] : memref<4x8x1xf32, #tpu.memory_space<vmem>>, vector<1x8x1xf32>
    %340 = vector.shape_cast %339 : vector<1x8x1xf32> to vector<8x1xf32>
    %cst_187 = arith.constant dense<0.000000e+00> : vector<8x8xf32>
    %341 = vector.multi_reduction <add>, %336, %cst_187 [2] : vector<8x8x8xf32> to vector<8x8xf32>
    %342 = vector.shape_cast %341 : vector<8x8xf32> to vector<8x8x1xf32>
    %cst_188 = arith.constant 8.000000e+00 : f32
    %343 = vector.broadcast %cst_188 : f32 to vector<8x8x1xf32>
    %344 = arith.divf %342, %343 : vector<8x8x1xf32>
    %cst_189 = arith.constant dense<0.000000e+00> : vector<8x1xf32>
    %345 = vector.multi_reduction <add>, %344, %cst_189 [0] : vector<8x8x1xf32> to vector<8x1xf32>
    %346 = vector.shape_cast %345 : vector<8x1xf32> to vector<1x8x1xf32>
    %cst_190 = arith.constant 8.000000e+00 : f32
    %347 = vector.broadcast %cst_190 : f32 to vector<1x8x1xf32>
    %348 = arith.divf %346, %347 : vector<1x8x1xf32>
    %349 = vector.broadcast %348 : vector<1x8x1xf32> to vector<8x8x8xf32>
    %350 = arith.subf %336, %349 : vector<8x8x8xf32>
    %351 = arith.mulf %350, %350 : vector<8x8x8xf32>
    %cst_191 = arith.constant dense<0.000000e+00> : vector<8x8xf32>
    %352 = vector.multi_reduction <add>, %351, %cst_191 [2] : vector<8x8x8xf32> to vector<8x8xf32>
    %353 = vector.shape_cast %352 : vector<8x8xf32> to vector<8x8x1xf32>
    %cst_192 = arith.constant 8.000000e+00 : f32
    %354 = vector.broadcast %cst_192 : f32 to vector<8x8x1xf32>
    %355 = arith.divf %353, %354 : vector<8x8x1xf32>
    %cst_193 = arith.constant dense<0.000000e+00> : vector<8x1xf32>
    %356 = vector.multi_reduction <add>, %355, %cst_193 [0] : vector<8x8x1xf32> to vector<8x1xf32>
    %357 = vector.shape_cast %356 : vector<8x1xf32> to vector<1x8x1xf32>
    %cst_194 = arith.constant 8.000000e+00 : f32
    %358 = vector.broadcast %cst_194 : f32 to vector<1x8x1xf32>
    %359 = arith.divf %357, %358 : vector<1x8x1xf32>
    %cst_195 = arith.constant 9.99999974E-6 : f32
    %360 = vector.broadcast %cst_195 : f32 to vector<1x8x1xf32>
    %361 = arith.addf %359, %360 : vector<1x8x1xf32>
    %362 = math.rsqrt %361 : vector<1x8x1xf32>
    %363 = vector.broadcast %348 : vector<1x8x1xf32> to vector<8x8x8xf32>
    %364 = arith.subf %336, %363 : vector<8x8x8xf32>
    %365 = vector.broadcast %362 : vector<1x8x1xf32> to vector<8x8x8xf32>
    %366 = arith.mulf %364, %365 : vector<8x8x8xf32>
    %367 = vector.shape_cast %338 : vector<8x1xf32> to vector<1x8x1xf32>
    %368 = vector.broadcast %367 : vector<1x8x1xf32> to vector<8x8x8xf32>
    %369 = arith.mulf %366, %368 : vector<8x8x8xf32>
    %370 = vector.shape_cast %340 : vector<8x1xf32> to vector<1x8x1xf32>
    %371 = vector.broadcast %370 : vector<1x8x1xf32> to vector<8x8x8xf32>
    %372 = arith.addf %369, %371 : vector<8x8x8xf32>
    %373 = vector.shape_cast %372 : vector<8x8x8xf32> to vector<64x8xf32>
    %c2_196 = arith.constant 2 : index
    %c0_197 = arith.constant 0 : index
    %c0_198 = arith.constant 0 : index
    %374 = vector.load %arg21[%c2_196, %c0_197, %c0_198] : memref<4x8x16xf32, #tpu.memory_space<vmem>>, vector<1x8x16xf32>
    %375 = vector.shape_cast %374 : vector<1x8x16xf32> to vector<8x16xf32>
    %cst_199 = arith.constant dense<0.000000e+00> : vector<64x16xf32>
    %376 = tpu.matmul %373, %375, %cst_199 {dimension_numbers = #tpu.dot_dimension_numbers<[1], [0], [0], [1], [0, 0, 1, 1], [], []>} : vector<64x8xf32>, vector<8x16xf32>, vector<64x16xf32> -> vector<64x16xf32>
    %c2_200 = arith.constant 2 : index
    %c0_201 = arith.constant 0 : index
    %c0_202 = arith.constant 0 : index
    %377 = vector.load %arg22[%c2_200, %c0_201, %c0_202] : memref<4x1x16xf32, #tpu.memory_space<vmem>>, vector<1x1x16xf32>
    %378 = vector.shape_cast %377 : vector<1x1x16xf32> to vector<1x16xf32>
    %379 = vector.broadcast %378 : vector<1x16xf32> to vector<64x16xf32>
    %380 = arith.addf %376, %379 : vector<64x16xf32>
    %cst_203 = arith.constant 0.000000e+00 : f32
    %381 = vector.broadcast %cst_203 : f32 to vector<64x16xf32>
    %382 = arith.maximumf %380, %381 : vector<64x16xf32>
    %c2_204 = arith.constant 2 : index
    %c0_205 = arith.constant 0 : index
    %c0_206 = arith.constant 0 : index
    %383 = vector.load %arg23[%c2_204, %c0_205, %c0_206] : memref<4x16x8xf32, #tpu.memory_space<vmem>>, vector<1x16x8xf32>
    %384 = vector.shape_cast %383 : vector<1x16x8xf32> to vector<16x8xf32>
    %cst_207 = arith.constant dense<0.000000e+00> : vector<64x8xf32>
    %385 = tpu.matmul %382, %384, %cst_207 {dimension_numbers = #tpu.dot_dimension_numbers<[1], [0], [0], [1], [0, 0, 1, 1], [], []>} : vector<64x16xf32>, vector<16x8xf32>, vector<64x8xf32> -> vector<64x8xf32>
    %c2_208 = arith.constant 2 : index
    %c0_209 = arith.constant 0 : index
    %c0_210 = arith.constant 0 : index
    %386 = vector.load %arg24[%c2_208, %c0_209, %c0_210] : memref<4x1x8xf32, #tpu.memory_space<vmem>>, vector<1x1x8xf32>
    %387 = vector.shape_cast %386 : vector<1x1x8xf32> to vector<1x8xf32>
    %388 = vector.broadcast %387 : vector<1x8xf32> to vector<64x8xf32>
    %389 = arith.addf %385, %388 : vector<64x8xf32>
    %390 = arith.addf %373, %389 : vector<64x8xf32>
    %391 = vector.shape_cast %390 : vector<64x8xf32> to vector<8x8x8xf32>
    %c2_211 = arith.constant 2 : index
    %c0_212 = arith.constant 0 : index
    %c0_213 = arith.constant 0 : index
    %392 = vector.load %arg19[%c2_211, %c0_212, %c0_213] : memref<4x8x1xf32, #tpu.memory_space<vmem>>, vector<1x8x1xf32>
    %393 = vector.shape_cast %392 : vector<1x8x1xf32> to vector<8x1xf32>
    %c2_214 = arith.constant 2 : index
    %c0_215 = arith.constant 0 : index
    %c0_216 = arith.constant 0 : index
    %394 = vector.load %arg20[%c2_214, %c0_215, %c0_216] : memref<4x8x1xf32, #tpu.memory_space<vmem>>, vector<1x8x1xf32>
    %395 = vector.shape_cast %394 : vector<1x8x1xf32> to vector<8x1xf32>
    %cst_217 = arith.constant dense<0.000000e+00> : vector<8x8xf32>
    %396 = vector.multi_reduction <add>, %391, %cst_217 [2] : vector<8x8x8xf32> to vector<8x8xf32>
    %397 = vector.shape_cast %396 : vector<8x8xf32> to vector<8x8x1xf32>
    %cst_218 = arith.constant 8.000000e+00 : f32
    %398 = vector.broadcast %cst_218 : f32 to vector<8x8x1xf32>
    %399 = arith.divf %397, %398 : vector<8x8x1xf32>
    %cst_219 = arith.constant dense<0.000000e+00> : vector<8x1xf32>
    %400 = vector.multi_reduction <add>, %399, %cst_219 [0] : vector<8x8x1xf32> to vector<8x1xf32>
    %401 = vector.shape_cast %400 : vector<8x1xf32> to vector<1x8x1xf32>
    %cst_220 = arith.constant 8.000000e+00 : f32
    %402 = vector.broadcast %cst_220 : f32 to vector<1x8x1xf32>
    %403 = arith.divf %401, %402 : vector<1x8x1xf32>
    %404 = vector.broadcast %403 : vector<1x8x1xf32> to vector<8x8x8xf32>
    %405 = arith.subf %391, %404 : vector<8x8x8xf32>
    %406 = arith.mulf %405, %405 : vector<8x8x8xf32>
    %cst_221 = arith.constant dense<0.000000e+00> : vector<8x8xf32>
    %407 = vector.multi_reduction <add>, %406, %cst_221 [2] : vector<8x8x8xf32> to vector<8x8xf32>
    %408 = vector.shape_cast %407 : vector<8x8xf32> to vector<8x8x1xf32>
    %cst_222 = arith.constant 8.000000e+00 : f32
    %409 = vector.broadcast %cst_222 : f32 to vector<8x8x1xf32>
    %410 = arith.divf %408, %409 : vector<8x8x1xf32>
    %cst_223 = arith.constant dense<0.000000e+00> : vector<8x1xf32>
    %411 = vector.multi_reduction <add>, %410, %cst_223 [0] : vector<8x8x1xf32> to vector<8x1xf32>
    %412 = vector.shape_cast %411 : vector<8x1xf32> to vector<1x8x1xf32>
    %cst_224 = arith.constant 8.000000e+00 : f32
    %413 = vector.broadcast %cst_224 : f32 to vector<1x8x1xf32>
    %414 = arith.divf %412, %413 : vector<1x8x1xf32>
    %cst_225 = arith.constant 9.99999974E-6 : f32
    %415 = vector.broadcast %cst_225 : f32 to vector<1x8x1xf32>
    %416 = arith.addf %414, %415 : vector<1x8x1xf32>
    %417 = math.rsqrt %416 : vector<1x8x1xf32>
    %418 = vector.broadcast %403 : vector<1x8x1xf32> to vector<8x8x8xf32>
    %419 = arith.subf %391, %418 : vector<8x8x8xf32>
    %420 = vector.broadcast %417 : vector<1x8x1xf32> to vector<8x8x8xf32>
    %421 = arith.mulf %419, %420 : vector<8x8x8xf32>
    %422 = vector.shape_cast %393 : vector<8x1xf32> to vector<1x8x1xf32>
    %423 = vector.broadcast %422 : vector<1x8x1xf32> to vector<8x8x8xf32>
    %424 = arith.mulf %421, %423 : vector<8x8x8xf32>
    %425 = vector.shape_cast %395 : vector<8x1xf32> to vector<1x8x1xf32>
    %426 = vector.broadcast %425 : vector<1x8x1xf32> to vector<8x8x8xf32>
    %427 = arith.addf %424, %426 : vector<8x8x8xf32>
    %428 = vector.shape_cast %427 : vector<8x8x8xf32> to vector<64x8xf32>
    %c3 = arith.constant 3 : index
    %c0_226 = arith.constant 0 : index
    %c0_227 = arith.constant 0 : index
    %429 = vector.load %arg13[%c3, %c0_226, %c0_227] : memref<4x8x24xf32, #tpu.memory_space<vmem>>, vector<1x8x24xf32>
    %430 = vector.shape_cast %429 : vector<1x8x24xf32> to vector<8x24xf32>
    %cst_228 = arith.constant dense<0.000000e+00> : vector<64x24xf32>
    %431 = tpu.matmul %428, %430, %cst_228 {dimension_numbers = #tpu.dot_dimension_numbers<[1], [0], [0], [1], [0, 0, 1, 1], [], []>} : vector<64x8xf32>, vector<8x24xf32>, vector<64x24xf32> -> vector<64x24xf32>
    %c3_229 = arith.constant 3 : index
    %c0_230 = arith.constant 0 : index
    %c0_231 = arith.constant 0 : index
    %432 = vector.load %arg14[%c3_229, %c0_230, %c0_231] : memref<4x1x24xf32, #tpu.memory_space<vmem>>, vector<1x1x24xf32>
    %433 = vector.shape_cast %432 : vector<1x1x24xf32> to vector<1x24xf32>
    %434 = vector.broadcast %433 : vector<1x24xf32> to vector<64x24xf32>
    %435 = arith.addf %431, %434 : vector<64x24xf32>
    %436 = vector.extract_strided_slice %435 {offsets = [0, 0], sizes = [64, 8], strides = [1, 1]} : vector<64x24xf32> to vector<64x8xf32>
    %437 = vector.extract_strided_slice %435 {offsets = [0, 8], sizes = [64, 8], strides = [1, 1]} : vector<64x24xf32> to vector<64x8xf32>
    %438 = vector.extract_strided_slice %435 {offsets = [0, 16], sizes = [64, 8], strides = [1, 1]} : vector<64x24xf32> to vector<64x8xf32>
    %c0_232 = arith.constant 0 : index
    %c0_233 = arith.constant 0 : index
    %439 = vector.load %arg5[%c0_232, %c0_233] : memref<64x64xf32, #tpu.memory_space<vmem>>, vector<64x64xf32>
    %cst_234 = arith.constant dense<0.000000e+00> : vector<64x8xf32>
    %440 = tpu.matmul %439, %436, %cst_234 {dimension_numbers = #tpu.dot_dimension_numbers<[1], [0], [0], [1], [0, 0, 1, 1], [], []>} : vector<64x64xf32>, vector<64x8xf32>, vector<64x8xf32> -> vector<64x8xf32>
    %c0_235 = arith.constant 0 : index
    %c0_236 = arith.constant 0 : index
    %441 = vector.load %arg6[%c0_235, %c0_236] : memref<64x64xf32, #tpu.memory_space<vmem>>, vector<64x64xf32>
    %cst_237 = arith.constant dense<0.000000e+00> : vector<64x8xf32>
    %442 = tpu.matmul %441, %437, %cst_237 {dimension_numbers = #tpu.dot_dimension_numbers<[1], [0], [0], [1], [0, 0, 1, 1], [], []>} : vector<64x64xf32>, vector<64x8xf32>, vector<64x8xf32> -> vector<64x8xf32>
    %443 = arith.mulf %440, %442 : vector<64x8xf32>
    %444 = vector.shape_cast %443 : vector<64x8xf32> to vector<8x8x8xf32>
    %cst_238 = arith.constant dense<0.000000e+00> : vector<8x8xf32>
    %445 = vector.multi_reduction <add>, %444, %cst_238 [1] : vector<8x8x8xf32> to vector<8x8xf32>
    %446 = vector.shape_cast %445 : vector<8x8xf32> to vector<8x1x8xf32>
    %447 = vector.shape_cast %446 : vector<8x1x8xf32> to vector<8x8xf32>
    %448 = vector.extract_strided_slice %16 {offsets = [0, 24], sizes = [8, 8], strides = [1, 1]} : vector<8x32xf32> to vector<8x8xf32>
    %449 = arith.addf %447, %448 : vector<8x8xf32>
    %cst_239 = arith.constant 0.000000e+00 : f32
    %450 = vector.broadcast %cst_239 : f32 to vector<8x8xf32>
    %451 = arith.cmpf oge, %449, %450 : vector<8x8xf32>
    %cst_240 = arith.constant 0.00999999977 : f32
    %452 = vector.broadcast %cst_240 : f32 to vector<8x8xf32>
    %453 = arith.mulf %452, %449 : vector<8x8xf32>
    %454 = arith.select %451, %449, %453 : vector<8x8xi1>, vector<8x8xf32>
    %c0_241 = arith.constant 0 : index
    %c0_242 = arith.constant 0 : index
    %455 = vector.load %arg4[%c0_241, %c0_242] : memref<64x8xf32, #tpu.memory_space<vmem>>, vector<64x8xf32>
    %cst_243 = arith.constant dense<0.000000e+00> : vector<64x8xf32>
    %456 = tpu.matmul %455, %454, %cst_243 {dimension_numbers = #tpu.dot_dimension_numbers<[1], [0], [0], [1], [0, 0, 1, 1], [], []>} : vector<64x8xf32>, vector<8x8xf32>, vector<64x8xf32> -> vector<64x8xf32>
    %457 = vector.shape_cast %456 : vector<64x8xf32> to vector<8x8x8xf32>
    %cst_244 = arith.constant dense<0xFF800000> : vector<8x8xf32>
    %458 = vector.multi_reduction <maximumf>, %457, %cst_244 [1] : vector<8x8x8xf32> to vector<8x8xf32>
    %459 = vector.shape_cast %458 : vector<8x8xf32> to vector<8x1x8xf32>
    %460 = vector.broadcast %459 : vector<8x1x8xf32> to vector<8x8x8xf32>
    %461 = arith.subf %457, %460 : vector<8x8x8xf32>
    %462 = math.exp %461 : vector<8x8x8xf32>
    %cst_245 = arith.constant dense<0.000000e+00> : vector<8x8xf32>
    %463 = vector.multi_reduction <add>, %462, %cst_245 [1] : vector<8x8x8xf32> to vector<8x8xf32>
    %464 = vector.shape_cast %463 : vector<8x8xf32> to vector<8x1x8xf32>
    %465 = vector.broadcast %464 : vector<8x1x8xf32> to vector<8x8x8xf32>
    %466 = arith.divf %462, %465 : vector<8x8x8xf32>
    %467 = vector.shape_cast %466 : vector<8x8x8xf32> to vector<64x8xf32>
    %c0_246 = arith.constant 0 : index
    %c0_247 = arith.constant 0 : index
    %468 = vector.load %arg7[%c0_246, %c0_247] : memref<8x64xf32, #tpu.memory_space<vmem>>, vector<8x64xf32>
    %cst_248 = arith.constant dense<0.000000e+00> : vector<64x64xf32>
    %469 = tpu.matmul %467, %468, %cst_248 {dimension_numbers = #tpu.dot_dimension_numbers<[1], [0], [0], [1], [0, 0, 1, 1], [], []>} : vector<64x8xf32>, vector<8x64xf32>, vector<64x64xf32> -> vector<64x64xf32>
    %c0_249 = arith.constant 0 : index
    %c0_250 = arith.constant 0 : index
    %470 = vector.load %arg8[%c0_249, %c0_250] : memref<64x64xf32, #tpu.memory_space<vmem>>, vector<64x64xf32>
    %471 = arith.mulf %469, %470 : vector<64x64xf32>
    %cst_251 = arith.constant dense<0.000000e+00> : vector<64x8xf32>
    %472 = tpu.matmul %471, %438, %cst_251 {dimension_numbers = #tpu.dot_dimension_numbers<[1], [0], [0], [1], [0, 0, 1, 1], [], []>} : vector<64x64xf32>, vector<64x8xf32>, vector<64x8xf32> -> vector<64x8xf32>
    %473 = arith.addf %428, %472 : vector<64x8xf32>
    %474 = vector.shape_cast %473 : vector<64x8xf32> to vector<8x8x8xf32>
    %c3_252 = arith.constant 3 : index
    %c0_253 = arith.constant 0 : index
    %c0_254 = arith.constant 0 : index
    %475 = vector.load %arg17[%c3_252, %c0_253, %c0_254] : memref<4x8x1xf32, #tpu.memory_space<vmem>>, vector<1x8x1xf32>
    %476 = vector.shape_cast %475 : vector<1x8x1xf32> to vector<8x1xf32>
    %c3_255 = arith.constant 3 : index
    %c0_256 = arith.constant 0 : index
    %c0_257 = arith.constant 0 : index
    %477 = vector.load %arg18[%c3_255, %c0_256, %c0_257] : memref<4x8x1xf32, #tpu.memory_space<vmem>>, vector<1x8x1xf32>
    %478 = vector.shape_cast %477 : vector<1x8x1xf32> to vector<8x1xf32>
    %cst_258 = arith.constant dense<0.000000e+00> : vector<8x8xf32>
    %479 = vector.multi_reduction <add>, %474, %cst_258 [2] : vector<8x8x8xf32> to vector<8x8xf32>
    %480 = vector.shape_cast %479 : vector<8x8xf32> to vector<8x8x1xf32>
    %cst_259 = arith.constant 8.000000e+00 : f32
    %481 = vector.broadcast %cst_259 : f32 to vector<8x8x1xf32>
    %482 = arith.divf %480, %481 : vector<8x8x1xf32>
    %cst_260 = arith.constant dense<0.000000e+00> : vector<8x1xf32>
    %483 = vector.multi_reduction <add>, %482, %cst_260 [0] : vector<8x8x1xf32> to vector<8x1xf32>
    %484 = vector.shape_cast %483 : vector<8x1xf32> to vector<1x8x1xf32>
    %cst_261 = arith.constant 8.000000e+00 : f32
    %485 = vector.broadcast %cst_261 : f32 to vector<1x8x1xf32>
    %486 = arith.divf %484, %485 : vector<1x8x1xf32>
    %487 = vector.broadcast %486 : vector<1x8x1xf32> to vector<8x8x8xf32>
    %488 = arith.subf %474, %487 : vector<8x8x8xf32>
    %489 = arith.mulf %488, %488 : vector<8x8x8xf32>
    %cst_262 = arith.constant dense<0.000000e+00> : vector<8x8xf32>
    %490 = vector.multi_reduction <add>, %489, %cst_262 [2] : vector<8x8x8xf32> to vector<8x8xf32>
    %491 = vector.shape_cast %490 : vector<8x8xf32> to vector<8x8x1xf32>
    %cst_263 = arith.constant 8.000000e+00 : f32
    %492 = vector.broadcast %cst_263 : f32 to vector<8x8x1xf32>
    %493 = arith.divf %491, %492 : vector<8x8x1xf32>
    %cst_264 = arith.constant dense<0.000000e+00> : vector<8x1xf32>
    %494 = vector.multi_reduction <add>, %493, %cst_264 [0] : vector<8x8x1xf32> to vector<8x1xf32>
    %495 = vector.shape_cast %494 : vector<8x1xf32> to vector<1x8x1xf32>
    %cst_265 = arith.constant 8.000000e+00 : f32
    %496 = vector.broadcast %cst_265 : f32 to vector<1x8x1xf32>
    %497 = arith.divf %495, %496 : vector<1x8x1xf32>
    %cst_266 = arith.constant 9.99999974E-6 : f32
    %498 = vector.broadcast %cst_266 : f32 to vector<1x8x1xf32>
    %499 = arith.addf %497, %498 : vector<1x8x1xf32>
    %500 = math.rsqrt %499 : vector<1x8x1xf32>
    %501 = vector.broadcast %486 : vector<1x8x1xf32> to vector<8x8x8xf32>
    %502 = arith.subf %474, %501 : vector<8x8x8xf32>
    %503 = vector.broadcast %500 : vector<1x8x1xf32> to vector<8x8x8xf32>
    %504 = arith.mulf %502, %503 : vector<8x8x8xf32>
    %505 = vector.shape_cast %476 : vector<8x1xf32> to vector<1x8x1xf32>
    %506 = vector.broadcast %505 : vector<1x8x1xf32> to vector<8x8x8xf32>
    %507 = arith.mulf %504, %506 : vector<8x8x8xf32>
    %508 = vector.shape_cast %478 : vector<8x1xf32> to vector<1x8x1xf32>
    %509 = vector.broadcast %508 : vector<1x8x1xf32> to vector<8x8x8xf32>
    %510 = arith.addf %507, %509 : vector<8x8x8xf32>
    %511 = vector.shape_cast %510 : vector<8x8x8xf32> to vector<64x8xf32>
    %c3_267 = arith.constant 3 : index
    %c0_268 = arith.constant 0 : index
    %c0_269 = arith.constant 0 : index
    %512 = vector.load %arg21[%c3_267, %c0_268, %c0_269] : memref<4x8x16xf32, #tpu.memory_space<vmem>>, vector<1x8x16xf32>
    %513 = vector.shape_cast %512 : vector<1x8x16xf32> to vector<8x16xf32>
    %cst_270 = arith.constant dense<0.000000e+00> : vector<64x16xf32>
    %514 = tpu.matmul %511, %513, %cst_270 {dimension_numbers = #tpu.dot_dimension_numbers<[1], [0], [0], [1], [0, 0, 1, 1], [], []>} : vector<64x8xf32>, vector<8x16xf32>, vector<64x16xf32> -> vector<64x16xf32>
    %c3_271 = arith.constant 3 : index
    %c0_272 = arith.constant 0 : index
    %c0_273 = arith.constant 0 : index
    %515 = vector.load %arg22[%c3_271, %c0_272, %c0_273] : memref<4x1x16xf32, #tpu.memory_space<vmem>>, vector<1x1x16xf32>
    %516 = vector.shape_cast %515 : vector<1x1x16xf32> to vector<1x16xf32>
    %517 = vector.broadcast %516 : vector<1x16xf32> to vector<64x16xf32>
    %518 = arith.addf %514, %517 : vector<64x16xf32>
    %cst_274 = arith.constant 0.000000e+00 : f32
    %519 = vector.broadcast %cst_274 : f32 to vector<64x16xf32>
    %520 = arith.maximumf %518, %519 : vector<64x16xf32>
    %c3_275 = arith.constant 3 : index
    %c0_276 = arith.constant 0 : index
    %c0_277 = arith.constant 0 : index
    %521 = vector.load %arg23[%c3_275, %c0_276, %c0_277] : memref<4x16x8xf32, #tpu.memory_space<vmem>>, vector<1x16x8xf32>
    %522 = vector.shape_cast %521 : vector<1x16x8xf32> to vector<16x8xf32>
    %cst_278 = arith.constant dense<0.000000e+00> : vector<64x8xf32>
    %523 = tpu.matmul %520, %522, %cst_278 {dimension_numbers = #tpu.dot_dimension_numbers<[1], [0], [0], [1], [0, 0, 1, 1], [], []>} : vector<64x16xf32>, vector<16x8xf32>, vector<64x8xf32> -> vector<64x8xf32>
    %c3_279 = arith.constant 3 : index
    %c0_280 = arith.constant 0 : index
    %c0_281 = arith.constant 0 : index
    %524 = vector.load %arg24[%c3_279, %c0_280, %c0_281] : memref<4x1x8xf32, #tpu.memory_space<vmem>>, vector<1x1x8xf32>
    %525 = vector.shape_cast %524 : vector<1x1x8xf32> to vector<1x8xf32>
    %526 = vector.broadcast %525 : vector<1x8xf32> to vector<64x8xf32>
    %527 = arith.addf %523, %526 : vector<64x8xf32>
    %528 = arith.addf %511, %527 : vector<64x8xf32>
    %529 = vector.shape_cast %528 : vector<64x8xf32> to vector<8x8x8xf32>
    %c3_282 = arith.constant 3 : index
    %c0_283 = arith.constant 0 : index
    %c0_284 = arith.constant 0 : index
    %530 = vector.load %arg19[%c3_282, %c0_283, %c0_284] : memref<4x8x1xf32, #tpu.memory_space<vmem>>, vector<1x8x1xf32>
    %531 = vector.shape_cast %530 : vector<1x8x1xf32> to vector<8x1xf32>
    %c3_285 = arith.constant 3 : index
    %c0_286 = arith.constant 0 : index
    %c0_287 = arith.constant 0 : index
    %532 = vector.load %arg20[%c3_285, %c0_286, %c0_287] : memref<4x8x1xf32, #tpu.memory_space<vmem>>, vector<1x8x1xf32>
    %533 = vector.shape_cast %532 : vector<1x8x1xf32> to vector<8x1xf32>
    %cst_288 = arith.constant dense<0.000000e+00> : vector<8x8xf32>
    %534 = vector.multi_reduction <add>, %529, %cst_288 [2] : vector<8x8x8xf32> to vector<8x8xf32>
    %535 = vector.shape_cast %534 : vector<8x8xf32> to vector<8x8x1xf32>
    %cst_289 = arith.constant 8.000000e+00 : f32
    %536 = vector.broadcast %cst_289 : f32 to vector<8x8x1xf32>
    %537 = arith.divf %535, %536 : vector<8x8x1xf32>
    %cst_290 = arith.constant dense<0.000000e+00> : vector<8x1xf32>
    %538 = vector.multi_reduction <add>, %537, %cst_290 [0] : vector<8x8x1xf32> to vector<8x1xf32>
    %539 = vector.shape_cast %538 : vector<8x1xf32> to vector<1x8x1xf32>
    %cst_291 = arith.constant 8.000000e+00 : f32
    %540 = vector.broadcast %cst_291 : f32 to vector<1x8x1xf32>
    %541 = arith.divf %539, %540 : vector<1x8x1xf32>
    %542 = vector.broadcast %541 : vector<1x8x1xf32> to vector<8x8x8xf32>
    %543 = arith.subf %529, %542 : vector<8x8x8xf32>
    %544 = arith.mulf %543, %543 : vector<8x8x8xf32>
    %cst_292 = arith.constant dense<0.000000e+00> : vector<8x8xf32>
    %545 = vector.multi_reduction <add>, %544, %cst_292 [2] : vector<8x8x8xf32> to vector<8x8xf32>
    %546 = vector.shape_cast %545 : vector<8x8xf32> to vector<8x8x1xf32>
    %cst_293 = arith.constant 8.000000e+00 : f32
    %547 = vector.broadcast %cst_293 : f32 to vector<8x8x1xf32>
    %548 = arith.divf %546, %547 : vector<8x8x1xf32>
    %cst_294 = arith.constant dense<0.000000e+00> : vector<8x1xf32>
    %549 = vector.multi_reduction <add>, %548, %cst_294 [0] : vector<8x8x1xf32> to vector<8x1xf32>
    %550 = vector.shape_cast %549 : vector<8x1xf32> to vector<1x8x1xf32>
    %cst_295 = arith.constant 8.000000e+00 : f32
    %551 = vector.broadcast %cst_295 : f32 to vector<1x8x1xf32>
    %552 = arith.divf %550, %551 : vector<1x8x1xf32>
    %cst_296 = arith.constant 9.99999974E-6 : f32
    %553 = vector.broadcast %cst_296 : f32 to vector<1x8x1xf32>
    %554 = arith.addf %552, %553 : vector<1x8x1xf32>
    %555 = math.rsqrt %554 : vector<1x8x1xf32>
    %556 = vector.broadcast %541 : vector<1x8x1xf32> to vector<8x8x8xf32>
    %557 = arith.subf %529, %556 : vector<8x8x8xf32>
    %558 = vector.broadcast %555 : vector<1x8x1xf32> to vector<8x8x8xf32>
    %559 = arith.mulf %557, %558 : vector<8x8x8xf32>
    %560 = vector.shape_cast %531 : vector<8x1xf32> to vector<1x8x1xf32>
    %561 = vector.broadcast %560 : vector<1x8x1xf32> to vector<8x8x8xf32>
    %562 = arith.mulf %559, %561 : vector<8x8x8xf32>
    %563 = vector.shape_cast %533 : vector<8x1xf32> to vector<1x8x1xf32>
    %564 = vector.broadcast %563 : vector<1x8x1xf32> to vector<8x8x8xf32>
    %565 = arith.addf %562, %564 : vector<8x8x8xf32>
    %566 = vector.shape_cast %565 : vector<8x8x8xf32> to vector<64x8xf32>
    %567 = vector.shape_cast %566 : vector<64x8xf32> to vector<8x8x8xf32>
    %cst_297 = arith.constant dense<0.000000e+00> : vector<8x8xf32>
    %568 = vector.multi_reduction <add>, %567, %cst_297 [0] : vector<8x8x8xf32> to vector<8x8xf32>
    %cst_298 = arith.constant 8.000000e+00 : f32
    %569 = vector.broadcast %cst_298 : f32 to vector<8x8xf32>
    %570 = arith.divf %568, %569 : vector<8x8xf32>
    %c0_299 = arith.constant 0 : index
    %c0_300 = arith.constant 0 : index
    %571 = vector.load %arg25[%c0_299, %c0_300] : memref<8x1xf32, #tpu.memory_space<vmem>>, vector<8x1xf32>
    %cst_301 = arith.constant dense<0.000000e+00> : vector<8x1xf32>
    %572 = tpu.matmul %570, %571, %cst_301 {dimension_numbers = #tpu.dot_dimension_numbers<[1], [0], [0], [1], [0, 0, 1, 1], [], []>} : vector<8x8xf32>, vector<8x1xf32>, vector<8x1xf32> -> vector<8x1xf32>
    %c0_302 = arith.constant 0 : index
    %c0_303 = arith.constant 0 : index
    %573 = vector.load %arg26[%c0_302, %c0_303] : memref<1x1xf32, #tpu.memory_space<vmem>>, vector<1x1xf32>
    %574 = vector.broadcast %573 : vector<1x1xf32> to vector<8x1xf32>
    %575 = arith.addf %572, %574 : vector<8x1xf32>
    %c0_304 = arith.constant 0 : index
    %c0_305 = arith.constant 0 : index
    %576 = vector.load %arg27[%c0_304, %c0_305] : memref<8x1xf32, #tpu.memory_space<vmem>>, vector<8x1xf32>
    tpu.vector_store %arg27[%c0_304, %c0_305], %575 {strides = array<i32>} : memref<8x1xf32, #tpu.memory_space<vmem>>, vector<8x1xf32>,
    return
  }
}

</mosaic_0001>

<llo_original>
// kernel: graph_transformer_forward.1
$region0: #{graph_transformer_forward.1}
  #allocation0 [shape = 'u32[]', space=smem, size = 0x4, offset = 0x4, fixed_abs, tag = 'smem constant byte address 0x4 - core index']
  #allocation1 [shape = 'u32[144,128]{1,0:T(1,128)}', space=vmem, size = 0x12000, scoped, tag = 'internal scratch']
  #allocation2 [shape = 'f32[1,1]{1,0:T(1,128)S(1)}', space=vmem, size = 0x200, scoped, tag = 'scoped memory for graph_transformer_forward.1']
  %s0 = inlined_call_operand.vmem [shape: f32[8,4], index: 0, kind: input, shape index: {}]
  %s1 = inlined_call_operand.vmem [shape: f32[8,8], index: 1, kind: input, shape index: {}]
  %s2 = inlined_call_operand.vmem [shape: f32[8,8], index: 2, kind: input, shape index: {}]
  %s3 = inlined_call_operand.vmem [shape: f32[8,8], index: 3, kind: input, shape index: {}]
  %s4 = inlined_call_operand.vmem [shape: f32[64,8], index: 4, kind: input, shape index: {}]
  %s5 = inlined_call_operand.vmem [shape: f32[64,64], index: 5, kind: input, shape index: {}]
  %s6 = inlined_call_operand.vmem [shape: f32[64,64], index: 6, kind: input, shape index: {}]
  %s7 = inlined_call_operand.vmem [shape: f32[8,64], index: 7, kind: input, shape index: {}]
  %s8 = inlined_call_operand.vmem [shape: f32[64,64], index: 8, kind: input, shape index: {}]
  %s9 = inlined_call_operand.vmem [shape: f32[4,8], index: 9, kind: input, shape index: {}]
  %s10 = inlined_call_operand.vmem [shape: f32[1,8], index: 10, kind: input, shape index: {}]
  %s11 = inlined_call_operand.vmem [shape: f32[8,8], index: 11, kind: input, shape index: {}]
  %s12 = inlined_call_operand.vmem [shape: f32[1,8], index: 12, kind: input, shape index: {}]
  %s13 = inlined_call_operand.vmem [shape: f32[4,8,24], index: 13, kind: input, shape index: {}]
  %s14 = inlined_call_operand.vmem [shape: f32[4,1,24], index: 14, kind: input, shape index: {}]
  %s15 = inlined_call_operand.vmem [shape: f32[8,32], index: 15, kind: input, shape index: {}]
  %s16 = inlined_call_operand.hbm [shape: f32[1,32], index: 16, kind: input, shape index: {}]
  %s17 = inlined_call_operand.vmem [shape: f32[4,8,1], index: 17, kind: input, shape index: {}]
  %s18 = inlined_call_operand.vmem [shape: f32[4,8,1], index: 18, kind: input, shape index: {}]
  %s19 = inlined_call_operand.vmem [shape: f32[4,8,1], index: 19, kind: input, shape index: {}]
  %s20 = inlined_call_operand.vmem [shape: f32[4,8,1], index: 20, kind: input, shape index: {}]
  %s21 = inlined_call_operand.vmem [shape: f32[4,8,16], index: 21, kind: input, shape index: {}]
  %s22 = inlined_call_operand.vmem [shape: f32[4,1,16], index: 22, kind: input, shape index: {}]
  %s23 = inlined_call_operand.vmem [shape: f32[4,16,8], index: 23, kind: input, shape index: {}]
  %s24 = inlined_call_operand.vmem [shape: f32[4,1,8], index: 24, kind: input, shape index: {}]
  %s25 = inlined_call_operand.vmem [shape: f32[8,1], index: 25, kind: input, shape index: {}]
  %s26 = inlined_call_operand.<no memory space> [shape: f32[1,1], index: 26, kind: input, shape index: {}]
  %s27 = inlined_call_operand.vmem [shape: f32[8,1], index: 27, kind: output, shape index: {}]
  %s28 = sld [smem:[#allocation0]]
  $region122: #{graph_transformer_forward.1} parent=0
    _
  %s30 = ssub.s32 1, %s28
  %s31 = scalar_select 0, %s30, %s28
  %v32 = vstv %s26
  %33 = vst [vmem:[#allocation2] sm:$0x1] %v32
  $region1: #{graph_transformer_forward.1} parent=0
    #allocation3 [shape = 'u8[512]{0}', space=vmem, size = 0x400, scoped, tag = 'input window, operand 16, single buffered']
    #allocation4 [shape = 's32[1]{0}', space=sflag, size = 0x4, scoped, tag = 'scoped memory for graph_transformer_forward.1']
    %34 = vsyncpa [#allocation4], 0
    // Predicated region
    $region2: #{graph_transformer_forward.1} parent=1 // pred_check
      _
    $region3: #{graph_transformer_forward.1} parent=1 // pred_check_branch
      %36 = sbr.rel (0) target = $region5
    $region4: #{graph_transformer_forward.1} parent=1 // pred_region
      _
    $region5: #{graph_transformer_forward.1} parent=1 // pred_fallthru
      _
    // Predicated region
    $region6: #{graph_transformer_forward.1} parent=1 // pred_check
      _
    $region7: #{graph_transformer_forward.1} parent=1 // pred_check_branch
      %38 = sbr.rel (0) target = $region9
    $region8: #{graph_transformer_forward.1} parent=1 // pred_region
      _
    $region9: #{graph_transformer_forward.1} parent=1 // pred_fallthru
      _
    // Predicated region
    $region10: #{graph_transformer_forward.1} parent=1 // pred_check
      _
    $region11: #{graph_transformer_forward.1} parent=1 // pred_check_branch
      %40 = sbr.rel (0) target = $region13
    $region12: #{graph_transformer_forward.1} parent=1 // pred_region
      _
    $region13: #{graph_transformer_forward.1} parent=1 // pred_fallthru
      _
    // Predicated region
    $region14: #{graph_transformer_forward.1} parent=1 // pred_check
      _
    $region15: #{graph_transformer_forward.1} parent=1 // pred_check_branch
      %42 = sbr.rel (0) target = $region17
    $region16: #{graph_transformer_forward.1} parent=1 // pred_region
      _
    $region17: #{graph_transformer_forward.1} parent=1 // pred_fallthru
      _
    // Predicated region
    $region18: #{graph_transformer_forward.1} parent=1 // pred_check
      _
    $region19: #{graph_transformer_forward.1} parent=1 // pred_check_branch
      %44 = sbr.rel (0) target = $region21
    $region20: #{graph_transformer_forward.1} parent=1 // pred_region
      _
    $region21: #{graph_transformer_forward.1} parent=1 // pred_fallthru
      _
    // Predicated region
    $region22: #{graph_transformer_forward.1} parent=1 // pred_check
      _
    $region23: #{graph_transformer_forward.1} parent=1 // pred_check_branch
      %46 = sbr.rel (0) target = $region25
    $region24: #{graph_transformer_forward.1} parent=1 // pred_region
      _
    $region25: #{graph_transformer_forward.1} parent=1 // pred_fallthru
      _
    // Predicated region
    $region26: #{graph_transformer_forward.1} parent=1 // pred_check
      _
    $region27: #{graph_transformer_forward.1} parent=1 // pred_check_branch
      %48 = sbr.rel (0) target = $region29
    $region28: #{graph_transformer_forward.1} parent=1 // pred_region
      _
    $region29: #{graph_transformer_forward.1} parent=1 // pred_fallthru
      _
    // Predicated region
    $region30: #{graph_transformer_forward.1} parent=1 // pred_check
      _
    $region31: #{graph_transformer_forward.1} parent=1 // pred_check_branch
      %50 = sbr.rel (0) target = $region33
    $region32: #{graph_transformer_forward.1} parent=1 // pred_region
      _
    $region33: #{graph_transformer_forward.1} parent=1 // pred_fallthru
      _
    // Predicated region
    $region34: #{graph_transformer_forward.1} parent=1 // pred_check
      _
    $region35: #{graph_transformer_forward.1} parent=1 // pred_check_branch
      %52 = sbr.rel (0) target = $region37
    $region36: #{graph_transformer_forward.1} parent=1 // pred_region
      _
    $region37: #{graph_transformer_forward.1} parent=1 // pred_fallthru
      _
    // Predicated region
    $region38: #{graph_transformer_forward.1} parent=1 // pred_check
      _
    $region39: #{graph_transformer_forward.1} parent=1 // pred_check_branch
      %54 = sbr.rel (0) target = $region41
    $region40: #{graph_transformer_forward.1} parent=1 // pred_region
      _
    $region41: #{graph_transformer_forward.1} parent=1 // pred_fallthru
      _
    // Predicated region
    $region42: #{graph_transformer_forward.1} parent=1 // pred_check
      _
    $region43: #{graph_transformer_forward.1} parent=1 // pred_check_branch
      %56 = sbr.rel (0) target = $region45
    $region44: #{graph_transformer_forward.1} parent=1 // pred_region
      _
    $region45: #{graph_transformer_forward.1} parent=1 // pred_fallthru
      _
    // Predicated region
    $region46: #{graph_transformer_forward.1} parent=1 // pred_check
      _
    $region47: #{graph_transformer_forward.1} parent=1 // pred_check_branch
      %58 = sbr.rel (0) target = $region49
    $region48: #{graph_transformer_forward.1} parent=1 // pred_region
      _
    $region49: #{graph_transformer_forward.1} parent=1 // pred_fallthru
      _
    // Predicated region
    $region50: #{graph_transformer_forward.1} parent=1 // pred_check
      _
    $region51: #{graph_transformer_forward.1} parent=1 // pred_check_branch
      %60 = sbr.rel (0) target = $region53
    $region52: #{graph_transformer_forward.1} parent=1 // pred_region
      _
    $region53: #{graph_transformer_forward.1} parent=1 // pred_fallthru
      _
    // Predicated region
    $region54: #{graph_transformer_forward.1} parent=1 // pred_check
      _
    $region55: #{graph_transformer_forward.1} parent=1 // pred_check_branch
      %62 = sbr.rel (0) target = $region57
    $region56: #{graph_transformer_forward.1} parent=1 // pred_region
      _
    $region57: #{graph_transformer_forward.1} parent=1 // pred_fallthru
      _
    // Predicated region
    $region58: #{graph_transformer_forward.1} parent=1 // pred_check
      _
    $region59: #{graph_transformer_forward.1} parent=1 // pred_check_branch
      %64 = sbr.rel (0) target = $region61
    $region60: #{graph_transformer_forward.1} parent=1 // pred_region
      _
    $region61: #{graph_transformer_forward.1} parent=1 // pred_fallthru
      _
    // Predicated region
    $region62: #{graph_transformer_forward.1} parent=1 // pred_check
      _
    $region63: #{graph_transformer_forward.1} parent=1 // pred_check_branch
      %66 = sbr.rel (0) target = $region65
    $region64: #{graph_transformer_forward.1} parent=1 // pred_region
      _
    $region65: #{graph_transformer_forward.1} parent=1 // pred_fallthru
      _
    // Predicated region
    $region66: #{graph_transformer_forward.1} parent=1 // pred_check
      _
    $region67: #{graph_transformer_forward.1} parent=1 // pred_check_branch
      %68 = sbr.rel (0) target = $region69
    $region68: #{graph_transformer_forward.1} parent=1 // pred_region
      %s70 = ssub.s32 16, 16
      %71 = vsyncadd [#allocation4], %s70
      %s73 = sshll.u32 [#allocation3], 4
      %s74 = int_to_ptr.vmem [resolvable:$true] %s73
      %76 = dma.hbm_to_vmem [thread:$0]  %s16, 16, %s74, [#allocation4]
    $region69: #{graph_transformer_forward.1} parent=1 // pred_fallthru
      _
    // Predicated region
    $region70: #{graph_transformer_forward.1} parent=1 // pred_check
      _
    $region71: #{graph_transformer_forward.1} parent=1 // pred_check_branch
      %78 = sbr.rel (0) target = $region73
    $region72: #{graph_transformer_forward.1} parent=1 // pred_region
      _
    $region73: #{graph_transformer_forward.1} parent=1 // pred_fallthru
      _
    // Predicated region
    $region74: #{graph_transformer_forward.1} parent=1 // pred_check
      _
    $region75: #{graph_transformer_forward.1} parent=1 // pred_check_branch
      %80 = sbr.rel (0) target = $region77
    $region76: #{graph_transformer_forward.1} parent=1 // pred_region
      _
    $region77: #{graph_transformer_forward.1} parent=1 // pred_fallthru
      _
    // Predicated region
    $region78: #{graph_transformer_forward.1} parent=1 // pred_check
      _
    $region79: #{graph_transformer_forward.1} parent=1 // pred_check_branch
      %82 = sbr.rel (0) target = $region81
    $region80: #{graph_transformer_forward.1} parent=1 // pred_region
      _
    $region81: #{graph_transformer_forward.1} parent=1 // pred_fallthru
      _
    // Predicated region
    $region82: #{graph_transformer_forward.1} parent=1 // pred_check
      _
    $region83: #{graph_transformer_forward.1} parent=1 // pred_check_branch
      %84 = sbr.rel (0) target = $region85
    $region84: #{graph_transformer_forward.1} parent=1 // pred_region
      _
    $region85: #{graph_transformer_forward.1} parent=1 // pred_fallthru
      _
    // Predicated region
    $region86: #{graph_transformer_forward.1} parent=1 // pred_check
      _
    $region87: #{graph_transformer_forward.1} parent=1 // pred_check_branch
      %86 = sbr.rel (0) target = $region89
    $region88: #{graph_transformer_forward.1} parent=1 // pred_region
      _
    $region89: #{graph_transformer_forward.1} parent=1 // pred_fallthru
      _
    // Predicated region
    $region90: #{graph_transformer_forward.1} parent=1 // pred_check
      _
    $region91: #{graph_transformer_forward.1} parent=1 // pred_check_branch
      %88 = sbr.rel (0) target = $region93
    $region92: #{graph_transformer_forward.1} parent=1 // pred_region
      _
    $region93: #{graph_transformer_forward.1} parent=1 // pred_fallthru
      _
    // Predicated region
    $region94: #{graph_transformer_forward.1} parent=1 // pred_check
      _
    $region95: #{graph_transformer_forward.1} parent=1 // pred_check_branch
      %90 = sbr.rel (0) target = $region97
    $region96: #{graph_transformer_forward.1} parent=1 // pred_region
      _
    $region97: #{graph_transformer_forward.1} parent=1 // pred_fallthru
      _
    // Predicated region
    $region98: #{graph_transformer_forward.1} parent=1 // pred_check
      _
    $region99: #{graph_transformer_forward.1} parent=1 // pred_check_branch
      %92 = sbr.rel (0) target = $region101
    $region100: #{graph_transformer_forward.1} parent=1 // pred_region
      _
    $region101: #{graph_transformer_forward.1} parent=1 // pred_fallthru
      _
    // Predicated region
    $region102: #{graph_transformer_forward.1} parent=1 // pred_check
      _
    $region103: #{graph_transformer_forward.1} parent=1 // pred_check_branch
      %94 = sbr.rel (0) target = $region105
    $region104: #{graph_transformer_forward.1} parent=1 // pred_region
      _
    $region105: #{graph_transformer_forward.1} parent=1 // pred_fallthru
      _
    // Predicated region
    $region106: #{graph_transformer_forward.1} parent=1 // pred_check
      _
    $region107: #{graph_transformer_forward.1} parent=1 // pred_check_branch
      %96 = sbr.rel (0) target = $region109
    $region108: #{graph_transformer_forward.1} parent=1 // pred_region
      _
    $region109: #{graph_transformer_forward.1} parent=1 // pred_fallthru
      _
    // Predicated region
    $region110: #{graph_transformer_forward.1} parent=1 // pred_check
      _
    $region111: #{graph_transformer_forward.1} parent=1 // pred_check_branch
      %98 = sbr.rel (0) target = $region113
    $region112: #{graph_transformer_forward.1} parent=1 // pred_region
      %99 = dma.done [#allocation4], 16
    $region113: #{graph_transformer_forward.1} parent=1 // pred_fallthru
      _
    %v100 = vld [vmem:[%s0] sm:$0xff]
    %v101 = vld [vmem:[%s9] sm:$0xf]
    %v102 = vld [vmem:[%s10] sm:$0x1]
    %v104 = vlaneseq
    %v105 = vshrl.u32 %v104, 7
    %v106 = vsub.s32 0, %v105
    %v107 = vrot.slane %v102, %v106
    %vm109 = vcmask 31744
    %v111 = vsel %vm109, %v100, 0
    %vm113 = vcmask 1043456
    %v115 = vsel %vm113, %v101, 0
    %117 = vmatprep.subr.mxu0 0.0
    %118 = vmatpush1.msra.mxu0 %v115
    %119 = vmatprep.subr.mxu0 0.0
    %120 = vmatpush1.msra.mxu0 0.0
    %121 = vmatprep.subr.mxu0 0.0
    %122 = vmatpush1.msra.mxu0 0.0
    %123 = vmatprep.subr.mxu0 0.0
    %124 = vmatpush1.msra.mxu0 0.0
    %125 = vmatprep.subr.mxu0 0.0
    %126 = vmatpush1.msra.mxu0 0.0
    %127 = vmatprep.subr.mxu0 0.0
    %128 = vmatpush1.msra.mxu0 0.0
    %129 = vmatprep.subr.mxu0 0.0
    %130 = vmatpush1.msra.mxu0 0.0
    %131 = vmatprep.subr.mxu0 0.0
    %132 = vmatpush1.msra.mxu0 0.0
    %133 = vmatprep.subr.mxu0 0.0
    %134 = vmatpush1.msra.mxu0 0.0
    %135 = vmatprep.subr.mxu0 0.0
    %136 = vmatpush1.msra.mxu0 0.0
    %137 = vmatprep.subr.mxu0 0.0
    %138 = vmatpush1.msra.mxu0 0.0
    %139 = vmatprep.subr.mxu0 0.0
    %140 = vmatpush1.msra.mxu0 0.0
    %141 = vmatprep.subr.mxu0 0.0
    %142 = vmatpush1.msra.mxu0 0.0
    %143 = vmatprep.subr.mxu0 0.0
    %144 = vmatpush1.msra.mxu0 0.0
    %145 = vmatprep.subr.mxu0 0.0
    %146 = vmatpush1.msra.mxu0 0.0
    %147 = vmatprep.subr.mxu0 0.0
    %148 = vmatpush1.msra.mxu0 0.0
    %149 = vmatprep.subr.mxu0 0.0
    %150 = vmatpush1.msra.mxu0 0.0
    %151 = vmatprep.subr.mxu0 0.0
    %152 = vmatpush1.msra.mxu0 0.0
    %153 = vmatprep.subr.mxu0 0.0
    %154 = vmatpush1.msra.mxu0 0.0
    %155 = vmatprep.subr.mxu0 0.0
    %156 = vmatpush1.msra.mxu0 0.0
    %157 = vmatprep.subr.mxu0 0.0
    %158 = vmatpush1.msra.mxu0 0.0
    %159 = vmatprep.subr.mxu0 0.0
    %160 = vmatpush1.msra.mxu0 0.0
    %161 = vmatprep.subr.mxu0 0.0
    %162 = vmatpush1.msra.mxu0 0.0
    %163 = vmatprep.subr.mxu0 0.0
    %164 = vmatpush1.msra.mxu0 0.0
    %165 = vmatprep.subr.mxu0 0.0
    %166 = vmatpush1.msra.mxu0 0.0
    %167 = vmatprep.subr.mxu0 0.0
    %168 = vmatpush1.msra.mxu0 0.0
    %169 = vmatprep.subr.mxu0 0.0
    %170 = vmatpush1.msra.mxu0 0.0
    %171 = vmatprep.subr.mxu0 0.0
    %172 = vmatpush1.msra.mxu0 0.0
    %173 = vmatprep.subr.mxu0 0.0
    %174 = vmatpush1.msra.mxu0 0.0
    %175 = vmatprep.subr.mxu0 0.0
    %176 = vmatpush1.msra.mxu0 0.0
    %177 = vmatprep.subr.mxu0 0.0
    %178 = vmatpush1.msra.mxu0 0.0
    %179 = vmatprep.subr.mxu0 0.0
    %180 = vmatpush1.msra.mxu0 0.0
    %181 = vmatprep.mubr.f32.mxu0 0.0
    %182 = vmatmul.mubr.f32.gmra.mrb[0].mxu0 %v111
    %v183 = vpop.f32.mrb[0].mxu0
    %v184 = vadd.f32 %v107, %v183
    %v185 = vpop.f32.mrb[0].mxu0
    %186 = vdwg.mxu0
    %v187 = vld [vmem:[%s1] sm:$0xff]
    %v188 = vld [vmem:[%s11] sm:$0xff]
    %v189 = vld [vmem:[%s12] sm:$0x1]
    %v191 = vlaneseq
    %v192 = vshrl.u32 %v191, 7
    %v193 = vsub.s32 0, %v192
    %v194 = vrot.slane %v189, %v193
    %vm196 = vcmask 64512
    %v198 = vsel %vm196, %v187, 0
    %200 = vmatprep.subr.mxu0 0.0
    %201 = vmatpush1.msra.mxu0 %v188
    %202 = vmatprep.subr.mxu0 0.0
    %203 = vmatpush1.msra.mxu0 0.0
    %204 = vmatprep.subr.mxu0 0.0
    %205 = vmatpush1.msra.mxu0 0.0
    %206 = vmatprep.subr.mxu0 0.0
    %207 = vmatpush1.msra.mxu0 0.0
    %208 = vmatprep.subr.mxu0 0.0
    %209 = vmatpush1.msra.mxu0 0.0
    %210 = vmatprep.subr.mxu0 0.0
    %211 = vmatpush1.msra.mxu0 0.0
    %212 = vmatprep.subr.mxu0 0.0
    %213 = vmatpush1.msra.mxu0 0.0
    %214 = vmatprep.subr.mxu0 0.0
    %215 = vmatpush1.msra.mxu0 0.0
    %216 = vmatprep.subr.mxu0 0.0
    %217 = vmatpush1.msra.mxu0 0.0
    %218 = vmatprep.subr.mxu0 0.0
    %219 = vmatpush1.msra.mxu0 0.0
    %220 = vmatprep.subr.mxu0 0.0
    %221 = vmatpush1.msra.mxu0 0.0
    %222 = vmatprep.subr.mxu0 0.0
    %223 = vmatpush1.msra.mxu0 0.0
    %224 = vmatprep.subr.mxu0 0.0
    %225 = vmatpush1.msra.mxu0 0.0
    %226 = vmatprep.subr.mxu0 0.0
    %227 = vmatpush1.msra.mxu0 0.0
    %228 = vmatprep.subr.mxu0 0.0
    %229 = vmatpush1.msra.mxu0 0.0
    %230 = vmatprep.subr.mxu0 0.0
    %231 = vmatpush1.msra.mxu0 0.0
    %232 = vmatprep.subr.mxu0 0.0
    %233 = vmatpush1.msra.mxu0 0.0
    %234 = vmatprep.subr.mxu0 0.0
    %235 = vmatpush1.msra.mxu0 0.0
    %236 = vmatprep.subr.mxu0 0.0
    %237 = vmatpush1.msra.mxu0 0.0
    %238 = vmatprep.subr.mxu0 0.0
    %239 = vmatpush1.msra.mxu0 0.0
    %240 = vmatprep.subr.mxu0 0.0
    %241 = vmatpush1.msra.mxu0 0.0
    %242 = vmatprep.subr.mxu0 0.0
    %243 = vmatpush1.msra.mxu0 0.0
    %244 = vmatprep.subr.mxu0 0.0
    %245 = vmatpush1.msra.mxu0 0.0
    %246 = vmatprep.subr.mxu0 0.0
    %247 = vmatpush1.msra.mxu0 0.0
    %248 = vmatprep.subr.mxu0 0.0
    %249 = vmatpush1.msra.mxu0 0.0
    %250 = vmatprep.subr.mxu0 0.0
    %251 = vmatpush1.msra.mxu0 0.0
    %252 = vmatprep.subr.mxu0 0.0
    %253 = vmatpush1.msra.mxu0 0.0
    %254 = vmatprep.subr.mxu0 0.0
    %255 = vmatpush1.msra.mxu0 0.0
    %256 = vmatprep.subr.mxu0 0.0
    %257 = vmatpush1.msra.mxu0 0.0
    %258 = vmatprep.subr.mxu0 0.0
    %259 = vmatpush1.msra.mxu0 0.0
    %260 = vmatprep.subr.mxu0 0.0
    %261 = vmatpush1.msra.mxu0 0.0
    %262 = vmatprep.subr.mxu0 0.0
    %263 = vmatpush1.msra.mxu0 0.0
    %264 = vmatprep.mubr.f32.mxu0 0.0
    %265 = vmatmul.mubr.f32.gmra.mrb[0].mxu0 %v198
    %v266 = vpop.f32.mrb[0].mxu0
    %v267 = vadd.f32 %v194, %v266
    %v268 = vpop.f32.mrb[0].mxu0
    %269 = vdwg.mxu0
    %v270 = vld [vmem:[%s15] sm:$0xff]
    %v271 = vld [vmem:[#allocation3] sm:$0x1]
    %v273 = vlaneseq
    %v274 = vshrl.u32 %v273, 7
    %v275 = vsub.s32 0, %v274
    %v276 = vrot.slane %v271, %v275
    %v279 = vsel %vm196, %v267, 0
    %281 = vmatprep.subr.mxu0 0.0
    %282 = vmatpush1.msra.mxu0 %v270
    %283 = vmatprep.subr.mxu0 0.0
    %284 = vmatpush1.msra.mxu0 0.0
    %285 = vmatprep.subr.mxu0 0.0
    %286 = vmatpush1.msra.mxu0 0.0
    %287 = vmatprep.subr.mxu0 0.0
    %288 = vmatpush1.msra.mxu0 0.0
    %289 = vmatprep.subr.mxu0 0.0
    %290 = vmatpush1.msra.mxu0 0.0
    %291 = vmatprep.subr.mxu0 0.0
    %292 = vmatpush1.msra.mxu0 0.0
    %293 = vmatprep.subr.mxu0 0.0
    %294 = vmatpush1.msra.mxu0 0.0
    %295 = vmatprep.subr.mxu0 0.0
    %296 = vmatpush1.msra.mxu0 0.0
    %297 = vmatprep.subr.mxu0 0.0
    %298 = vmatpush1.msra.mxu0 0.0
    %299 = vmatprep.subr.mxu0 0.0
    %300 = vmatpush1.msra.mxu0 0.0
    %301 = vmatprep.subr.mxu0 0.0
    %302 = vmatpush1.msra.mxu0 0.0
    %303 = vmatprep.subr.mxu0 0.0
    %304 = vmatpush1.msra.mxu0 0.0
    %305 = vmatprep.subr.mxu0 0.0
    %306 = vmatpush1.msra.mxu0 0.0
    %307 = vmatprep.subr.mxu0 0.0
    %308 = vmatpush1.msra.mxu0 0.0
    %309 = vmatprep.subr.mxu0 0.0
    %310 = vmatpush1.msra.mxu0 0.0
    %311 = vmatprep.subr.mxu0 0.0
    %312 = vmatpush1.msra.mxu0 0.0
    %313 = vmatprep.subr.mxu0 0.0
    %314 = vmatpush1.msra.mxu0 0.0
    %315 = vmatprep.subr.mxu0 0.0
    %316 = vmatpush1.msra.mxu0 0.0
    %317 = vmatprep.subr.mxu0 0.0
    %318 = vmatpush1.msra.mxu0 0.0
    %319 = vmatprep.subr.mxu0 0.0
    %320 = vmatpush1.msra.mxu0 0.0
    %321 = vmatprep.subr.mxu0 0.0
    %322 = vmatpush1.msra.mxu0 0.0
    %323 = vmatprep.subr.mxu0 0.0
    %324 = vmatpush1.msra.mxu0 0.0
    %325 = vmatprep.subr.mxu0 0.0
    %326 = vmatpush1.msra.mxu0 0.0
    %327 = vmatprep.subr.mxu0 0.0
    %328 = vmatpush1.msra.mxu0 0.0
    %329 = vmatprep.subr.mxu0 0.0
    %330 = vmatpush1.msra.mxu0 0.0
    %331 = vmatprep.subr.mxu0 0.0
    %332 = vmatpush1.msra.mxu0 0.0
    %333 = vmatprep.subr.mxu0 0.0
    %334 = vmatpush1.msra.mxu0 0.0
    %335 = vmatprep.subr.mxu0 0.0
    %336 = vmatpush1.msra.mxu0 0.0
    %337 = vmatprep.subr.mxu0 0.0
    %338 = vmatpush1.msra.mxu0 0.0
    %339 = vmatprep.subr.mxu0 0.0
    %340 = vmatpush1.msra.mxu0 0.0
    %341 = vmatprep.subr.mxu0 0.0
    %342 = vmatpush1.msra.mxu0 0.0
    %343 = vmatprep.subr.mxu0 0.0
    %344 = vmatpush1.msra.mxu0 0.0
    %345 = vmatprep.mubr.f32.mxu0 0.0
    %346 = vmatmul.mubr.f32.gmra.mrb[0].mxu0 %v279
    %v347 = vpop.f32.mrb[0].mxu0
    %v348 = vadd.f32 %v276, %v347
    %v349 = vpop.f32.mrb[0].mxu0
    %350 = vdwg.mxu0
    %v351 = vld [vmem:[%s13] sm:$0xff]
    %v352 = vld [vmem:[%s14] sm:$0x1]
    %v354 = vlaneseq
    %v355 = vshrl.u32 %v354, 7
    %v356 = vsub.s32 0, %v355
    %v357 = vrot.slane %v352, %v356
    %v360 = vsel %vm196, %v184, 0
    %362 = vmatprep.subr.mxu0 0.0
    %363 = vmatpush1.msra.mxu0 %v351
    %364 = vmatprep.subr.mxu0 0.0
    %365 = vmatpush1.msra.mxu0 0.0
    %366 = vmatprep.subr.mxu0 0.0
    %367 = vmatpush1.msra.mxu0 0.0
    %368 = vmatprep.subr.mxu0 0.0
    %369 = vmatpush1.msra.mxu0 0.0
    %370 = vmatprep.subr.mxu0 0.0
    %371 = vmatpush1.msra.mxu0 0.0
    %372 = vmatprep.subr.mxu0 0.0
    %373 = vmatpush1.msra.mxu0 0.0
    %374 = vmatprep.subr.mxu0 0.0
    %375 = vmatpush1.msra.mxu0 0.0
    %376 = vmatprep.subr.mxu0 0.0
    %377 = vmatpush1.msra.mxu0 0.0
    %378 = vmatprep.subr.mxu0 0.0
    %379 = vmatpush1.msra.mxu0 0.0
    %380 = vmatprep.subr.mxu0 0.0
    %381 = vmatpush1.msra.mxu0 0.0
    %382 = vmatprep.subr.mxu0 0.0
    %383 = vmatpush1.msra.mxu0 0.0
    %384 = vmatprep.subr.mxu0 0.0
    %385 = vmatpush1.msra.mxu0 0.0
    %386 = vmatprep.subr.mxu0 0.0
    %387 = vmatpush1.msra.mxu0 0.0
    %388 = vmatprep.subr.mxu0 0.0
    %389 = vmatpush1.msra.mxu0 0.0
    %390 = vmatprep.subr.mxu0 0.0
    %391 = vmatpush1.msra.mxu0 0.0
    %392 = vmatprep.subr.mxu0 0.0
    %393 = vmatpush1.msra.mxu0 0.0
    %394 = vmatprep.subr.mxu0 0.0
    %395 = vmatpush1.msra.mxu0 0.0
    %396 = vmatprep.subr.mxu0 0.0
    %397 = vmatpush1.msra.mxu0 0.0
    %398 = vmatprep.subr.mxu0 0.0
    %399 = vmatpush1.msra.mxu0 0.0
    %400 = vmatprep.subr.mxu0 0.0
    %401 = vmatpush1.msra.mxu0 0.0
    %402 = vmatprep.subr.mxu0 0.0
    %403 = vmatpush1.msra.mxu0 0.0
    %404 = vmatprep.subr.mxu0 0.0
    %405 = vmatpush1.msra.mxu0 0.0
    %406 = vmatprep.subr.mxu0 0.0
    %407 = vmatpush1.msra.mxu0 0.0
    %408 = vmatprep.subr.mxu0 0.0
    %409 = vmatpush1.msra.mxu0 0.0
    %410 = vmatprep.subr.mxu0 0.0
    %411 = vmatpush1.msra.mxu0 0.0
    %412 = vmatprep.subr.mxu0 0.0
    %413 = vmatpush1.msra.mxu0 0.0
    %414 = vmatprep.subr.mxu0 0.0
    %415 = vmatpush1.msra.mxu0 0.0
    %416 = vmatprep.subr.mxu0 0.0
    %417 = vmatpush1.msra.mxu0 0.0
    %418 = vmatprep.subr.mxu0 0.0
    %419 = vmatpush1.msra.mxu0 0.0
    %420 = vmatprep.subr.mxu0 0.0
    %421 = vmatpush1.msra.mxu0 0.0
    %422 = vmatprep.subr.mxu0 0.0
    %423 = vmatpush1.msra.mxu0 0.0
    %424 = vmatprep.subr.mxu0 0.0
    %425 = vmatpush1.msra.mxu0 0.0
    %426 = vmatprep.mubr.f32.mxu0 0.0
    %427 = vmatmul.mubr.f32.gmra.mrb[0].mxu0 %v360
    %v428 = vpop.f32.mrb[0].mxu0
    %v429 = vadd.f32 %v357, %v428
    %v430 = vpop.f32.mrb[0].mxu0
    %431 = vdwg.mxu0
    %v432 = vld [vmem:[%s2] sm:$0xff]
    %v434 = vsel %vm196, %v432, 0
    %436 = vmatprep.subr.mxu0 0.0
    %437 = vmatpush1.msra.mxu0 %v429
    %438 = vmatprep.subr.mxu0 0.0
    %439 = vmatpush1.msra.mxu0 0.0
    %440 = vmatprep.subr.mxu0 0.0
    %441 = vmatpush1.msra.mxu0 0.0
    %442 = vmatprep.subr.mxu0 0.0
    %443 = vmatpush1.msra.mxu0 0.0
    %444 = vmatprep.subr.mxu0 0.0
    %445 = vmatpush1.msra.mxu0 0.0
    %446 = vmatprep.subr.mxu0 0.0
    %447 = vmatpush1.msra.mxu0 0.0
    %448 = vmatprep.subr.mxu0 0.0
    %449 = vmatpush1.msra.mxu0 0.0
    %450 = vmatprep.subr.mxu0 0.0
    %451 = vmatpush1.msra.mxu0 0.0
    %452 = vmatprep.subr.mxu0 0.0
    %453 = vmatpush1.msra.mxu0 0.0
    %454 = vmatprep.subr.mxu0 0.0
    %455 = vmatpush1.msra.mxu0 0.0
    %456 = vmatprep.subr.mxu0 0.0
    %457 = vmatpush1.msra.mxu0 0.0
    %458 = vmatprep.subr.mxu0 0.0
    %459 = vmatpush1.msra.mxu0 0.0
    %460 = vmatprep.subr.mxu0 0.0
    %461 = vmatpush1.msra.mxu0 0.0
    %462 = vmatprep.subr.mxu0 0.0
    %463 = vmatpush1.msra.mxu0 0.0
    %464 = vmatprep.subr.mxu0 0.0
    %465 = vmatpush1.msra.mxu0 0.0
    %466 = vmatprep.subr.mxu0 0.0
    %467 = vmatpush1.msra.mxu0 0.0
    %468 = vmatprep.subr.mxu0 0.0
    %469 = vmatpush1.msra.mxu0 0.0
    %470 = vmatprep.subr.mxu0 0.0
    %471 = vmatpush1.msra.mxu0 0.0
    %472 = vmatprep.subr.mxu0 0.0
    %473 = vmatpush1.msra.mxu0 0.0
    %474 = vmatprep.subr.mxu0 0.0
    %475 = vmatpush1.msra.mxu0 0.0
    %476 = vmatprep.subr.mxu0 0.0
    %477 = vmatpush1.msra.mxu0 0.0
    %478 = vmatprep.subr.mxu0 0.0
    %479 = vmatpush1.msra.mxu0 0.0
    %480 = vmatprep.subr.mxu0 0.0
    %481 = vmatpush1.msra.mxu0 0.0
    %482 = vmatprep.subr.mxu0 0.0
    %483 = vmatpush1.msra.mxu0 0.0
    %484 = vmatprep.subr.mxu0 0.0
    %485 = vmatpush1.msra.mxu0 0.0
    %486 = vmatprep.subr.mxu0 0.0
    %487 = vmatpush1.msra.mxu0 0.0
    %488 = vmatprep.subr.mxu0 0.0
    %489 = vmatpush1.msra.mxu0 0.0
    %490 = vmatprep.subr.mxu0 0.0
    %491 = vmatpush1.msra.mxu0 0.0
    %492 = vmatprep.subr.mxu0 0.0
    %493 = vmatpush1.msra.mxu0 0.0
    %494 = vmatprep.subr.mxu0 0.0
    %495 = vmatpush1.msra.mxu0 0.0
    %496 = vmatprep.subr.mxu0 0.0
    %497 = vmatpush1.msra.mxu0 0.0
    %498 = vmatprep.subr.mxu0 0.0
    %499 = vmatpush1.msra.mxu0 0.0
    %500 = vmatprep.mubr.f32.mxu0 0.0
    %501 = vmatmul.mubr.f32.gmra.mrb[0].mxu0 %v434
    %v502 = vpop.f32.mrb[0].mxu0
    %v503 = vadd.f32 0.0, %v502
    %v504 = vpop.f32.mrb[0].mxu0
    %505 = vdwg.mxu0
    %v506 = vld [vmem:[%s3] sm:$0xff]
    %508 = vrot.lane.b32.xlu0 %v429, 120
    %v509 = vpop.permute.xlu0 %508
    %v512 = vsel %vm196, %v506, 0
    %514 = vmatprep.subr.mxu0 0.0
    %515 = vmatpush1.msra.mxu0 %v509
    %516 = vmatprep.subr.mxu0 0.0
    %517 = vmatpush1.msra.mxu0 0.0
    %518 = vmatprep.subr.mxu0 0.0
    %519 = vmatpush1.msra.mxu0 0.0
    %520 = vmatprep.subr.mxu0 0.0
    %521 = vmatpush1.msra.mxu0 0.0
    %522 = vmatprep.subr.mxu0 0.0
    %523 = vmatpush1.msra.mxu0 0.0
    %524 = vmatprep.subr.mxu0 0.0
    %525 = vmatpush1.msra.mxu0 0.0
    %526 = vmatprep.subr.mxu0 0.0
    %527 = vmatpush1.msra.mxu0 0.0
    %528 = vmatprep.subr.mxu0 0.0
    %529 = vmatpush1.msra.mxu0 0.0
    %530 = vmatprep.subr.mxu0 0.0
    %531 = vmatpush1.msra.mxu0 0.0
    %532 = vmatprep.subr.mxu0 0.0
    %533 = vmatpush1.msra.mxu0 0.0
    %534 = vmatprep.subr.mxu0 0.0
    %535 = vmatpush1.msra.mxu0 0.0
    %536 = vmatprep.subr.mxu0 0.0
    %537 = vmatpush1.msra.mxu0 0.0
    %538 = vmatprep.subr.mxu0 0.0
    %539 = vmatpush1.msra.mxu0 0.0
    %540 = vmatprep.subr.mxu0 0.0
    %541 = vmatpush1.msra.mxu0 0.0
    %542 = vmatprep.subr.mxu0 0.0
    %543 = vmatpush1.msra.mxu0 0.0
    %544 = vmatprep.subr.mxu0 0.0
    %545 = vmatpush1.msra.mxu0 0.0
    %546 = vmatprep.subr.mxu0 0.0
    %547 = vmatpush1.msra.mxu0 0.0
    %548 = vmatprep.subr.mxu0 0.0
    %549 = vmatpush1.msra.mxu0 0.0
    %550 = vmatprep.subr.mxu0 0.0
    %551 = vmatpush1.msra.mxu0 0.0
    %552 = vmatprep.subr.mxu0 0.0
    %553 = vmatpush1.msra.mxu0 0.0
    %554 = vmatprep.subr.mxu0 0.0
    %555 = vmatpush1.msra.mxu0 0.0
    %556 = vmatprep.subr.mxu0 0.0
    %557 = vmatpush1.msra.mxu0 0.0
    %558 = vmatprep.subr.mxu0 0.0
    %559 = vmatpush1.msra.mxu0 0.0
    %560 = vmatprep.subr.mxu0 0.0
    %561 = vmatpush1.msra.mxu0 0.0
    %562 = vmatprep.subr.mxu0 0.0
    %563 = vmatpush1.msra.mxu0 0.0
    %564 = vmatprep.subr.mxu0 0.0
    %565 = vmatpush1.msra.mxu0 0.0
    %566 = vmatprep.subr.mxu0 0.0
    %567 = vmatpush1.msra.mxu0 0.0
    %568 = vmatprep.subr.mxu0 0.0
    %569 = vmatpush1.msra.mxu0 0.0
    %570 = vmatprep.subr.mxu0 0.0
    %571 = vmatpush1.msra.mxu0 0.0
    %572 = vmatprep.subr.mxu0 0.0
    %573 = vmatpush1.msra.mxu0 0.0
    %574 = vmatprep.subr.mxu0 0.0
    %575 = vmatpush1.msra.mxu0 0.0
    %576 = vmatprep.subr.mxu0 0.0
    %577 = vmatpush1.msra.mxu0 0.0
    %578 = vmatprep.mubr.f32.mxu0 0.0
    %579 = vmatmul.mubr.f32.gmra.mrb[0].mxu0 %v512
    %v580 = vpop.f32.mrb[0].mxu0
    %v581 = vadd.f32 0.0, %v580
    %v582 = vpop.f32.mrb[0].mxu0
    %583 = vdwg.mxu0
    %v584 = vmul.f32 %v503, %v581
    %585 = vxpose.xlu0.b32.start [1/16] %v584, 128
    %586 = vxpose.xlu0.b32.cont [2/16] 0.0, 128
    %587 = vxpose.xlu0.b32.cont [3/16] 0.0, 128
    %588 = vxpose.xlu0.b32.cont [4/16] 0.0, 128
    %589 = vxpose.xlu0.b32.cont [5/16] 0.0, 128
    %590 = vxpose.xlu0.b32.cont [6/16] 0.0, 128
    %591 = vxpose.xlu0.b32.cont [7/16] 0.0, 128
    %592 = vxpose.xlu0.b32.cont [8/16] 0.0, 128
    %593 = vxpose.xlu0.b32.cont [9/16] 0.0, 128
    %594 = vxpose.xlu0.b32.cont [10/16] 0.0, 128
    %595 = vxpose.xlu0.b32.cont [11/16] 0.0, 128
    %596 = vxpose.xlu0.b32.cont [12/16] 0.0, 128
    %597 = vxpose.xlu0.b32.cont [13/16] 0.0, 128
    %598 = vxpose.xlu0.b32.cont [14/16] 0.0, 128
    %599 = vxpose.xlu0.b32.cont [15/16] 0.0, 128
    %600 = vxpose.xlu0.b32.end [16/16] 0.0, 128
    %v601 = vpop.trf.xlu0
    %v602 = vpop.trf.xlu0
    %v603 = vpop.trf.xlu0
    %v604 = vpop.trf.xlu0
    %v605 = vpop.trf.xlu0
    %v606 = vpop.trf.xlu0
    %v607 = vpop.trf.xlu0
    %v608 = vpop.trf.xlu0
    %v609 = vpop.trf.xlu0
    %v610 = vpop.trf.xlu0
    %v611 = vpop.trf.xlu0
    %v612 = vpop.trf.xlu0
    %v613 = vpop.trf.xlu0
    %v614 = vpop.trf.xlu0
    %v615 = vpop.trf.xlu0
    %v616 = vpop.trf.xlu0
    %v617 = vsel %vm196, %v601, 0.0
    %v618 = vrot.slane %v617, 4
    %v619 = vadd.f32 %v617, %v618
    %v620 = vrot.slane %v619, 2
    %v621 = vadd.f32 %v619, %v620
    %v622 = vrot.slane %v621, 1
    %v623 = vadd.f32 %v621, %v622
    %v624 = vadd.f32 %v623, %v348
    %vm625 = vcmp.ge.f32.partialorder %v624, 0.0
    %v626 = vmul.f32 %v624, 0.01
    %v627 = vsel %vm625, %v624, %v626
    %v628 = vld [vmem:[%s4] sm:$0xff]
    %v629 = vld [vmem:[%s4 + $0x8] sm:$0xff]
    %v630 = vld [vmem:[%s4 + $0x10] sm:$0xff]
    %v631 = vld [vmem:[%s4 + $0x18] sm:$0xff]
    %v632 = vld [vmem:[%s4 + $0x20] sm:$0xff]
    %v633 = vld [vmem:[%s4 + $0x28] sm:$0xff]
    %v634 = vld [vmem:[%s4 + $0x30] sm:$0xff]
    %v635 = vld [vmem:[%s4 + $0x38] sm:$0xff]
    %v637 = vsel %vm196, %v628, 0
    %v640 = vsel %vm196, %v629, 0
    %v643 = vsel %vm196, %v630, 0
    %v646 = vsel %vm196, %v631, 0
    %v649 = vsel %vm196, %v632, 0
    %v652 = vsel %vm196, %v633, 0
    %v655 = vsel %vm196, %v634, 0
    %v658 = vsel %vm196, %v635, 0
    %660 = vmatprep.subr.mxu0 0.0
    %661 = vmatpush1.msra.mxu0 %v627
    %662 = vmatprep.subr.mxu0 0.0
    %663 = vmatpush1.msra.mxu0 0.0
    %664 = vmatprep.subr.mxu0 0.0
    %665 = vmatpush1.msra.mxu0 0.0
    %666 = vmatprep.subr.mxu0 0.0
    %667 = vmatpush1.msra.mxu0 0.0
    %668 = vmatprep.subr.mxu0 0.0
    %669 = vmatpush1.msra.mxu0 0.0
    %670 = vmatprep.subr.mxu0 0.0
    %671 = vmatpush1.msra.mxu0 0.0
    %672 = vmatprep.subr.mxu0 0.0
    %673 = vmatpush1.msra.mxu0 0.0
    %674 = vmatprep.subr.mxu0 0.0
    %675 = vmatpush1.msra.mxu0 0.0
    %676 = vmatprep.subr.mxu0 0.0
    %677 = vmatpush1.msra.mxu0 0.0
    %678 = vmatprep.subr.mxu0 0.0
    %679 = vmatpush1.msra.mxu0 0.0
    %680 = vmatprep.subr.mxu0 0.0
    %681 = vmatpush1.msra.mxu0 0.0
    %682 = vmatprep.subr.mxu0 0.0
    %683 = vmatpush1.msra.mxu0 0.0
    %684 = vmatprep.subr.mxu0 0.0
    %685 = vmatpush1.msra.mxu0 0.0
    %686 = vmatprep.subr.mxu0 0.0
    %687 = vmatpush1.msra.mxu0 0.0
    %688 = vmatprep.subr.mxu0 0.0
    %689 = vmatpush1.msra.mxu0 0.0
    %690 = vmatprep.subr.mxu0 0.0
    %691 = vmatpush1.msra.mxu0 0.0
    %692 = vmatprep.subr.mxu0 0.0
    %693 = vmatpush1.msra.mxu0 0.0
    %694 = vmatprep.subr.mxu0 0.0
    %695 = vmatpush1.msra.mxu0 0.0
    %696 = vmatprep.subr.mxu0 0.0
    %697 = vmatpush1.msra.mxu0 0.0
    %698 = vmatprep.subr.mxu0 0.0
    %699 = vmatpush1.msra.mxu0 0.0
    %700 = vmatprep.subr.mxu0 0.0
    %701 = vmatpush1.msra.mxu0 0.0
    %702 = vmatprep.subr.mxu0 0.0
    %703 = vmatpush1.msra.mxu0 0.0
    %704 = vmatprep.subr.mxu0 0.0
    %705 = vmatpush1.msra.mxu0 0.0
    %706 = vmatprep.subr.mxu0 0.0
    %707 = vmatpush1.msra.mxu0 0.0
    %708 = vmatprep.subr.mxu0 0.0
    %709 = vmatpush1.msra.mxu0 0.0
    %710 = vmatprep.subr.mxu0 0.0
    %711 = vmatpush1.msra.mxu0 0.0
    %712 = vmatprep.subr.mxu0 0.0
    %713 = vmatpush1.msra.mxu0 0.0
    %714 = vmatprep.subr.mxu0 0.0
    %715 = vmatpush1.msra.mxu0 0.0
    %716 = vmatprep.subr.mxu0 0.0
    %717 = vmatpush1.msra.mxu0 0.0
    %718 = vmatprep.subr.mxu0 0.0
    %719 = vmatpush1.msra.mxu0 0.0
    %720 = vmatprep.subr.mxu0 0.0
    %721 = vmatpush1.msra.mxu0 0.0
    %722 = vmatprep.subr.mxu0 0.0
    %723 = vmatpush1.msra.mxu0 0.0
    %724 = vmatprep.mubr.f32.mxu0 0.0
    %725 = vmatmul.mubr.f32.gmra.mrb[0].mxu0 %v637
    %v726 = vpop.f32.mrb[0].mxu0
    %v727 = vadd.f32 0.0, %v726
    %v728 = vpop.f32.mrb[0].mxu0
    %729 = vmatprep.mubr.f32.mxu0 0.0
    %730 = vmatmul.mubr.f32.gmra.mrb[0].mxu0 %v640
    %v731 = vpop.f32.mrb[0].mxu0
    %v732 = vadd.f32 0.0, %v731
    %v733 = vpop.f32.mrb[0].mxu0
    %734 = vmatprep.mubr.f32.mxu0 0.0
    %735 = vmatmul.mubr.f32.gmra.mrb[0].mxu0 %v643
    %v736 = vpop.f32.mrb[0].mxu0
    %v737 = vadd.f32 0.0, %v736
    %v738 = vpop.f32.mrb[0].mxu0
    %739 = vmatprep.mubr.f32.mxu0 0.0
    %740 = vmatmul.mubr.f32.gmra.mrb[0].mxu0 %v646
    %v741 = vpop.f32.mrb[0].mxu0
    %v742 = vadd.f32 0.0, %v741
    %v743 = vpop.f32.mrb[0].mxu0
    %744 = vmatprep.mubr.f32.mxu0 0.0
    %745 = vmatmul.mubr.f32.gmra.mrb[0].mxu0 %v649
    %v746 = vpop.f32.mrb[0].mxu0
    %v747 = vadd.f32 0.0, %v746
    %v748 = vpop.f32.mrb[0].mxu0
    %749 = vmatprep.mubr.f32.mxu0 0.0
    %750 = vmatmul.mubr.f32.gmra.mrb[0].mxu0 %v652
    %v751 = vpop.f32.mrb[0].mxu0
    %v752 = vadd.f32 0.0, %v751
    %v753 = vpop.f32.mrb[0].mxu0
    %754 = vmatprep.mubr.f32.mxu0 0.0
    %755 = vmatmul.mubr.f32.gmra.mrb[0].mxu0 %v655
    %v756 = vpop.f32.mrb[0].mxu0
    %v757 = vadd.f32 0.0, %v756
    %v758 = vpop.f32.mrb[0].mxu0
    %759 = vmatprep.mubr.f32.mxu0 0.0
    %760 = vmatmul.mubr.f32.gmra.mrb[0].mxu0 %v658
    %v761 = vpop.f32.mrb[0].mxu0
    %v762 = vadd.f32 0.0, %v761
    %v763 = vpop.f32.mrb[0].mxu0
    %764 = vdwg.mxu0
    %v765 = vsel %vm196, %v727, -inf
    %v766 = vrot.slane %v765, 4
    %v767 = vmax.f32 %v765, %v766
    %v768 = vrot.slane %v767, 2
    %v769 = vmax.f32 %v767, %v768
    %v770 = vrot.slane %v769, 1
    %v771 = vmax.f32 %v769, %v770
    %v772 = vsel %vm196, %v732, -inf
    %v773 = vrot.slane %v772, 4
    %v774 = vmax.f32 %v772, %v773
    %v775 = vrot.slane %v774, 2
    %v776 = vmax.f32 %v774, %v775
    %v777 = vrot.slane %v776, 1
    %v778 = vmax.f32 %v776, %v777
    %v779 = vsel %vm196, %v737, -inf
    %v780 = vrot.slane %v779, 4
    %v781 = vmax.f32 %v779, %v780
    %v782 = vrot.slane %v781, 2
    %v783 = vmax.f32 %v781, %v782
    %v784 = vrot.slane %v783, 1
    %v785 = vmax.f32 %v783, %v784
    %v786 = vsel %vm196, %v742, -inf
    %v787 = vrot.slane %v786, 4
    %v788 = vmax.f32 %v786, %v787
    %v789 = vrot.slane %v788, 2
    %v790 = vmax.f32 %v788, %v789
    %v791 = vrot.slane %v790, 1
    %v792 = vmax.f32 %v790, %v791
    %v793 = vsel %vm196, %v747, -inf
    %v794 = vrot.slane %v793, 4
    %v795 = vmax.f32 %v793, %v794
    %v796 = vrot.slane %v795, 2
    %v797 = vmax.f32 %v795, %v796
    %v798 = vrot.slane %v797, 1
    %v799 = vmax.f32 %v797, %v798
    %v800 = vsel %vm196, %v752, -inf
    %v801 = vrot.slane %v800, 4
    %v802 = vmax.f32 %v800, %v801
    %v803 = vrot.slane %v802, 2
    %v804 = vmax.f32 %v802, %v803
    %v805 = vrot.slane %v804, 1
    %v806 = vmax.f32 %v804, %v805
    %v807 = vsel %vm196, %v757, -inf
    %v808 = vrot.slane %v807, 4
    %v809 = vmax.f32 %v807, %v808
    %v810 = vrot.slane %v809, 2
    %v811 = vmax.f32 %v809, %v810
    %v812 = vrot.slane %v811, 1
    %v813 = vmax.f32 %v811, %v812
    %v814 = vsel %vm196, %v762, -inf
    %v815 = vrot.slane %v814, 4
    %v816 = vmax.f32 %v814, %v815
    %v817 = vrot.slane %v816, 2
    %v818 = vmax.f32 %v816, %v817
    %v819 = vrot.slane %v818, 1
    %v820 = vmax.f32 %v818, %v819
    %v821 = vsub.f32 %v727, %v771
    %v822 = vsub.f32 %v732, %v778
    %v823 = vsub.f32 %v737, %v785
    %v824 = vsub.f32 %v742, %v792
    %v825 = vsub.f32 %v747, %v799
    %v826 = vsub.f32 %v752, %v806
    %v827 = vsub.f32 %v757, %v813
    %v828 = vsub.f32 %v762, %v820
    %v829 = vmul.f32 %v821, 1.442695
    %v830 = vpow.pop %v829
    %v831 = vmul.f32 %v822, 1.442695
    %v832 = vpow.pop %v831
    %v833 = vmul.f32 %v823, 1.442695
    %v834 = vpow.pop %v833
    %v835 = vmul.f32 %v824, 1.442695
    %v836 = vpow.pop %v835
    %v837 = vmul.f32 %v825, 1.442695
    %v838 = vpow.pop %v837
    %v839 = vmul.f32 %v826, 1.442695
    %v840 = vpow.pop %v839
    %v841 = vmul.f32 %v827, 1.442695
    %v842 = vpow.pop %v841
    %v843 = vmul.f32 %v828, 1.442695
    %v844 = vpow.pop %v843
    %v845 = vsel %vm196, %v830, 0.0
    %v846 = vrot.slane %v845, 4
    %v847 = vadd.f32 %v845, %v846
    %v848 = vrot.slane %v847, 2
    %v849 = vadd.f32 %v847, %v848
    %v850 = vrot.slane %v849, 1
    %v851 = vadd.f32 %v849, %v850
    %v852 = vsel %vm196, %v832, 0.0
    %v853 = vrot.slane %v852, 4
    %v854 = vadd.f32 %v852, %v853
    %v855 = vrot.slane %v854, 2
    %v856 = vadd.f32 %v854, %v855
    %v857 = vrot.slane %v856, 1
    %v858 = vadd.f32 %v856, %v857
    %v859 = vsel %vm196, %v834, 0.0
    %v860 = vrot.slane %v859, 4
    %v861 = vadd.f32 %v859, %v860
    %v862 = vrot.slane %v861, 2
    %v863 = vadd.f32 %v861, %v862
    %v864 = vrot.slane %v863, 1
    %v865 = vadd.f32 %v863, %v864
    %v866 = vsel %vm196, %v836, 0.0
    %v867 = vrot.slane %v866, 4
    %v868 = vadd.f32 %v866, %v867
    %v869 = vrot.slane %v868, 2
    %v870 = vadd.f32 %v868, %v869
    %v871 = vrot.slane %v870, 1
    %v872 = vadd.f32 %v870, %v871
    %v873 = vsel %vm196, %v838, 0.0
    %v874 = vrot.slane %v873, 4
    %v875 = vadd.f32 %v873, %v874
    %v876 = vrot.slane %v875, 2
    %v877 = vadd.f32 %v875, %v876
    %v878 = vrot.slane %v877, 1
    %v879 = vadd.f32 %v877, %v878
    %v880 = vsel %vm196, %v840, 0.0
    %v881 = vrot.slane %v880, 4
    %v882 = vadd.f32 %v880, %v881
    %v883 = vrot.slane %v882, 2
    %v884 = vadd.f32 %v882, %v883
    %v885 = vrot.slane %v884, 1
    %v886 = vadd.f32 %v884, %v885
    %v887 = vsel %vm196, %v842, 0.0
    %v888 = vrot.slane %v887, 4
    %v889 = vadd.f32 %v887, %v888
    %v890 = vrot.slane %v889, 2
    %v891 = vadd.f32 %v889, %v890
    %v892 = vrot.slane %v891, 1
    %v893 = vadd.f32 %v891, %v892
    %v894 = vsel %vm196, %v844, 0.0
    %v895 = vrot.slane %v894, 4
    %v896 = vadd.f32 %v894, %v895
    %v897 = vrot.slane %v896, 2
    %v898 = vadd.f32 %v896, %v897
    %v899 = vrot.slane %v898, 1
    %v900 = vadd.f32 %v898, %v899
    %v901 = vrcp.pop %v851
    %v902 = vmul.f32 %v830, %v901
    %v903 = vrcp.pop %v858
    %v904 = vmul.f32 %v832, %v903
    %v905 = vrcp.pop %v865
    %v906 = vmul.f32 %v834, %v905
    %v907 = vrcp.pop %v872
    %v908 = vmul.f32 %v836, %v907
    %v909 = vrcp.pop %v879
    %v910 = vmul.f32 %v838, %v909
    %v911 = vrcp.pop %v886
    %v912 = vmul.f32 %v840, %v911
    %v913 = vrcp.pop %v893
    %v914 = vmul.f32 %v842, %v913
    %v915 = vrcp.pop %v900
    %v916 = vmul.f32 %v844, %v915
    %917 = vrot.lane.b32.xlu0 %v429, 112
    %v918 = vpop.permute.xlu0 %917
    %v921 = vsel %vm196, %v902, 0
    %v924 = vsel %vm196, %v904, 0
    %v927 = vsel %vm196, %v906, 0
    %v930 = vsel %vm196, %v908, 0
    %v933 = vsel %vm196, %v910, 0
    %v936 = vsel %vm196, %v912, 0
    %v939 = vsel %vm196, %v914, 0
    %v942 = vsel %vm196, %v916, 0
    %944 = vmatprep.subr.mxu0 0.0
    %945 = vmatpush1.msra.mxu0 %v918
    %946 = vmatprep.subr.mxu0 0.0
    %947 = vmatpush1.msra.mxu0 0.0
    %948 = vmatprep.subr.mxu0 0.0
    %949 = vmatpush1.msra.mxu0 0.0
    %950 = vmatprep.subr.mxu0 0.0
    %951 = vmatpush1.msra.mxu0 0.0
    %952 = vmatprep.subr.mxu0 0.0
    %953 = vmatpush1.msra.mxu0 0.0
    %954 = vmatprep.subr.mxu0 0.0
    %955 = vmatpush1.msra.mxu0 0.0
    %956 = vmatprep.subr.mxu0 0.0
    %957 = vmatpush1.msra.mxu0 0.0
    %958 = vmatprep.subr.mxu0 0.0
    %959 = vmatpush1.msra.mxu0 0.0
    %960 = vmatprep.subr.mxu0 0.0
    %961 = vmatpush1.msra.mxu0 0.0
    %962 = vmatprep.subr.mxu0 0.0
    %963 = vmatpush1.msra.mxu0 0.0
    %964 = vmatprep.subr.mxu0 0.0
    %965 = vmatpush1.msra.mxu0 0.0
    %966 = vmatprep.subr.mxu0 0.0
    %967 = vmatpush1.msra.mxu0 0.0
    %968 = vmatprep.subr.mxu0 0.0
    %969 = vmatpush1.msra.mxu0 0.0
    %970 = vmatprep.subr.mxu0 0.0
    %971 = vmatpush1.msra.mxu0 0.0
    %972 = vmatprep.subr.mxu0 0.0
    %973 = vmatpush1.msra.mxu0 0.0
    %974 = vmatprep.subr.mxu0 0.0
    %975 = vmatpush1.msra.mxu0 0.0
    %976 = vmatprep.subr.mxu0 0.0
    %977 = vmatpush1.msra.mxu0 0.0
    %978 = vmatprep.subr.mxu0 0.0
    %979 = vmatpush1.msra.mxu0 0.0
    %980 = vmatprep.subr.mxu0 0.0
    %981 = vmatpush1.msra.mxu0 0.0
    %982 = vmatprep.subr.mxu0 0.0
    %983 = vmatpush1.msra.mxu0 0.0
    %984 = vmatprep.subr.mxu0 0.0
    %985 = vmatpush1.msra.mxu0 0.0
    %986 = vmatprep.subr.mxu0 0.0
    %987 = vmatpush1.msra.mxu0 0.0
    %988 = vmatprep.subr.mxu0 0.0
    %989 = vmatpush1.msra.mxu0 0.0
    %990 = vmatprep.subr.mxu0 0.0
    %991 = vmatpush1.msra.mxu0 0.0
    %992 = vmatprep.subr.mxu0 0.0
    %993 = vmatpush1.msra.mxu0 0.0
    %994 = vmatprep.subr.mxu0 0.0
    %995 = vmatpush1.msra.mxu0 0.0
    %996 = vmatprep.subr.mxu0 0.0
    %997 = vmatpush1.msra.mxu0 0.0
    %998 = vmatprep.subr.mxu0 0.0
    %999 = vmatpush1.msra.mxu0 0.0
    %1000 = vmatprep.subr.mxu0 0.0
    %1001 = vmatpush1.msra.mxu0 0.0
    %1002 = vmatprep.subr.mxu0 0.0
    %1003 = vmatpush1.msra.mxu0 0.0
    %1004 = vmatprep.subr.mxu0 0.0
    %1005 = vmatpush1.msra.mxu0 0.0
    %1006 = vmatprep.subr.mxu0 0.0
    %1007 = vmatpush1.msra.mxu0 0.0
    %1008 = vmatprep.mubr.f32.mxu0 0.0
    %1009 = vmatmul.mubr.f32.gmra.mrb[0].mxu0 %v921
    %v1010 = vpop.f32.mrb[0].mxu0
    %v1011 = vadd.f32 0.0, %v1010
    %v1012 = vpop.f32.mrb[0].mxu0
    %1013 = vmatprep.mubr.f32.mxu0 0.0
    %1014 = vmatmul.mubr.f32.gmra.mrb[0].mxu0 %v924
    %v1015 = vpop.f32.mrb[0].mxu0
    %v1016 = vadd.f32 0.0, %v1015
    %v1017 = vpop.f32.mrb[0].mxu0
    %1018 = vmatprep.mubr.f32.mxu0 0.0
    %1019 = vmatmul.mubr.f32.gmra.mrb[0].mxu0 %v927
    %v1020 = vpop.f32.mrb[0].mxu0
    %v1021 = vadd.f32 0.0, %v1020
    %v1022 = vpop.f32.mrb[0].mxu0
    %1023 = vmatprep.mubr.f32.mxu0 0.0
    %1024 = vmatmul.mubr.f32.gmra.mrb[0].mxu0 %v930
    %v1025 = vpop.f32.mrb[0].mxu0
    %v1026 = vadd.f32 0.0, %v1025
    %v1027 = vpop.f32.mrb[0].mxu0
    %1028 = vmatprep.mubr.f32.mxu0 0.0
    %1029 = vmatmul.mubr.f32.gmra.mrb[0].mxu0 %v933
    %v1030 = vpop.f32.mrb[0].mxu0
    %v1031 = vadd.f32 0.0, %v1030
    %v1032 = vpop.f32.mrb[0].mxu0
    %1033 = vmatprep.mubr.f32.mxu0 0.0
    %1034 = vmatmul.mubr.f32.gmra.mrb[0].mxu0 %v936
    %v1035 = vpop.f32.mrb[0].mxu0
    %v1036 = vadd.f32 0.0, %v1035
    %v1037 = vpop.f32.mrb[0].mxu0
    %1038 = vmatprep.mubr.f32.mxu0 0.0
    %1039 = vmatmul.mubr.f32.gmra.mrb[0].mxu0 %v939
    %v1040 = vpop.f32.mrb[0].mxu0
    %v1041 = vadd.f32 0.0, %v1040
    %v1042 = vpop.f32.mrb[0].mxu0
    %1043 = vmatprep.mubr.f32.mxu0 0.0
    %1044 = vmatmul.mubr.f32.gmra.mrb[0].mxu0 %v942
    %v1045 = vpop.f32.mrb[0].mxu0
    %v1046 = vadd.f32 0.0, %v1045
    %v1047 = vpop.f32.mrb[0].mxu0
    %1048 = vdwg.mxu0
    %v1049 = vadd.f32 %v184, %v1011
    %v1050 = vadd.f32 %v184, %v1016
    %v1051 = vadd.f32 %v184, %v1021
    %v1052 = vadd.f32 %v184, %v1026
    %v1053 = vadd.f32 %v184, %v1031
    %v1054 = vadd.f32 %v184, %v1036
    %v1055 = vadd.f32 %v184, %v1041
    %v1056 = vadd.f32 %v184, %v1046
    %v1057 = vld [vmem:[%s17] sm:$0xff]
    %v1058 = vld [vmem:[%s18] sm:$0xff]
    %v1059 = vsel %vm196, %v1049, 0.0
    %1060 = vadd.xlane.f32.xlu0 %v1059
    %v1061 = vpop.xlane.xlu0 %1060
    %v1062 = vsel %vm196, %v1050, 0.0
    %1063 = vadd.xlane.f32.xlu0 %v1062
    %v1064 = vpop.xlane.xlu0 %1063
    %v1065 = vsel %vm196, %v1051, 0.0
    %1066 = vadd.xlane.f32.xlu0 %v1065
    %v1067 = vpop.xlane.xlu0 %1066
    %v1068 = vsel %vm196, %v1052, 0.0
    %1069 = vadd.xlane.f32.xlu0 %v1068
    %v1070 = vpop.xlane.xlu0 %1069
    %v1071 = vsel %vm196, %v1053, 0.0
    %1072 = vadd.xlane.f32.xlu0 %v1071
    %v1073 = vpop.xlane.xlu0 %1072
    %v1074 = vsel %vm196, %v1054, 0.0
    %1075 = vadd.xlane.f32.xlu0 %v1074
    %v1076 = vpop.xlane.xlu0 %1075
    %v1077 = vsel %vm196, %v1055, 0.0
    %1078 = vadd.xlane.f32.xlu0 %v1077
    %v1079 = vpop.xlane.xlu0 %1078
    %v1080 = vsel %vm196, %v1056, 0.0
    %1081 = vadd.xlane.f32.xlu0 %v1080
    %v1082 = vpop.xlane.xlu0 %1081
    %v1083 = vrcp.pop 8.0
    %v1084 = vmul.f32 %v1061, %v1083
    %v1085 = vmul.f32 %v1064, %v1083
    %v1086 = vmul.f32 %v1067, %v1083
    %v1087 = vmul.f32 %v1070, %v1083
    %v1088 = vmul.f32 %v1073, %v1083
    %v1089 = vmul.f32 %v1076, %v1083
    %v1090 = vmul.f32 %v1079, %v1083
    %v1091 = vmul.f32 %v1082, %v1083
    %v1092 = vadd.f32 %v1084, %v1085
    %v1093 = vadd.f32 %v1092, %v1086
    %v1094 = vadd.f32 %v1093, %v1087
    %v1095 = vadd.f32 %v1094, %v1088
    %v1096 = vadd.f32 %v1095, %v1089
    %v1097 = vadd.f32 %v1096, %v1090
    %v1098 = vadd.f32 %v1097, %v1091
    %v1099 = vmul.f32 %v1098, %v1083
    %v1100 = vsub.f32 %v1049, %v1099
    %v1101 = vsub.f32 %v1050, %v1099
    %v1102 = vsub.f32 %v1051, %v1099
    %v1103 = vsub.f32 %v1052, %v1099
    %v1104 = vsub.f32 %v1053, %v1099
    %v1105 = vsub.f32 %v1054, %v1099
    %v1106 = vsub.f32 %v1055, %v1099
    %v1107 = vsub.f32 %v1056, %v1099
    %v1108 = vmul.f32 %v1100, %v1100
    %v1109 = vmul.f32 %v1101, %v1101
    %v1110 = vmul.f32 %v1102, %v1102
    %v1111 = vmul.f32 %v1103, %v1103
    %v1112 = vmul.f32 %v1104, %v1104
    %v1113 = vmul.f32 %v1105, %v1105
    %v1114 = vmul.f32 %v1106, %v1106
    %v1115 = vmul.f32 %v1107, %v1107
    %v1116 = vsel %vm196, %v1108, 0.0
    %1117 = vadd.xlane.f32.xlu0 %v1116
    %v1118 = vpop.xlane.xlu0 %1117
    %v1119 = vsel %vm196, %v1109, 0.0
    %1120 = vadd.xlane.f32.xlu0 %v1119
    %v1121 = vpop.xlane.xlu0 %1120
    %v1122 = vsel %vm196, %v1110, 0.0
    %1123 = vadd.xlane.f32.xlu0 %v1122
    %v1124 = vpop.xlane.xlu0 %1123
    %v1125 = vsel %vm196, %v1111, 0.0
    %1126 = vadd.xlane.f32.xlu0 %v1125
    %v1127 = vpop.xlane.xlu0 %1126
    %v1128 = vsel %vm196, %v1112, 0.0
    %1129 = vadd.xlane.f32.xlu0 %v1128
    %v1130 = vpop.xlane.xlu0 %1129
    %v1131 = vsel %vm196, %v1113, 0.0
    %1132 = vadd.xlane.f32.xlu0 %v1131
    %v1133 = vpop.xlane.xlu0 %1132
    %v1134 = vsel %vm196, %v1114, 0.0
    %1135 = vadd.xlane.f32.xlu0 %v1134
    %v1136 = vpop.xlane.xlu0 %1135
    %v1137 = vsel %vm196, %v1115, 0.0
    %1138 = vadd.xlane.f32.xlu0 %v1137
    %v1139 = vpop.xlane.xlu0 %1138
    %v1140 = vmul.f32 %v1118, %v1083
    %v1141 = vmul.f32 %v1121, %v1083
    %v1142 = vmul.f32 %v1124, %v1083
    %v1143 = vmul.f32 %v1127, %v1083
    %v1144 = vmul.f32 %v1130, %v1083
    %v1145 = vmul.f32 %v1133, %v1083
    %v1146 = vmul.f32 %v1136, %v1083
    %v1147 = vmul.f32 %v1139, %v1083
    %v1148 = vadd.f32 %v1140, %v1141
    %v1149 = vadd.f32 %v1148, %v1142
    %v1150 = vadd.f32 %v1149, %v1143
    %v1151 = vadd.f32 %v1150, %v1144
    %v1152 = vadd.f32 %v1151, %v1145
    %v1153 = vadd.f32 %v1152, %v1146
    %v1154 = vadd.f32 %v1153, %v1147
    %v1155 = vmul.f32 %v1154, %v1083
    %v1156 = vadd.f32 %v1155, 1e-05
    %v1157 = vrsqrt.pop %v1156
    %v1158 = vmul.f32 %v1100, %v1157
    %v1159 = vmul.f32 %v1101, %v1157
    %v1160 = vmul.f32 %v1102, %v1157
    %v1161 = vmul.f32 %v1103, %v1157
    %v1162 = vmul.f32 %v1104, %v1157
    %v1163 = vmul.f32 %v1105, %v1157
    %v1164 = vmul.f32 %v1106, %v1157
    %v1165 = vmul.f32 %v1107, %v1157
    %1167 = vset.pattern.permute.xlu0 0
    %1168 = vperm.xlu0 %1167, %v1057
    %v1169 = vpop.permute.xlu0 %1168
    %v1171 = vmul.f32 %v1158, %v1169
    %v1172 = vmul.f32 %v1159, %v1169
    %v1173 = vmul.f32 %v1160, %v1169
    %v1174 = vmul.f32 %v1161, %v1169
    %v1175 = vmul.f32 %v1162, %v1169
    %v1176 = vmul.f32 %v1163, %v1169
    %v1177 = vmul.f32 %v1164, %v1169
    %v1178 = vmul.f32 %v1165, %v1169
    %1180 = vset.pattern.permute.xlu0 0
    %1181 = vperm.xlu0 %1180, %v1058
    %v1182 = vpop.permute.xlu0 %1181
    %v1184 = vadd.f32 %v1171, %v1182
    %v1185 = vadd.f32 %v1172, %v1182
    %v1186 = vadd.f32 %v1173, %v1182
    %v1187 = vadd.f32 %v1174, %v1182
    %v1188 = vadd.f32 %v1175, %v1182
    %v1189 = vadd.f32 %v1176, %v1182
    %v1190 = vadd.f32 %v1177, %v1182
    %v1191 = vadd.f32 %v1178, %v1182
    %v1192 = vld [vmem:[%s21] sm:$0xff]
    %v1193 = vld [vmem:[%s22] sm:$0x1]
    %v1195 = vlaneseq
    %v1196 = vshrl.u32 %v1195, 7
    %v1197 = vsub.s32 0, %v1196
    %v1198 = vrot.slane %v1193, %v1197
    %v1201 = vsel %vm196, %v1184, 0
    %v1204 = vsel %vm196, %v1185, 0
    %v1207 = vsel %vm196, %v1186, 0
    %v1210 = vsel %vm196, %v1187, 0
    %v1213 = vsel %vm196, %v1188, 0
    %v1216 = vsel %vm196, %v1189, 0
    %v1219 = vsel %vm196, %v1190, 0
    %v1222 = vsel %vm196, %v1191, 0
    %1224 = vmatprep.subr.mxu0 0.0
    %1225 = vmatpush1.msra.mxu0 %v1192
    %1226 = vmatprep.subr.mxu0 0.0
    %1227 = vmatpush1.msra.mxu0 0.0
    %1228 = vmatprep.subr.mxu0 0.0
    %1229 = vmatpush1.msra.mxu0 0.0
    %1230 = vmatprep.subr.mxu0 0.0
    %1231 = vmatpush1.msra.mxu0 0.0
    %1232 = vmatprep.subr.mxu0 0.0
    %1233 = vmatpush1.msra.mxu0 0.0
    %1234 = vmatprep.subr.mxu0 0.0
    %1235 = vmatpush1.msra.mxu0 0.0
    %1236 = vmatprep.subr.mxu0 0.0
    %1237 = vmatpush1.msra.mxu0 0.0
    %1238 = vmatprep.subr.mxu0 0.0
    %1239 = vmatpush1.msra.mxu0 0.0
    %1240 = vmatprep.subr.mxu0 0.0
    %1241 = vmatpush1.msra.mxu0 0.0
    %1242 = vmatprep.subr.mxu0 0.0
    %1243 = vmatpush1.msra.mxu0 0.0
    %1244 = vmatprep.subr.mxu0 0.0
    %1245 = vmatpush1.msra.mxu0 0.0
    %1246 = vmatprep.subr.mxu0 0.0
    %1247 = vmatpush1.msra.mxu0 0.0
    %1248 = vmatprep.subr.mxu0 0.0
    %1249 = vmatpush1.msra.mxu0 0.0
    %1250 = vmatprep.subr.mxu0 0.0
    %1251 = vmatpush1.msra.mxu0 0.0
    %1252 = vmatprep.subr.mxu0 0.0
    %1253 = vmatpush1.msra.mxu0 0.0
    %1254 = vmatprep.subr.mxu0 0.0
    %1255 = vmatpush1.msra.mxu0 0.0
    %1256 = vmatprep.subr.mxu0 0.0
    %1257 = vmatpush1.msra.mxu0 0.0
    %1258 = vmatprep.subr.mxu0 0.0
    %1259 = vmatpush1.msra.mxu0 0.0
    %1260 = vmatprep.subr.mxu0 0.0
    %1261 = vmatpush1.msra.mxu0 0.0
    %1262 = vmatprep.subr.mxu0 0.0
    %1263 = vmatpush1.msra.mxu0 0.0
    %1264 = vmatprep.subr.mxu0 0.0
    %1265 = vmatpush1.msra.mxu0 0.0
    %1266 = vmatprep.subr.mxu0 0.0
    %1267 = vmatpush1.msra.mxu0 0.0
    %1268 = vmatprep.subr.mxu0 0.0
    %1269 = vmatpush1.msra.mxu0 0.0
    %1270 = vmatprep.subr.mxu0 0.0
    %1271 = vmatpush1.msra.mxu0 0.0
    %1272 = vmatprep.subr.mxu0 0.0
    %1273 = vmatpush1.msra.mxu0 0.0
    %1274 = vmatprep.subr.mxu0 0.0
    %1275 = vmatpush1.msra.mxu0 0.0
    %1276 = vmatprep.subr.mxu0 0.0
    %1277 = vmatpush1.msra.mxu0 0.0
    %1278 = vmatprep.subr.mxu0 0.0
    %1279 = vmatpush1.msra.mxu0 0.0
    %1280 = vmatprep.subr.mxu0 0.0
    %1281 = vmatpush1.msra.mxu0 0.0
    %1282 = vmatprep.subr.mxu0 0.0
    %1283 = vmatpush1.msra.mxu0 0.0
    %1284 = vmatprep.subr.mxu0 0.0
    %1285 = vmatpush1.msra.mxu0 0.0
    %1286 = vmatprep.subr.mxu0 0.0
    %1287 = vmatpush1.msra.mxu0 0.0
    %1288 = vmatprep.mubr.f32.mxu0 0.0
    %1289 = vmatmul.mubr.f32.gmra.mrb[0].mxu0 %v1201
    %v1290 = vpop.f32.mrb[0].mxu0
    %v1291 = vadd.f32 %v1198, %v1290
    %v1292 = vpop.f32.mrb[0].mxu0
    %1293 = vmatprep.mubr.f32.mxu0 0.0
    %1294 = vmatmul.mubr.f32.gmra.mrb[0].mxu0 %v1204
    %v1295 = vpop.f32.mrb[0].mxu0
    %v1296 = vadd.f32 %v1198, %v1295
    %v1297 = vpop.f32.mrb[0].mxu0
    %1298 = vmatprep.mubr.f32.mxu0 0.0
    %1299 = vmatmul.mubr.f32.gmra.mrb[0].mxu0 %v1207
    %v1300 = vpop.f32.mrb[0].mxu0
    %v1301 = vadd.f32 %v1198, %v1300
    %v1302 = vpop.f32.mrb[0].mxu0
    %1303 = vmatprep.mubr.f32.mxu0 0.0
    %1304 = vmatmul.mubr.f32.gmra.mrb[0].mxu0 %v1210
    %v1305 = vpop.f32.mrb[0].mxu0
    %v1306 = vadd.f32 %v1198, %v1305
    %v1307 = vpop.f32.mrb[0].mxu0
    %1308 = vmatprep.mubr.f32.mxu0 0.0
    %1309 = vmatmul.mubr.f32.gmra.mrb[0].mxu0 %v1213
    %v1310 = vpop.f32.mrb[0].mxu0
    %v1311 = vadd.f32 %v1198, %v1310
    %v1312 = vpop.f32.mrb[0].mxu0
    %1313 = vmatprep.mubr.f32.mxu0 0.0
    %1314 = vmatmul.mubr.f32.gmra.mrb[0].mxu0 %v1216
    %v1315 = vpop.f32.mrb[0].mxu0
    %v1316 = vadd.f32 %v1198, %v1315
    %v1317 = vpop.f32.mrb[0].mxu0
    %1318 = vmatprep.mubr.f32.mxu0 0.0
    %1319 = vmatmul.mubr.f32.gmra.mrb[0].mxu0 %v1219
    %v1320 = vpop.f32.mrb[0].mxu0
    %v1321 = vadd.f32 %v1198, %v1320
    %v1322 = vpop.f32.mrb[0].mxu0
    %1323 = vmatprep.mubr.f32.mxu0 0.0
    %1324 = vmatmul.mubr.f32.gmra.mrb[0].mxu0 %v1222
    %v1325 = vpop.f32.mrb[0].mxu0
    %v1326 = vadd.f32 %v1198, %v1325
    %v1327 = vpop.f32.mrb[0].mxu0
    %1328 = vdwg.mxu0
    %v1329 = vmax.f32 %v1291, 0.0
    %v1330 = vmax.f32 %v1296, 0.0
    %v1331 = vmax.f32 %v1301, 0.0
    %v1332 = vmax.f32 %v1306, 0.0
    %v1333 = vmax.f32 %v1311, 0.0
    %v1334 = vmax.f32 %v1316, 0.0
    %v1335 = vmax.f32 %v1321, 0.0
    %v1336 = vmax.f32 %v1326, 0.0
    %v1337 = vld [vmem:[%s23] sm:$0xff]
    %v1338 = vld [vmem:[%s23 + $0x8] sm:$0xff]
    %v1339 = vld [vmem:[%s24] sm:$0x1]
    %v1341 = vlaneseq
    %v1342 = vshrl.u32 %v1341, 7
    %v1343 = vsub.s32 0, %v1342
    %v1344 = vrot.slane %v1339, %v1343
    %vm1346 = vcmask 130048
    %v1348 = vsel %vm1346, %v1329, 0
    %v1351 = vsel %vm1346, %v1330, 0
    %v1354 = vsel %vm1346, %v1331, 0
    %v1357 = vsel %vm1346, %v1332, 0
    %v1360 = vsel %vm1346, %v1333, 0
    %v1363 = vsel %vm1346, %v1334, 0
    %v1366 = vsel %vm1346, %v1335, 0
    %v1369 = vsel %vm1346, %v1336, 0
    %1371 = vmatprep.subr.mxu0 0.0
    %1372 = vmatpush1.msra.mxu0 %v1337
    %1373 = vmatprep.subr.mxu0 0.0
    %1374 = vmatpush1.msra.mxu0 %v1338
    %1375 = vmatprep.subr.mxu0 0.0
    %1376 = vmatpush1.msra.mxu0 0.0
    %1377 = vmatprep.subr.mxu0 0.0
    %1378 = vmatpush1.msra.mxu0 0.0
    %1379 = vmatprep.subr.mxu0 0.0
    %1380 = vmatpush1.msra.mxu0 0.0
    %1381 = vmatprep.subr.mxu0 0.0
    %1382 = vmatpush1.msra.mxu0 0.0
    %1383 = vmatprep.subr.mxu0 0.0
    %1384 = vmatpush1.msra.mxu0 0.0
    %1385 = vmatprep.subr.mxu0 0.0
    %1386 = vmatpush1.msra.mxu0 0.0
    %1387 = vmatprep.subr.mxu0 0.0
    %1388 = vmatpush1.msra.mxu0 0.0
    %1389 = vmatprep.subr.mxu0 0.0
    %1390 = vmatpush1.msra.mxu0 0.0
    %1391 = vmatprep.subr.mxu0 0.0
    %1392 = vmatpush1.msra.mxu0 0.0
    %1393 = vmatprep.subr.mxu0 0.0
    %1394 = vmatpush1.msra.mxu0 0.0
    %1395 = vmatprep.subr.mxu0 0.0
    %1396 = vmatpush1.msra.mxu0 0.0
    %1397 = vmatprep.subr.mxu0 0.0
    %1398 = vmatpush1.msra.mxu0 0.0
    %1399 = vmatprep.subr.mxu0 0.0
    %1400 = vmatpush1.msra.mxu0 0.0
    %1401 = vmatprep.subr.mxu0 0.0
    %1402 = vmatpush1.msra.mxu0 0.0
    %1403 = vmatprep.subr.mxu0 0.0
    %1404 = vmatpush1.msra.mxu0 0.0
    %1405 = vmatprep.subr.mxu0 0.0
    %1406 = vmatpush1.msra.mxu0 0.0
    %1407 = vmatprep.subr.mxu0 0.0
    %1408 = vmatpush1.msra.mxu0 0.0
    %1409 = vmatprep.subr.mxu0 0.0
    %1410 = vmatpush1.msra.mxu0 0.0
    %1411 = vmatprep.subr.mxu0 0.0
    %1412 = vmatpush1.msra.mxu0 0.0
    %1413 = vmatprep.subr.mxu0 0.0
    %1414 = vmatpush1.msra.mxu0 0.0
    %1415 = vmatprep.subr.mxu0 0.0
    %1416 = vmatpush1.msra.mxu0 0.0
    %1417 = vmatprep.subr.mxu0 0.0
    %1418 = vmatpush1.msra.mxu0 0.0
    %1419 = vmatprep.subr.mxu0 0.0
    %1420 = vmatpush1.msra.mxu0 0.0
    %1421 = vmatprep.subr.mxu0 0.0
    %1422 = vmatpush1.msra.mxu0 0.0
    %1423 = vmatprep.subr.mxu0 0.0
    %1424 = vmatpush1.msra.mxu0 0.0
    %1425 = vmatprep.subr.mxu0 0.0
    %1426 = vmatpush1.msra.mxu0 0.0
    %1427 = vmatprep.subr.mxu0 0.0
    %1428 = vmatpush1.msra.mxu0 0.0
    %1429 = vmatprep.subr.mxu0 0.0
    %1430 = vmatpush1.msra.mxu0 0.0
    %1431 = vmatprep.subr.mxu0 0.0
    %1432 = vmatpush1.msra.mxu0 0.0
    %1433 = vmatprep.subr.mxu0 0.0
    %1434 = vmatpush1.msra.mxu0 0.0
    %1435 = vmatprep.mubr.f32.mxu0 0.0
    %1436 = vmatmul.mubr.f32.gmra.mrb[0].mxu0 %v1348
    %v1437 = vpop.f32.mrb[0].mxu0
    %v1438 = vadd.f32 %v1344, %v1437
    %v1439 = vpop.f32.mrb[0].mxu0
    %1440 = vmatprep.mubr.f32.mxu0 0.0
    %1441 = vmatmul.mubr.f32.gmra.mrb[0].mxu0 %v1351
    %v1442 = vpop.f32.mrb[0].mxu0
    %v1443 = vadd.f32 %v1344, %v1442
    %v1444 = vpop.f32.mrb[0].mxu0
    %1445 = vmatprep.mubr.f32.mxu0 0.0
    %1446 = vmatmul.mubr.f32.gmra.mrb[0].mxu0 %v1354
    %v1447 = vpop.f32.mrb[0].mxu0
    %v1448 = vadd.f32 %v1344, %v1447
    %v1449 = vpop.f32.mrb[0].mxu0
    %1450 = vmatprep.mubr.f32.mxu0 0.0
    %1451 = vmatmul.mubr.f32.gmra.mrb[0].mxu0 %v1357
    %v1452 = vpop.f32.mrb[0].mxu0
    %v1453 = vadd.f32 %v1344, %v1452
    %v1454 = vpop.f32.mrb[0].mxu0
    %1455 = vmatprep.mubr.f32.mxu0 0.0
    %1456 = vmatmul.mubr.f32.gmra.mrb[0].mxu0 %v1360
    %v1457 = vpop.f32.mrb[0].mxu0
    %v1458 = vadd.f32 %v1344, %v1457
    %v1459 = vpop.f32.mrb[0].mxu0
    %1460 = vmatprep.mubr.f32.mxu0 0.0
    %1461 = vmatmul.mubr.f32.gmra.mrb[0].mxu0 %v1363
    %v1462 = vpop.f32.mrb[0].mxu0
    %v1463 = vadd.f32 %v1344, %v1462
    %v1464 = vpop.f32.mrb[0].mxu0
    %1465 = vmatprep.mubr.f32.mxu0 0.0
    %1466 = vmatmul.mubr.f32.gmra.mrb[0].mxu0 %v1366
    %v1467 = vpop.f32.mrb[0].mxu0
    %v1468 = vadd.f32 %v1344, %v1467
    %v1469 = vpop.f32.mrb[0].mxu0
    %1470 = vmatprep.mubr.f32.mxu0 0.0
    %1471 = vmatmul.mubr.f32.gmra.mrb[0].mxu0 %v1369
    %v1472 = vpop.f32.mrb[0].mxu0
    %v1473 = vadd.f32 %v1344, %v1472
    %v1474 = vpop.f32.mrb[0].mxu0
    %1475 = vdwg.mxu0
    %v1476 = vadd.f32 %v1184, %v1438
    %v1477 = vadd.f32 %v1185, %v1443
    %v1478 = vadd.f32 %v1186, %v1448
    %v1479 = vadd.f32 %v1187, %v1453
    %v1480 = vadd.f32 %v1188, %v1458
    %v1481 = vadd.f32 %v1189, %v1463
    %v1482 = vadd.f32 %v1190, %v1468
    %v1483 = vadd.f32 %v1191, %v1473
    %v1484 = vld [vmem:[%s19] sm:$0xff]
    %v1485 = vld [vmem:[%s20] sm:$0xff]
    %v1486 = vsel %vm196, %v1476, 0.0
    %1487 = vadd.xlane.f32.xlu0 %v1486
    %v1488 = vpop.xlane.xlu0 %1487
    %v1489 = vsel %vm196, %v1477, 0.0
    %1490 = vadd.xlane.f32.xlu0 %v1489
    %v1491 = vpop.xlane.xlu0 %1490
    %v1492 = vsel %vm196, %v1478, 0.0
    %1493 = vadd.xlane.f32.xlu0 %v1492
    %v1494 = vpop.xlane.xlu0 %1493
    %v1495 = vsel %vm196, %v1479, 0.0
    %1496 = vadd.xlane.f32.xlu0 %v1495
    %v1497 = vpop.xlane.xlu0 %1496
    %v1498 = vsel %vm196, %v1480, 0.0
    %1499 = vadd.xlane.f32.xlu0 %v1498
    %v1500 = vpop.xlane.xlu0 %1499
    %v1501 = vsel %vm196, %v1481, 0.0
    %1502 = vadd.xlane.f32.xlu0 %v1501
    %v1503 = vpop.xlane.xlu0 %1502
    %v1504 = vsel %vm196, %v1482, 0.0
    %1505 = vadd.xlane.f32.xlu0 %v1504
    %v1506 = vpop.xlane.xlu0 %1505
    %v1507 = vsel %vm196, %v1483, 0.0
    %1508 = vadd.xlane.f32.xlu0 %v1507
    %v1509 = vpop.xlane.xlu0 %1508
    %v1510 = vmul.f32 %v1488, %v1083
    %v1511 = vmul.f32 %v1491, %v1083
    %v1512 = vmul.f32 %v1494, %v1083
    %v1513 = vmul.f32 %v1497, %v1083
    %v1514 = vmul.f32 %v1500, %v1083
    %v1515 = vmul.f32 %v1503, %v1083
    %v1516 = vmul.f32 %v1506, %v1083
    %v1517 = vmul.f32 %v1509, %v1083
    %v1518 = vadd.f32 %v1510, %v1511
    %v1519 = vadd.f32 %v1518, %v1512
    %v1520 = vadd.f32 %v1519, %v1513
    %v1521 = vadd.f32 %v1520, %v1514
    %v1522 = vadd.f32 %v1521, %v1515
    %v1523 = vadd.f32 %v1522, %v1516
    %v1524 = vadd.f32 %v1523, %v1517
    %v1525 = vmul.f32 %v1524, %v1083
    %v1526 = vsub.f32 %v1476, %v1525
    %v1527 = vsub.f32 %v1477, %v1525
    %v1528 = vsub.f32 %v1478, %v1525
    %v1529 = vsub.f32 %v1479, %v1525
    %v1530 = vsub.f32 %v1480, %v1525
    %v1531 = vsub.f32 %v1481, %v1525
    %v1532 = vsub.f32 %v1482, %v1525
    %v1533 = vsub.f32 %v1483, %v1525
    %v1534 = vmul.f32 %v1526, %v1526
    %v1535 = vmul.f32 %v1527, %v1527
    %v1536 = vmul.f32 %v1528, %v1528
    %v1537 = vmul.f32 %v1529, %v1529
    %v1538 = vmul.f32 %v1530, %v1530
    %v1539 = vmul.f32 %v1531, %v1531
    %v1540 = vmul.f32 %v1532, %v1532
    %v1541 = vmul.f32 %v1533, %v1533
    %v1542 = vsel %vm196, %v1534, 0.0
    %1543 = vadd.xlane.f32.xlu0 %v1542
    %v1544 = vpop.xlane.xlu0 %1543
    %v1545 = vsel %vm196, %v1535, 0.0
    %1546 = vadd.xlane.f32.xlu0 %v1545
    %v1547 = vpop.xlane.xlu0 %1546
    %v1548 = vsel %vm196, %v1536, 0.0
    %1549 = vadd.xlane.f32.xlu0 %v1548
    %v1550 = vpop.xlane.xlu0 %1549
    %v1551 = vsel %vm196, %v1537, 0.0
    %1552 = vadd.xlane.f32.xlu0 %v1551
    %v1553 = vpop.xlane.xlu0 %1552
    %v1554 = vsel %vm196, %v1538, 0.0
    %1555 = vadd.xlane.f32.xlu0 %v1554
    %v1556 = vpop.xlane.xlu0 %1555
    %v1557 = vsel %vm196, %v1539, 0.0
    %1558 = vadd.xlane.f32.xlu0 %v1557
    %v1559 = vpop.xlane.xlu0 %1558
    %v1560 = vsel %vm196, %v1540, 0.0
    %1561 = vadd.xlane.f32.xlu0 %v1560
    %v1562 = vpop.xlane.xlu0 %1561
    %v1563 = vsel %vm196, %v1541, 0.0
    %1564 = vadd.xlane.f32.xlu0 %v1563
    %v1565 = vpop.xlane.xlu0 %1564
    %v1566 = vmul.f32 %v1544, %v1083
    %v1567 = vmul.f32 %v1547, %v1083
    %v1568 = vmul.f32 %v1550, %v1083
    %v1569 = vmul.f32 %v1553, %v1083
    %v1570 = vmul.f32 %v1556, %v1083
    %v1571 = vmul.f32 %v1559, %v1083
    %v1572 = vmul.f32 %v1562, %v1083
    %v1573 = vmul.f32 %v1565, %v1083
    %v1574 = vadd.f32 %v1566, %v1567
    %v1575 = vadd.f32 %v1574, %v1568
    %v1576 = vadd.f32 %v1575, %v1569
    %v1577 = vadd.f32 %v1576, %v1570
    %v1578 = vadd.f32 %v1577, %v1571
    %v1579 = vadd.f32 %v1578, %v1572
    %v1580 = vadd.f32 %v1579, %v1573
    %v1581 = vmul.f32 %v1580, %v1083
    %v1582 = vadd.f32 %v1581, 1e-05
    %v1583 = vrsqrt.pop %v1582
    %v1584 = vmul.f32 %v1526, %v1583
    %v1585 = vmul.f32 %v1527, %v1583
    %v1586 = vmul.f32 %v1528, %v1583
    %v1587 = vmul.f32 %v1529, %v1583
    %v1588 = vmul.f32 %v1530, %v1583
    %v1589 = vmul.f32 %v1531, %v1583
    %v1590 = vmul.f32 %v1532, %v1583
    %v1591 = vmul.f32 %v1533, %v1583
    %1593 = vset.pattern.permute.xlu0 0
    %1594 = vperm.xlu0 %1593, %v1484
    %v1595 = vpop.permute.xlu0 %1594
    %v1597 = vmul.f32 %v1584, %v1595
    %v1598 = vmul.f32 %v1585, %v1595
    %v1599 = vmul.f32 %v1586, %v1595
    %v1600 = vmul.f32 %v1587, %v1595
    %v1601 = vmul.f32 %v1588, %v1595
    %v1602 = vmul.f32 %v1589, %v1595
    %v1603 = vmul.f32 %v1590, %v1595
    %v1604 = vmul.f32 %v1591, %v1595
    %1606 = vset.pattern.permute.xlu0 0
    %1607 = vperm.xlu0 %1606, %v1485
    %v1608 = vpop.permute.xlu0 %1607
    %v1610 = vadd.f32 %v1597, %v1608
    %v1611 = vadd.f32 %v1598, %v1608
    %v1612 = vadd.f32 %v1599, %v1608
    %v1613 = vadd.f32 %v1600, %v1608
    %v1614 = vadd.f32 %v1601, %v1608
    %v1615 = vadd.f32 %v1602, %v1608
    %v1616 = vadd.f32 %v1603, %v1608
    %v1617 = vadd.f32 %v1604, %v1608
    %s1618 = scalar_lea.vmem %s13, 8
    %v1619 = vld [vmem:[%s1618] sm:$0xff]
    %s1620 = scalar_lea.vmem %s14, 1
    %v1621 = vld [vmem:[%s1620] sm:$0x1]
    %v1623 = vlaneseq
    %v1624 = vshrl.u32 %v1623, 7
    %v1625 = vsub.s32 0, %v1624
    %v1626 = vrot.slane %v1621, %v1625
    %v1629 = vsel %vm196, %v1610, 0
    %v1632 = vsel %vm196, %v1611, 0
    %v1635 = vsel %vm196, %v1612, 0
    %v1638 = vsel %vm196, %v1613, 0
    %v1641 = vsel %vm196, %v1614, 0
    %v1644 = vsel %vm196, %v1615, 0
    %v1647 = vsel %vm196, %v1616, 0
    %v1650 = vsel %vm196, %v1617, 0
    %1652 = vmatprep.subr.mxu0 0.0
    %1653 = vmatpush1.msra.mxu0 %v1619
    %1654 = vmatprep.subr.mxu0 0.0
    %1655 = vmatpush1.msra.mxu0 0.0
    %1656 = vmatprep.subr.mxu0 0.0
    %1657 = vmatpush1.msra.mxu0 0.0
    %1658 = vmatprep.subr.mxu0 0.0
    %1659 = vmatpush1.msra.mxu0 0.0
    %1660 = vmatprep.subr.mxu0 0.0
    %1661 = vmatpush1.msra.mxu0 0.0
    %1662 = vmatprep.subr.mxu0 0.0
    %1663 = vmatpush1.msra.mxu0 0.0
    %1664 = vmatprep.subr.mxu0 0.0
    %1665 = vmatpush1.msra.mxu0 0.0
    %1666 = vmatprep.subr.mxu0 0.0
    %1667 = vmatpush1.msra.mxu0 0.0
    %1668 = vmatprep.subr.mxu0 0.0
    %1669 = vmatpush1.msra.mxu0 0.0
    %1670 = vmatprep.subr.mxu0 0.0
    %1671 = vmatpush1.msra.mxu0 0.0
    %1672 = vmatprep.subr.mxu0 0.0
    %1673 = vmatpush1.msra.mxu0 0.0
    %1674 = vmatprep.subr.mxu0 0.0
    %1675 = vmatpush1.msra.mxu0 0.0
    %1676 = vmatprep.subr.mxu0 0.0
    %1677 = vmatpush1.msra.mxu0 0.0
    %1678 = vmatprep.subr.mxu0 0.0
    %1679 = vmatpush1.msra.mxu0 0.0
    %1680 = vmatprep.subr.mxu0 0.0
    %1681 = vmatpush1.msra.mxu0 0.0
    %1682 = vmatprep.subr.mxu0 0.0
    %1683 = vmatpush1.msra.mxu0 0.0
    %1684 = vmatprep.subr.mxu0 0.0
    %1685 = vmatpush1.msra.mxu0 0.0
    %1686 = vmatprep.subr.mxu0 0.0
    %1687 = vmatpush1.msra.mxu0 0.0
    %1688 = vmatprep.subr.mxu0 0.0
    %1689 = vmatpush1.msra.mxu0 0.0
    %1690 = vmatprep.subr.mxu0 0.0
    %1691 = vmatpush1.msra.mxu0 0.0
    %1692 = vmatprep.subr.mxu0 0.0
    %1693 = vmatpush1.msra.mxu0 0.0
    %1694 = vmatprep.subr.mxu0 0.0
    %1695 = vmatpush1.msra.mxu0 0.0
    %1696 = vmatprep.subr.mxu0 0.0
    %1697 = vmatpush1.msra.mxu0 0.0
    %1698 = vmatprep.subr.mxu0 0.0
    %1699 = vmatpush1.msra.mxu0 0.0
    %1700 = vmatprep.subr.mxu0 0.0
    %1701 = vmatpush1.msra.mxu0 0.0
    %1702 = vmatprep.subr.mxu0 0.0
    %1703 = vmatpush1.msra.mxu0 0.0
    %1704 = vmatprep.subr.mxu0 0.0
    %1705 = vmatpush1.msra.mxu0 0.0
    %1706 = vmatprep.subr.mxu0 0.0
    %1707 = vmatpush1.msra.mxu0 0.0
    %1708 = vmatprep.subr.mxu0 0.0
    %1709 = vmatpush1.msra.mxu0 0.0
    %1710 = vmatprep.subr.mxu0 0.0
    %1711 = vmatpush1.msra.mxu0 0.0
    %1712 = vmatprep.subr.mxu0 0.0
    %1713 = vmatpush1.msra.mxu0 0.0
    %1714 = vmatprep.subr.mxu0 0.0
    %1715 = vmatpush1.msra.mxu0 0.0
    %1716 = vmatprep.mubr.f32.mxu0 0.0
    %1717 = vmatmul.mubr.f32.gmra.mrb[0].mxu0 %v1629
    %v1718 = vpop.f32.mrb[0].mxu0
    %v1719 = vadd.f32 %v1626, %v1718
    %v1720 = vpop.f32.mrb[0].mxu0
    %1721 = vmatprep.mubr.f32.mxu0 0.0
    %1722 = vmatmul.mubr.f32.gmra.mrb[0].mxu0 %v1632
    %v1723 = vpop.f32.mrb[0].mxu0
    %v1724 = vadd.f32 %v1626, %v1723
    %v1725 = vpop.f32.mrb[0].mxu0
    %1726 = vmatprep.mubr.f32.mxu0 0.0
    %1727 = vmatmul.mubr.f32.gmra.mrb[0].mxu0 %v1635
    %v1728 = vpop.f32.mrb[0].mxu0
    %v1729 = vadd.f32 %v1626, %v1728
    %v1730 = vpop.f32.mrb[0].mxu0
    %1731 = vmatprep.mubr.f32.mxu0 0.0
    %1732 = vmatmul.mubr.f32.gmra.mrb[0].mxu0 %v1638
    %v1733 = vpop.f32.mrb[0].mxu0
    %v1734 = vadd.f32 %v1626, %v1733
    %v1735 = vpop.f32.mrb[0].mxu0
    %1736 = vmatprep.mubr.f32.mxu0 0.0
    %1737 = vmatmul.mubr.f32.gmra.mrb[0].mxu0 %v1641
    %v1738 = vpop.f32.mrb[0].mxu0
    %v1739 = vadd.f32 %v1626, %v1738
    %v1740 = vpop.f32.mrb[0].mxu0
    %1741 = vmatprep.mubr.f32.mxu0 0.0
    %1742 = vmatmul.mubr.f32.gmra.mrb[0].mxu0 %v1644
    %v1743 = vpop.f32.mrb[0].mxu0
    %v1744 = vadd.f32 %v1626, %v1743
    %v1745 = vpop.f32.mrb[0].mxu0
    %1746 = vmatprep.mubr.f32.mxu0 0.0
    %1747 = vmatmul.mubr.f32.gmra.mrb[0].mxu0 %v1647
    %v1748 = vpop.f32.mrb[0].mxu0
    %v1749 = vadd.f32 %v1626, %v1748
    %v1750 = vpop.f32.mrb[0].mxu0
    %1751 = vmatprep.mubr.f32.mxu0 0.0
    %1752 = vmatmul.mubr.f32.gmra.mrb[0].mxu0 %v1650
    %v1753 = vpop.f32.mrb[0].mxu0
    %v1754 = vadd.f32 %v1626, %v1753
    %v1755 = vpop.f32.mrb[0].mxu0
    %1756 = vdwg.mxu0
    %v1757 = vld [vmem:[%s5] sm:$0xff]
    %v1758 = vld [vmem:[%s5 + $0x8] sm:$0xff]
    %v1759 = vld [vmem:[%s5 + $0x10] sm:$0xff]
    %v1760 = vld [vmem:[%s5 + $0x18] sm:$0xff]
    %v1761 = vld [vmem:[%s5 + $0x20] sm:$0xff]
    %v1762 = vld [vmem:[%s5 + $0x28] sm:$0xff]
    %v1763 = vld [vmem:[%s5 + $0x30] sm:$0xff]
    %v1764 = vld [vmem:[%s5 + $0x38] sm:$0xff]
    %vm1765 = vcmask 523264
    %v1767 = vsel %vm1765, %v1757, 0
    %v1770 = vsel %vm1765, %v1758, 0
    %v1773 = vsel %vm1765, %v1759, 0
    %v1776 = vsel %vm1765, %v1760, 0
    %v1779 = vsel %vm1765, %v1761, 0
    %v1782 = vsel %vm1765, %v1762, 0
    %v1785 = vsel %vm1765, %v1763, 0
    %v1788 = vsel %vm1765, %v1764, 0
    %1790 = vmatprep.subr.mxu0 0.0
    %1791 = vmatpush1.msra.mxu0 %v1719
    %1792 = vmatprep.subr.mxu0 0.0
    %1793 = vmatpush1.msra.mxu0 %v1724
    %1794 = vmatprep.subr.mxu0 0.0
    %1795 = vmatpush1.msra.mxu0 %v1729
    %1796 = vmatprep.subr.mxu0 0.0
    %1797 = vmatpush1.msra.mxu0 %v1734
    %1798 = vmatprep.subr.mxu0 0.0
    %1799 = vmatpush1.msra.mxu0 %v1739
    %1800 = vmatprep.subr.mxu0 0.0
    %1801 = vmatpush1.msra.mxu0 %v1744
    %1802 = vmatprep.subr.mxu0 0.0
    %1803 = vmatpush1.msra.mxu0 %v1749
    %1804 = vmatprep.subr.mxu0 0.0
    %1805 = vmatpush1.msra.mxu0 %v1754
    %1806 = vmatprep.subr.mxu0 0.0
    %1807 = vmatpush1.msra.mxu0 0.0
    %1808 = vmatprep.subr.mxu0 0.0
    %1809 = vmatpush1.msra.mxu0 0.0
    %1810 = vmatprep.subr.mxu0 0.0
    %1811 = vmatpush1.msra.mxu0 0.0
    %1812 = vmatprep.subr.mxu0 0.0
    %1813 = vmatpush1.msra.mxu0 0.0
    %1814 = vmatprep.subr.mxu0 0.0
    %1815 = vmatpush1.msra.mxu0 0.0
    %1816 = vmatprep.subr.mxu0 0.0
    %1817 = vmatpush1.msra.mxu0 0.0
    %1818 = vmatprep.subr.mxu0 0.0
    %1819 = vmatpush1.msra.mxu0 0.0
    %1820 = vmatprep.subr.mxu0 0.0
    %1821 = vmatpush1.msra.mxu0 0.0
    %1822 = vmatprep.subr.mxu0 0.0
    %1823 = vmatpush1.msra.mxu0 0.0
    %1824 = vmatprep.subr.mxu0 0.0
    %1825 = vmatpush1.msra.mxu0 0.0
    %1826 = vmatprep.subr.mxu0 0.0
    %1827 = vmatpush1.msra.mxu0 0.0
    %1828 = vmatprep.subr.mxu0 0.0
    %1829 = vmatpush1.msra.mxu0 0.0
    %1830 = vmatprep.subr.mxu0 0.0
    %1831 = vmatpush1.msra.mxu0 0.0
    %1832 = vmatprep.subr.mxu0 0.0
    %1833 = vmatpush1.msra.mxu0 0.0
    %1834 = vmatprep.subr.mxu0 0.0
    %1835 = vmatpush1.msra.mxu0 0.0
    %1836 = vmatprep.subr.mxu0 0.0
    %1837 = vmatpush1.msra.mxu0 0.0
    %1838 = vmatprep.subr.mxu0 0.0
    %1839 = vmatpush1.msra.mxu0 0.0
    %1840 = vmatprep.subr.mxu0 0.0
    %1841 = vmatpush1.msra.mxu0 0.0
    %1842 = vmatprep.subr.mxu0 0.0
    %1843 = vmatpush1.msra.mxu0 0.0
    %1844 = vmatprep.subr.mxu0 0.0
    %1845 = vmatpush1.msra.mxu0 0.0
    %1846 = vmatprep.subr.mxu0 0.0
    %1847 = vmatpush1.msra.mxu0 0.0
    %1848 = vmatprep.subr.mxu0 0.0
    %1849 = vmatpush1.msra.mxu0 0.0
    %1850 = vmatprep.subr.mxu0 0.0
    %1851 = vmatpush1.msra.mxu0 0.0
    %1852 = vmatprep.subr.mxu0 0.0
    %1853 = vmatpush1.msra.mxu0 0.0
    %1854 = vmatprep.mubr.f32.mxu0 0.0
    %1855 = vmatmul.mubr.f32.gmra.mrb[0].mxu0 %v1767
    %v1856 = vpop.f32.mrb[0].mxu0
    %v1857 = vadd.f32 0.0, %v1856
    %v1858 = vpop.f32.mrb[0].mxu0
    %1859 = vmatprep.mubr.f32.mxu0 0.0
    %1860 = vmatmul.mubr.f32.gmra.mrb[0].mxu0 %v1770
    %v1861 = vpop.f32.mrb[0].mxu0
    %v1862 = vadd.f32 0.0, %v1861
    %v1863 = vpop.f32.mrb[0].mxu0
    %1864 = vmatprep.mubr.f32.mxu0 0.0
    %1865 = vmatmul.mubr.f32.gmra.mrb[0].mxu0 %v1773
    %v1866 = vpop.f32.mrb[0].mxu0
    %v1867 = vadd.f32 0.0, %v1866
    %v1868 = vpop.f32.mrb[0].mxu0
    %1869 = vmatprep.mubr.f32.mxu0 0.0
    %1870 = vmatmul.mubr.f32.gmra.mrb[0].mxu0 %v1776
    %v1871 = vpop.f32.mrb[0].mxu0
    %v1872 = vadd.f32 0.0, %v1871
    %v1873 = vpop.f32.mrb[0].mxu0
    %1874 = vmatprep.mubr.f32.mxu0 0.0
    %1875 = vmatmul.mubr.f32.gmra.mrb[0].mxu0 %v1779
    %v1876 = vpop.f32.mrb[0].mxu0
    %v1877 = vadd.f32 0.0, %v1876
    %v1878 = vpop.f32.mrb[0].mxu0
    %1879 = vmatprep.mubr.f32.mxu0 0.0
    %1880 = vmatmul.mubr.f32.gmra.mrb[0].mxu0 %v1782
    %v1881 = vpop.f32.mrb[0].mxu0
    %v1882 = vadd.f32 0.0, %v1881
    %v1883 = vpop.f32.mrb[0].mxu0
    %1884 = vmatprep.mubr.f32.mxu0 0.0
    %1885 = vmatmul.mubr.f32.gmra.mrb[0].mxu0 %v1785
    %v1886 = vpop.f32.mrb[0].mxu0
    %v1887 = vadd.f32 0.0, %v1886
    %v1888 = vpop.f32.mrb[0].mxu0
    %1889 = vmatprep.mubr.f32.mxu0 0.0
    %1890 = vmatmul.mubr.f32.gmra.mrb[0].mxu0 %v1788
    %v1891 = vpop.f32.mrb[0].mxu0
    %v1892 = vadd.f32 0.0, %v1891
    %v1893 = vpop.f32.mrb[0].mxu0
    %1894 = vdwg.mxu0
    %v1895 = vld [vmem:[%s6] sm:$0xff]
    %v1896 = vld [vmem:[%s6 + $0x8] sm:$0xff]
    %v1897 = vld [vmem:[%s6 + $0x10] sm:$0xff]
    %v1898 = vld [vmem:[%s6 + $0x18] sm:$0xff]
    %v1899 = vld [vmem:[%s6 + $0x20] sm:$0xff]
    %v1900 = vld [vmem:[%s6 + $0x28] sm:$0xff]
    %v1901 = vld [vmem:[%s6 + $0x30] sm:$0xff]
    %v1902 = vld [vmem:[%s6 + $0x38] sm:$0xff]
    %1911 = vrot.lane.b32.xlu0 %v1719, 120
    %v1912 = vpop.permute.xlu0 %1911
    %1913 = vrot.lane.b32.xlu0 %v1724, 120
    %v1914 = vpop.permute.xlu0 %1913
    %1915 = vrot.lane.b32.xlu0 %v1729, 120
    %v1916 = vpop.permute.xlu0 %1915
    %1917 = vrot.lane.b32.xlu0 %v1734, 120
    %v1918 = vpop.permute.xlu0 %1917
    %1919 = vrot.lane.b32.xlu0 %v1739, 120
    %v1920 = vpop.permute.xlu0 %1919
    %1921 = vrot.lane.b32.xlu0 %v1744, 120
    %v1922 = vpop.permute.xlu0 %1921
    %1923 = vrot.lane.b32.xlu0 %v1749, 120
    %v1924 = vpop.permute.xlu0 %1923
    %1925 = vrot.lane.b32.xlu0 %v1754, 120
    %v1926 = vpop.permute.xlu0 %1925
    %v1936 = vsel %vm1765, %v1895, 0
    %v1939 = vsel %vm1765, %v1896, 0
    %v1942 = vsel %vm1765, %v1897, 0
    %v1945 = vsel %vm1765, %v1898, 0
    %v1948 = vsel %vm1765, %v1899, 0
    %v1951 = vsel %vm1765, %v1900, 0
    %v1954 = vsel %vm1765, %v1901, 0
    %v1957 = vsel %vm1765, %v1902, 0
    %1959 = vmatprep.subr.mxu0 0.0
    %1960 = vmatpush1.msra.mxu0 %v1912
    %1961 = vmatprep.subr.mxu0 0.0
    %1962 = vmatpush1.msra.mxu0 %v1914
    %1963 = vmatprep.subr.mxu0 0.0
    %1964 = vmatpush1.msra.mxu0 %v1916
    %1965 = vmatprep.subr.mxu0 0.0
    %1966 = vmatpush1.msra.mxu0 %v1918
    %1967 = vmatprep.subr.mxu0 0.0
    %1968 = vmatpush1.msra.mxu0 %v1920
    %1969 = vmatprep.subr.mxu0 0.0
    %1970 = vmatpush1.msra.mxu0 %v1922
    %1971 = vmatprep.subr.mxu0 0.0
    %1972 = vmatpush1.msra.mxu0 %v1924
    %1973 = vmatprep.subr.mxu0 0.0
    %1974 = vmatpush1.msra.mxu0 %v1926
    %1975 = vmatprep.subr.mxu0 0.0
    %1976 = vmatpush1.msra.mxu0 0.0
    %1977 = vmatprep.subr.mxu0 0.0
    %1978 = vmatpush1.msra.mxu0 0.0
    %1979 = vmatprep.subr.mxu0 0.0
    %1980 = vmatpush1.msra.mxu0 0.0
    %1981 = vmatprep.subr.mxu0 0.0
    %1982 = vmatpush1.msra.mxu0 0.0
    %1983 = vmatprep.subr.mxu0 0.0
    %1984 = vmatpush1.msra.mxu0 0.0
    %1985 = vmatprep.subr.mxu0 0.0
    %1986 = vmatpush1.msra.mxu0 0.0
    %1987 = vmatprep.subr.mxu0 0.0
    %1988 = vmatpush1.msra.mxu0 0.0
    %1989 = vmatprep.subr.mxu0 0.0
    %1990 = vmatpush1.msra.mxu0 0.0
    %1991 = vmatprep.subr.mxu0 0.0
    %1992 = vmatpush1.msra.mxu0 0.0
    %1993 = vmatprep.subr.mxu0 0.0
    %1994 = vmatpush1.msra.mxu0 0.0
    %1995 = vmatprep.subr.mxu0 0.0
    %1996 = vmatpush1.msra.mxu0 0.0
    %1997 = vmatprep.subr.mxu0 0.0
    %1998 = vmatpush1.msra.mxu0 0.0
    %1999 = vmatprep.subr.mxu0 0.0
    %2000 = vmatpush1.msra.mxu0 0.0
    %2001 = vmatprep.subr.mxu0 0.0
    %2002 = vmatpush1.msra.mxu0 0.0
    %2003 = vmatprep.subr.mxu0 0.0
    %2004 = vmatpush1.msra.mxu0 0.0
    %2005 = vmatprep.subr.mxu0 0.0
    %2006 = vmatpush1.msra.mxu0 0.0
    %2007 = vmatprep.subr.mxu0 0.0
    %2008 = vmatpush1.msra.mxu0 0.0
    %2009 = vmatprep.subr.mxu0 0.0
    %2010 = vmatpush1.msra.mxu0 0.0
    %2011 = vmatprep.subr.mxu0 0.0
    %2012 = vmatpush1.msra.mxu0 0.0
    %2013 = vmatprep.subr.mxu0 0.0
    %2014 = vmatpush1.msra.mxu0 0.0
    %2015 = vmatprep.subr.mxu0 0.0
    %2016 = vmatpush1.msra.mxu0 0.0
    %2017 = vmatprep.subr.mxu0 0.0
    %2018 = vmatpush1.msra.mxu0 0.0
    %2019 = vmatprep.subr.mxu0 0.0
    %2020 = vmatpush1.msra.mxu0 0.0
    %2021 = vmatprep.subr.mxu0 0.0
    %2022 = vmatpush1.msra.mxu0 0.0
    %2023 = vmatprep.mubr.f32.mxu0 0.0
    %2024 = vmatmul.mubr.f32.gmra.mrb[0].mxu0 %v1936
    %v2025 = vpop.f32.mrb[0].mxu0
    %v2026 = vadd.f32 0.0, %v2025
    %v2027 = vpop.f32.mrb[0].mxu0
    %2028 = vmatprep.mubr.f32.mxu0 0.0
    %2029 = vmatmul.mubr.f32.gmra.mrb[0].mxu0 %v1939
    %v2030 = vpop.f32.mrb[0].mxu0
    %v2031 = vadd.f32 0.0, %v2030
    %v2032 = vpop.f32.mrb[0].mxu0
    %2033 = vmatprep.mubr.f32.mxu0 0.0
    %2034 = vmatmul.mubr.f32.gmra.mrb[0].mxu0 %v1942
    %v2035 = vpop.f32.mrb[0].mxu0
    %v2036 = vadd.f32 0.0, %v2035
    %v2037 = vpop.f32.mrb[0].mxu0
    %2038 = vmatprep.mubr.f32.mxu0 0.0
    %2039 = vmatmul.mubr.f32.gmra.mrb[0].mxu0 %v1945
    %v2040 = vpop.f32.mrb[0].mxu0
    %v2041 = vadd.f32 0.0, %v2040
    %v2042 = vpop.f32.mrb[0].mxu0
    %2043 = vmatprep.mubr.f32.mxu0 0.0
    %2044 = vmatmul.mubr.f32.gmra.mrb[0].mxu0 %v1948
    %v2045 = vpop.f32.mrb[0].mxu0
    %v2046 = vadd.f32 0.0, %v2045
    %v2047 = vpop.f32.mrb[0].mxu0
    %2048 = vmatprep.mubr.f32.mxu0 0.0
    %2049 = vmatmul.mubr.f32.gmra.mrb[0].mxu0 %v1951
    %v2050 = vpop.f32.mrb[0].mxu0
    %v2051 = vadd.f32 0.0, %v2050
    %v2052 = vpop.f32.mrb[0].mxu0
    %2053 = vmatprep.mubr.f32.mxu0 0.0
    %2054 = vmatmul.mubr.f32.gmra.mrb[0].mxu0 %v1954
    %v2055 = vpop.f32.mrb[0].mxu0
    %v2056 = vadd.f32 0.0, %v2055
    %v2057 = vpop.f32.mrb[0].mxu0
    %2058 = vmatprep.mubr.f32.mxu0 0.0
    %2059 = vmatmul.mubr.f32.gmra.mrb[0].mxu0 %v1957
    %v2060 = vpop.f32.mrb[0].mxu0
    %v2061 = vadd.f32 0.0, %v2060
    %v2062 = vpop.f32.mrb[0].mxu0
    %2063 = vdwg.mxu0
    %v2064 = vmul.f32 %v1857, %v2026
    %v2065 = vmul.f32 %v1862, %v2031
    %v2066 = vmul.f32 %v1867, %v2036
    %v2067 = vmul.f32 %v1872, %v2041
    %v2068 = vmul.f32 %v1877, %v2046
    %v2069 = vmul.f32 %v1882, %v2051
    %v2070 = vmul.f32 %v1887, %v2056
    %v2071 = vmul.f32 %v1892, %v2061
    %v2072 = vsel %vm196, %v2064, 0.0
    %v2073 = vrot.slane %v2072, 4
    %v2074 = vadd.f32 %v2072, %v2073
    %v2075 = vrot.slane %v2074, 2
    %v2076 = vadd.f32 %v2074, %v2075
    %v2077 = vrot.slane %v2076, 1
    %v2078 = vadd.f32 %v2076, %v2077
    %v2079 = vsel %vm196, %v2065, 0.0
    %v2080 = vrot.slane %v2079, 4
    %v2081 = vadd.f32 %v2079, %v2080
    %v2082 = vrot.slane %v2081, 2
    %v2083 = vadd.f32 %v2081, %v2082
    %v2084 = vrot.slane %v2083, 1
    %v2085 = vadd.f32 %v2083, %v2084
    %v2086 = vsel %vm196, %v2066, 0.0
    %v2087 = vrot.slane %v2086, 4
    %v2088 = vadd.f32 %v2086, %v2087
    %v2089 = vrot.slane %v2088, 2
    %v2090 = vadd.f32 %v2088, %v2089
    %v2091 = vrot.slane %v2090, 1
    %v2092 = vadd.f32 %v2090, %v2091
    %v2093 = vsel %vm196, %v2067, 0.0
    %v2094 = vrot.slane %v2093, 4
    %v2095 = vadd.f32 %v2093, %v2094
    %v2096 = vrot.slane %v2095, 2
    %v2097 = vadd.f32 %v2095, %v2096
    %v2098 = vrot.slane %v2097, 1
    %v2099 = vadd.f32 %v2097, %v2098
    %v2100 = vsel %vm196, %v2068, 0.0
    %v2101 = vrot.slane %v2100, 4
    %v2102 = vadd.f32 %v2100, %v2101
    %v2103 = vrot.slane %v2102, 2
    %v2104 = vadd.f32 %v2102, %v2103
    %v2105 = vrot.slane %v2104, 1
    %v2106 = vadd.f32 %v2104, %v2105
    %v2107 = vsel %vm196, %v2069, 0.0
    %v2108 = vrot.slane %v2107, 4
    %v2109 = vadd.f32 %v2107, %v2108
    %v2110 = vrot.slane %v2109, 2
    %v2111 = vadd.f32 %v2109, %v2110
    %v2112 = vrot.slane %v2111, 1
    %v2113 = vadd.f32 %v2111, %v2112
    %v2114 = vsel %vm196, %v2070, 0.0
    %v2115 = vrot.slane %v2114, 4
    %v2116 = vadd.f32 %v2114, %v2115
    %v2117 = vrot.slane %v2116, 2
    %v2118 = vadd.f32 %v2116, %v2117
    %v2119 = vrot.slane %v2118, 1
    %v2120 = vadd.f32 %v2118, %v2119
    %v2121 = vsel %vm196, %v2071, 0.0
    %v2122 = vrot.slane %v2121, 4
    %v2123 = vadd.f32 %v2121, %v2122
    %v2124 = vrot.slane %v2123, 2
    %v2125 = vadd.f32 %v2123, %v2124
    %v2126 = vrot.slane %v2125, 1
    %v2127 = vadd.f32 %v2125, %v2126
    %v2129 = vrot.slane %v348, 1
    %v2130 = vrot.slane %v348, 2
    %v2131 = vrot.slane %v348, 3
    %v2132 = vrot.slane %v348, 4
    %v2133 = vrot.slane %v348, 5
    %v2134 = vrot.slane %v348, 6
    %v2135 = vrot.slane %v348, 7
    %2136 = vrot.lane.b32.xlu0 %v348, 120
    %v2137 = vpop.permute.xlu0 %2136
    %2138 = vrot.lane.b32.xlu0 %v2129, 120
    %v2139 = vpop.permute.xlu0 %2138
    %2140 = vrot.lane.b32.xlu0 %v2130, 120
    %v2141 = vpop.permute.xlu0 %2140
    %2142 = vrot.lane.b32.xlu0 %v2131, 120
    %v2143 = vpop.permute.xlu0 %2142
    %2144 = vrot.lane.b32.xlu0 %v2132, 120
    %v2145 = vpop.permute.xlu0 %2144
    %2146 = vrot.lane.b32.xlu0 %v2133, 120
    %v2147 = vpop.permute.xlu0 %2146
    %2148 = vrot.lane.b32.xlu0 %v2134, 120
    %v2149 = vpop.permute.xlu0 %2148
    %2150 = vrot.lane.b32.xlu0 %v2135, 120
    %v2151 = vpop.permute.xlu0 %2150
    %v2160 = vadd.f32 %v2078, %v2137
    %v2161 = vadd.f32 %v2085, %v2139
    %v2162 = vadd.f32 %v2092, %v2141
    %v2163 = vadd.f32 %v2099, %v2143
    %v2164 = vadd.f32 %v2106, %v2145
    %v2165 = vadd.f32 %v2113, %v2147
    %v2166 = vadd.f32 %v2120, %v2149
    %v2167 = vadd.f32 %v2127, %v2151
    %vm2168 = vcmp.ge.f32.partialorder %v2160, 0.0
    %vm2169 = vcmp.ge.f32.partialorder %v2161, 0.0
    %vm2170 = vcmp.ge.f32.partialorder %v2162, 0.0
    %vm2171 = vcmp.ge.f32.partialorder %v2163, 0.0
    %vm2172 = vcmp.ge.f32.partialorder %v2164, 0.0
    %vm2173 = vcmp.ge.f32.partialorder %v2165, 0.0
    %vm2174 = vcmp.ge.f32.partialorder %v2166, 0.0
    %vm2175 = vcmp.ge.f32.partialorder %v2167, 0.0
    %v2176 = vmul.f32 %v2160, 0.01
    %v2177 = vmul.f32 %v2161, 0.01
    %v2178 = vmul.f32 %v2162, 0.01
    %v2179 = vmul.f32 %v2163, 0.01
    %v2180 = vmul.f32 %v2164, 0.01
    %v2181 = vmul.f32 %v2165, 0.01
    %v2182 = vmul.f32 %v2166, 0.01
    %v2183 = vmul.f32 %v2167, 0.01
    %v2184 = vsel %vm2168, %v2160, %v2176
    %v2185 = vsel %vm2169, %v2161, %v2177
    %v2186 = vsel %vm2170, %v2162, %v2178
    %v2187 = vsel %vm2171, %v2163, %v2179
    %v2188 = vsel %vm2172, %v2164, %v2180
    %v2189 = vsel %vm2173, %v2165, %v2181
    %v2190 = vsel %vm2174, %v2166, %v2182
    %v2191 = vsel %vm2175, %v2167, %v2183
    %v2200 = vrot.slane %v2185, 7
    %vm2201 = vcmask 1041409
    %v2202 = vsel %vm2201, %v2200, %v2184
    %v2203 = vrot.slane %v2186, 6
    %vm2204 = vcmask 1042434
    %v2205 = vsel %vm2204, %v2203, %v2202
    %v2206 = vrot.slane %v2187, 5
    %vm2207 = vcmask 1043459
    %v2208 = vsel %vm2207, %v2206, %v2205
    %v2209 = vrot.slane %v2188, 4
    %vm2210 = vcmask 1044484
    %v2211 = vsel %vm2210, %v2209, %v2208
    %v2212 = vrot.slane %v2189, 3
    %vm2213 = vcmask 1045509
    %v2214 = vsel %vm2213, %v2212, %v2211
    %v2215 = vrot.slane %v2190, 2
    %vm2216 = vcmask 1046534
    %v2217 = vsel %vm2216, %v2215, %v2214
    %v2218 = vrot.slane %v2191, 1
    %vm2219 = vcmask 1047559
    %v2220 = vsel %vm2219, %v2218, %v2217
    %2222 = vmatprep.subr.mxu0 0.0
    %2223 = vmatpush1.msra.mxu0 %v2220
    %2224 = vmatprep.subr.mxu0 0.0
    %2225 = vmatpush1.msra.mxu0 0.0
    %2226 = vmatprep.subr.mxu0 0.0
    %2227 = vmatpush1.msra.mxu0 0.0
    %2228 = vmatprep.subr.mxu0 0.0
    %2229 = vmatpush1.msra.mxu0 0.0
    %2230 = vmatprep.subr.mxu0 0.0
    %2231 = vmatpush1.msra.mxu0 0.0
    %2232 = vmatprep.subr.mxu0 0.0
    %2233 = vmatpush1.msra.mxu0 0.0
    %2234 = vmatprep.subr.mxu0 0.0
    %2235 = vmatpush1.msra.mxu0 0.0
    %2236 = vmatprep.subr.mxu0 0.0
    %2237 = vmatpush1.msra.mxu0 0.0
    %2238 = vmatprep.subr.mxu0 0.0
    %2239 = vmatpush1.msra.mxu0 0.0
    %2240 = vmatprep.subr.mxu0 0.0
    %2241 = vmatpush1.msra.mxu0 0.0
    %2242 = vmatprep.subr.mxu0 0.0
    %2243 = vmatpush1.msra.mxu0 0.0
    %2244 = vmatprep.subr.mxu0 0.0
    %2245 = vmatpush1.msra.mxu0 0.0
    %2246 = vmatprep.subr.mxu0 0.0
    %2247 = vmatpush1.msra.mxu0 0.0
    %2248 = vmatprep.subr.mxu0 0.0
    %2249 = vmatpush1.msra.mxu0 0.0
    %2250 = vmatprep.subr.mxu0 0.0
    %2251 = vmatpush1.msra.mxu0 0.0
    %2252 = vmatprep.subr.mxu0 0.0
    %2253 = vmatpush1.msra.mxu0 0.0
    %2254 = vmatprep.subr.mxu0 0.0
    %2255 = vmatpush1.msra.mxu0 0.0
    %2256 = vmatprep.subr.mxu0 0.0
    %2257 = vmatpush1.msra.mxu0 0.0
    %2258 = vmatprep.subr.mxu0 0.0
    %2259 = vmatpush1.msra.mxu0 0.0
    %2260 = vmatprep.subr.mxu0 0.0
    %2261 = vmatpush1.msra.mxu0 0.0
    %2262 = vmatprep.subr.mxu0 0.0
    %2263 = vmatpush1.msra.mxu0 0.0
    %2264 = vmatprep.subr.mxu0 0.0
    %2265 = vmatpush1.msra.mxu0 0.0
    %2266 = vmatprep.subr.mxu0 0.0
    %2267 = vmatpush1.msra.mxu0 0.0
    %2268 = vmatprep.subr.mxu0 0.0
    %2269 = vmatpush1.msra.mxu0 0.0
    %2270 = vmatprep.subr.mxu0 0.0
    %2271 = vmatpush1.msra.mxu0 0.0
    %2272 = vmatprep.subr.mxu0 0.0
    %2273 = vmatpush1.msra.mxu0 0.0
    %2274 = vmatprep.subr.mxu0 0.0
    %2275 = vmatpush1.msra.mxu0 0.0
    %2276 = vmatprep.subr.mxu0 0.0
    %2277 = vmatpush1.msra.mxu0 0.0
    %2278 = vmatprep.subr.mxu0 0.0
    %2279 = vmatpush1.msra.mxu0 0.0
    %2280 = vmatprep.subr.mxu0 0.0
    %2281 = vmatpush1.msra.mxu0 0.0
    %2282 = vmatprep.subr.mxu0 0.0
    %2283 = vmatpush1.msra.mxu0 0.0
    %2284 = vmatprep.subr.mxu0 0.0
    %2285 = vmatpush1.msra.mxu0 0.0
    %2286 = vmatprep.mubr.f32.mxu0 0.0
    %2287 = vmatmul.mubr.f32.gmra.mrb[0].mxu0 %v637
    %v2288 = vpop.f32.mrb[0].mxu0
    %v2289 = vadd.f32 0.0, %v2288
    %v2290 = vpop.f32.mrb[0].mxu0
    %2291 = vmatprep.mubr.f32.mxu0 0.0
    %2292 = vmatmul.mubr.f32.gmra.mrb[0].mxu0 %v640
    %v2293 = vpop.f32.mrb[0].mxu0
    %v2294 = vadd.f32 0.0, %v2293
    %v2295 = vpop.f32.mrb[0].mxu0
    %2296 = vmatprep.mubr.f32.mxu0 0.0
    %2297 = vmatmul.mubr.f32.gmra.mrb[0].mxu0 %v643
    %v2298 = vpop.f32.mrb[0].mxu0
    %v2299 = vadd.f32 0.0, %v2298
    %v2300 = vpop.f32.mrb[0].mxu0
    %2301 = vmatprep.mubr.f32.mxu0 0.0
    %2302 = vmatmul.mubr.f32.gmra.mrb[0].mxu0 %v646
    %v2303 = vpop.f32.mrb[0].mxu0
    %v2304 = vadd.f32 0.0, %v2303
    %v2305 = vpop.f32.mrb[0].mxu0
    %2306 = vmatprep.mubr.f32.mxu0 0.0
    %2307 = vmatmul.mubr.f32.gmra.mrb[0].mxu0 %v649
    %v2308 = vpop.f32.mrb[0].mxu0
    %v2309 = vadd.f32 0.0, %v2308
    %v2310 = vpop.f32.mrb[0].mxu0
    %2311 = vmatprep.mubr.f32.mxu0 0.0
    %2312 = vmatmul.mubr.f32.gmra.mrb[0].mxu0 %v652
    %v2313 = vpop.f32.mrb[0].mxu0
    %v2314 = vadd.f32 0.0, %v2313
    %v2315 = vpop.f32.mrb[0].mxu0
    %2316 = vmatprep.mubr.f32.mxu0 0.0
    %2317 = vmatmul.mubr.f32.gmra.mrb[0].mxu0 %v655
    %v2318 = vpop.f32.mrb[0].mxu0
    %v2319 = vadd.f32 0.0, %v2318
    %v2320 = vpop.f32.mrb[0].mxu0
    %2321 = vmatprep.mubr.f32.mxu0 0.0
    %2322 = vmatmul.mubr.f32.gmra.mrb[0].mxu0 %v658
    %v2323 = vpop.f32.mrb[0].mxu0
    %v2324 = vadd.f32 0.0, %v2323
    %v2325 = vpop.f32.mrb[0].mxu0
    %2326 = vdwg.mxu0
    %v2327 = vsel %vm196, %v2289, -inf
    %v2328 = vrot.slane %v2327, 4
    %v2329 = vmax.f32 %v2327, %v2328
    %v2330 = vrot.slane %v2329, 2
    %v2331 = vmax.f32 %v2329, %v2330
    %v2332 = vrot.slane %v2331, 1
    %v2333 = vmax.f32 %v2331, %v2332
    %v2334 = vsel %vm196, %v2294, -inf
    %v2335 = vrot.slane %v2334, 4
    %v2336 = vmax.f32 %v2334, %v2335
    %v2337 = vrot.slane %v2336, 2
    %v2338 = vmax.f32 %v2336, %v2337
    %v2339 = vrot.slane %v2338, 1
    %v2340 = vmax.f32 %v2338, %v2339
    %v2341 = vsel %vm196, %v2299, -inf
    %v2342 = vrot.slane %v2341, 4
    %v2343 = vmax.f32 %v2341, %v2342
    %v2344 = vrot.slane %v2343, 2
    %v2345 = vmax.f32 %v2343, %v2344
    %v2346 = vrot.slane %v2345, 1
    %v2347 = vmax.f32 %v2345, %v2346
    %v2348 = vsel %vm196, %v2304, -inf
    %v2349 = vrot.slane %v2348, 4
    %v2350 = vmax.f32 %v2348, %v2349
    %v2351 = vrot.slane %v2350, 2
    %v2352 = vmax.f32 %v2350, %v2351
    %v2353 = vrot.slane %v2352, 1
    %v2354 = vmax.f32 %v2352, %v2353
    %v2355 = vsel %vm196, %v2309, -inf
    %v2356 = vrot.slane %v2355, 4
    %v2357 = vmax.f32 %v2355, %v2356
    %v2358 = vrot.slane %v2357, 2
    %v2359 = vmax.f32 %v2357, %v2358
    %v2360 = vrot.slane %v2359, 1
    %v2361 = vmax.f32 %v2359, %v2360
    %v2362 = vsel %vm196, %v2314, -inf
    %v2363 = vrot.slane %v2362, 4
    %v2364 = vmax.f32 %v2362, %v2363
    %v2365 = vrot.slane %v2364, 2
    %v2366 = vmax.f32 %v2364, %v2365
    %v2367 = vrot.slane %v2366, 1
    %v2368 = vmax.f32 %v2366, %v2367
    %v2369 = vsel %vm196, %v2319, -inf
    %v2370 = vrot.slane %v2369, 4
    %v2371 = vmax.f32 %v2369, %v2370
    %v2372 = vrot.slane %v2371, 2
    %v2373 = vmax.f32 %v2371, %v2372
    %v2374 = vrot.slane %v2373, 1
    %v2375 = vmax.f32 %v2373, %v2374
    %v2376 = vsel %vm196, %v2324, -inf
    %v2377 = vrot.slane %v2376, 4
    %v2378 = vmax.f32 %v2376, %v2377
    %v2379 = vrot.slane %v2378, 2
    %v2380 = vmax.f32 %v2378, %v2379
    %v2381 = vrot.slane %v2380, 1
    %v2382 = vmax.f32 %v2380, %v2381
    %v2383 = vsub.f32 %v2289, %v2333
    %v2384 = vsub.f32 %v2294, %v2340
    %v2385 = vsub.f32 %v2299, %v2347
    %v2386 = vsub.f32 %v2304, %v2354
    %v2387 = vsub.f32 %v2309, %v2361
    %v2388 = vsub.f32 %v2314, %v2368
    %v2389 = vsub.f32 %v2319, %v2375
    %v2390 = vsub.f32 %v2324, %v2382
    %v2391 = vmul.f32 %v2383, 1.442695
    %v2392 = vpow.pop %v2391
    %v2393 = vmul.f32 %v2384, 1.442695
    %v2394 = vpow.pop %v2393
    %v2395 = vmul.f32 %v2385, 1.442695
    %v2396 = vpow.pop %v2395
    %v2397 = vmul.f32 %v2386, 1.442695
    %v2398 = vpow.pop %v2397
    %v2399 = vmul.f32 %v2387, 1.442695
    %v2400 = vpow.pop %v2399
    %v2401 = vmul.f32 %v2388, 1.442695
    %v2402 = vpow.pop %v2401
    %v2403 = vmul.f32 %v2389, 1.442695
    %v2404 = vpow.pop %v2403
    %v2405 = vmul.f32 %v2390, 1.442695
    %v2406 = vpow.pop %v2405
    %v2407 = vsel %vm196, %v2392, 0.0
    %v2408 = vrot.slane %v2407, 4
    %v2409 = vadd.f32 %v2407, %v2408
    %v2410 = vrot.slane %v2409, 2
    %v2411 = vadd.f32 %v2409, %v2410
    %v2412 = vrot.slane %v2411, 1
    %v2413 = vadd.f32 %v2411, %v2412
    %v2414 = vsel %vm196, %v2394, 0.0
    %v2415 = vrot.slane %v2414, 4
    %v2416 = vadd.f32 %v2414, %v2415
    %v2417 = vrot.slane %v2416, 2
    %v2418 = vadd.f32 %v2416, %v2417
    %v2419 = vrot.slane %v2418, 1
    %v2420 = vadd.f32 %v2418, %v2419
    %v2421 = vsel %vm196, %v2396, 0.0
    %v2422 = vrot.slane %v2421, 4
    %v2423 = vadd.f32 %v2421, %v2422
    %v2424 = vrot.slane %v2423, 2
    %v2425 = vadd.f32 %v2423, %v2424
    %v2426 = vrot.slane %v2425, 1
    %v2427 = vadd.f32 %v2425, %v2426
    %v2428 = vsel %vm196, %v2398, 0.0
    %v2429 = vrot.slane %v2428, 4
    %v2430 = vadd.f32 %v2428, %v2429
    %v2431 = vrot.slane %v2430, 2
    %v2432 = vadd.f32 %v2430, %v2431
    %v2433 = vrot.slane %v2432, 1
    %v2434 = vadd.f32 %v2432, %v2433
    %v2435 = vsel %vm196, %v2400, 0.0
    %v2436 = vrot.slane %v2435, 4
    %v2437 = vadd.f32 %v2435, %v2436
    %v2438 = vrot.slane %v2437, 2
    %v2439 = vadd.f32 %v2437, %v2438
    %v2440 = vrot.slane %v2439, 1
    %v2441 = vadd.f32 %v2439, %v2440
    %v2442 = vsel %vm196, %v2402, 0.0
    %v2443 = vrot.slane %v2442, 4
    %v2444 = vadd.f32 %v2442, %v2443
    %v2445 = vrot.slane %v2444, 2
    %v2446 = vadd.f32 %v2444, %v2445
    %v2447 = vrot.slane %v2446, 1
    %v2448 = vadd.f32 %v2446, %v2447
    %v2449 = vsel %vm196, %v2404, 0.0
    %v2450 = vrot.slane %v2449, 4
    %v2451 = vadd.f32 %v2449, %v2450
    %v2452 = vrot.slane %v2451, 2
    %v2453 = vadd.f32 %v2451, %v2452
    %v2454 = vrot.slane %v2453, 1
    %v2455 = vadd.f32 %v2453, %v2454
    %v2456 = vsel %vm196, %v2406, 0.0
    %v2457 = vrot.slane %v2456, 4
    %v2458 = vadd.f32 %v2456, %v2457
    %v2459 = vrot.slane %v2458, 2
    %v2460 = vadd.f32 %v2458, %v2459
    %v2461 = vrot.slane %v2460, 1
    %v2462 = vadd.f32 %v2460, %v2461
    %v2463 = vrcp.pop %v2413
    %v2464 = vmul.f32 %v2392, %v2463
    %v2465 = vrcp.pop %v2420
    %v2466 = vmul.f32 %v2394, %v2465
    %v2467 = vrcp.pop %v2427
    %v2468 = vmul.f32 %v2396, %v2467
    %v2469 = vrcp.pop %v2434
    %v2470 = vmul.f32 %v2398, %v2469
    %v2471 = vrcp.pop %v2441
    %v2472 = vmul.f32 %v2400, %v2471
    %v2473 = vrcp.pop %v2448
    %v2474 = vmul.f32 %v2402, %v2473
    %v2475 = vrcp.pop %v2455
    %v2476 = vmul.f32 %v2404, %v2475
    %v2477 = vrcp.pop %v2462
    %v2478 = vmul.f32 %v2406, %v2477
    %v2479 = vld [vmem:[%s7] sm:$0xff]
    %v2481 = vsel %vm196, %v2464, 0
    %v2484 = vsel %vm196, %v2466, 0
    %v2487 = vsel %vm196, %v2468, 0
    %v2490 = vsel %vm196, %v2470, 0
    %v2493 = vsel %vm196, %v2472, 0
    %v2496 = vsel %vm196, %v2474, 0
    %v2499 = vsel %vm196, %v2476, 0
    %v2502 = vsel %vm196, %v2478, 0
    %2504 = vmatprep.subr.mxu0 0.0
    %2505 = vmatpush1.msra.mxu0 %v2479
    %2506 = vmatprep.subr.mxu0 0.0
    %2507 = vmatpush1.msra.mxu0 0.0
    %2508 = vmatprep.subr.mxu0 0.0
    %2509 = vmatpush1.msra.mxu0 0.0
    %2510 = vmatprep.subr.mxu0 0.0
    %2511 = vmatpush1.msra.mxu0 0.0
    %2512 = vmatprep.subr.mxu0 0.0
    %2513 = vmatpush1.msra.mxu0 0.0
    %2514 = vmatprep.subr.mxu0 0.0
    %2515 = vmatpush1.msra.mxu0 0.0
    %2516 = vmatprep.subr.mxu0 0.0
    %2517 = vmatpush1.msra.mxu0 0.0
    %2518 = vmatprep.subr.mxu0 0.0
    %2519 = vmatpush1.msra.mxu0 0.0
    %2520 = vmatprep.subr.mxu0 0.0
    %2521 = vmatpush1.msra.mxu0 0.0
    %2522 = vmatprep.subr.mxu0 0.0
    %2523 = vmatpush1.msra.mxu0 0.0
    %2524 = vmatprep.subr.mxu0 0.0
    %2525 = vmatpush1.msra.mxu0 0.0
    %2526 = vmatprep.subr.mxu0 0.0
    %2527 = vmatpush1.msra.mxu0 0.0
    %2528 = vmatprep.subr.mxu0 0.0
    %2529 = vmatpush1.msra.mxu0 0.0
    %2530 = vmatprep.subr.mxu0 0.0
    %2531 = vmatpush1.msra.mxu0 0.0
    %2532 = vmatprep.subr.mxu0 0.0
    %2533 = vmatpush1.msra.mxu0 0.0
    %2534 = vmatprep.subr.mxu0 0.0
    %2535 = vmatpush1.msra.mxu0 0.0
    %2536 = vmatprep.subr.mxu0 0.0
    %2537 = vmatpush1.msra.mxu0 0.0
    %2538 = vmatprep.subr.mxu0 0.0
    %2539 = vmatpush1.msra.mxu0 0.0
    %2540 = vmatprep.subr.mxu0 0.0
    %2541 = vmatpush1.msra.mxu0 0.0
    %2542 = vmatprep.subr.mxu0 0.0
    %2543 = vmatpush1.msra.mxu0 0.0
    %2544 = vmatprep.subr.mxu0 0.0
    %2545 = vmatpush1.msra.mxu0 0.0
    %2546 = vmatprep.subr.mxu0 0.0
    %2547 = vmatpush1.msra.mxu0 0.0
    %2548 = vmatprep.subr.mxu0 0.0
    %2549 = vmatpush1.msra.mxu0 0.0
    %2550 = vmatprep.subr.mxu0 0.0
    %2551 = vmatpush1.msra.mxu0 0.0
    %2552 = vmatprep.subr.mxu0 0.0
    %2553 = vmatpush1.msra.mxu0 0.0
    %2554 = vmatprep.subr.mxu0 0.0
    %2555 = vmatpush1.msra.mxu0 0.0
    %2556 = vmatprep.subr.mxu0 0.0
    %2557 = vmatpush1.msra.mxu0 0.0
    %2558 = vmatprep.subr.mxu0 0.0
    %2559 = vmatpush1.msra.mxu0 0.0
    %2560 = vmatprep.subr.mxu0 0.0
    %2561 = vmatpush1.msra.mxu0 0.0
    %2562 = vmatprep.subr.mxu0 0.0
    %2563 = vmatpush1.msra.mxu0 0.0
    %2564 = vmatprep.subr.mxu0 0.0
    %2565 = vmatpush1.msra.mxu0 0.0
    %2566 = vmatprep.subr.mxu0 0.0
    %2567 = vmatpush1.msra.mxu0 0.0
    %2568 = vmatprep.mubr.f32.mxu0 0.0
    %2569 = vmatmul.mubr.f32.gmra.mrb[0].mxu0 %v2481
    %v2570 = vpop.f32.mrb[0].mxu0
    %v2571 = vadd.f32 0.0, %v2570
    %v2572 = vpop.f32.mrb[0].mxu0
    %2573 = vmatprep.mubr.f32.mxu0 0.0
    %2574 = vmatmul.mubr.f32.gmra.mrb[0].mxu0 %v2484
    %v2575 = vpop.f32.mrb[0].mxu0
    %v2576 = vadd.f32 0.0, %v2575
    %v2577 = vpop.f32.mrb[0].mxu0
    %2578 = vmatprep.mubr.f32.mxu0 0.0
    %2579 = vmatmul.mubr.f32.gmra.mrb[0].mxu0 %v2487
    %v2580 = vpop.f32.mrb[0].mxu0
    %v2581 = vadd.f32 0.0, %v2580
    %v2582 = vpop.f32.mrb[0].mxu0
    %2583 = vmatprep.mubr.f32.mxu0 0.0
    %2584 = vmatmul.mubr.f32.gmra.mrb[0].mxu0 %v2490
    %v2585 = vpop.f32.mrb[0].mxu0
    %v2586 = vadd.f32 0.0, %v2585
    %v2587 = vpop.f32.mrb[0].mxu0
    %2588 = vmatprep.mubr.f32.mxu0 0.0
    %2589 = vmatmul.mubr.f32.gmra.mrb[0].mxu0 %v2493
    %v2590 = vpop.f32.mrb[0].mxu0
    %v2591 = vadd.f32 0.0, %v2590
    %v2592 = vpop.f32.mrb[0].mxu0
    %2593 = vmatprep.mubr.f32.mxu0 0.0
    %2594 = vmatmul.mubr.f32.gmra.mrb[0].mxu0 %v2496
    %v2595 = vpop.f32.mrb[0].mxu0
    %v2596 = vadd.f32 0.0, %v2595
    %v2597 = vpop.f32.mrb[0].mxu0
    %2598 = vmatprep.mubr.f32.mxu0 0.0
    %2599 = vmatmul.mubr.f32.gmra.mrb[0].mxu0 %v2499
    %v2600 = vpop.f32.mrb[0].mxu0
    %v2601 = vadd.f32 0.0, %v2600
    %v2602 = vpop.f32.mrb[0].mxu0
    %2603 = vmatprep.mubr.f32.mxu0 0.0
    %2604 = vmatmul.mubr.f32.gmra.mrb[0].mxu0 %v2502
    %v2605 = vpop.f32.mrb[0].mxu0
    %v2606 = vadd.f32 0.0, %v2605
    %v2607 = vpop.f32.mrb[0].mxu0
    %2608 = vdwg.mxu0
    %v2609 = vld [vmem:[%s8] sm:$0xff]
    %v2610 = vld [vmem:[%s8 + $0x8] sm:$0xff]
    %v2611 = vld [vmem:[%s8 + $0x10] sm:$0xff]
    %v2612 = vld [vmem:[%s8 + $0x18] sm:$0xff]
    %v2613 = vld [vmem:[%s8 + $0x20] sm:$0xff]
    %v2614 = vld [vmem:[%s8 + $0x28] sm:$0xff]
    %v2615 = vld [vmem:[%s8 + $0x30] sm:$0xff]
    %v2616 = vld [vmem:[%s8 + $0x38] sm:$0xff]
    %v2617 = vmul.f32 %v2571, %v2609
    %v2618 = vmul.f32 %v2576, %v2610
    %v2619 = vmul.f32 %v2581, %v2611
    %v2620 = vmul.f32 %v2586, %v2612
    %v2621 = vmul.f32 %v2591, %v2613
    %v2622 = vmul.f32 %v2596, %v2614
    %v2623 = vmul.f32 %v2601, %v2615
    %v2624 = vmul.f32 %v2606, %v2616
    %2625 = vrot.lane.b32.xlu0 %v1719, 112
    %v2626 = vpop.permute.xlu0 %2625
    %2627 = vrot.lane.b32.xlu0 %v1724, 112
    %v2628 = vpop.permute.xlu0 %2627
    %2629 = vrot.lane.b32.xlu0 %v1729, 112
    %v2630 = vpop.permute.xlu0 %2629
    %2631 = vrot.lane.b32.xlu0 %v1734, 112
    %v2632 = vpop.permute.xlu0 %2631
    %2633 = vrot.lane.b32.xlu0 %v1739, 112
    %v2634 = vpop.permute.xlu0 %2633
    %2635 = vrot.lane.b32.xlu0 %v1744, 112
    %v2636 = vpop.permute.xlu0 %2635
    %2637 = vrot.lane.b32.xlu0 %v1749, 112
    %v2638 = vpop.permute.xlu0 %2637
    %2639 = vrot.lane.b32.xlu0 %v1754, 112
    %v2640 = vpop.permute.xlu0 %2639
    %v2650 = vsel %vm1765, %v2617, 0
    %v2653 = vsel %vm1765, %v2618, 0
    %v2656 = vsel %vm1765, %v2619, 0
    %v2659 = vsel %vm1765, %v2620, 0
    %v2662 = vsel %vm1765, %v2621, 0
    %v2665 = vsel %vm1765, %v2622, 0
    %v2668 = vsel %vm1765, %v2623, 0
    %v2671 = vsel %vm1765, %v2624, 0
    %2673 = vmatprep.subr.mxu0 0.0
    %2674 = vmatpush1.msra.mxu0 %v2626
    %2675 = vmatprep.subr.mxu0 0.0
    %2676 = vmatpush1.msra.mxu0 %v2628
    %2677 = vmatprep.subr.mxu0 0.0
    %2678 = vmatpush1.msra.mxu0 %v2630
    %2679 = vmatprep.subr.mxu0 0.0
    %2680 = vmatpush1.msra.mxu0 %v2632
    %2681 = vmatprep.subr.mxu0 0.0
    %2682 = vmatpush1.msra.mxu0 %v2634
    %2683 = vmatprep.subr.mxu0 0.0
    %2684 = vmatpush1.msra.mxu0 %v2636
    %2685 = vmatprep.subr.mxu0 0.0
    %2686 = vmatpush1.msra.mxu0 %v2638
    %2687 = vmatprep.subr.mxu0 0.0
    %2688 = vmatpush1.msra.mxu0 %v2640
    %2689 = vmatprep.subr.mxu0 0.0
    %2690 = vmatpush1.msra.mxu0 0.0
    %2691 = vmatprep.subr.mxu0 0.0
    %2692 = vmatpush1.msra.mxu0 0.0
    %2693 = vmatprep.subr.mxu0 0.0
    %2694 = vmatpush1.msra.mxu0 0.0
    %2695 = vmatprep.subr.mxu0 0.0
    %2696 = vmatpush1.msra.mxu0 0.0
    %2697 = vmatprep.subr.mxu0 0.0
    %2698 = vmatpush1.msra.mxu0 0.0
    %2699 = vmatprep.subr.mxu0 0.0
    %2700 = vmatpush1.msra.mxu0 0.0
    %2701 = vmatprep.subr.mxu0 0.0
    %2702 = vmatpush1.msra.mxu0 0.0
    %2703 = vmatprep.subr.mxu0 0.0
    %2704 = vmatpush1.msra.mxu0 0.0
    %2705 = vmatprep.subr.mxu0 0.0
    %2706 = vmatpush1.msra.mxu0 0.0
    %2707 = vmatprep.subr.mxu0 0.0
    %2708 = vmatpush1.msra.mxu0 0.0
    %2709 = vmatprep.subr.mxu0 0.0
    %2710 = vmatpush1.msra.mxu0 0.0
    %2711 = vmatprep.subr.mxu0 0.0
    %2712 = vmatpush1.msra.mxu0 0.0
    %2713 = vmatprep.subr.mxu0 0.0
    %2714 = vmatpush1.msra.mxu0 0.0
    %2715 = vmatprep.subr.mxu0 0.0
    %2716 = vmatpush1.msra.mxu0 0.0
    %2717 = vmatprep.subr.mxu0 0.0
    %2718 = vmatpush1.msra.mxu0 0.0
    %2719 = vmatprep.subr.mxu0 0.0
    %2720 = vmatpush1.msra.mxu0 0.0
    %2721 = vmatprep.subr.mxu0 0.0
    %2722 = vmatpush1.msra.mxu0 0.0
    %2723 = vmatprep.subr.mxu0 0.0
    %2724 = vmatpush1.msra.mxu0 0.0
    %2725 = vmatprep.subr.mxu0 0.0
    %2726 = vmatpush1.msra.mxu0 0.0
    %2727 = vmatprep.subr.mxu0 0.0
    %2728 = vmatpush1.msra.mxu0 0.0
    %2729 = vmatprep.subr.mxu0 0.0
    %2730 = vmatpush1.msra.mxu0 0.0
    %2731 = vmatprep.subr.mxu0 0.0
    %2732 = vmatpush1.msra.mxu0 0.0
    %2733 = vmatprep.subr.mxu0 0.0
    %2734 = vmatpush1.msra.mxu0 0.0
    %2735 = vmatprep.subr.mxu0 0.0
    %2736 = vmatpush1.msra.mxu0 0.0
    %2737 = vmatprep.mubr.f32.mxu0 0.0
    %2738 = vmatmul.mubr.f32.gmra.mrb[0].mxu0 %v2650
    %v2739 = vpop.f32.mrb[0].mxu0
    %v2740 = vadd.f32 0.0, %v2739
    %v2741 = vpop.f32.mrb[0].mxu0
    %2742 = vmatprep.mubr.f32.mxu0 0.0
    %2743 = vmatmul.mubr.f32.gmra.mrb[0].mxu0 %v2653
    %v2744 = vpop.f32.mrb[0].mxu0
    %v2745 = vadd.f32 0.0, %v2744
    %v2746 = vpop.f32.mrb[0].mxu0
    %2747 = vmatprep.mubr.f32.mxu0 0.0
    %2748 = vmatmul.mubr.f32.gmra.mrb[0].mxu0 %v2656
    %v2749 = vpop.f32.mrb[0].mxu0
    %v2750 = vadd.f32 0.0, %v2749
    %v2751 = vpop.f32.mrb[0].mxu0
    %2752 = vmatprep.mubr.f32.mxu0 0.0
    %2753 = vmatmul.mubr.f32.gmra.mrb[0].mxu0 %v2659
    %v2754 = vpop.f32.mrb[0].mxu0
    %v2755 = vadd.f32 0.0, %v2754
    %v2756 = vpop.f32.mrb[0].mxu0
    %2757 = vmatprep.mubr.f32.mxu0 0.0
    %2758 = vmatmul.mubr.f32.gmra.mrb[0].mxu0 %v2662
    %v2759 = vpop.f32.mrb[0].mxu0
    %v2760 = vadd.f32 0.0, %v2759
    %v2761 = vpop.f32.mrb[0].mxu0
    %2762 = vmatprep.mubr.f32.mxu0 0.0
    %2763 = vmatmul.mubr.f32.gmra.mrb[0].mxu0 %v2665
    %v2764 = vpop.f32.mrb[0].mxu0
    %v2765 = vadd.f32 0.0, %v2764
    %v2766 = vpop.f32.mrb[0].mxu0
    %2767 = vmatprep.mubr.f32.mxu0 0.0
    %2768 = vmatmul.mubr.f32.gmra.mrb[0].mxu0 %v2668
    %v2769 = vpop.f32.mrb[0].mxu0
    %v2770 = vadd.f32 0.0, %v2769
    %v2771 = vpop.f32.mrb[0].mxu0
    %2772 = vmatprep.mubr.f32.mxu0 0.0
    %2773 = vmatmul.mubr.f32.gmra.mrb[0].mxu0 %v2671
    %v2774 = vpop.f32.mrb[0].mxu0
    %v2775 = vadd.f32 0.0, %v2774
    %v2776 = vpop.f32.mrb[0].mxu0
    %2777 = vdwg.mxu0
    %v2778 = vadd.f32 %v1610, %v2740
    %v2779 = vadd.f32 %v1611, %v2745
    %v2780 = vadd.f32 %v1612, %v2750
    %v2781 = vadd.f32 %v1613, %v2755
    %v2782 = vadd.f32 %v1614, %v2760
    %v2783 = vadd.f32 %v1615, %v2765
    %v2784 = vadd.f32 %v1616, %v2770
    %v2785 = vadd.f32 %v1617, %v2775
    %s2786 = scalar_lea.vmem %s17, 8
    %v2787 = vld [vmem:[%s2786] sm:$0xff]
    %s2788 = scalar_lea.vmem %s18, 8
    %v2789 = vld [vmem:[%s2788] sm:$0xff]
    %v2790 = vsel %vm196, %v2778, 0.0
    %2791 = vadd.xlane.f32.xlu0 %v2790
    %v2792 = vpop.xlane.xlu0 %2791
    %v2793 = vsel %vm196, %v2779, 0.0
    %2794 = vadd.xlane.f32.xlu0 %v2793
    %v2795 = vpop.xlane.xlu0 %2794
    %v2796 = vsel %vm196, %v2780, 0.0
    %2797 = vadd.xlane.f32.xlu0 %v2796
    %v2798 = vpop.xlane.xlu0 %2797
    %v2799 = vsel %vm196, %v2781, 0.0
    %2800 = vadd.xlane.f32.xlu0 %v2799
    %v2801 = vpop.xlane.xlu0 %2800
    %v2802 = vsel %vm196, %v2782, 0.0
    %2803 = vadd.xlane.f32.xlu0 %v2802
    %v2804 = vpop.xlane.xlu0 %2803
    %v2805 = vsel %vm196, %v2783, 0.0
    %2806 = vadd.xlane.f32.xlu0 %v2805
    %v2807 = vpop.xlane.xlu0 %2806
    %v2808 = vsel %vm196, %v2784, 0.0
    %2809 = vadd.xlane.f32.xlu0 %v2808
    %v2810 = vpop.xlane.xlu0 %2809
    %v2811 = vsel %vm196, %v2785, 0.0
    %2812 = vadd.xlane.f32.xlu0 %v2811
    %v2813 = vpop.xlane.xlu0 %2812
    %v2814 = vmul.f32 %v2792, %v1083
    %v2815 = vmul.f32 %v2795, %v1083
    %v2816 = vmul.f32 %v2798, %v1083
    %v2817 = vmul.f32 %v2801, %v1083
    %v2818 = vmul.f32 %v2804, %v1083
    %v2819 = vmul.f32 %v2807, %v1083
    %v2820 = vmul.f32 %v2810, %v1083
    %v2821 = vmul.f32 %v2813, %v1083
    %v2822 = vadd.f32 %v2814, %v2815
    %v2823 = vadd.f32 %v2822, %v2816
    %v2824 = vadd.f32 %v2823, %v2817
    %v2825 = vadd.f32 %v2824, %v2818
    %v2826 = vadd.f32 %v2825, %v2819
    %v2827 = vadd.f32 %v2826, %v2820
    %v2828 = vadd.f32 %v2827, %v2821
    %v2829 = vmul.f32 %v2828, %v1083
    %v2830 = vsub.f32 %v2778, %v2829
    %v2831 = vsub.f32 %v2779, %v2829
    %v2832 = vsub.f32 %v2780, %v2829
    %v2833 = vsub.f32 %v2781, %v2829
    %v2834 = vsub.f32 %v2782, %v2829
    %v2835 = vsub.f32 %v2783, %v2829
    %v2836 = vsub.f32 %v2784, %v2829
    %v2837 = vsub.f32 %v2785, %v2829
    %v2838 = vmul.f32 %v2830, %v2830
    %v2839 = vmul.f32 %v2831, %v2831
    %v2840 = vmul.f32 %v2832, %v2832
    %v2841 = vmul.f32 %v2833, %v2833
    %v2842 = vmul.f32 %v2834, %v2834
    %v2843 = vmul.f32 %v2835, %v2835
    %v2844 = vmul.f32 %v2836, %v2836
    %v2845 = vmul.f32 %v2837, %v2837
    %v2846 = vsel %vm196, %v2838, 0.0
    %2847 = vadd.xlane.f32.xlu0 %v2846
    %v2848 = vpop.xlane.xlu0 %2847
    %v2849 = vsel %vm196, %v2839, 0.0
    %2850 = vadd.xlane.f32.xlu0 %v2849
    %v2851 = vpop.xlane.xlu0 %2850
    %v2852 = vsel %vm196, %v2840, 0.0
    %2853 = vadd.xlane.f32.xlu0 %v2852
    %v2854 = vpop.xlane.xlu0 %2853
    %v2855 = vsel %vm196, %v2841, 0.0
    %2856 = vadd.xlane.f32.xlu0 %v2855
    %v2857 = vpop.xlane.xlu0 %2856
    %v2858 = vsel %vm196, %v2842, 0.0
    %2859 = vadd.xlane.f32.xlu0 %v2858
    %v2860 = vpop.xlane.xlu0 %2859
    %v2861 = vsel %vm196, %v2843, 0.0
    %2862 = vadd.xlane.f32.xlu0 %v2861
    %v2863 = vpop.xlane.xlu0 %2862
    %v2864 = vsel %vm196, %v2844, 0.0
    %2865 = vadd.xlane.f32.xlu0 %v2864
    %v2866 = vpop.xlane.xlu0 %2865
    %v2867 = vsel %vm196, %v2845, 0.0
    %2868 = vadd.xlane.f32.xlu0 %v2867
    %v2869 = vpop.xlane.xlu0 %2868
    %v2870 = vmul.f32 %v2848, %v1083
    %v2871 = vmul.f32 %v2851, %v1083
    %v2872 = vmul.f32 %v2854, %v1083
    %v2873 = vmul.f32 %v2857, %v1083
    %v2874 = vmul.f32 %v2860, %v1083
    %v2875 = vmul.f32 %v2863, %v1083
    %v2876 = vmul.f32 %v2866, %v1083
    %v2877 = vmul.f32 %v2869, %v1083
    %v2878 = vadd.f32 %v2870, %v2871
    %v2879 = vadd.f32 %v2878, %v2872
    %v2880 = vadd.f32 %v2879, %v2873
    %v2881 = vadd.f32 %v2880, %v2874
    %v2882 = vadd.f32 %v2881, %v2875
    %v2883 = vadd.f32 %v2882, %v2876
    %v2884 = vadd.f32 %v2883, %v2877
    %v2885 = vmul.f32 %v2884, %v1083
    %v2886 = vadd.f32 %v2885, 1e-05
    %v2887 = vrsqrt.pop %v2886
    %v2888 = vmul.f32 %v2830, %v2887
    %v2889 = vmul.f32 %v2831, %v2887
    %v2890 = vmul.f32 %v2832, %v2887
    %v2891 = vmul.f32 %v2833, %v2887
    %v2892 = vmul.f32 %v2834, %v2887
    %v2893 = vmul.f32 %v2835, %v2887
    %v2894 = vmul.f32 %v2836, %v2887
    %v2895 = vmul.f32 %v2837, %v2887
    %2897 = vset.pattern.permute.xlu0 0
    %2898 = vperm.xlu0 %2897, %v2787
    %v2899 = vpop.permute.xlu0 %2898
    %v2901 = vmul.f32 %v2888, %v2899
    %v2902 = vmul.f32 %v2889, %v2899
    %v2903 = vmul.f32 %v2890, %v2899
    %v2904 = vmul.f32 %v2891, %v2899
    %v2905 = vmul.f32 %v2892, %v2899
    %v2906 = vmul.f32 %v2893, %v2899
    %v2907 = vmul.f32 %v2894, %v2899
    %v2908 = vmul.f32 %v2895, %v2899
    %2910 = vset.pattern.permute.xlu0 0
    %2911 = vperm.xlu0 %2910, %v2789
    %v2912 = vpop.permute.xlu0 %2911
    %v2914 = vadd.f32 %v2901, %v2912
    %v2915 = vadd.f32 %v2902, %v2912
    %v2916 = vadd.f32 %v2903, %v2912
    %v2917 = vadd.f32 %v2904, %v2912
    %v2918 = vadd.f32 %v2905, %v2912
    %v2919 = vadd.f32 %v2906, %v2912
    %v2920 = vadd.f32 %v2907, %v2912
    %v2921 = vadd.f32 %v2908, %v2912
    %s2922 = scalar_lea.vmem %s21, 8
    %v2923 = vld [vmem:[%s2922] sm:$0xff]
    %s2924 = scalar_lea.vmem %s22, 1
    %v2925 = vld [vmem:[%s2924] sm:$0x1]
    %v2927 = vlaneseq
    %v2928 = vshrl.u32 %v2927, 7
    %v2929 = vsub.s32 0, %v2928
    %v2930 = vrot.slane %v2925, %v2929
    %v2933 = vsel %vm196, %v2914, 0
    %v2936 = vsel %vm196, %v2915, 0
    %v2939 = vsel %vm196, %v2916, 0
    %v2942 = vsel %vm196, %v2917, 0
    %v2945 = vsel %vm196, %v2918, 0
    %v2948 = vsel %vm196, %v2919, 0
    %v2951 = vsel %vm196, %v2920, 0
    %v2954 = vsel %vm196, %v2921, 0
    %2956 = vmatprep.subr.mxu0 0.0
    %2957 = vmatpush1.msra.mxu0 %v2923
    %2958 = vmatprep.subr.mxu0 0.0
    %2959 = vmatpush1.msra.mxu0 0.0
    %2960 = vmatprep.subr.mxu0 0.0
    %2961 = vmatpush1.msra.mxu0 0.0
    %2962 = vmatprep.subr.mxu0 0.0
    %2963 = vmatpush1.msra.mxu0 0.0
    %2964 = vmatprep.subr.mxu0 0.0
    %2965 = vmatpush1.msra.mxu0 0.0
    %2966 = vmatprep.subr.mxu0 0.0
    %2967 = vmatpush1.msra.mxu0 0.0
    %2968 = vmatprep.subr.mxu0 0.0
    %2969 = vmatpush1.msra.mxu0 0.0
    %2970 = vmatprep.subr.mxu0 0.0
    %2971 = vmatpush1.msra.mxu0 0.0
    %2972 = vmatprep.subr.mxu0 0.0
    %2973 = vmatpush1.msra.mxu0 0.0
    %2974 = vmatprep.subr.mxu0 0.0
    %2975 = vmatpush1.msra.mxu0 0.0
    %2976 = vmatprep.subr.mxu0 0.0
    %2977 = vmatpush1.msra.mxu0 0.0
    %2978 = vmatprep.subr.mxu0 0.0
    %2979 = vmatpush1.msra.mxu0 0.0
    %2980 = vmatprep.subr.mxu0 0.0
    %2981 = vmatpush1.msra.mxu0 0.0
    %2982 = vmatprep.subr.mxu0 0.0
    %2983 = vmatpush1.msra.mxu0 0.0
    %2984 = vmatprep.subr.mxu0 0.0
    %2985 = vmatpush1.msra.mxu0 0.0
    %2986 = vmatprep.subr.mxu0 0.0
    %2987 = vmatpush1.msra.mxu0 0.0
    %2988 = vmatprep.subr.mxu0 0.0
    %2989 = vmatpush1.msra.mxu0 0.0
    %2990 = vmatprep.subr.mxu0 0.0
    %2991 = vmatpush1.msra.mxu0 0.0
    %2992 = vmatprep.subr.mxu0 0.0
    %2993 = vmatpush1.msra.mxu0 0.0
    %2994 = vmatprep.subr.mxu0 0.0
    %2995 = vmatpush1.msra.mxu0 0.0
    %2996 = vmatprep.subr.mxu0 0.0
    %2997 = vmatpush1.msra.mxu0 0.0
    %2998 = vmatprep.subr.mxu0 0.0
    %2999 = vmatpush1.msra.mxu0 0.0
    %3000 = vmatprep.subr.mxu0 0.0
    %3001 = vmatpush1.msra.mxu0 0.0
    %3002 = vmatprep.subr.mxu0 0.0
    %3003 = vmatpush1.msra.mxu0 0.0
    %3004 = vmatprep.subr.mxu0 0.0
    %3005 = vmatpush1.msra.mxu0 0.0
    %3006 = vmatprep.subr.mxu0 0.0
    %3007 = vmatpush1.msra.mxu0 0.0
    %3008 = vmatprep.subr.mxu0 0.0
    %3009 = vmatpush1.msra.mxu0 0.0
    %3010 = vmatprep.subr.mxu0 0.0
    %3011 = vmatpush1.msra.mxu0 0.0
    %3012 = vmatprep.subr.mxu0 0.0
    %3013 = vmatpush1.msra.mxu0 0.0
    %3014 = vmatprep.subr.mxu0 0.0
    %3015 = vmatpush1.msra.mxu0 0.0
    %3016 = vmatprep.subr.mxu0 0.0
    %3017 = vmatpush1.msra.mxu0 0.0
    %3018 = vmatprep.subr.mxu0 0.0
    %3019 = vmatpush1.msra.mxu0 0.0
    %3020 = vmatprep.mubr.f32.mxu0 0.0
    %3021 = vmatmul.mubr.f32.gmra.mrb[0].mxu0 %v2933
    %v3022 = vpop.f32.mrb[0].mxu0
    %v3023 = vadd.f32 %v2930, %v3022
    %v3024 = vpop.f32.mrb[0].mxu0
    %3025 = vmatprep.mubr.f32.mxu0 0.0
    %3026 = vmatmul.mubr.f32.gmra.mrb[0].mxu0 %v2936
    %v3027 = vpop.f32.mrb[0].mxu0
    %v3028 = vadd.f32 %v2930, %v3027
    %v3029 = vpop.f32.mrb[0].mxu0
    %3030 = vmatprep.mubr.f32.mxu0 0.0
    %3031 = vmatmul.mubr.f32.gmra.mrb[0].mxu0 %v2939
    %v3032 = vpop.f32.mrb[0].mxu0
    %v3033 = vadd.f32 %v2930, %v3032
    %v3034 = vpop.f32.mrb[0].mxu0
    %3035 = vmatprep.mubr.f32.mxu0 0.0
    %3036 = vmatmul.mubr.f32.gmra.mrb[0].mxu0 %v2942
    %v3037 = vpop.f32.mrb[0].mxu0
    %v3038 = vadd.f32 %v2930, %v3037
    %v3039 = vpop.f32.mrb[0].mxu0
    %3040 = vmatprep.mubr.f32.mxu0 0.0
    %3041 = vmatmul.mubr.f32.gmra.mrb[0].mxu0 %v2945
    %v3042 = vpop.f32.mrb[0].mxu0
    %v3043 = vadd.f32 %v2930, %v3042
    %v3044 = vpop.f32.mrb[0].mxu0
    %3045 = vmatprep.mubr.f32.mxu0 0.0
    %3046 = vmatmul.mubr.f32.gmra.mrb[0].mxu0 %v2948
    %v3047 = vpop.f32.mrb[0].mxu0
    %v3048 = vadd.f32 %v2930, %v3047
    %v3049 = vpop.f32.mrb[0].mxu0
    %3050 = vmatprep.mubr.f32.mxu0 0.0
    %3051 = vmatmul.mubr.f32.gmra.mrb[0].mxu0 %v2951
    %v3052 = vpop.f32.mrb[0].mxu0
    %v3053 = vadd.f32 %v2930, %v3052
    %v3054 = vpop.f32.mrb[0].mxu0
    %3055 = vmatprep.mubr.f32.mxu0 0.0
    %3056 = vmatmul.mubr.f32.gmra.mrb[0].mxu0 %v2954
    %v3057 = vpop.f32.mrb[0].mxu0
    %v3058 = vadd.f32 %v2930, %v3057
    %v3059 = vpop.f32.mrb[0].mxu0
    %3060 = vdwg.mxu0
    %v3061 = vmax.f32 %v3023, 0.0
    %v3062 = vmax.f32 %v3028, 0.0
    %v3063 = vmax.f32 %v3033, 0.0
    %v3064 = vmax.f32 %v3038, 0.0
    %v3065 = vmax.f32 %v3043, 0.0
    %v3066 = vmax.f32 %v3048, 0.0
    %v3067 = vmax.f32 %v3053, 0.0
    %v3068 = vmax.f32 %v3058, 0.0
    %s3069 = scalar_lea.vmem %s23, 16
    %v3070 = vld [vmem:[%s3069] sm:$0xff]
    %v3071 = vld [vmem:[%s3069 + $0x8] sm:$0xff]
    %s3072 = scalar_lea.vmem %s24, 1
    %v3073 = vld [vmem:[%s3072] sm:$0x1]
    %v3075 = vlaneseq
    %v3076 = vshrl.u32 %v3075, 7
    %v3077 = vsub.s32 0, %v3076
    %v3078 = vrot.slane %v3073, %v3077
    %v3081 = vsel %vm1346, %v3061, 0
    %v3084 = vsel %vm1346, %v3062, 0
    %v3087 = vsel %vm1346, %v3063, 0
    %v3090 = vsel %vm1346, %v3064, 0
    %v3093 = vsel %vm1346, %v3065, 0
    %v3096 = vsel %vm1346, %v3066, 0
    %v3099 = vsel %vm1346, %v3067, 0
    %v3102 = vsel %vm1346, %v3068, 0
    %3104 = vmatprep.subr.mxu0 0.0
    %3105 = vmatpush1.msra.mxu0 %v3070
    %3106 = vmatprep.subr.mxu0 0.0
    %3107 = vmatpush1.msra.mxu0 %v3071
    %3108 = vmatprep.subr.mxu0 0.0
    %3109 = vmatpush1.msra.mxu0 0.0
    %3110 = vmatprep.subr.mxu0 0.0
    %3111 = vmatpush1.msra.mxu0 0.0
    %3112 = vmatprep.subr.mxu0 0.0
    %3113 = vmatpush1.msra.mxu0 0.0
    %3114 = vmatprep.subr.mxu0 0.0
    %3115 = vmatpush1.msra.mxu0 0.0
    %3116 = vmatprep.subr.mxu0 0.0
    %3117 = vmatpush1.msra.mxu0 0.0
    %3118 = vmatprep.subr.mxu0 0.0
    %3119 = vmatpush1.msra.mxu0 0.0
    %3120 = vmatprep.subr.mxu0 0.0
    %3121 = vmatpush1.msra.mxu0 0.0
    %3122 = vmatprep.subr.mxu0 0.0
    %3123 = vmatpush1.msra.mxu0 0.0
    %3124 = vmatprep.subr.mxu0 0.0
    %3125 = vmatpush1.msra.mxu0 0.0
    %3126 = vmatprep.subr.mxu0 0.0
    %3127 = vmatpush1.msra.mxu0 0.0
    %3128 = vmatprep.subr.mxu0 0.0
    %3129 = vmatpush1.msra.mxu0 0.0
    %3130 = vmatprep.subr.mxu0 0.0
    %3131 = vmatpush1.msra.mxu0 0.0
    %3132 = vmatprep.subr.mxu0 0.0
    %3133 = vmatpush1.msra.mxu0 0.0
    %3134 = vmatprep.subr.mxu0 0.0
    %3135 = vmatpush1.msra.mxu0 0.0
    %3136 = vmatprep.subr.mxu0 0.0
    %3137 = vmatpush1.msra.mxu0 0.0
    %3138 = vmatprep.subr.mxu0 0.0
    %3139 = vmatpush1.msra.mxu0 0.0
    %3140 = vmatprep.subr.mxu0 0.0
    %3141 = vmatpush1.msra.mxu0 0.0
    %3142 = vmatprep.subr.mxu0 0.0
    %3143 = vmatpush1.msra.mxu0 0.0
    %3144 = vmatprep.subr.mxu0 0.0
    %3145 = vmatpush1.msra.mxu0 0.0
    %3146 = vmatprep.subr.mxu0 0.0
    %3147 = vmatpush1.msra.mxu0 0.0
    %3148 = vmatprep.subr.mxu0 0.0
    %3149 = vmatpush1.msra.mxu0 0.0
    %3150 = vmatprep.subr.mxu0 0.0
    %3151 = vmatpush1.msra.mxu0 0.0
    %3152 = vmatprep.subr.mxu0 0.0
    %3153 = vmatpush1.msra.mxu0 0.0
    %3154 = vmatprep.subr.mxu0 0.0
    %3155 = vmatpush1.msra.mxu0 0.0
    %3156 = vmatprep.subr.mxu0 0.0
    %3157 = vmatpush1.msra.mxu0 0.0
    %3158 = vmatprep.subr.mxu0 0.0
    %3159 = vmatpush1.msra.mxu0 0.0
    %3160 = vmatprep.subr.mxu0 0.0
    %3161 = vmatpush1.msra.mxu0 0.0
    %3162 = vmatprep.subr.mxu0 0.0
    %3163 = vmatpush1.msra.mxu0 0.0
    %3164 = vmatprep.subr.mxu0 0.0
    %3165 = vmatpush1.msra.mxu0 0.0
    %3166 = vmatprep.subr.mxu0 0.0
    %3167 = vmatpush1.msra.mxu0 0.0
    %3168 = vmatprep.mubr.f32.mxu0 0.0
    %3169 = vmatmul.mubr.f32.gmra.mrb[0].mxu0 %v3081
    %v3170 = vpop.f32.mrb[0].mxu0
    %v3171 = vadd.f32 %v3078, %v3170
    %v3172 = vpop.f32.mrb[0].mxu0
    %3173 = vmatprep.mubr.f32.mxu0 0.0
    %3174 = vmatmul.mubr.f32.gmra.mrb[0].mxu0 %v3084
    %v3175 = vpop.f32.mrb[0].mxu0
    %v3176 = vadd.f32 %v3078, %v3175
    %v3177 = vpop.f32.mrb[0].mxu0
    %3178 = vmatprep.mubr.f32.mxu0 0.0
    %3179 = vmatmul.mubr.f32.gmra.mrb[0].mxu0 %v3087
    %v3180 = vpop.f32.mrb[0].mxu0
    %v3181 = vadd.f32 %v3078, %v3180
    %v3182 = vpop.f32.mrb[0].mxu0
    %3183 = vmatprep.mubr.f32.mxu0 0.0
    %3184 = vmatmul.mubr.f32.gmra.mrb[0].mxu0 %v3090
    %v3185 = vpop.f32.mrb[0].mxu0
    %v3186 = vadd.f32 %v3078, %v3185
    %v3187 = vpop.f32.mrb[0].mxu0
    %3188 = vmatprep.mubr.f32.mxu0 0.0
    %3189 = vmatmul.mubr.f32.gmra.mrb[0].mxu0 %v3093
    %v3190 = vpop.f32.mrb[0].mxu0
    %v3191 = vadd.f32 %v3078, %v3190
    %v3192 = vpop.f32.mrb[0].mxu0
    %3193 = vmatprep.mubr.f32.mxu0 0.0
    %3194 = vmatmul.mubr.f32.gmra.mrb[0].mxu0 %v3096
    %v3195 = vpop.f32.mrb[0].mxu0
    %v3196 = vadd.f32 %v3078, %v3195
    %v3197 = vpop.f32.mrb[0].mxu0
    %3198 = vmatprep.mubr.f32.mxu0 0.0
    %3199 = vmatmul.mubr.f32.gmra.mrb[0].mxu0 %v3099
    %v3200 = vpop.f32.mrb[0].mxu0
    %v3201 = vadd.f32 %v3078, %v3200
    %v3202 = vpop.f32.mrb[0].mxu0
    %3203 = vmatprep.mubr.f32.mxu0 0.0
    %3204 = vmatmul.mubr.f32.gmra.mrb[0].mxu0 %v3102
    %v3205 = vpop.f32.mrb[0].mxu0
    %v3206 = vadd.f32 %v3078, %v3205
    %v3207 = vpop.f32.mrb[0].mxu0
    %3208 = vdwg.mxu0
    %v3209 = vadd.f32 %v2914, %v3171
    %v3210 = vadd.f32 %v2915, %v3176
    %v3211 = vadd.f32 %v2916, %v3181
    %v3212 = vadd.f32 %v2917, %v3186
    %v3213 = vadd.f32 %v2918, %v3191
    %v3214 = vadd.f32 %v2919, %v3196
    %v3215 = vadd.f32 %v2920, %v3201
    %v3216 = vadd.f32 %v2921, %v3206
    %s3217 = scalar_lea.vmem %s19, 8
    %v3218 = vld [vmem:[%s3217] sm:$0xff]
    %s3219 = scalar_lea.vmem %s20, 8
    %v3220 = vld [vmem:[%s3219] sm:$0xff]
    %v3221 = vsel %vm196, %v3209, 0.0
    %3222 = vadd.xlane.f32.xlu0 %v3221
    %v3223 = vpop.xlane.xlu0 %3222
    %v3224 = vsel %vm196, %v3210, 0.0
    %3225 = vadd.xlane.f32.xlu0 %v3224
    %v3226 = vpop.xlane.xlu0 %3225
    %v3227 = vsel %vm196, %v3211, 0.0
    %3228 = vadd.xlane.f32.xlu0 %v3227
    %v3229 = vpop.xlane.xlu0 %3228
    %v3230 = vsel %vm196, %v3212, 0.0
    %3231 = vadd.xlane.f32.xlu0 %v3230
    %v3232 = vpop.xlane.xlu0 %3231
    %v3233 = vsel %vm196, %v3213, 0.0
    %3234 = vadd.xlane.f32.xlu0 %v3233
    %v3235 = vpop.xlane.xlu0 %3234
    %v3236 = vsel %vm196, %v3214, 0.0
    %3237 = vadd.xlane.f32.xlu0 %v3236
    %v3238 = vpop.xlane.xlu0 %3237
    %v3239 = vsel %vm196, %v3215, 0.0
    %3240 = vadd.xlane.f32.xlu0 %v3239
    %v3241 = vpop.xlane.xlu0 %3240
    %v3242 = vsel %vm196, %v3216, 0.0
    %3243 = vadd.xlane.f32.xlu0 %v3242
    %v3244 = vpop.xlane.xlu0 %3243
    %v3245 = vmul.f32 %v3223, %v1083
    %v3246 = vmul.f32 %v3226, %v1083
    %v3247 = vmul.f32 %v3229, %v1083
    %v3248 = vmul.f32 %v3232, %v1083
    %v3249 = vmul.f32 %v3235, %v1083
    %v3250 = vmul.f32 %v3238, %v1083
    %v3251 = vmul.f32 %v3241, %v1083
    %v3252 = vmul.f32 %v3244, %v1083
    %v3253 = vadd.f32 %v3245, %v3246
    %v3254 = vadd.f32 %v3253, %v3247
    %v3255 = vadd.f32 %v3254, %v3248
    %v3256 = vadd.f32 %v3255, %v3249
    %v3257 = vadd.f32 %v3256, %v3250
    %v3258 = vadd.f32 %v3257, %v3251
    %v3259 = vadd.f32 %v3258, %v3252
    %v3260 = vmul.f32 %v3259, %v1083
    %v3261 = vsub.f32 %v3209, %v3260
    %v3262 = vsub.f32 %v3210, %v3260
    %v3263 = vsub.f32 %v3211, %v3260
    %v3264 = vsub.f32 %v3212, %v3260
    %v3265 = vsub.f32 %v3213, %v3260
    %v3266 = vsub.f32 %v3214, %v3260
    %v3267 = vsub.f32 %v3215, %v3260
    %v3268 = vsub.f32 %v3216, %v3260
    %v3269 = vmul.f32 %v3261, %v3261
    %v3270 = vmul.f32 %v3262, %v3262
    %v3271 = vmul.f32 %v3263, %v3263
    %v3272 = vmul.f32 %v3264, %v3264
    %v3273 = vmul.f32 %v3265, %v3265
    %v3274 = vmul.f32 %v3266, %v3266
    %v3275 = vmul.f32 %v3267, %v3267
    %v3276 = vmul.f32 %v3268, %v3268
    %v3277 = vsel %vm196, %v3269, 0.0
    %3278 = vadd.xlane.f32.xlu0 %v3277
    %v3279 = vpop.xlane.xlu0 %3278
    %v3280 = vsel %vm196, %v3270, 0.0
    %3281 = vadd.xlane.f32.xlu0 %v3280
    %v3282 = vpop.xlane.xlu0 %3281
    %v3283 = vsel %vm196, %v3271, 0.0
    %3284 = vadd.xlane.f32.xlu0 %v3283
    %v3285 = vpop.xlane.xlu0 %3284
    %v3286 = vsel %vm196, %v3272, 0.0
    %3287 = vadd.xlane.f32.xlu0 %v3286
    %v3288 = vpop.xlane.xlu0 %3287
    %v3289 = vsel %vm196, %v3273, 0.0
    %3290 = vadd.xlane.f32.xlu0 %v3289
    %v3291 = vpop.xlane.xlu0 %3290
    %v3292 = vsel %vm196, %v3274, 0.0
    %3293 = vadd.xlane.f32.xlu0 %v3292
    %v3294 = vpop.xlane.xlu0 %3293
    %v3295 = vsel %vm196, %v3275, 0.0
    %3296 = vadd.xlane.f32.xlu0 %v3295
    %v3297 = vpop.xlane.xlu0 %3296
    %v3298 = vsel %vm196, %v3276, 0.0
    %3299 = vadd.xlane.f32.xlu0 %v3298
    %v3300 = vpop.xlane.xlu0 %3299
    %v3301 = vmul.f32 %v3279, %v1083
    %v3302 = vmul.f32 %v3282, %v1083
    %v3303 = vmul.f32 %v3285, %v1083
    %v3304 = vmul.f32 %v3288, %v1083
    %v3305 = vmul.f32 %v3291, %v1083
    %v3306 = vmul.f32 %v3294, %v1083
    %v3307 = vmul.f32 %v3297, %v1083
    %v3308 = vmul.f32 %v3300, %v1083
    %v3309 = vadd.f32 %v3301, %v3302
    %v3310 = vadd.f32 %v3309, %v3303
    %v3311 = vadd.f32 %v3310, %v3304
    %v3312 = vadd.f32 %v3311, %v3305
    %v3313 = vadd.f32 %v3312, %v3306
    %v3314 = vadd.f32 %v3313, %v3307
    %v3315 = vadd.f32 %v3314, %v3308
    %v3316 = vmul.f32 %v3315, %v1083
    %v3317 = vadd.f32 %v3316, 1e-05
    %v3318 = vrsqrt.pop %v3317
    %v3319 = vmul.f32 %v3261, %v3318
    %v3320 = vmul.f32 %v3262, %v3318
    %v3321 = vmul.f32 %v3263, %v3318
    %v3322 = vmul.f32 %v3264, %v3318
    %v3323 = vmul.f32 %v3265, %v3318
    %v3324 = vmul.f32 %v3266, %v3318
    %v3325 = vmul.f32 %v3267, %v3318
    %v3326 = vmul.f32 %v3268, %v3318
    %3328 = vset.pattern.permute.xlu0 0
    %3329 = vperm.xlu0 %3328, %v3218
    %v3330 = vpop.permute.xlu0 %3329
    %v3332 = vmul.f32 %v3319, %v3330
    %v3333 = vmul.f32 %v3320, %v3330
    %v3334 = vmul.f32 %v3321, %v3330
    %v3335 = vmul.f32 %v3322, %v3330
    %v3336 = vmul.f32 %v3323, %v3330
    %v3337 = vmul.f32 %v3324, %v3330
    %v3338 = vmul.f32 %v3325, %v3330
    %v3339 = vmul.f32 %v3326, %v3330
    %3341 = vset.pattern.permute.xlu0 0
    %3342 = vperm.xlu0 %3341, %v3220
    %v3343 = vpop.permute.xlu0 %3342
    %v3345 = vadd.f32 %v3332, %v3343
    %v3346 = vadd.f32 %v3333, %v3343
    %v3347 = vadd.f32 %v3334, %v3343
    %v3348 = vadd.f32 %v3335, %v3343
    %v3349 = vadd.f32 %v3336, %v3343
    %v3350 = vadd.f32 %v3337, %v3343
    %v3351 = vadd.f32 %v3338, %v3343
    %v3352 = vadd.f32 %v3339, %v3343
    %s3353 = scalar_lea.vmem %s13, 16
    %v3354 = vld [vmem:[%s3353] sm:$0xff]
    %s3355 = scalar_lea.vmem %s14, 2
    %v3356 = vld [vmem:[%s3355] sm:$0x1]
    %v3358 = vlaneseq
    %v3359 = vshrl.u32 %v3358, 7
    %v3360 = vsub.s32 0, %v3359
    %v3361 = vrot.slane %v3356, %v3360
    %v3364 = vsel %vm196, %v3345, 0
    %v3367 = vsel %vm196, %v3346, 0
    %v3370 = vsel %vm196, %v3347, 0
    %v3373 = vsel %vm196, %v3348, 0
    %v3376 = vsel %vm196, %v3349, 0
    %v3379 = vsel %vm196, %v3350, 0
    %v3382 = vsel %vm196, %v3351, 0
    %v3385 = vsel %vm196, %v3352, 0
    %3387 = vmatprep.subr.mxu0 0.0
    %3388 = vmatpush1.msra.mxu0 %v3354
    %3389 = vmatprep.subr.mxu0 0.0
    %3390 = vmatpush1.msra.mxu0 0.0
    %3391 = vmatprep.subr.mxu0 0.0
    %3392 = vmatpush1.msra.mxu0 0.0
    %3393 = vmatprep.subr.mxu0 0.0
    %3394 = vmatpush1.msra.mxu0 0.0
    %3395 = vmatprep.subr.mxu0 0.0
    %3396 = vmatpush1.msra.mxu0 0.0
    %3397 = vmatprep.subr.mxu0 0.0
    %3398 = vmatpush1.msra.mxu0 0.0
    %3399 = vmatprep.subr.mxu0 0.0
    %3400 = vmatpush1.msra.mxu0 0.0
    %3401 = vmatprep.subr.mxu0 0.0
    %3402 = vmatpush1.msra.mxu0 0.0
    %3403 = vmatprep.subr.mxu0 0.0
    %3404 = vmatpush1.msra.mxu0 0.0
    %3405 = vmatprep.subr.mxu0 0.0
    %3406 = vmatpush1.msra.mxu0 0.0
    %3407 = vmatprep.subr.mxu0 0.0
    %3408 = vmatpush1.msra.mxu0 0.0
    %3409 = vmatprep.subr.mxu0 0.0
    %3410 = vmatpush1.msra.mxu0 0.0
    %3411 = vmatprep.subr.mxu0 0.0
    %3412 = vmatpush1.msra.mxu0 0.0
    %3413 = vmatprep.subr.mxu0 0.0
    %3414 = vmatpush1.msra.mxu0 0.0
    %3415 = vmatprep.subr.mxu0 0.0
    %3416 = vmatpush1.msra.mxu0 0.0
    %3417 = vmatprep.subr.mxu0 0.0
    %3418 = vmatpush1.msra.mxu0 0.0
    %3419 = vmatprep.subr.mxu0 0.0
    %3420 = vmatpush1.msra.mxu0 0.0
    %3421 = vmatprep.subr.mxu0 0.0
    %3422 = vmatpush1.msra.mxu0 0.0
    %3423 = vmatprep.subr.mxu0 0.0
    %3424 = vmatpush1.msra.mxu0 0.0
    %3425 = vmatprep.subr.mxu0 0.0
    %3426 = vmatpush1.msra.mxu0 0.0
    %3427 = vmatprep.subr.mxu0 0.0
    %3428 = vmatpush1.msra.mxu0 0.0
    %3429 = vmatprep.subr.mxu0 0.0
    %3430 = vmatpush1.msra.mxu0 0.0
    %3431 = vmatprep.subr.mxu0 0.0
    %3432 = vmatpush1.msra.mxu0 0.0
    %3433 = vmatprep.subr.mxu0 0.0
    %3434 = vmatpush1.msra.mxu0 0.0
    %3435 = vmatprep.subr.mxu0 0.0
    %3436 = vmatpush1.msra.mxu0 0.0
    %3437 = vmatprep.subr.mxu0 0.0
    %3438 = vmatpush1.msra.mxu0 0.0
    %3439 = vmatprep.subr.mxu0 0.0
    %3440 = vmatpush1.msra.mxu0 0.0
    %3441 = vmatprep.subr.mxu0 0.0
    %3442 = vmatpush1.msra.mxu0 0.0
    %3443 = vmatprep.subr.mxu0 0.0
    %3444 = vmatpush1.msra.mxu0 0.0
    %3445 = vmatprep.subr.mxu0 0.0
    %3446 = vmatpush1.msra.mxu0 0.0
    %3447 = vmatprep.subr.mxu0 0.0
    %3448 = vmatpush1.msra.mxu0 0.0
    %3449 = vmatprep.subr.mxu0 0.0
    %3450 = vmatpush1.msra.mxu0 0.0
    %3451 = vmatprep.mubr.f32.mxu0 0.0
    %3452 = vmatmul.mubr.f32.gmra.mrb[0].mxu0 %v3364
    %v3453 = vpop.f32.mrb[0].mxu0
    %v3454 = vadd.f32 %v3361, %v3453
    %v3455 = vpop.f32.mrb[0].mxu0
    %3456 = vmatprep.mubr.f32.mxu0 0.0
    %3457 = vmatmul.mubr.f32.gmra.mrb[0].mxu0 %v3367
    %v3458 = vpop.f32.mrb[0].mxu0
    %v3459 = vadd.f32 %v3361, %v3458
    %v3460 = vpop.f32.mrb[0].mxu0
    %3461 = vmatprep.mubr.f32.mxu0 0.0
    %3462 = vmatmul.mubr.f32.gmra.mrb[0].mxu0 %v3370
    %v3463 = vpop.f32.mrb[0].mxu0
    %v3464 = vadd.f32 %v3361, %v3463
    %v3465 = vpop.f32.mrb[0].mxu0
    %3466 = vmatprep.mubr.f32.mxu0 0.0
    %3467 = vmatmul.mubr.f32.gmra.mrb[0].mxu0 %v3373
    %v3468 = vpop.f32.mrb[0].mxu0
    %v3469 = vadd.f32 %v3361, %v3468
    %v3470 = vpop.f32.mrb[0].mxu0
    %3471 = vmatprep.mubr.f32.mxu0 0.0
    %3472 = vmatmul.mubr.f32.gmra.mrb[0].mxu0 %v3376
    %v3473 = vpop.f32.mrb[0].mxu0
    %v3474 = vadd.f32 %v3361, %v3473
    %v3475 = vpop.f32.mrb[0].mxu0
    %3476 = vmatprep.mubr.f32.mxu0 0.0
    %3477 = vmatmul.mubr.f32.gmra.mrb[0].mxu0 %v3379
    %v3478 = vpop.f32.mrb[0].mxu0
    %v3479 = vadd.f32 %v3361, %v3478
    %v3480 = vpop.f32.mrb[0].mxu0
    %3481 = vmatprep.mubr.f32.mxu0 0.0
    %3482 = vmatmul.mubr.f32.gmra.mrb[0].mxu0 %v3382
    %v3483 = vpop.f32.mrb[0].mxu0
    %v3484 = vadd.f32 %v3361, %v3483
    %v3485 = vpop.f32.mrb[0].mxu0
    %3486 = vmatprep.mubr.f32.mxu0 0.0
    %3487 = vmatmul.mubr.f32.gmra.mrb[0].mxu0 %v3385
    %v3488 = vpop.f32.mrb[0].mxu0
    %v3489 = vadd.f32 %v3361, %v3488
    %v3490 = vpop.f32.mrb[0].mxu0
    %3491 = vdwg.mxu0
    %3492 = vmatprep.subr.mxu0 0.0
    %3493 = vmatpush1.msra.mxu0 %v3454
    %3494 = vmatprep.subr.mxu0 0.0
    %3495 = vmatpush1.msra.mxu0 %v3459
    %3496 = vmatprep.subr.mxu0 0.0
    %3497 = vmatpush1.msra.mxu0 %v3464
    %3498 = vmatprep.subr.mxu0 0.0
    %3499 = vmatpush1.msra.mxu0 %v3469
    %3500 = vmatprep.subr.mxu0 0.0
    %3501 = vmatpush1.msra.mxu0 %v3474
    %3502 = vmatprep.subr.mxu0 0.0
    %3503 = vmatpush1.msra.mxu0 %v3479
    %3504 = vmatprep.subr.mxu0 0.0
    %3505 = vmatpush1.msra.mxu0 %v3484
    %3506 = vmatprep.subr.mxu0 0.0
    %3507 = vmatpush1.msra.mxu0 %v3489
    %3508 = vmatprep.subr.mxu0 0.0
    %3509 = vmatpush1.msra.mxu0 0.0
    %3510 = vmatprep.subr.mxu0 0.0
    %3511 = vmatpush1.msra.mxu0 0.0
    %3512 = vmatprep.subr.mxu0 0.0
    %3513 = vmatpush1.msra.mxu0 0.0
    %3514 = vmatprep.subr.mxu0 0.0
    %3515 = vmatpush1.msra.mxu0 0.0
    %3516 = vmatprep.subr.mxu0 0.0
    %3517 = vmatpush1.msra.mxu0 0.0
    %3518 = vmatprep.subr.mxu0 0.0
    %3519 = vmatpush1.msra.mxu0 0.0
    %3520 = vmatprep.subr.mxu0 0.0
    %3521 = vmatpush1.msra.mxu0 0.0
    %3522 = vmatprep.subr.mxu0 0.0
    %3523 = vmatpush1.msra.mxu0 0.0
    %3524 = vmatprep.subr.mxu0 0.0
    %3525 = vmatpush1.msra.mxu0 0.0
    %3526 = vmatprep.subr.mxu0 0.0
    %3527 = vmatpush1.msra.mxu0 0.0
    %3528 = vmatprep.subr.mxu0 0.0
    %3529 = vmatpush1.msra.mxu0 0.0
    %3530 = vmatprep.subr.mxu0 0.0
    %3531 = vmatpush1.msra.mxu0 0.0
    %3532 = vmatprep.subr.mxu0 0.0
    %3533 = vmatpush1.msra.mxu0 0.0
    %3534 = vmatprep.subr.mxu0 0.0
    %3535 = vmatpush1.msra.mxu0 0.0
    %3536 = vmatprep.subr.mxu0 0.0
    %3537 = vmatpush1.msra.mxu0 0.0
    %3538 = vmatprep.subr.mxu0 0.0
    %3539 = vmatpush1.msra.mxu0 0.0
    %3540 = vmatprep.subr.mxu0 0.0
    %3541 = vmatpush1.msra.mxu0 0.0
    %3542 = vmatprep.subr.mxu0 0.0
    %3543 = vmatpush1.msra.mxu0 0.0
    %3544 = vmatprep.subr.mxu0 0.0
    %3545 = vmatpush1.msra.mxu0 0.0
    %3546 = vmatprep.subr.mxu0 0.0
    %3547 = vmatpush1.msra.mxu0 0.0
    %3548 = vmatprep.subr.mxu0 0.0
    %3549 = vmatpush1.msra.mxu0 0.0
    %3550 = vmatprep.subr.mxu0 0.0
    %3551 = vmatpush1.msra.mxu0 0.0
    %3552 = vmatprep.subr.mxu0 0.0
    %3553 = vmatpush1.msra.mxu0 0.0
    %3554 = vmatprep.subr.mxu0 0.0
    %3555 = vmatpush1.msra.mxu0 0.0
    %3556 = vmatprep.mubr.f32.mxu0 0.0
    %3557 = vmatmul.mubr.f32.gmra.mrb[0].mxu0 %v1767
    %v3558 = vpop.f32.mrb[0].mxu0
    %v3559 = vadd.f32 0.0, %v3558
    %v3560 = vpop.f32.mrb[0].mxu0
    %3561 = vmatprep.mubr.f32.mxu0 0.0
    %3562 = vmatmul.mubr.f32.gmra.mrb[0].mxu0 %v1770
    %v3563 = vpop.f32.mrb[0].mxu0
    %v3564 = vadd.f32 0.0, %v3563
    %v3565 = vpop.f32.mrb[0].mxu0
    %3566 = vmatprep.mubr.f32.mxu0 0.0
    %3567 = vmatmul.mubr.f32.gmra.mrb[0].mxu0 %v1773
    %v3568 = vpop.f32.mrb[0].mxu0
    %v3569 = vadd.f32 0.0, %v3568
    %v3570 = vpop.f32.mrb[0].mxu0
    %3571 = vmatprep.mubr.f32.mxu0 0.0
    %3572 = vmatmul.mubr.f32.gmra.mrb[0].mxu0 %v1776
    %v3573 = vpop.f32.mrb[0].mxu0
    %v3574 = vadd.f32 0.0, %v3573
    %v3575 = vpop.f32.mrb[0].mxu0
    %3576 = vmatprep.mubr.f32.mxu0 0.0
    %3577 = vmatmul.mubr.f32.gmra.mrb[0].mxu0 %v1779
    %v3578 = vpop.f32.mrb[0].mxu0
    %v3579 = vadd.f32 0.0, %v3578
    %v3580 = vpop.f32.mrb[0].mxu0
    %3581 = vmatprep.mubr.f32.mxu0 0.0
    %3582 = vmatmul.mubr.f32.gmra.mrb[0].mxu0 %v1782
    %v3583 = vpop.f32.mrb[0].mxu0
    %v3584 = vadd.f32 0.0, %v3583
    %v3585 = vpop.f32.mrb[0].mxu0
    %3586 = vmatprep.mubr.f32.mxu0 0.0
    %3587 = vmatmul.mubr.f32.gmra.mrb[0].mxu0 %v1785
    %v3588 = vpop.f32.mrb[0].mxu0
    %v3589 = vadd.f32 0.0, %v3588
    %v3590 = vpop.f32.mrb[0].mxu0
    %3591 = vmatprep.mubr.f32.mxu0 0.0
    %3592 = vmatmul.mubr.f32.gmra.mrb[0].mxu0 %v1788
    %v3593 = vpop.f32.mrb[0].mxu0
    %v3594 = vadd.f32 0.0, %v3593
    %v3595 = vpop.f32.mrb[0].mxu0
    %3596 = vdwg.mxu0
    %3605 = vrot.lane.b32.xlu0 %v3454, 120
    %v3606 = vpop.permute.xlu0 %3605
    %3607 = vrot.lane.b32.xlu0 %v3459, 120
    %v3608 = vpop.permute.xlu0 %3607
    %3609 = vrot.lane.b32.xlu0 %v3464, 120
    %v3610 = vpop.permute.xlu0 %3609
    %3611 = vrot.lane.b32.xlu0 %v3469, 120
    %v3612 = vpop.permute.xlu0 %3611
    %3613 = vrot.lane.b32.xlu0 %v3474, 120
    %v3614 = vpop.permute.xlu0 %3613
    %3615 = vrot.lane.b32.xlu0 %v3479, 120
    %v3616 = vpop.permute.xlu0 %3615
    %3617 = vrot.lane.b32.xlu0 %v3484, 120
    %v3618 = vpop.permute.xlu0 %3617
    %3619 = vrot.lane.b32.xlu0 %v3489, 120
    %v3620 = vpop.permute.xlu0 %3619
    %3629 = vmatprep.subr.mxu0 0.0
    %3630 = vmatpush1.msra.mxu0 %v3606
    %3631 = vmatprep.subr.mxu0 0.0
    %3632 = vmatpush1.msra.mxu0 %v3608
    %3633 = vmatprep.subr.mxu0 0.0
    %3634 = vmatpush1.msra.mxu0 %v3610
    %3635 = vmatprep.subr.mxu0 0.0
    %3636 = vmatpush1.msra.mxu0 %v3612
    %3637 = vmatprep.subr.mxu0 0.0
    %3638 = vmatpush1.msra.mxu0 %v3614
    %3639 = vmatprep.subr.mxu0 0.0
    %3640 = vmatpush1.msra.mxu0 %v3616
    %3641 = vmatprep.subr.mxu0 0.0
    %3642 = vmatpush1.msra.mxu0 %v3618
    %3643 = vmatprep.subr.mxu0 0.0
    %3644 = vmatpush1.msra.mxu0 %v3620
    %3645 = vmatprep.subr.mxu0 0.0
    %3646 = vmatpush1.msra.mxu0 0.0
    %3647 = vmatprep.subr.mxu0 0.0
    %3648 = vmatpush1.msra.mxu0 0.0
    %3649 = vmatprep.subr.mxu0 0.0
    %3650 = vmatpush1.msra.mxu0 0.0
    %3651 = vmatprep.subr.mxu0 0.0
    %3652 = vmatpush1.msra.mxu0 0.0
    %3653 = vmatprep.subr.mxu0 0.0
    %3654 = vmatpush1.msra.mxu0 0.0
    %3655 = vmatprep.subr.mxu0 0.0
    %3656 = vmatpush1.msra.mxu0 0.0
    %3657 = vmatprep.subr.mxu0 0.0
    %3658 = vmatpush1.msra.mxu0 0.0
    %3659 = vmatprep.subr.mxu0 0.0
    %3660 = vmatpush1.msra.mxu0 0.0
    %3661 = vmatprep.subr.mxu0 0.0
    %3662 = vmatpush1.msra.mxu0 0.0
    %3663 = vmatprep.subr.mxu0 0.0
    %3664 = vmatpush1.msra.mxu0 0.0
    %3665 = vmatprep.subr.mxu0 0.0
    %3666 = vmatpush1.msra.mxu0 0.0
    %3667 = vmatprep.subr.mxu0 0.0
    %3668 = vmatpush1.msra.mxu0 0.0
    %3669 = vmatprep.subr.mxu0 0.0
    %3670 = vmatpush1.msra.mxu0 0.0
    %3671 = vmatprep.subr.mxu0 0.0
    %3672 = vmatpush1.msra.mxu0 0.0
    %3673 = vmatprep.subr.mxu0 0.0
    %3674 = vmatpush1.msra.mxu0 0.0
    %3675 = vmatprep.subr.mxu0 0.0
    %3676 = vmatpush1.msra.mxu0 0.0
    %3677 = vmatprep.subr.mxu0 0.0
    %3678 = vmatpush1.msra.mxu0 0.0
    %3679 = vmatprep.subr.mxu0 0.0
    %3680 = vmatpush1.msra.mxu0 0.0
    %3681 = vmatprep.subr.mxu0 0.0
    %3682 = vmatpush1.msra.mxu0 0.0
    %3683 = vmatprep.subr.mxu0 0.0
    %3684 = vmatpush1.msra.mxu0 0.0
    %3685 = vmatprep.subr.mxu0 0.0
    %3686 = vmatpush1.msra.mxu0 0.0
    %3687 = vmatprep.subr.mxu0 0.0
    %3688 = vmatpush1.msra.mxu0 0.0
    %3689 = vmatprep.subr.mxu0 0.0
    %3690 = vmatpush1.msra.mxu0 0.0
    %3691 = vmatprep.subr.mxu0 0.0
    %3692 = vmatpush1.msra.mxu0 0.0
    %3693 = vmatprep.mubr.f32.mxu0 0.0
    %3694 = vmatmul.mubr.f32.gmra.mrb[0].mxu0 %v1936
    %v3695 = vpop.f32.mrb[0].mxu0
    %v3696 = vadd.f32 0.0, %v3695
    %v3697 = vpop.f32.mrb[0].mxu0
    %3698 = vmatprep.mubr.f32.mxu0 0.0
    %3699 = vmatmul.mubr.f32.gmra.mrb[0].mxu0 %v1939
    %v3700 = vpop.f32.mrb[0].mxu0
    %v3701 = vadd.f32 0.0, %v3700
    %v3702 = vpop.f32.mrb[0].mxu0
    %3703 = vmatprep.mubr.f32.mxu0 0.0
    %3704 = vmatmul.mubr.f32.gmra.mrb[0].mxu0 %v1942
    %v3705 = vpop.f32.mrb[0].mxu0
    %v3706 = vadd.f32 0.0, %v3705
    %v3707 = vpop.f32.mrb[0].mxu0
    %3708 = vmatprep.mubr.f32.mxu0 0.0
    %3709 = vmatmul.mubr.f32.gmra.mrb[0].mxu0 %v1945
    %v3710 = vpop.f32.mrb[0].mxu0
    %v3711 = vadd.f32 0.0, %v3710
    %v3712 = vpop.f32.mrb[0].mxu0
    %3713 = vmatprep.mubr.f32.mxu0 0.0
    %3714 = vmatmul.mubr.f32.gmra.mrb[0].mxu0 %v1948
    %v3715 = vpop.f32.mrb[0].mxu0
    %v3716 = vadd.f32 0.0, %v3715
    %v3717 = vpop.f32.mrb[0].mxu0
    %3718 = vmatprep.mubr.f32.mxu0 0.0
    %3719 = vmatmul.mubr.f32.gmra.mrb[0].mxu0 %v1951
    %v3720 = vpop.f32.mrb[0].mxu0
    %v3721 = vadd.f32 0.0, %v3720
    %v3722 = vpop.f32.mrb[0].mxu0
    %3723 = vmatprep.mubr.f32.mxu0 0.0
    %3724 = vmatmul.mubr.f32.gmra.mrb[0].mxu0 %v1954
    %v3725 = vpop.f32.mrb[0].mxu0
    %v3726 = vadd.f32 0.0, %v3725
    %v3727 = vpop.f32.mrb[0].mxu0
    %3728 = vmatprep.mubr.f32.mxu0 0.0
    %3729 = vmatmul.mubr.f32.gmra.mrb[0].mxu0 %v1957
    %v3730 = vpop.f32.mrb[0].mxu0
    %v3731 = vadd.f32 0.0, %v3730
    %v3732 = vpop.f32.mrb[0].mxu0
    %3733 = vdwg.mxu0
    %v3734 = vmul.f32 %v3559, %v3696
    %v3735 = vmul.f32 %v3564, %v3701
    %v3736 = vmul.f32 %v3569, %v3706
    %v3737 = vmul.f32 %v3574, %v3711
    %v3738 = vmul.f32 %v3579, %v3716
    %v3739 = vmul.f32 %v3584, %v3721
    %v3740 = vmul.f32 %v3589, %v3726
    %v3741 = vmul.f32 %v3594, %v3731
    %v3742 = vsel %vm196, %v3734, 0.0
    %v3743 = vrot.slane %v3742, 4
    %v3744 = vadd.f32 %v3742, %v3743
    %v3745 = vrot.slane %v3744, 2
    %v3746 = vadd.f32 %v3744, %v3745
    %v3747 = vrot.slane %v3746, 1
    %v3748 = vadd.f32 %v3746, %v3747
    %v3749 = vsel %vm196, %v3735, 0.0
    %v3750 = vrot.slane %v3749, 4
    %v3751 = vadd.f32 %v3749, %v3750
    %v3752 = vrot.slane %v3751, 2
    %v3753 = vadd.f32 %v3751, %v3752
    %v3754 = vrot.slane %v3753, 1
    %v3755 = vadd.f32 %v3753, %v3754
    %v3756 = vsel %vm196, %v3736, 0.0
    %v3757 = vrot.slane %v3756, 4
    %v3758 = vadd.f32 %v3756, %v3757
    %v3759 = vrot.slane %v3758, 2
    %v3760 = vadd.f32 %v3758, %v3759
    %v3761 = vrot.slane %v3760, 1
    %v3762 = vadd.f32 %v3760, %v3761
    %v3763 = vsel %vm196, %v3737, 0.0
    %v3764 = vrot.slane %v3763, 4
    %v3765 = vadd.f32 %v3763, %v3764
    %v3766 = vrot.slane %v3765, 2
    %v3767 = vadd.f32 %v3765, %v3766
    %v3768 = vrot.slane %v3767, 1
    %v3769 = vadd.f32 %v3767, %v3768
    %v3770 = vsel %vm196, %v3738, 0.0
    %v3771 = vrot.slane %v3770, 4
    %v3772 = vadd.f32 %v3770, %v3771
    %v3773 = vrot.slane %v3772, 2
    %v3774 = vadd.f32 %v3772, %v3773
    %v3775 = vrot.slane %v3774, 1
    %v3776 = vadd.f32 %v3774, %v3775
    %v3777 = vsel %vm196, %v3739, 0.0
    %v3778 = vrot.slane %v3777, 4
    %v3779 = vadd.f32 %v3777, %v3778
    %v3780 = vrot.slane %v3779, 2
    %v3781 = vadd.f32 %v3779, %v3780
    %v3782 = vrot.slane %v3781, 1
    %v3783 = vadd.f32 %v3781, %v3782
    %v3784 = vsel %vm196, %v3740, 0.0
    %v3785 = vrot.slane %v3784, 4
    %v3786 = vadd.f32 %v3784, %v3785
    %v3787 = vrot.slane %v3786, 2
    %v3788 = vadd.f32 %v3786, %v3787
    %v3789 = vrot.slane %v3788, 1
    %v3790 = vadd.f32 %v3788, %v3789
    %v3791 = vsel %vm196, %v3741, 0.0
    %v3792 = vrot.slane %v3791, 4
    %v3793 = vadd.f32 %v3791, %v3792
    %v3794 = vrot.slane %v3793, 2
    %v3795 = vadd.f32 %v3793, %v3794
    %v3796 = vrot.slane %v3795, 1
    %v3797 = vadd.f32 %v3795, %v3796
    %3798 = vrot.lane.b32.xlu0 %v348, 112
    %v3799 = vpop.permute.xlu0 %3798
    %3800 = vrot.lane.b32.xlu0 %v2129, 112
    %v3801 = vpop.permute.xlu0 %3800
    %3802 = vrot.lane.b32.xlu0 %v2130, 112
    %v3803 = vpop.permute.xlu0 %3802
    %3804 = vrot.lane.b32.xlu0 %v2131, 112
    %v3805 = vpop.permute.xlu0 %3804
    %3806 = vrot.lane.b32.xlu0 %v2132, 112
    %v3807 = vpop.permute.xlu0 %3806
    %3808 = vrot.lane.b32.xlu0 %v2133, 112
    %v3809 = vpop.permute.xlu0 %3808
    %3810 = vrot.lane.b32.xlu0 %v2134, 112
    %v3811 = vpop.permute.xlu0 %3810
    %3812 = vrot.lane.b32.xlu0 %v2135, 112
    %v3813 = vpop.permute.xlu0 %3812
    %v3822 = vadd.f32 %v3748, %v3799
    %v3823 = vadd.f32 %v3755, %v3801
    %v3824 = vadd.f32 %v3762, %v3803
    %v3825 = vadd.f32 %v3769, %v3805
    %v3826 = vadd.f32 %v3776, %v3807
    %v3827 = vadd.f32 %v3783, %v3809
    %v3828 = vadd.f32 %v3790, %v3811
    %v3829 = vadd.f32 %v3797, %v3813
    %vm3830 = vcmp.ge.f32.partialorder %v3822, 0.0
    %vm3831 = vcmp.ge.f32.partialorder %v3823, 0.0
    %vm3832 = vcmp.ge.f32.partialorder %v3824, 0.0
    %vm3833 = vcmp.ge.f32.partialorder %v3825, 0.0
    %vm3834 = vcmp.ge.f32.partialorder %v3826, 0.0
    %vm3835 = vcmp.ge.f32.partialorder %v3827, 0.0
    %vm3836 = vcmp.ge.f32.partialorder %v3828, 0.0
    %vm3837 = vcmp.ge.f32.partialorder %v3829, 0.0
    %v3838 = vmul.f32 %v3822, 0.01
    %v3839 = vmul.f32 %v3823, 0.01
    %v3840 = vmul.f32 %v3824, 0.01
    %v3841 = vmul.f32 %v3825, 0.01
    %v3842 = vmul.f32 %v3826, 0.01
    %v3843 = vmul.f32 %v3827, 0.01
    %v3844 = vmul.f32 %v3828, 0.01
    %v3845 = vmul.f32 %v3829, 0.01
    %v3846 = vsel %vm3830, %v3822, %v3838
    %v3847 = vsel %vm3831, %v3823, %v3839
    %v3848 = vsel %vm3832, %v3824, %v3840
    %v3849 = vsel %vm3833, %v3825, %v3841
    %v3850 = vsel %vm3834, %v3826, %v3842
    %v3851 = vsel %vm3835, %v3827, %v3843
    %v3852 = vsel %vm3836, %v3828, %v3844
    %v3853 = vsel %vm3837, %v3829, %v3845
    %v3862 = vrot.slane %v3847, 7
    %v3863 = vsel %vm2201, %v3862, %v3846
    %v3864 = vrot.slane %v3848, 6
    %v3865 = vsel %vm2204, %v3864, %v3863
    %v3866 = vrot.slane %v3849, 5
    %v3867 = vsel %vm2207, %v3866, %v3865
    %v3868 = vrot.slane %v3850, 4
    %v3869 = vsel %vm2210, %v3868, %v3867
    %v3870 = vrot.slane %v3851, 3
    %v3871 = vsel %vm2213, %v3870, %v3869
    %v3872 = vrot.slane %v3852, 2
    %v3873 = vsel %vm2216, %v3872, %v3871
    %v3874 = vrot.slane %v3853, 1
    %v3875 = vsel %vm2219, %v3874, %v3873
    %3877 = vmatprep.subr.mxu0 0.0
    %3878 = vmatpush1.msra.mxu0 %v3875
    %3879 = vmatprep.subr.mxu0 0.0
    %3880 = vmatpush1.msra.mxu0 0.0
    %3881 = vmatprep.subr.mxu0 0.0
    %3882 = vmatpush1.msra.mxu0 0.0
    %3883 = vmatprep.subr.mxu0 0.0
    %3884 = vmatpush1.msra.mxu0 0.0
    %3885 = vmatprep.subr.mxu0 0.0
    %3886 = vmatpush1.msra.mxu0 0.0
    %3887 = vmatprep.subr.mxu0 0.0
    %3888 = vmatpush1.msra.mxu0 0.0
    %3889 = vmatprep.subr.mxu0 0.0
    %3890 = vmatpush1.msra.mxu0 0.0
    %3891 = vmatprep.subr.mxu0 0.0
    %3892 = vmatpush1.msra.mxu0 0.0
    %3893 = vmatprep.subr.mxu0 0.0
    %3894 = vmatpush1.msra.mxu0 0.0
    %3895 = vmatprep.subr.mxu0 0.0
    %3896 = vmatpush1.msra.mxu0 0.0
    %3897 = vmatprep.subr.mxu0 0.0
    %3898 = vmatpush1.msra.mxu0 0.0
    %3899 = vmatprep.subr.mxu0 0.0
    %3900 = vmatpush1.msra.mxu0 0.0
    %3901 = vmatprep.subr.mxu0 0.0
    %3902 = vmatpush1.msra.mxu0 0.0
    %3903 = vmatprep.subr.mxu0 0.0
    %3904 = vmatpush1.msra.mxu0 0.0
    %3905 = vmatprep.subr.mxu0 0.0
    %3906 = vmatpush1.msra.mxu0 0.0
    %3907 = vmatprep.subr.mxu0 0.0
    %3908 = vmatpush1.msra.mxu0 0.0
    %3909 = vmatprep.subr.mxu0 0.0
    %3910 = vmatpush1.msra.mxu0 0.0
    %3911 = vmatprep.subr.mxu0 0.0
    %3912 = vmatpush1.msra.mxu0 0.0
    %3913 = vmatprep.subr.mxu0 0.0
    %3914 = vmatpush1.msra.mxu0 0.0
    %3915 = vmatprep.subr.mxu0 0.0
    %3916 = vmatpush1.msra.mxu0 0.0
    %3917 = vmatprep.subr.mxu0 0.0
    %3918 = vmatpush1.msra.mxu0 0.0
    %3919 = vmatprep.subr.mxu0 0.0
    %3920 = vmatpush1.msra.mxu0 0.0
    %3921 = vmatprep.subr.mxu0 0.0
    %3922 = vmatpush1.msra.mxu0 0.0
    %3923 = vmatprep.subr.mxu0 0.0
    %3924 = vmatpush1.msra.mxu0 0.0
    %3925 = vmatprep.subr.mxu0 0.0
    %3926 = vmatpush1.msra.mxu0 0.0
    %3927 = vmatprep.subr.mxu0 0.0
    %3928 = vmatpush1.msra.mxu0 0.0
    %3929 = vmatprep.subr.mxu0 0.0
    %3930 = vmatpush1.msra.mxu0 0.0
    %3931 = vmatprep.subr.mxu0 0.0
    %3932 = vmatpush1.msra.mxu0 0.0
    %3933 = vmatprep.subr.mxu0 0.0
    %3934 = vmatpush1.msra.mxu0 0.0
    %3935 = vmatprep.subr.mxu0 0.0
    %3936 = vmatpush1.msra.mxu0 0.0
    %3937 = vmatprep.subr.mxu0 0.0
    %3938 = vmatpush1.msra.mxu0 0.0
    %3939 = vmatprep.subr.mxu0 0.0
    %3940 = vmatpush1.msra.mxu0 0.0
    %3941 = vmatprep.mubr.f32.mxu0 0.0
    %3942 = vmatmul.mubr.f32.gmra.mrb[0].mxu0 %v637
    %v3943 = vpop.f32.mrb[0].mxu0
    %v3944 = vadd.f32 0.0, %v3943
    %v3945 = vpop.f32.mrb[0].mxu0
    %3946 = vmatprep.mubr.f32.mxu0 0.0
    %3947 = vmatmul.mubr.f32.gmra.mrb[0].mxu0 %v640
    %v3948 = vpop.f32.mrb[0].mxu0
    %v3949 = vadd.f32 0.0, %v3948
    %v3950 = vpop.f32.mrb[0].mxu0
    %3951 = vmatprep.mubr.f32.mxu0 0.0
    %3952 = vmatmul.mubr.f32.gmra.mrb[0].mxu0 %v643
    %v3953 = vpop.f32.mrb[0].mxu0
    %v3954 = vadd.f32 0.0, %v3953
    %v3955 = vpop.f32.mrb[0].mxu0
    %3956 = vmatprep.mubr.f32.mxu0 0.0
    %3957 = vmatmul.mubr.f32.gmra.mrb[0].mxu0 %v646
    %v3958 = vpop.f32.mrb[0].mxu0
    %v3959 = vadd.f32 0.0, %v3958
    %v3960 = vpop.f32.mrb[0].mxu0
    %3961 = vmatprep.mubr.f32.mxu0 0.0
    %3962 = vmatmul.mubr.f32.gmra.mrb[0].mxu0 %v649
    %v3963 = vpop.f32.mrb[0].mxu0
    %v3964 = vadd.f32 0.0, %v3963
    %v3965 = vpop.f32.mrb[0].mxu0
    %3966 = vmatprep.mubr.f32.mxu0 0.0
    %3967 = vmatmul.mubr.f32.gmra.mrb[0].mxu0 %v652
    %v3968 = vpop.f32.mrb[0].mxu0
    %v3969 = vadd.f32 0.0, %v3968
    %v3970 = vpop.f32.mrb[0].mxu0
    %3971 = vmatprep.mubr.f32.mxu0 0.0
    %3972 = vmatmul.mubr.f32.gmra.mrb[0].mxu0 %v655
    %v3973 = vpop.f32.mrb[0].mxu0
    %v3974 = vadd.f32 0.0, %v3973
    %v3975 = vpop.f32.mrb[0].mxu0
    %3976 = vmatprep.mubr.f32.mxu0 0.0
    %3977 = vmatmul.mubr.f32.gmra.mrb[0].mxu0 %v658
    %v3978 = vpop.f32.mrb[0].mxu0
    %v3979 = vadd.f32 0.0, %v3978
    %v3980 = vpop.f32.mrb[0].mxu0
    %3981 = vdwg.mxu0
    %v3982 = vsel %vm196, %v3944, -inf
    %v3983 = vrot.slane %v3982, 4
    %v3984 = vmax.f32 %v3982, %v3983
    %v3985 = vrot.slane %v3984, 2
    %v3986 = vmax.f32 %v3984, %v3985
    %v3987 = vrot.slane %v3986, 1
    %v3988 = vmax.f32 %v3986, %v3987
    %v3989 = vsel %vm196, %v3949, -inf
    %v3990 = vrot.slane %v3989, 4
    %v3991 = vmax.f32 %v3989, %v3990
    %v3992 = vrot.slane %v3991, 2
    %v3993 = vmax.f32 %v3991, %v3992
    %v3994 = vrot.slane %v3993, 1
    %v3995 = vmax.f32 %v3993, %v3994
    %v3996 = vsel %vm196, %v3954, -inf
    %v3997 = vrot.slane %v3996, 4
    %v3998 = vmax.f32 %v3996, %v3997
    %v3999 = vrot.slane %v3998, 2
    %v4000 = vmax.f32 %v3998, %v3999
    %v4001 = vrot.slane %v4000, 1
    %v4002 = vmax.f32 %v4000, %v4001
    %v4003 = vsel %vm196, %v3959, -inf
    %v4004 = vrot.slane %v4003, 4
    %v4005 = vmax.f32 %v4003, %v4004
    %v4006 = vrot.slane %v4005, 2
    %v4007 = vmax.f32 %v4005, %v4006
    %v4008 = vrot.slane %v4007, 1
    %v4009 = vmax.f32 %v4007, %v4008
    %v4010 = vsel %vm196, %v3964, -inf
    %v4011 = vrot.slane %v4010, 4
    %v4012 = vmax.f32 %v4010, %v4011
    %v4013 = vrot.slane %v4012, 2
    %v4014 = vmax.f32 %v4012, %v4013
    %v4015 = vrot.slane %v4014, 1
    %v4016 = vmax.f32 %v4014, %v4015
    %v4017 = vsel %vm196, %v3969, -inf
    %v4018 = vrot.slane %v4017, 4
    %v4019 = vmax.f32 %v4017, %v4018
    %v4020 = vrot.slane %v4019, 2
    %v4021 = vmax.f32 %v4019, %v4020
    %v4022 = vrot.slane %v4021, 1
    %v4023 = vmax.f32 %v4021, %v4022
    %v4024 = vsel %vm196, %v3974, -inf
    %v4025 = vrot.slane %v4024, 4
    %v4026 = vmax.f32 %v4024, %v4025
    %v4027 = vrot.slane %v4026, 2
    %v4028 = vmax.f32 %v4026, %v4027
    %v4029 = vrot.slane %v4028, 1
    %v4030 = vmax.f32 %v4028, %v4029
    %v4031 = vsel %vm196, %v3979, -inf
    %v4032 = vrot.slane %v4031, 4
    %v4033 = vmax.f32 %v4031, %v4032
    %v4034 = vrot.slane %v4033, 2
    %v4035 = vmax.f32 %v4033, %v4034
    %v4036 = vrot.slane %v4035, 1
    %v4037 = vmax.f32 %v4035, %v4036
    %v4038 = vsub.f32 %v3944, %v3988
    %v4039 = vsub.f32 %v3949, %v3995
    %v4040 = vsub.f32 %v3954, %v4002
    %v4041 = vsub.f32 %v3959, %v4009
    %v4042 = vsub.f32 %v3964, %v4016
    %v4043 = vsub.f32 %v3969, %v4023
    %v4044 = vsub.f32 %v3974, %v4030
    %v4045 = vsub.f32 %v3979, %v4037
    %v4046 = vmul.f32 %v4038, 1.442695
    %v4047 = vpow.pop %v4046
    %v4048 = vmul.f32 %v4039, 1.442695
    %v4049 = vpow.pop %v4048
    %v4050 = vmul.f32 %v4040, 1.442695
    %v4051 = vpow.pop %v4050
    %v4052 = vmul.f32 %v4041, 1.442695
    %v4053 = vpow.pop %v4052
    %v4054 = vmul.f32 %v4042, 1.442695
    %v4055 = vpow.pop %v4054
    %v4056 = vmul.f32 %v4043, 1.442695
    %v4057 = vpow.pop %v4056
    %v4058 = vmul.f32 %v4044, 1.442695
    %v4059 = vpow.pop %v4058
    %v4060 = vmul.f32 %v4045, 1.442695
    %v4061 = vpow.pop %v4060
    %v4062 = vsel %vm196, %v4047, 0.0
    %v4063 = vrot.slane %v4062, 4
    %v4064 = vadd.f32 %v4062, %v4063
    %v4065 = vrot.slane %v4064, 2
    %v4066 = vadd.f32 %v4064, %v4065
    %v4067 = vrot.slane %v4066, 1
    %v4068 = vadd.f32 %v4066, %v4067
    %v4069 = vsel %vm196, %v4049, 0.0
    %v4070 = vrot.slane %v4069, 4
    %v4071 = vadd.f32 %v4069, %v4070
    %v4072 = vrot.slane %v4071, 2
    %v4073 = vadd.f32 %v4071, %v4072
    %v4074 = vrot.slane %v4073, 1
    %v4075 = vadd.f32 %v4073, %v4074
    %v4076 = vsel %vm196, %v4051, 0.0
    %v4077 = vrot.slane %v4076, 4
    %v4078 = vadd.f32 %v4076, %v4077
    %v4079 = vrot.slane %v4078, 2
    %v4080 = vadd.f32 %v4078, %v4079
    %v4081 = vrot.slane %v4080, 1
    %v4082 = vadd.f32 %v4080, %v4081
    %v4083 = vsel %vm196, %v4053, 0.0
    %v4084 = vrot.slane %v4083, 4
    %v4085 = vadd.f32 %v4083, %v4084
    %v4086 = vrot.slane %v4085, 2
    %v4087 = vadd.f32 %v4085, %v4086
    %v4088 = vrot.slane %v4087, 1
    %v4089 = vadd.f32 %v4087, %v4088
    %v4090 = vsel %vm196, %v4055, 0.0
    %v4091 = vrot.slane %v4090, 4
    %v4092 = vadd.f32 %v4090, %v4091
    %v4093 = vrot.slane %v4092, 2
    %v4094 = vadd.f32 %v4092, %v4093
    %v4095 = vrot.slane %v4094, 1
    %v4096 = vadd.f32 %v4094, %v4095
    %v4097 = vsel %vm196, %v4057, 0.0
    %v4098 = vrot.slane %v4097, 4
    %v4099 = vadd.f32 %v4097, %v4098
    %v4100 = vrot.slane %v4099, 2
    %v4101 = vadd.f32 %v4099, %v4100
    %v4102 = vrot.slane %v4101, 1
    %v4103 = vadd.f32 %v4101, %v4102
    %v4104 = vsel %vm196, %v4059, 0.0
    %v4105 = vrot.slane %v4104, 4
    %v4106 = vadd.f32 %v4104, %v4105
    %v4107 = vrot.slane %v4106, 2
    %v4108 = vadd.f32 %v4106, %v4107
    %v4109 = vrot.slane %v4108, 1
    %v4110 = vadd.f32 %v4108, %v4109
    %v4111 = vsel %vm196, %v4061, 0.0
    %v4112 = vrot.slane %v4111, 4
    %v4113 = vadd.f32 %v4111, %v4112
    %v4114 = vrot.slane %v4113, 2
    %v4115 = vadd.f32 %v4113, %v4114
    %v4116 = vrot.slane %v4115, 1
    %v4117 = vadd.f32 %v4115, %v4116
    %v4118 = vrcp.pop %v4068
    %v4119 = vmul.f32 %v4047, %v4118
    %v4120 = vrcp.pop %v4075
    %v4121 = vmul.f32 %v4049, %v4120
    %v4122 = vrcp.pop %v4082
    %v4123 = vmul.f32 %v4051, %v4122
    %v4124 = vrcp.pop %v4089
    %v4125 = vmul.f32 %v4053, %v4124
    %v4126 = vrcp.pop %v4096
    %v4127 = vmul.f32 %v4055, %v4126
    %v4128 = vrcp.pop %v4103
    %v4129 = vmul.f32 %v4057, %v4128
    %v4130 = vrcp.pop %v4110
    %v4131 = vmul.f32 %v4059, %v4130
    %v4132 = vrcp.pop %v4117
    %v4133 = vmul.f32 %v4061, %v4132
    %v4135 = vsel %vm196, %v4119, 0
    %v4138 = vsel %vm196, %v4121, 0
    %v4141 = vsel %vm196, %v4123, 0
    %v4144 = vsel %vm196, %v4125, 0
    %v4147 = vsel %vm196, %v4127, 0
    %v4150 = vsel %vm196, %v4129, 0
    %v4153 = vsel %vm196, %v4131, 0
    %v4156 = vsel %vm196, %v4133, 0
    %4158 = vmatprep.subr.mxu0 0.0
    %4159 = vmatpush1.msra.mxu0 %v2479
    %4160 = vmatprep.subr.mxu0 0.0
    %4161 = vmatpush1.msra.mxu0 0.0
    %4162 = vmatprep.subr.mxu0 0.0
    %4163 = vmatpush1.msra.mxu0 0.0
    %4164 = vmatprep.subr.mxu0 0.0
    %4165 = vmatpush1.msra.mxu0 0.0
    %4166 = vmatprep.subr.mxu0 0.0
    %4167 = vmatpush1.msra.mxu0 0.0
    %4168 = vmatprep.subr.mxu0 0.0
    %4169 = vmatpush1.msra.mxu0 0.0
    %4170 = vmatprep.subr.mxu0 0.0
    %4171 = vmatpush1.msra.mxu0 0.0
    %4172 = vmatprep.subr.mxu0 0.0
    %4173 = vmatpush1.msra.mxu0 0.0
    %4174 = vmatprep.subr.mxu0 0.0
    %4175 = vmatpush1.msra.mxu0 0.0
    %4176 = vmatprep.subr.mxu0 0.0
    %4177 = vmatpush1.msra.mxu0 0.0
    %4178 = vmatprep.subr.mxu0 0.0
    %4179 = vmatpush1.msra.mxu0 0.0
    %4180 = vmatprep.subr.mxu0 0.0
    %4181 = vmatpush1.msra.mxu0 0.0
    %4182 = vmatprep.subr.mxu0 0.0
    %4183 = vmatpush1.msra.mxu0 0.0
    %4184 = vmatprep.subr.mxu0 0.0
    %4185 = vmatpush1.msra.mxu0 0.0
    %4186 = vmatprep.subr.mxu0 0.0
    %4187 = vmatpush1.msra.mxu0 0.0
    %4188 = vmatprep.subr.mxu0 0.0
    %4189 = vmatpush1.msra.mxu0 0.0
    %4190 = vmatprep.subr.mxu0 0.0
    %4191 = vmatpush1.msra.mxu0 0.0
    %4192 = vmatprep.subr.mxu0 0.0
    %4193 = vmatpush1.msra.mxu0 0.0
    %4194 = vmatprep.subr.mxu0 0.0
    %4195 = vmatpush1.msra.mxu0 0.0
    %4196 = vmatprep.subr.mxu0 0.0
    %4197 = vmatpush1.msra.mxu0 0.0
    %4198 = vmatprep.subr.mxu0 0.0
    %4199 = vmatpush1.msra.mxu0 0.0
    %4200 = vmatprep.subr.mxu0 0.0
    %4201 = vmatpush1.msra.mxu0 0.0
    %4202 = vmatprep.subr.mxu0 0.0
    %4203 = vmatpush1.msra.mxu0 0.0
    %4204 = vmatprep.subr.mxu0 0.0
    %4205 = vmatpush1.msra.mxu0 0.0
    %4206 = vmatprep.subr.mxu0 0.0
    %4207 = vmatpush1.msra.mxu0 0.0
    %4208 = vmatprep.subr.mxu0 0.0
    %4209 = vmatpush1.msra.mxu0 0.0
    %4210 = vmatprep.subr.mxu0 0.0
    %4211 = vmatpush1.msra.mxu0 0.0
    %4212 = vmatprep.subr.mxu0 0.0
    %4213 = vmatpush1.msra.mxu0 0.0
    %4214 = vmatprep.subr.mxu0 0.0
    %4215 = vmatpush1.msra.mxu0 0.0
    %4216 = vmatprep.subr.mxu0 0.0
    %4217 = vmatpush1.msra.mxu0 0.0
    %4218 = vmatprep.subr.mxu0 0.0
    %4219 = vmatpush1.msra.mxu0 0.0
    %4220 = vmatprep.subr.mxu0 0.0
    %4221 = vmatpush1.msra.mxu0 0.0
    %4222 = vmatprep.mubr.f32.mxu0 0.0
    %4223 = vmatmul.mubr.f32.gmra.mrb[0].mxu0 %v4135
    %v4224 = vpop.f32.mrb[0].mxu0
    %v4225 = vadd.f32 0.0, %v4224
    %v4226 = vpop.f32.mrb[0].mxu0
    %4227 = vmatprep.mubr.f32.mxu0 0.0
    %4228 = vmatmul.mubr.f32.gmra.mrb[0].mxu0 %v4138
    %v4229 = vpop.f32.mrb[0].mxu0
    %v4230 = vadd.f32 0.0, %v4229
    %v4231 = vpop.f32.mrb[0].mxu0
    %4232 = vmatprep.mubr.f32.mxu0 0.0
    %4233 = vmatmul.mubr.f32.gmra.mrb[0].mxu0 %v4141
    %v4234 = vpop.f32.mrb[0].mxu0
    %v4235 = vadd.f32 0.0, %v4234
    %v4236 = vpop.f32.mrb[0].mxu0
    %4237 = vmatprep.mubr.f32.mxu0 0.0
    %4238 = vmatmul.mubr.f32.gmra.mrb[0].mxu0 %v4144
    %v4239 = vpop.f32.mrb[0].mxu0
    %v4240 = vadd.f32 0.0, %v4239
    %v4241 = vpop.f32.mrb[0].mxu0
    %4242 = vmatprep.mubr.f32.mxu0 0.0
    %4243 = vmatmul.mubr.f32.gmra.mrb[0].mxu0 %v4147
    %v4244 = vpop.f32.mrb[0].mxu0
    %v4245 = vadd.f32 0.0, %v4244
    %v4246 = vpop.f32.mrb[0].mxu0
    %4247 = vmatprep.mubr.f32.mxu0 0.0
    %4248 = vmatmul.mubr.f32.gmra.mrb[0].mxu0 %v4150
    %v4249 = vpop.f32.mrb[0].mxu0
    %v4250 = vadd.f32 0.0, %v4249
    %v4251 = vpop.f32.mrb[0].mxu0
    %4252 = vmatprep.mubr.f32.mxu0 0.0
    %4253 = vmatmul.mubr.f32.gmra.mrb[0].mxu0 %v4153
    %v4254 = vpop.f32.mrb[0].mxu0
    %v4255 = vadd.f32 0.0, %v4254
    %v4256 = vpop.f32.mrb[0].mxu0
    %4257 = vmatprep.mubr.f32.mxu0 0.0
    %4258 = vmatmul.mubr.f32.gmra.mrb[0].mxu0 %v4156
    %v4259 = vpop.f32.mrb[0].mxu0
    %v4260 = vadd.f32 0.0, %v4259
    %v4261 = vpop.f32.mrb[0].mxu0
    %4262 = vdwg.mxu0
    %v4263 = vmul.f32 %v4225, %v2609
    %v4264 = vmul.f32 %v4230, %v2610
    %v4265 = vmul.f32 %v4235, %v2611
    %v4266 = vmul.f32 %v4240, %v2612
    %v4267 = vmul.f32 %v4245, %v2613
    %v4268 = vmul.f32 %v4250, %v2614
    %v4269 = vmul.f32 %v4255, %v2615
    %v4270 = vmul.f32 %v4260, %v2616
    %4271 = vrot.lane.b32.xlu0 %v3454, 112
    %v4272 = vpop.permute.xlu0 %4271
    %4273 = vrot.lane.b32.xlu0 %v3459, 112
    %v4274 = vpop.permute.xlu0 %4273
    %4275 = vrot.lane.b32.xlu0 %v3464, 112
    %v4276 = vpop.permute.xlu0 %4275
    %4277 = vrot.lane.b32.xlu0 %v3469, 112
    %v4278 = vpop.permute.xlu0 %4277
    %4279 = vrot.lane.b32.xlu0 %v3474, 112
    %v4280 = vpop.permute.xlu0 %4279
    %4281 = vrot.lane.b32.xlu0 %v3479, 112
    %v4282 = vpop.permute.xlu0 %4281
    %4283 = vrot.lane.b32.xlu0 %v3484, 112
    %v4284 = vpop.permute.xlu0 %4283
    %4285 = vrot.lane.b32.xlu0 %v3489, 112
    %v4286 = vpop.permute.xlu0 %4285
    %v4296 = vsel %vm1765, %v4263, 0
    %v4299 = vsel %vm1765, %v4264, 0
    %v4302 = vsel %vm1765, %v4265, 0
    %v4305 = vsel %vm1765, %v4266, 0
    %v4308 = vsel %vm1765, %v4267, 0
    %v4311 = vsel %vm1765, %v4268, 0
    %v4314 = vsel %vm1765, %v4269, 0
    %v4317 = vsel %vm1765, %v4270, 0
    %4319 = vmatprep.subr.mxu0 0.0
    %4320 = vmatpush1.msra.mxu0 %v4272
    %4321 = vmatprep.subr.mxu0 0.0
    %4322 = vmatpush1.msra.mxu0 %v4274
    %4323 = vmatprep.subr.mxu0 0.0
    %4324 = vmatpush1.msra.mxu0 %v4276
    %4325 = vmatprep.subr.mxu0 0.0
    %4326 = vmatpush1.msra.mxu0 %v4278
    %4327 = vmatprep.subr.mxu0 0.0
    %4328 = vmatpush1.msra.mxu0 %v4280
    %4329 = vmatprep.subr.mxu0 0.0
    %4330 = vmatpush1.msra.mxu0 %v4282
    %4331 = vmatprep.subr.mxu0 0.0
    %4332 = vmatpush1.msra.mxu0 %v4284
    %4333 = vmatprep.subr.mxu0 0.0
    %4334 = vmatpush1.msra.mxu0 %v4286
    %4335 = vmatprep.subr.mxu0 0.0
    %4336 = vmatpush1.msra.mxu0 0.0
    %4337 = vmatprep.subr.mxu0 0.0
    %4338 = vmatpush1.msra.mxu0 0.0
    %4339 = vmatprep.subr.mxu0 0.0
    %4340 = vmatpush1.msra.mxu0 0.0
    %4341 = vmatprep.subr.mxu0 0.0
    %4342 = vmatpush1.msra.mxu0 0.0
    %4343 = vmatprep.subr.mxu0 0.0
    %4344 = vmatpush1.msra.mxu0 0.0
    %4345 = vmatprep.subr.mxu0 0.0
    %4346 = vmatpush1.msra.mxu0 0.0
    %4347 = vmatprep.subr.mxu0 0.0
    %4348 = vmatpush1.msra.mxu0 0.0
    %4349 = vmatprep.subr.mxu0 0.0
    %4350 = vmatpush1.msra.mxu0 0.0
    %4351 = vmatprep.subr.mxu0 0.0
    %4352 = vmatpush1.msra.mxu0 0.0
    %4353 = vmatprep.subr.mxu0 0.0
    %4354 = vmatpush1.msra.mxu0 0.0
    %4355 = vmatprep.subr.mxu0 0.0
    %4356 = vmatpush1.msra.mxu0 0.0
    %4357 = vmatprep.subr.mxu0 0.0
    %4358 = vmatpush1.msra.mxu0 0.0
    %4359 = vmatprep.subr.mxu0 0.0
    %4360 = vmatpush1.msra.mxu0 0.0
    %4361 = vmatprep.subr.mxu0 0.0
    %4362 = vmatpush1.msra.mxu0 0.0
    %4363 = vmatprep.subr.mxu0 0.0
    %4364 = vmatpush1.msra.mxu0 0.0
    %4365 = vmatprep.subr.mxu0 0.0
    %4366 = vmatpush1.msra.mxu0 0.0
    %4367 = vmatprep.subr.mxu0 0.0
    %4368 = vmatpush1.msra.mxu0 0.0
    %4369 = vmatprep.subr.mxu0 0.0
    %4370 = vmatpush1.msra.mxu0 0.0
    %4371 = vmatprep.subr.mxu0 0.0
    %4372 = vmatpush1.msra.mxu0 0.0
    %4373 = vmatprep.subr.mxu0 0.0
    %4374 = vmatpush1.msra.mxu0 0.0
    %4375 = vmatprep.subr.mxu0 0.0
    %4376 = vmatpush1.msra.mxu0 0.0
    %4377 = vmatprep.subr.mxu0 0.0
    %4378 = vmatpush1.msra.mxu0 0.0
    %4379 = vmatprep.subr.mxu0 0.0
    %4380 = vmatpush1.msra.mxu0 0.0
    %4381 = vmatprep.subr.mxu0 0.0
    %4382 = vmatpush1.msra.mxu0 0.0
    %4383 = vmatprep.mubr.f32.mxu0 0.0
    %4384 = vmatmul.mubr.f32.gmra.mrb[0].mxu0 %v4296
    %v4385 = vpop.f32.mrb[0].mxu0
    %v4386 = vadd.f32 0.0, %v4385
    %v4387 = vpop.f32.mrb[0].mxu0
    %4388 = vmatprep.mubr.f32.mxu0 0.0
    %4389 = vmatmul.mubr.f32.gmra.mrb[0].mxu0 %v4299
    %v4390 = vpop.f32.mrb[0].mxu0
    %v4391 = vadd.f32 0.0, %v4390
    %v4392 = vpop.f32.mrb[0].mxu0
    %4393 = vmatprep.mubr.f32.mxu0 0.0
    %4394 = vmatmul.mubr.f32.gmra.mrb[0].mxu0 %v4302
    %v4395 = vpop.f32.mrb[0].mxu0
    %v4396 = vadd.f32 0.0, %v4395
    %v4397 = vpop.f32.mrb[0].mxu0
    %4398 = vmatprep.mubr.f32.mxu0 0.0
    %4399 = vmatmul.mubr.f32.gmra.mrb[0].mxu0 %v4305
    %v4400 = vpop.f32.mrb[0].mxu0
    %v4401 = vadd.f32 0.0, %v4400
    %v4402 = vpop.f32.mrb[0].mxu0
    %4403 = vmatprep.mubr.f32.mxu0 0.0
    %4404 = vmatmul.mubr.f32.gmra.mrb[0].mxu0 %v4308
    %v4405 = vpop.f32.mrb[0].mxu0
    %v4406 = vadd.f32 0.0, %v4405
    %v4407 = vpop.f32.mrb[0].mxu0
    %4408 = vmatprep.mubr.f32.mxu0 0.0
    %4409 = vmatmul.mubr.f32.gmra.mrb[0].mxu0 %v4311
    %v4410 = vpop.f32.mrb[0].mxu0
    %v4411 = vadd.f32 0.0, %v4410
    %v4412 = vpop.f32.mrb[0].mxu0
    %4413 = vmatprep.mubr.f32.mxu0 0.0
    %4414 = vmatmul.mubr.f32.gmra.mrb[0].mxu0 %v4314
    %v4415 = vpop.f32.mrb[0].mxu0
    %v4416 = vadd.f32 0.0, %v4415
    %v4417 = vpop.f32.mrb[0].mxu0
    %4418 = vmatprep.mubr.f32.mxu0 0.0
    %4419 = vmatmul.mubr.f32.gmra.mrb[0].mxu0 %v4317
    %v4420 = vpop.f32.mrb[0].mxu0
    %v4421 = vadd.f32 0.0, %v4420
    %v4422 = vpop.f32.mrb[0].mxu0
    %4423 = vdwg.mxu0
    %v4424 = vadd.f32 %v3345, %v4386
    %v4425 = vadd.f32 %v3346, %v4391
    %v4426 = vadd.f32 %v3347, %v4396
    %v4427 = vadd.f32 %v3348, %v4401
    %v4428 = vadd.f32 %v3349, %v4406
    %v4429 = vadd.f32 %v3350, %v4411
    %v4430 = vadd.f32 %v3351, %v4416
    %v4431 = vadd.f32 %v3352, %v4421
    %s4432 = scalar_lea.vmem %s17, 16
    %v4433 = vld [vmem:[%s4432] sm:$0xff]
    %s4434 = scalar_lea.vmem %s18, 16
    %v4435 = vld [vmem:[%s4434] sm:$0xff]
    %v4436 = vsel %vm196, %v4424, 0.0
    %4437 = vadd.xlane.f32.xlu0 %v4436
    %v4438 = vpop.xlane.xlu0 %4437
    %v4439 = vsel %vm196, %v4425, 0.0
    %4440 = vadd.xlane.f32.xlu0 %v4439
    %v4441 = vpop.xlane.xlu0 %4440
    %v4442 = vsel %vm196, %v4426, 0.0
    %4443 = vadd.xlane.f32.xlu0 %v4442
    %v4444 = vpop.xlane.xlu0 %4443
    %v4445 = vsel %vm196, %v4427, 0.0
    %4446 = vadd.xlane.f32.xlu0 %v4445
    %v4447 = vpop.xlane.xlu0 %4446
    %v4448 = vsel %vm196, %v4428, 0.0
    %4449 = vadd.xlane.f32.xlu0 %v4448
    %v4450 = vpop.xlane.xlu0 %4449
    %v4451 = vsel %vm196, %v4429, 0.0
    %4452 = vadd.xlane.f32.xlu0 %v4451
    %v4453 = vpop.xlane.xlu0 %4452
    %v4454 = vsel %vm196, %v4430, 0.0
    %4455 = vadd.xlane.f32.xlu0 %v4454
    %v4456 = vpop.xlane.xlu0 %4455
    %v4457 = vsel %vm196, %v4431, 0.0
    %4458 = vadd.xlane.f32.xlu0 %v4457
    %v4459 = vpop.xlane.xlu0 %4458
    %v4460 = vmul.f32 %v4438, %v1083
    %v4461 = vmul.f32 %v4441, %v1083
    %v4462 = vmul.f32 %v4444, %v1083
    %v4463 = vmul.f32 %v4447, %v1083
    %v4464 = vmul.f32 %v4450, %v1083
    %v4465 = vmul.f32 %v4453, %v1083
    %v4466 = vmul.f32 %v4456, %v1083
    %v4467 = vmul.f32 %v4459, %v1083
    %v4468 = vadd.f32 %v4460, %v4461
    %v4469 = vadd.f32 %v4468, %v4462
    %v4470 = vadd.f32 %v4469, %v4463
    %v4471 = vadd.f32 %v4470, %v4464
    %v4472 = vadd.f32 %v4471, %v4465
    %v4473 = vadd.f32 %v4472, %v4466
    %v4474 = vadd.f32 %v4473, %v4467
    %v4475 = vmul.f32 %v4474, %v1083
    %v4476 = vsub.f32 %v4424, %v4475
    %v4477 = vsub.f32 %v4425, %v4475
    %v4478 = vsub.f32 %v4426, %v4475
    %v4479 = vsub.f32 %v4427, %v4475
    %v4480 = vsub.f32 %v4428, %v4475
    %v4481 = vsub.f32 %v4429, %v4475
    %v4482 = vsub.f32 %v4430, %v4475
    %v4483 = vsub.f32 %v4431, %v4475
    %v4484 = vmul.f32 %v4476, %v4476
    %v4485 = vmul.f32 %v4477, %v4477
    %v4486 = vmul.f32 %v4478, %v4478
    %v4487 = vmul.f32 %v4479, %v4479
    %v4488 = vmul.f32 %v4480, %v4480
    %v4489 = vmul.f32 %v4481, %v4481
    %v4490 = vmul.f32 %v4482, %v4482
    %v4491 = vmul.f32 %v4483, %v4483
    %v4492 = vsel %vm196, %v4484, 0.0
    %4493 = vadd.xlane.f32.xlu0 %v4492
    %v4494 = vpop.xlane.xlu0 %4493
    %v4495 = vsel %vm196, %v4485, 0.0
    %4496 = vadd.xlane.f32.xlu0 %v4495
    %v4497 = vpop.xlane.xlu0 %4496
    %v4498 = vsel %vm196, %v4486, 0.0
    %4499 = vadd.xlane.f32.xlu0 %v4498
    %v4500 = vpop.xlane.xlu0 %4499
    %v4501 = vsel %vm196, %v4487, 0.0
    %4502 = vadd.xlane.f32.xlu0 %v4501
    %v4503 = vpop.xlane.xlu0 %4502
    %v4504 = vsel %vm196, %v4488, 0.0
    %4505 = vadd.xlane.f32.xlu0 %v4504
    %v4506 = vpop.xlane.xlu0 %4505
    %v4507 = vsel %vm196, %v4489, 0.0
    %4508 = vadd.xlane.f32.xlu0 %v4507
    %v4509 = vpop.xlane.xlu0 %4508
    %v4510 = vsel %vm196, %v4490, 0.0
    %4511 = vadd.xlane.f32.xlu0 %v4510
    %v4512 = vpop.xlane.xlu0 %4511
    %v4513 = vsel %vm196, %v4491, 0.0
    %4514 = vadd.xlane.f32.xlu0 %v4513
    %v4515 = vpop.xlane.xlu0 %4514
    %v4516 = vmul.f32 %v4494, %v1083
    %v4517 = vmul.f32 %v4497, %v1083
    %v4518 = vmul.f32 %v4500, %v1083
    %v4519 = vmul.f32 %v4503, %v1083
    %v4520 = vmul.f32 %v4506, %v1083
    %v4521 = vmul.f32 %v4509, %v1083
    %v4522 = vmul.f32 %v4512, %v1083
    %v4523 = vmul.f32 %v4515, %v1083
    %v4524 = vadd.f32 %v4516, %v4517
    %v4525 = vadd.f32 %v4524, %v4518
    %v4526 = vadd.f32 %v4525, %v4519
    %v4527 = vadd.f32 %v4526, %v4520
    %v4528 = vadd.f32 %v4527, %v4521
    %v4529 = vadd.f32 %v4528, %v4522
    %v4530 = vadd.f32 %v4529, %v4523
    %v4531 = vmul.f32 %v4530, %v1083
    %v4532 = vadd.f32 %v4531, 1e-05
    %v4533 = vrsqrt.pop %v4532
    %v4534 = vmul.f32 %v4476, %v4533
    %v4535 = vmul.f32 %v4477, %v4533
    %v4536 = vmul.f32 %v4478, %v4533
    %v4537 = vmul.f32 %v4479, %v4533
    %v4538 = vmul.f32 %v4480, %v4533
    %v4539 = vmul.f32 %v4481, %v4533
    %v4540 = vmul.f32 %v4482, %v4533
    %v4541 = vmul.f32 %v4483, %v4533
    %4543 = vset.pattern.permute.xlu0 0
    %4544 = vperm.xlu0 %4543, %v4433
    %v4545 = vpop.permute.xlu0 %4544
    %v4547 = vmul.f32 %v4534, %v4545
    %v4548 = vmul.f32 %v4535, %v4545
    %v4549 = vmul.f32 %v4536, %v4545
    %v4550 = vmul.f32 %v4537, %v4545
    %v4551 = vmul.f32 %v4538, %v4545
    %v4552 = vmul.f32 %v4539, %v4545
    %v4553 = vmul.f32 %v4540, %v4545
    %v4554 = vmul.f32 %v4541, %v4545
    %4556 = vset.pattern.permute.xlu0 0
    %4557 = vperm.xlu0 %4556, %v4435
    %v4558 = vpop.permute.xlu0 %4557
    %v4560 = vadd.f32 %v4547, %v4558
    %v4561 = vadd.f32 %v4548, %v4558
    %v4562 = vadd.f32 %v4549, %v4558
    %v4563 = vadd.f32 %v4550, %v4558
    %v4564 = vadd.f32 %v4551, %v4558
    %v4565 = vadd.f32 %v4552, %v4558
    %v4566 = vadd.f32 %v4553, %v4558
    %v4567 = vadd.f32 %v4554, %v4558
    %s4568 = scalar_lea.vmem %s21, 16
    %v4569 = vld [vmem:[%s4568] sm:$0xff]
    %s4570 = scalar_lea.vmem %s22, 2
    %v4571 = vld [vmem:[%s4570] sm:$0x1]
    %v4573 = vlaneseq
    %v4574 = vshrl.u32 %v4573, 7
    %v4575 = vsub.s32 0, %v4574
    %v4576 = vrot.slane %v4571, %v4575
    %v4579 = vsel %vm196, %v4560, 0
    %v4582 = vsel %vm196, %v4561, 0
    %v4585 = vsel %vm196, %v4562, 0
    %v4588 = vsel %vm196, %v4563, 0
    %v4591 = vsel %vm196, %v4564, 0
    %v4594 = vsel %vm196, %v4565, 0
    %v4597 = vsel %vm196, %v4566, 0
    %v4600 = vsel %vm196, %v4567, 0
    %4602 = vmatprep.subr.mxu0 0.0
    %4603 = vmatpush1.msra.mxu0 %v4569
    %4604 = vmatprep.subr.mxu0 0.0
    %4605 = vmatpush1.msra.mxu0 0.0
    %4606 = vmatprep.subr.mxu0 0.0
    %4607 = vmatpush1.msra.mxu0 0.0
    %4608 = vmatprep.subr.mxu0 0.0
    %4609 = vmatpush1.msra.mxu0 0.0
    %4610 = vmatprep.subr.mxu0 0.0
    %4611 = vmatpush1.msra.mxu0 0.0
    %4612 = vmatprep.subr.mxu0 0.0
    %4613 = vmatpush1.msra.mxu0 0.0
    %4614 = vmatprep.subr.mxu0 0.0
    %4615 = vmatpush1.msra.mxu0 0.0
    %4616 = vmatprep.subr.mxu0 0.0
    %4617 = vmatpush1.msra.mxu0 0.0
    %4618 = vmatprep.subr.mxu0 0.0
    %4619 = vmatpush1.msra.mxu0 0.0
    %4620 = vmatprep.subr.mxu0 0.0
    %4621 = vmatpush1.msra.mxu0 0.0
    %4622 = vmatprep.subr.mxu0 0.0
    %4623 = vmatpush1.msra.mxu0 0.0
    %4624 = vmatprep.subr.mxu0 0.0
    %4625 = vmatpush1.msra.mxu0 0.0
    %4626 = vmatprep.subr.mxu0 0.0
    %4627 = vmatpush1.msra.mxu0 0.0
    %4628 = vmatprep.subr.mxu0 0.0
    %4629 = vmatpush1.msra.mxu0 0.0
    %4630 = vmatprep.subr.mxu0 0.0
    %4631 = vmatpush1.msra.mxu0 0.0
    %4632 = vmatprep.subr.mxu0 0.0
    %4633 = vmatpush1.msra.mxu0 0.0
    %4634 = vmatprep.subr.mxu0 0.0
    %4635 = vmatpush1.msra.mxu0 0.0
    %4636 = vmatprep.subr.mxu0 0.0
    %4637 = vmatpush1.msra.mxu0 0.0
    %4638 = vmatprep.subr.mxu0 0.0
    %4639 = vmatpush1.msra.mxu0 0.0
    %4640 = vmatprep.subr.mxu0 0.0
    %4641 = vmatpush1.msra.mxu0 0.0
    %4642 = vmatprep.subr.mxu0 0.0
    %4643 = vmatpush1.msra.mxu0 0.0
    %4644 = vmatprep.subr.mxu0 0.0
    %4645 = vmatpush1.msra.mxu0 0.0
    %4646 = vmatprep.subr.mxu0 0.0
    %4647 = vmatpush1.msra.mxu0 0.0
    %4648 = vmatprep.subr.mxu0 0.0
    %4649 = vmatpush1.msra.mxu0 0.0
    %4650 = vmatprep.subr.mxu0 0.0
    %4651 = vmatpush1.msra.mxu0 0.0
    %4652 = vmatprep.subr.mxu0 0.0
    %4653 = vmatpush1.msra.mxu0 0.0
    %4654 = vmatprep.subr.mxu0 0.0
    %4655 = vmatpush1.msra.mxu0 0.0
    %4656 = vmatprep.subr.mxu0 0.0
    %4657 = vmatpush1.msra.mxu0 0.0
    %4658 = vmatprep.subr.mxu0 0.0
    %4659 = vmatpush1.msra.mxu0 0.0
    %4660 = vmatprep.subr.mxu0 0.0
    %4661 = vmatpush1.msra.mxu0 0.0
    %4662 = vmatprep.subr.mxu0 0.0
    %4663 = vmatpush1.msra.mxu0 0.0
    %4664 = vmatprep.subr.mxu0 0.0
    %4665 = vmatpush1.msra.mxu0 0.0
    %4666 = vmatprep.mubr.f32.mxu0 0.0
    %4667 = vmatmul.mubr.f32.gmra.mrb[0].mxu0 %v4579
    %v4668 = vpop.f32.mrb[0].mxu0
    %v4669 = vadd.f32 %v4576, %v4668
    %v4670 = vpop.f32.mrb[0].mxu0
    %4671 = vmatprep.mubr.f32.mxu0 0.0
    %4672 = vmatmul.mubr.f32.gmra.mrb[0].mxu0 %v4582
    %v4673 = vpop.f32.mrb[0].mxu0
    %v4674 = vadd.f32 %v4576, %v4673
    %v4675 = vpop.f32.mrb[0].mxu0
    %4676 = vmatprep.mubr.f32.mxu0 0.0
    %4677 = vmatmul.mubr.f32.gmra.mrb[0].mxu0 %v4585
    %v4678 = vpop.f32.mrb[0].mxu0
    %v4679 = vadd.f32 %v4576, %v4678
    %v4680 = vpop.f32.mrb[0].mxu0
    %4681 = vmatprep.mubr.f32.mxu0 0.0
    %4682 = vmatmul.mubr.f32.gmra.mrb[0].mxu0 %v4588
    %v4683 = vpop.f32.mrb[0].mxu0
    %v4684 = vadd.f32 %v4576, %v4683
    %v4685 = vpop.f32.mrb[0].mxu0
    %4686 = vmatprep.mubr.f32.mxu0 0.0
    %4687 = vmatmul.mubr.f32.gmra.mrb[0].mxu0 %v4591
    %v4688 = vpop.f32.mrb[0].mxu0
    %v4689 = vadd.f32 %v4576, %v4688
    %v4690 = vpop.f32.mrb[0].mxu0
    %4691 = vmatprep.mubr.f32.mxu0 0.0
    %4692 = vmatmul.mubr.f32.gmra.mrb[0].mxu0 %v4594
    %v4693 = vpop.f32.mrb[0].mxu0
    %v4694 = vadd.f32 %v4576, %v4693
    %v4695 = vpop.f32.mrb[0].mxu0
    %4696 = vmatprep.mubr.f32.mxu0 0.0
    %4697 = vmatmul.mubr.f32.gmra.mrb[0].mxu0 %v4597
    %v4698 = vpop.f32.mrb[0].mxu0
    %v4699 = vadd.f32 %v4576, %v4698
    %v4700 = vpop.f32.mrb[0].mxu0
    %4701 = vmatprep.mubr.f32.mxu0 0.0
    %4702 = vmatmul.mubr.f32.gmra.mrb[0].mxu0 %v4600
    %v4703 = vpop.f32.mrb[0].mxu0
    %v4704 = vadd.f32 %v4576, %v4703
    %v4705 = vpop.f32.mrb[0].mxu0
    %4706 = vdwg.mxu0
    %v4707 = vmax.f32 %v4669, 0.0
    %v4708 = vmax.f32 %v4674, 0.0
    %v4709 = vmax.f32 %v4679, 0.0
    %v4710 = vmax.f32 %v4684, 0.0
    %v4711 = vmax.f32 %v4689, 0.0
    %v4712 = vmax.f32 %v4694, 0.0
    %v4713 = vmax.f32 %v4699, 0.0
    %v4714 = vmax.f32 %v4704, 0.0
    %s4715 = scalar_lea.vmem %s23, 32
    %v4716 = vld [vmem:[%s4715] sm:$0xff]
    %v4717 = vld [vmem:[%s4715 + $0x8] sm:$0xff]
    %s4718 = scalar_lea.vmem %s24, 2
    %v4719 = vld [vmem:[%s4718] sm:$0x1]
    %v4721 = vlaneseq
    %v4722 = vshrl.u32 %v4721, 7
    %v4723 = vsub.s32 0, %v4722
    %v4724 = vrot.slane %v4719, %v4723
    %v4727 = vsel %vm1346, %v4707, 0
    %v4730 = vsel %vm1346, %v4708, 0
    %v4733 = vsel %vm1346, %v4709, 0
    %v4736 = vsel %vm1346, %v4710, 0
    %v4739 = vsel %vm1346, %v4711, 0
    %v4742 = vsel %vm1346, %v4712, 0
    %v4745 = vsel %vm1346, %v4713, 0
    %v4748 = vsel %vm1346, %v4714, 0
    %4750 = vmatprep.subr.mxu0 0.0
    %4751 = vmatpush1.msra.mxu0 %v4716
    %4752 = vmatprep.subr.mxu0 0.0
    %4753 = vmatpush1.msra.mxu0 %v4717
    %4754 = vmatprep.subr.mxu0 0.0
    %4755 = vmatpush1.msra.mxu0 0.0
    %4756 = vmatprep.subr.mxu0 0.0
    %4757 = vmatpush1.msra.mxu0 0.0
    %4758 = vmatprep.subr.mxu0 0.0
    %4759 = vmatpush1.msra.mxu0 0.0
    %4760 = vmatprep.subr.mxu0 0.0
    %4761 = vmatpush1.msra.mxu0 0.0
    %4762 = vmatprep.subr.mxu0 0.0
    %4763 = vmatpush1.msra.mxu0 0.0
    %4764 = vmatprep.subr.mxu0 0.0
    %4765 = vmatpush1.msra.mxu0 0.0
    %4766 = vmatprep.subr.mxu0 0.0
    %4767 = vmatpush1.msra.mxu0 0.0
    %4768 = vmatprep.subr.mxu0 0.0
    %4769 = vmatpush1.msra.mxu0 0.0
    %4770 = vmatprep.subr.mxu0 0.0
    %4771 = vmatpush1.msra.mxu0 0.0
    %4772 = vmatprep.subr.mxu0 0.0
    %4773 = vmatpush1.msra.mxu0 0.0
    %4774 = vmatprep.subr.mxu0 0.0
    %4775 = vmatpush1.msra.mxu0 0.0
    %4776 = vmatprep.subr.mxu0 0.0
    %4777 = vmatpush1.msra.mxu0 0.0
    %4778 = vmatprep.subr.mxu0 0.0
    %4779 = vmatpush1.msra.mxu0 0.0
    %4780 = vmatprep.subr.mxu0 0.0
    %4781 = vmatpush1.msra.mxu0 0.0
    %4782 = vmatprep.subr.mxu0 0.0
    %4783 = vmatpush1.msra.mxu0 0.0
    %4784 = vmatprep.subr.mxu0 0.0
    %4785 = vmatpush1.msra.mxu0 0.0
    %4786 = vmatprep.subr.mxu0 0.0
    %4787 = vmatpush1.msra.mxu0 0.0
    %4788 = vmatprep.subr.mxu0 0.0
    %4789 = vmatpush1.msra.mxu0 0.0
    %4790 = vmatprep.subr.mxu0 0.0
    %4791 = vmatpush1.msra.mxu0 0.0
    %4792 = vmatprep.subr.mxu0 0.0
    %4793 = vmatpush1.msra.mxu0 0.0
    %4794 = vmatprep.subr.mxu0 0.0
    %4795 = vmatpush1.msra.mxu0 0.0
    %4796 = vmatprep.subr.mxu0 0.0
    %4797 = vmatpush1.msra.mxu0 0.0
    %4798 = vmatprep.subr.mxu0 0.0
    %4799 = vmatpush1.msra.mxu0 0.0
    %4800 = vmatprep.subr.mxu0 0.0
    %4801 = vmatpush1.msra.mxu0 0.0
    %4802 = vmatprep.subr.mxu0 0.0
    %4803 = vmatpush1.msra.mxu0 0.0
    %4804 = vmatprep.subr.mxu0 0.0
    %4805 = vmatpush1.msra.mxu0 0.0
    %4806 = vmatprep.subr.mxu0 0.0
    %4807 = vmatpush1.msra.mxu0 0.0
    %4808 = vmatprep.subr.mxu0 0.0
    %4809 = vmatpush1.msra.mxu0 0.0
    %4810 = vmatprep.subr.mxu0 0.0
    %4811 = vmatpush1.msra.mxu0 0.0
    %4812 = vmatprep.subr.mxu0 0.0
    %4813 = vmatpush1.msra.mxu0 0.0
    %4814 = vmatprep.mubr.f32.mxu0 0.0
    %4815 = vmatmul.mubr.f32.gmra.mrb[0].mxu0 %v4727
    %v4816 = vpop.f32.mrb[0].mxu0
    %v4817 = vadd.f32 %v4724, %v4816
    %v4818 = vpop.f32.mrb[0].mxu0
    %4819 = vmatprep.mubr.f32.mxu0 0.0
    %4820 = vmatmul.mubr.f32.gmra.mrb[0].mxu0 %v4730
    %v4821 = vpop.f32.mrb[0].mxu0
    %v4822 = vadd.f32 %v4724, %v4821
    %v4823 = vpop.f32.mrb[0].mxu0
    %4824 = vmatprep.mubr.f32.mxu0 0.0
    %4825 = vmatmul.mubr.f32.gmra.mrb[0].mxu0 %v4733
    %v4826 = vpop.f32.mrb[0].mxu0
    %v4827 = vadd.f32 %v4724, %v4826
    %v4828 = vpop.f32.mrb[0].mxu0
    %4829 = vmatprep.mubr.f32.mxu0 0.0
    %4830 = vmatmul.mubr.f32.gmra.mrb[0].mxu0 %v4736
    %v4831 = vpop.f32.mrb[0].mxu0
    %v4832 = vadd.f32 %v4724, %v4831
    %v4833 = vpop.f32.mrb[0].mxu0
    %4834 = vmatprep.mubr.f32.mxu0 0.0
    %4835 = vmatmul.mubr.f32.gmra.mrb[0].mxu0 %v4739
    %v4836 = vpop.f32.mrb[0].mxu0
    %v4837 = vadd.f32 %v4724, %v4836
    %v4838 = vpop.f32.mrb[0].mxu0
    %4839 = vmatprep.mubr.f32.mxu0 0.0
    %4840 = vmatmul.mubr.f32.gmra.mrb[0].mxu0 %v4742
    %v4841 = vpop.f32.mrb[0].mxu0
    %v4842 = vadd.f32 %v4724, %v4841
    %v4843 = vpop.f32.mrb[0].mxu0
    %4844 = vmatprep.mubr.f32.mxu0 0.0
    %4845 = vmatmul.mubr.f32.gmra.mrb[0].mxu0 %v4745
    %v4846 = vpop.f32.mrb[0].mxu0
    %v4847 = vadd.f32 %v4724, %v4846
    %v4848 = vpop.f32.mrb[0].mxu0
    %4849 = vmatprep.mubr.f32.mxu0 0.0
    %4850 = vmatmul.mubr.f32.gmra.mrb[0].mxu0 %v4748
    %v4851 = vpop.f32.mrb[0].mxu0
    %v4852 = vadd.f32 %v4724, %v4851
    %v4853 = vpop.f32.mrb[0].mxu0
    %4854 = vdwg.mxu0
    %v4855 = vadd.f32 %v4560, %v4817
    %v4856 = vadd.f32 %v4561, %v4822
    %v4857 = vadd.f32 %v4562, %v4827
    %v4858 = vadd.f32 %v4563, %v4832
    %v4859 = vadd.f32 %v4564, %v4837
    %v4860 = vadd.f32 %v4565, %v4842
    %v4861 = vadd.f32 %v4566, %v4847
    %v4862 = vadd.f32 %v4567, %v4852
    %s4863 = scalar_lea.vmem %s19, 16
    %v4864 = vld [vmem:[%s4863] sm:$0xff]
    %s4865 = scalar_lea.vmem %s20, 16
    %v4866 = vld [vmem:[%s4865] sm:$0xff]
    %v4867 = vsel %vm196, %v4855, 0.0
    %4868 = vadd.xlane.f32.xlu0 %v4867
    %v4869 = vpop.xlane.xlu0 %4868
    %v4870 = vsel %vm196, %v4856, 0.0
    %4871 = vadd.xlane.f32.xlu0 %v4870
    %v4872 = vpop.xlane.xlu0 %4871
    %v4873 = vsel %vm196, %v4857, 0.0
    %4874 = vadd.xlane.f32.xlu0 %v4873
    %v4875 = vpop.xlane.xlu0 %4874
    %v4876 = vsel %vm196, %v4858, 0.0
    %4877 = vadd.xlane.f32.xlu0 %v4876
    %v4878 = vpop.xlane.xlu0 %4877
    %v4879 = vsel %vm196, %v4859, 0.0
    %4880 = vadd.xlane.f32.xlu0 %v4879
    %v4881 = vpop.xlane.xlu0 %4880
    %v4882 = vsel %vm196, %v4860, 0.0
    %4883 = vadd.xlane.f32.xlu0 %v4882
    %v4884 = vpop.xlane.xlu0 %4883
    %v4885 = vsel %vm196, %v4861, 0.0
    %4886 = vadd.xlane.f32.xlu0 %v4885
    %v4887 = vpop.xlane.xlu0 %4886
    %v4888 = vsel %vm196, %v4862, 0.0
    %4889 = vadd.xlane.f32.xlu0 %v4888
    %v4890 = vpop.xlane.xlu0 %4889
    %v4891 = vmul.f32 %v4869, %v1083
    %v4892 = vmul.f32 %v4872, %v1083
    %v4893 = vmul.f32 %v4875, %v1083
    %v4894 = vmul.f32 %v4878, %v1083
    %v4895 = vmul.f32 %v4881, %v1083
    %v4896 = vmul.f32 %v4884, %v1083
    %v4897 = vmul.f32 %v4887, %v1083
    %v4898 = vmul.f32 %v4890, %v1083
    %v4899 = vadd.f32 %v4891, %v4892
    %v4900 = vadd.f32 %v4899, %v4893
    %v4901 = vadd.f32 %v4900, %v4894
    %v4902 = vadd.f32 %v4901, %v4895
    %v4903 = vadd.f32 %v4902, %v4896
    %v4904 = vadd.f32 %v4903, %v4897
    %v4905 = vadd.f32 %v4904, %v4898
    %v4906 = vmul.f32 %v4905, %v1083
    %v4907 = vsub.f32 %v4855, %v4906
    %v4908 = vsub.f32 %v4856, %v4906
    %v4909 = vsub.f32 %v4857, %v4906
    %v4910 = vsub.f32 %v4858, %v4906
    %v4911 = vsub.f32 %v4859, %v4906
    %v4912 = vsub.f32 %v4860, %v4906
    %v4913 = vsub.f32 %v4861, %v4906
    %v4914 = vsub.f32 %v4862, %v4906
    %v4915 = vmul.f32 %v4907, %v4907
    %v4916 = vmul.f32 %v4908, %v4908
    %v4917 = vmul.f32 %v4909, %v4909
    %v4918 = vmul.f32 %v4910, %v4910
    %v4919 = vmul.f32 %v4911, %v4911
    %v4920 = vmul.f32 %v4912, %v4912
    %v4921 = vmul.f32 %v4913, %v4913
    %v4922 = vmul.f32 %v4914, %v4914
    %v4923 = vsel %vm196, %v4915, 0.0
    %4924 = vadd.xlane.f32.xlu0 %v4923
    %v4925 = vpop.xlane.xlu0 %4924
    %v4926 = vsel %vm196, %v4916, 0.0
    %4927 = vadd.xlane.f32.xlu0 %v4926
    %v4928 = vpop.xlane.xlu0 %4927
    %v4929 = vsel %vm196, %v4917, 0.0
    %4930 = vadd.xlane.f32.xlu0 %v4929
    %v4931 = vpop.xlane.xlu0 %4930
    %v4932 = vsel %vm196, %v4918, 0.0
    %4933 = vadd.xlane.f32.xlu0 %v4932
    %v4934 = vpop.xlane.xlu0 %4933
    %v4935 = vsel %vm196, %v4919, 0.0
    %4936 = vadd.xlane.f32.xlu0 %v4935
    %v4937 = vpop.xlane.xlu0 %4936
    %v4938 = vsel %vm196, %v4920, 0.0
    %4939 = vadd.xlane.f32.xlu0 %v4938
    %v4940 = vpop.xlane.xlu0 %4939
    %v4941 = vsel %vm196, %v4921, 0.0
    %4942 = vadd.xlane.f32.xlu0 %v4941
    %v4943 = vpop.xlane.xlu0 %4942
    %v4944 = vsel %vm196, %v4922, 0.0
    %4945 = vadd.xlane.f32.xlu0 %v4944
    %v4946 = vpop.xlane.xlu0 %4945
    %v4947 = vmul.f32 %v4925, %v1083
    %v4948 = vmul.f32 %v4928, %v1083
    %v4949 = vmul.f32 %v4931, %v1083
    %v4950 = vmul.f32 %v4934, %v1083
    %v4951 = vmul.f32 %v4937, %v1083
    %v4952 = vmul.f32 %v4940, %v1083
    %v4953 = vmul.f32 %v4943, %v1083
    %v4954 = vmul.f32 %v4946, %v1083
    %v4955 = vadd.f32 %v4947, %v4948
    %v4956 = vadd.f32 %v4955, %v4949
    %v4957 = vadd.f32 %v4956, %v4950
    %v4958 = vadd.f32 %v4957, %v4951
    %v4959 = vadd.f32 %v4958, %v4952
    %v4960 = vadd.f32 %v4959, %v4953
    %v4961 = vadd.f32 %v4960, %v4954
    %v4962 = vmul.f32 %v4961, %v1083
    %v4963 = vadd.f32 %v4962, 1e-05
    %v4964 = vrsqrt.pop %v4963
    %v4965 = vmul.f32 %v4907, %v4964
    %v4966 = vmul.f32 %v4908, %v4964
    %v4967 = vmul.f32 %v4909, %v4964
    %v4968 = vmul.f32 %v4910, %v4964
    %v4969 = vmul.f32 %v4911, %v4964
    %v4970 = vmul.f32 %v4912, %v4964
    %v4971 = vmul.f32 %v4913, %v4964
    %v4972 = vmul.f32 %v4914, %v4964
    %4974 = vset.pattern.permute.xlu0 0
    %4975 = vperm.xlu0 %4974, %v4864
    %v4976 = vpop.permute.xlu0 %4975
    %v4978 = vmul.f32 %v4965, %v4976
    %v4979 = vmul.f32 %v4966, %v4976
    %v4980 = vmul.f32 %v4967, %v4976
    %v4981 = vmul.f32 %v4968, %v4976
    %v4982 = vmul.f32 %v4969, %v4976
    %v4983 = vmul.f32 %v4970, %v4976
    %v4984 = vmul.f32 %v4971, %v4976
    %v4985 = vmul.f32 %v4972, %v4976
    %4987 = vset.pattern.permute.xlu0 0
    %4988 = vperm.xlu0 %4987, %v4866
    %v4989 = vpop.permute.xlu0 %4988
    %v4991 = vadd.f32 %v4978, %v4989
    %v4992 = vadd.f32 %v4979, %v4989
    %v4993 = vadd.f32 %v4980, %v4989
    %v4994 = vadd.f32 %v4981, %v4989
    %v4995 = vadd.f32 %v4982, %v4989
    %v4996 = vadd.f32 %v4983, %v4989
    %v4997 = vadd.f32 %v4984, %v4989
    %v4998 = vadd.f32 %v4985, %v4989
    %s4999 = scalar_lea.vmem %s13, 24
    %v5000 = vld [vmem:[%s4999] sm:$0xff]
    %s5001 = scalar_lea.vmem %s14, 3
    %v5002 = vld [vmem:[%s5001] sm:$0x1]
    %v5004 = vlaneseq
    %v5005 = vshrl.u32 %v5004, 7
    %v5006 = vsub.s32 0, %v5005
    %v5007 = vrot.slane %v5002, %v5006
    %v5010 = vsel %vm196, %v4991, 0
    %v5013 = vsel %vm196, %v4992, 0
    %v5016 = vsel %vm196, %v4993, 0
    %v5019 = vsel %vm196, %v4994, 0
    %v5022 = vsel %vm196, %v4995, 0
    %v5025 = vsel %vm196, %v4996, 0
    %v5028 = vsel %vm196, %v4997, 0
    %v5031 = vsel %vm196, %v4998, 0
    %5033 = vmatprep.subr.mxu0 0.0
    %5034 = vmatpush1.msra.mxu0 %v5000
    %5035 = vmatprep.subr.mxu0 0.0
    %5036 = vmatpush1.msra.mxu0 0.0
    %5037 = vmatprep.subr.mxu0 0.0
    %5038 = vmatpush1.msra.mxu0 0.0
    %5039 = vmatprep.subr.mxu0 0.0
    %5040 = vmatpush1.msra.mxu0 0.0
    %5041 = vmatprep.subr.mxu0 0.0
    %5042 = vmatpush1.msra.mxu0 0.0
    %5043 = vmatprep.subr.mxu0 0.0
    %5044 = vmatpush1.msra.mxu0 0.0
    %5045 = vmatprep.subr.mxu0 0.0
    %5046 = vmatpush1.msra.mxu0 0.0
    %5047 = vmatprep.subr.mxu0 0.0
    %5048 = vmatpush1.msra.mxu0 0.0
    %5049 = vmatprep.subr.mxu0 0.0
    %5050 = vmatpush1.msra.mxu0 0.0
    %5051 = vmatprep.subr.mxu0 0.0
    %5052 = vmatpush1.msra.mxu0 0.0
    %5053 = vmatprep.subr.mxu0 0.0
    %5054 = vmatpush1.msra.mxu0 0.0
    %5055 = vmatprep.subr.mxu0 0.0
    %5056 = vmatpush1.msra.mxu0 0.0
    %5057 = vmatprep.subr.mxu0 0.0
    %5058 = vmatpush1.msra.mxu0 0.0
    %5059 = vmatprep.subr.mxu0 0.0
    %5060 = vmatpush1.msra.mxu0 0.0
    %5061 = vmatprep.subr.mxu0 0.0
    %5062 = vmatpush1.msra.mxu0 0.0
    %5063 = vmatprep.subr.mxu0 0.0
    %5064 = vmatpush1.msra.mxu0 0.0
    %5065 = vmatprep.subr.mxu0 0.0
    %5066 = vmatpush1.msra.mxu0 0.0
    %5067 = vmatprep.subr.mxu0 0.0
    %5068 = vmatpush1.msra.mxu0 0.0
    %5069 = vmatprep.subr.mxu0 0.0
    %5070 = vmatpush1.msra.mxu0 0.0
    %5071 = vmatprep.subr.mxu0 0.0
    %5072 = vmatpush1.msra.mxu0 0.0
    %5073 = vmatprep.subr.mxu0 0.0
    %5074 = vmatpush1.msra.mxu0 0.0
    %5075 = vmatprep.subr.mxu0 0.0
    %5076 = vmatpush1.msra.mxu0 0.0
    %5077 = vmatprep.subr.mxu0 0.0
    %5078 = vmatpush1.msra.mxu0 0.0
    %5079 = vmatprep.subr.mxu0 0.0
    %5080 = vmatpush1.msra.mxu0 0.0
    %5081 = vmatprep.subr.mxu0 0.0
    %5082 = vmatpush1.msra.mxu0 0.0
    %5083 = vmatprep.subr.mxu0 0.0
    %5084 = vmatpush1.msra.mxu0 0.0
    %5085 = vmatprep.subr.mxu0 0.0
    %5086 = vmatpush1.msra.mxu0 0.0
    %5087 = vmatprep.subr.mxu0 0.0
    %5088 = vmatpush1.msra.mxu0 0.0
    %5089 = vmatprep.subr.mxu0 0.0
    %5090 = vmatpush1.msra.mxu0 0.0
    %5091 = vmatprep.subr.mxu0 0.0
    %5092 = vmatpush1.msra.mxu0 0.0
    %5093 = vmatprep.subr.mxu0 0.0
    %5094 = vmatpush1.msra.mxu0 0.0
    %5095 = vmatprep.subr.mxu0 0.0
    %5096 = vmatpush1.msra.mxu0 0.0
    %5097 = vmatprep.mubr.f32.mxu0 0.0
    %5098 = vmatmul.mubr.f32.gmra.mrb[0].mxu0 %v5010
    %v5099 = vpop.f32.mrb[0].mxu0
    %v5100 = vadd.f32 %v5007, %v5099
    %v5101 = vpop.f32.mrb[0].mxu0
    %5102 = vmatprep.mubr.f32.mxu0 0.0
    %5103 = vmatmul.mubr.f32.gmra.mrb[0].mxu0 %v5013
    %v5104 = vpop.f32.mrb[0].mxu0
    %v5105 = vadd.f32 %v5007, %v5104
    %v5106 = vpop.f32.mrb[0].mxu0
    %5107 = vmatprep.mubr.f32.mxu0 0.0
    %5108 = vmatmul.mubr.f32.gmra.mrb[0].mxu0 %v5016
    %v5109 = vpop.f32.mrb[0].mxu0
    %v5110 = vadd.f32 %v5007, %v5109
    %v5111 = vpop.f32.mrb[0].mxu0
    %5112 = vmatprep.mubr.f32.mxu0 0.0
    %5113 = vmatmul.mubr.f32.gmra.mrb[0].mxu0 %v5019
    %v5114 = vpop.f32.mrb[0].mxu0
    %v5115 = vadd.f32 %v5007, %v5114
    %v5116 = vpop.f32.mrb[0].mxu0
    %5117 = vmatprep.mubr.f32.mxu0 0.0
    %5118 = vmatmul.mubr.f32.gmra.mrb[0].mxu0 %v5022
    %v5119 = vpop.f32.mrb[0].mxu0
    %v5120 = vadd.f32 %v5007, %v5119
    %v5121 = vpop.f32.mrb[0].mxu0
    %5122 = vmatprep.mubr.f32.mxu0 0.0
    %5123 = vmatmul.mubr.f32.gmra.mrb[0].mxu0 %v5025
    %v5124 = vpop.f32.mrb[0].mxu0
    %v5125 = vadd.f32 %v5007, %v5124
    %v5126 = vpop.f32.mrb[0].mxu0
    %5127 = vmatprep.mubr.f32.mxu0 0.0
    %5128 = vmatmul.mubr.f32.gmra.mrb[0].mxu0 %v5028
    %v5129 = vpop.f32.mrb[0].mxu0
    %v5130 = vadd.f32 %v5007, %v5129
    %v5131 = vpop.f32.mrb[0].mxu0
    %5132 = vmatprep.mubr.f32.mxu0 0.0
    %5133 = vmatmul.mubr.f32.gmra.mrb[0].mxu0 %v5031
    %v5134 = vpop.f32.mrb[0].mxu0
    %v5135 = vadd.f32 %v5007, %v5134
    %v5136 = vpop.f32.mrb[0].mxu0
    %5137 = vdwg.mxu0
    %5138 = vmatprep.subr.mxu0 0.0
    %5139 = vmatpush1.msra.mxu0 %v5100
    %5140 = vmatprep.subr.mxu0 0.0
    %5141 = vmatpush1.msra.mxu0 %v5105
    %5142 = vmatprep.subr.mxu0 0.0
    %5143 = vmatpush1.msra.mxu0 %v5110
    %5144 = vmatprep.subr.mxu0 0.0
    %5145 = vmatpush1.msra.mxu0 %v5115
    %5146 = vmatprep.subr.mxu0 0.0
    %5147 = vmatpush1.msra.mxu0 %v5120
    %5148 = vmatprep.subr.mxu0 0.0
    %5149 = vmatpush1.msra.mxu0 %v5125
    %5150 = vmatprep.subr.mxu0 0.0
    %5151 = vmatpush1.msra.mxu0 %v5130
    %5152 = vmatprep.subr.mxu0 0.0
    %5153 = vmatpush1.msra.mxu0 %v5135
    %5154 = vmatprep.subr.mxu0 0.0
    %5155 = vmatpush1.msra.mxu0 0.0
    %5156 = vmatprep.subr.mxu0 0.0
    %5157 = vmatpush1.msra.mxu0 0.0
    %5158 = vmatprep.subr.mxu0 0.0
    %5159 = vmatpush1.msra.mxu0 0.0
    %5160 = vmatprep.subr.mxu0 0.0
    %5161 = vmatpush1.msra.mxu0 0.0
    %5162 = vmatprep.subr.mxu0 0.0
    %5163 = vmatpush1.msra.mxu0 0.0
    %5164 = vmatprep.subr.mxu0 0.0
    %5165 = vmatpush1.msra.mxu0 0.0
    %5166 = vmatprep.subr.mxu0 0.0
    %5167 = vmatpush1.msra.mxu0 0.0
    %5168 = vmatprep.subr.mxu0 0.0
    %5169 = vmatpush1.msra.mxu0 0.0
    %5170 = vmatprep.subr.mxu0 0.0
    %5171 = vmatpush1.msra.mxu0 0.0
    %5172 = vmatprep.subr.mxu0 0.0
    %5173 = vmatpush1.msra.mxu0 0.0
    %5174 = vmatprep.subr.mxu0 0.0
    %5175 = vmatpush1.msra.mxu0 0.0
    %5176 = vmatprep.subr.mxu0 0.0
    %5177 = vmatpush1.msra.mxu0 0.0
    %5178 = vmatprep.subr.mxu0 0.0
    %5179 = vmatpush1.msra.mxu0 0.0
    %5180 = vmatprep.subr.mxu0 0.0
    %5181 = vmatpush1.msra.mxu0 0.0
    %5182 = vmatprep.subr.mxu0 0.0
    %5183 = vmatpush1.msra.mxu0 0.0
    %5184 = vmatprep.subr.mxu0 0.0
    %5185 = vmatpush1.msra.mxu0 0.0
    %5186 = vmatprep.subr.mxu0 0.0
    %5187 = vmatpush1.msra.mxu0 0.0
    %5188 = vmatprep.subr.mxu0 0.0
    %5189 = vmatpush1.msra.mxu0 0.0
    %5190 = vmatprep.subr.mxu0 0.0
    %5191 = vmatpush1.msra.mxu0 0.0
    %5192 = vmatprep.subr.mxu0 0.0
    %5193 = vmatpush1.msra.mxu0 0.0
    %5194 = vmatprep.subr.mxu0 0.0
    %5195 = vmatpush1.msra.mxu0 0.0
    %5196 = vmatprep.subr.mxu0 0.0
    %5197 = vmatpush1.msra.mxu0 0.0
    %5198 = vmatprep.subr.mxu0 0.0
    %5199 = vmatpush1.msra.mxu0 0.0
    %5200 = vmatprep.subr.mxu0 0.0
    %5201 = vmatpush1.msra.mxu0 0.0
    %5202 = vmatprep.mubr.f32.mxu0 0.0
    %5203 = vmatmul.mubr.f32.gmra.mrb[0].mxu0 %v1767
    %v5204 = vpop.f32.mrb[0].mxu0
    %v5205 = vadd.f32 0.0, %v5204
    %v5206 = vpop.f32.mrb[0].mxu0
    %5207 = vmatprep.mubr.f32.mxu0 0.0
    %5208 = vmatmul.mubr.f32.gmra.mrb[0].mxu0 %v1770
    %v5209 = vpop.f32.mrb[0].mxu0
    %v5210 = vadd.f32 0.0, %v5209
    %v5211 = vpop.f32.mrb[0].mxu0
    %5212 = vmatprep.mubr.f32.mxu0 0.0
    %5213 = vmatmul.mubr.f32.gmra.mrb[0].mxu0 %v1773
    %v5214 = vpop.f32.mrb[0].mxu0
    %v5215 = vadd.f32 0.0, %v5214
    %v5216 = vpop.f32.mrb[0].mxu0
    %5217 = vmatprep.mubr.f32.mxu0 0.0
    %5218 = vmatmul.mubr.f32.gmra.mrb[0].mxu0 %v1776
    %v5219 = vpop.f32.mrb[0].mxu0
    %v5220 = vadd.f32 0.0, %v5219
    %v5221 = vpop.f32.mrb[0].mxu0
    %5222 = vmatprep.mubr.f32.mxu0 0.0
    %5223 = vmatmul.mubr.f32.gmra.mrb[0].mxu0 %v1779
    %v5224 = vpop.f32.mrb[0].mxu0
    %v5225 = vadd.f32 0.0, %v5224
    %v5226 = vpop.f32.mrb[0].mxu0
    %5227 = vmatprep.mubr.f32.mxu0 0.0
    %5228 = vmatmul.mubr.f32.gmra.mrb[0].mxu0 %v1782
    %v5229 = vpop.f32.mrb[0].mxu0
    %v5230 = vadd.f32 0.0, %v5229
    %v5231 = vpop.f32.mrb[0].mxu0
    %5232 = vmatprep.mubr.f32.mxu0 0.0
    %5233 = vmatmul.mubr.f32.gmra.mrb[0].mxu0 %v1785
    %v5234 = vpop.f32.mrb[0].mxu0
    %v5235 = vadd.f32 0.0, %v5234
    %v5236 = vpop.f32.mrb[0].mxu0
    %5237 = vmatprep.mubr.f32.mxu0 0.0
    %5238 = vmatmul.mubr.f32.gmra.mrb[0].mxu0 %v1788
    %v5239 = vpop.f32.mrb[0].mxu0
    %v5240 = vadd.f32 0.0, %v5239
    %v5241 = vpop.f32.mrb[0].mxu0
    %5242 = vdwg.mxu0
    %5251 = vrot.lane.b32.xlu0 %v5100, 120
    %v5252 = vpop.permute.xlu0 %5251
    %5253 = vrot.lane.b32.xlu0 %v5105, 120
    %v5254 = vpop.permute.xlu0 %5253
    %5255 = vrot.lane.b32.xlu0 %v5110, 120
    %v5256 = vpop.permute.xlu0 %5255
    %5257 = vrot.lane.b32.xlu0 %v5115, 120
    %v5258 = vpop.permute.xlu0 %5257
    %5259 = vrot.lane.b32.xlu0 %v5120, 120
    %v5260 = vpop.permute.xlu0 %5259
    %5261 = vrot.lane.b32.xlu0 %v5125, 120
    %v5262 = vpop.permute.xlu0 %5261
    %5263 = vrot.lane.b32.xlu0 %v5130, 120
    %v5264 = vpop.permute.xlu0 %5263
    %5265 = vrot.lane.b32.xlu0 %v5135, 120
    %v5266 = vpop.permute.xlu0 %5265
    %5275 = vmatprep.subr.mxu0 0.0
    %5276 = vmatpush1.msra.mxu0 %v5252
    %5277 = vmatprep.subr.mxu0 0.0
    %5278 = vmatpush1.msra.mxu0 %v5254
    %5279 = vmatprep.subr.mxu0 0.0
    %5280 = vmatpush1.msra.mxu0 %v5256
    %5281 = vmatprep.subr.mxu0 0.0
    %5282 = vmatpush1.msra.mxu0 %v5258
    %5283 = vmatprep.subr.mxu0 0.0
    %5284 = vmatpush1.msra.mxu0 %v5260
    %5285 = vmatprep.subr.mxu0 0.0
    %5286 = vmatpush1.msra.mxu0 %v5262
    %5287 = vmatprep.subr.mxu0 0.0
    %5288 = vmatpush1.msra.mxu0 %v5264
    %5289 = vmatprep.subr.mxu0 0.0
    %5290 = vmatpush1.msra.mxu0 %v5266
    %5291 = vmatprep.subr.mxu0 0.0
    %5292 = vmatpush1.msra.mxu0 0.0
    %5293 = vmatprep.subr.mxu0 0.0
    %5294 = vmatpush1.msra.mxu0 0.0
    %5295 = vmatprep.subr.mxu0 0.0
    %5296 = vmatpush1.msra.mxu0 0.0
    %5297 = vmatprep.subr.mxu0 0.0
    %5298 = vmatpush1.msra.mxu0 0.0
    %5299 = vmatprep.subr.mxu0 0.0
    %5300 = vmatpush1.msra.mxu0 0.0
    %5301 = vmatprep.subr.mxu0 0.0
    %5302 = vmatpush1.msra.mxu0 0.0
    %5303 = vmatprep.subr.mxu0 0.0
    %5304 = vmatpush1.msra.mxu0 0.0
    %5305 = vmatprep.subr.mxu0 0.0
    %5306 = vmatpush1.msra.mxu0 0.0
    %5307 = vmatprep.subr.mxu0 0.0
    %5308 = vmatpush1.msra.mxu0 0.0
    %5309 = vmatprep.subr.mxu0 0.0
    %5310 = vmatpush1.msra.mxu0 0.0
    %5311 = vmatprep.subr.mxu0 0.0
    %5312 = vmatpush1.msra.mxu0 0.0
    %5313 = vmatprep.subr.mxu0 0.0
    %5314 = vmatpush1.msra.mxu0 0.0
    %5315 = vmatprep.subr.mxu0 0.0
    %5316 = vmatpush1.msra.mxu0 0.0
    %5317 = vmatprep.subr.mxu0 0.0
    %5318 = vmatpush1.msra.mxu0 0.0
    %5319 = vmatprep.subr.mxu0 0.0
    %5320 = vmatpush1.msra.mxu0 0.0
    %5321 = vmatprep.subr.mxu0 0.0
    %5322 = vmatpush1.msra.mxu0 0.0
    %5323 = vmatprep.subr.mxu0 0.0
    %5324 = vmatpush1.msra.mxu0 0.0
    %5325 = vmatprep.subr.mxu0 0.0
    %5326 = vmatpush1.msra.mxu0 0.0
    %5327 = vmatprep.subr.mxu0 0.0
    %5328 = vmatpush1.msra.mxu0 0.0
    %5329 = vmatprep.subr.mxu0 0.0
    %5330 = vmatpush1.msra.mxu0 0.0
    %5331 = vmatprep.subr.mxu0 0.0
    %5332 = vmatpush1.msra.mxu0 0.0
    %5333 = vmatprep.subr.mxu0 0.0
    %5334 = vmatpush1.msra.mxu0 0.0
    %5335 = vmatprep.subr.mxu0 0.0
    %5336 = vmatpush1.msra.mxu0 0.0
    %5337 = vmatprep.subr.mxu0 0.0
    %5338 = vmatpush1.msra.mxu0 0.0
    %5339 = vmatprep.mubr.f32.mxu0 0.0
    %5340 = vmatmul.mubr.f32.gmra.mrb[0].mxu0 %v1936
    %v5341 = vpop.f32.mrb[0].mxu0
    %v5342 = vadd.f32 0.0, %v5341
    %v5343 = vpop.f32.mrb[0].mxu0
    %5344 = vmatprep.mubr.f32.mxu0 0.0
    %5345 = vmatmul.mubr.f32.gmra.mrb[0].mxu0 %v1939
    %v5346 = vpop.f32.mrb[0].mxu0
    %v5347 = vadd.f32 0.0, %v5346
    %v5348 = vpop.f32.mrb[0].mxu0
    %5349 = vmatprep.mubr.f32.mxu0 0.0
    %5350 = vmatmul.mubr.f32.gmra.mrb[0].mxu0 %v1942
    %v5351 = vpop.f32.mrb[0].mxu0
    %v5352 = vadd.f32 0.0, %v5351
    %v5353 = vpop.f32.mrb[0].mxu0
    %5354 = vmatprep.mubr.f32.mxu0 0.0
    %5355 = vmatmul.mubr.f32.gmra.mrb[0].mxu0 %v1945
    %v5356 = vpop.f32.mrb[0].mxu0
    %v5357 = vadd.f32 0.0, %v5356
    %v5358 = vpop.f32.mrb[0].mxu0
    %5359 = vmatprep.mubr.f32.mxu0 0.0
    %5360 = vmatmul.mubr.f32.gmra.mrb[0].mxu0 %v1948
    %v5361 = vpop.f32.mrb[0].mxu0
    %v5362 = vadd.f32 0.0, %v5361
    %v5363 = vpop.f32.mrb[0].mxu0
    %5364 = vmatprep.mubr.f32.mxu0 0.0
    %5365 = vmatmul.mubr.f32.gmra.mrb[0].mxu0 %v1951
    %v5366 = vpop.f32.mrb[0].mxu0
    %v5367 = vadd.f32 0.0, %v5366
    %v5368 = vpop.f32.mrb[0].mxu0
    %5369 = vmatprep.mubr.f32.mxu0 0.0
    %5370 = vmatmul.mubr.f32.gmra.mrb[0].mxu0 %v1954
    %v5371 = vpop.f32.mrb[0].mxu0
    %v5372 = vadd.f32 0.0, %v5371
    %v5373 = vpop.f32.mrb[0].mxu0
    %5374 = vmatprep.mubr.f32.mxu0 0.0
    %5375 = vmatmul.mubr.f32.gmra.mrb[0].mxu0 %v1957
    %v5376 = vpop.f32.mrb[0].mxu0
    %v5377 = vadd.f32 0.0, %v5376
    %v5378 = vpop.f32.mrb[0].mxu0
    %5379 = vdwg.mxu0
    %v5380 = vmul.f32 %v5205, %v5342
    %v5381 = vmul.f32 %v5210, %v5347
    %v5382 = vmul.f32 %v5215, %v5352
    %v5383 = vmul.f32 %v5220, %v5357
    %v5384 = vmul.f32 %v5225, %v5362
    %v5385 = vmul.f32 %v5230, %v5367
    %v5386 = vmul.f32 %v5235, %v5372
    %v5387 = vmul.f32 %v5240, %v5377
    %v5388 = vsel %vm196, %v5380, 0.0
    %v5389 = vrot.slane %v5388, 4
    %v5390 = vadd.f32 %v5388, %v5389
    %v5391 = vrot.slane %v5390, 2
    %v5392 = vadd.f32 %v5390, %v5391
    %v5393 = vrot.slane %v5392, 1
    %v5394 = vadd.f32 %v5392, %v5393
    %v5395 = vsel %vm196, %v5381, 0.0
    %v5396 = vrot.slane %v5395, 4
    %v5397 = vadd.f32 %v5395, %v5396
    %v5398 = vrot.slane %v5397, 2
    %v5399 = vadd.f32 %v5397, %v5398
    %v5400 = vrot.slane %v5399, 1
    %v5401 = vadd.f32 %v5399, %v5400
    %v5402 = vsel %vm196, %v5382, 0.0
    %v5403 = vrot.slane %v5402, 4
    %v5404 = vadd.f32 %v5402, %v5403
    %v5405 = vrot.slane %v5404, 2
    %v5406 = vadd.f32 %v5404, %v5405
    %v5407 = vrot.slane %v5406, 1
    %v5408 = vadd.f32 %v5406, %v5407
    %v5409 = vsel %vm196, %v5383, 0.0
    %v5410 = vrot.slane %v5409, 4
    %v5411 = vadd.f32 %v5409, %v5410
    %v5412 = vrot.slane %v5411, 2
    %v5413 = vadd.f32 %v5411, %v5412
    %v5414 = vrot.slane %v5413, 1
    %v5415 = vadd.f32 %v5413, %v5414
    %v5416 = vsel %vm196, %v5384, 0.0
    %v5417 = vrot.slane %v5416, 4
    %v5418 = vadd.f32 %v5416, %v5417
    %v5419 = vrot.slane %v5418, 2
    %v5420 = vadd.f32 %v5418, %v5419
    %v5421 = vrot.slane %v5420, 1
    %v5422 = vadd.f32 %v5420, %v5421
    %v5423 = vsel %vm196, %v5385, 0.0
    %v5424 = vrot.slane %v5423, 4
    %v5425 = vadd.f32 %v5423, %v5424
    %v5426 = vrot.slane %v5425, 2
    %v5427 = vadd.f32 %v5425, %v5426
    %v5428 = vrot.slane %v5427, 1
    %v5429 = vadd.f32 %v5427, %v5428
    %v5430 = vsel %vm196, %v5386, 0.0
    %v5431 = vrot.slane %v5430, 4
    %v5432 = vadd.f32 %v5430, %v5431
    %v5433 = vrot.slane %v5432, 2
    %v5434 = vadd.f32 %v5432, %v5433
    %v5435 = vrot.slane %v5434, 1
    %v5436 = vadd.f32 %v5434, %v5435
    %v5437 = vsel %vm196, %v5387, 0.0
    %v5438 = vrot.slane %v5437, 4
    %v5439 = vadd.f32 %v5437, %v5438
    %v5440 = vrot.slane %v5439, 2
    %v5441 = vadd.f32 %v5439, %v5440
    %v5442 = vrot.slane %v5441, 1
    %v5443 = vadd.f32 %v5441, %v5442
    %5444 = vrot.lane.b32.xlu0 %v348, 104
    %v5445 = vpop.permute.xlu0 %5444
    %5446 = vrot.lane.b32.xlu0 %v2129, 104
    %v5447 = vpop.permute.xlu0 %5446
    %5448 = vrot.lane.b32.xlu0 %v2130, 104
    %v5449 = vpop.permute.xlu0 %5448
    %5450 = vrot.lane.b32.xlu0 %v2131, 104
    %v5451 = vpop.permute.xlu0 %5450
    %5452 = vrot.lane.b32.xlu0 %v2132, 104
    %v5453 = vpop.permute.xlu0 %5452
    %5454 = vrot.lane.b32.xlu0 %v2133, 104
    %v5455 = vpop.permute.xlu0 %5454
    %5456 = vrot.lane.b32.xlu0 %v2134, 104
    %v5457 = vpop.permute.xlu0 %5456
    %5458 = vrot.lane.b32.xlu0 %v2135, 104
    %v5459 = vpop.permute.xlu0 %5458
    %v5468 = vadd.f32 %v5394, %v5445
    %v5469 = vadd.f32 %v5401, %v5447
    %v5470 = vadd.f32 %v5408, %v5449
    %v5471 = vadd.f32 %v5415, %v5451
    %v5472 = vadd.f32 %v5422, %v5453
    %v5473 = vadd.f32 %v5429, %v5455
    %v5474 = vadd.f32 %v5436, %v5457
    %v5475 = vadd.f32 %v5443, %v5459
    %vm5476 = vcmp.ge.f32.partialorder %v5468, 0.0
    %vm5477 = vcmp.ge.f32.partialorder %v5469, 0.0
    %vm5478 = vcmp.ge.f32.partialorder %v5470, 0.0
    %vm5479 = vcmp.ge.f32.partialorder %v5471, 0.0
    %vm5480 = vcmp.ge.f32.partialorder %v5472, 0.0
    %vm5481 = vcmp.ge.f32.partialorder %v5473, 0.0
    %vm5482 = vcmp.ge.f32.partialorder %v5474, 0.0
    %vm5483 = vcmp.ge.f32.partialorder %v5475, 0.0
    %v5484 = vmul.f32 %v5468, 0.01
    %v5485 = vmul.f32 %v5469, 0.01
    %v5486 = vmul.f32 %v5470, 0.01
    %v5487 = vmul.f32 %v5471, 0.01
    %v5488 = vmul.f32 %v5472, 0.01
    %v5489 = vmul.f32 %v5473, 0.01
    %v5490 = vmul.f32 %v5474, 0.01
    %v5491 = vmul.f32 %v5475, 0.01
    %v5492 = vsel %vm5476, %v5468, %v5484
    %v5493 = vsel %vm5477, %v5469, %v5485
    %v5494 = vsel %vm5478, %v5470, %v5486
    %v5495 = vsel %vm5479, %v5471, %v5487
    %v5496 = vsel %vm5480, %v5472, %v5488
    %v5497 = vsel %vm5481, %v5473, %v5489
    %v5498 = vsel %vm5482, %v5474, %v5490
    %v5499 = vsel %vm5483, %v5475, %v5491
    %v5508 = vrot.slane %v5493, 7
    %v5509 = vsel %vm2201, %v5508, %v5492
    %v5510 = vrot.slane %v5494, 6
    %v5511 = vsel %vm2204, %v5510, %v5509
    %v5512 = vrot.slane %v5495, 5
    %v5513 = vsel %vm2207, %v5512, %v5511
    %v5514 = vrot.slane %v5496, 4
    %v5515 = vsel %vm2210, %v5514, %v5513
    %v5516 = vrot.slane %v5497, 3
    %v5517 = vsel %vm2213, %v5516, %v5515
    %v5518 = vrot.slane %v5498, 2
    %v5519 = vsel %vm2216, %v5518, %v5517
    %v5520 = vrot.slane %v5499, 1
    %v5521 = vsel %vm2219, %v5520, %v5519
    %5523 = vmatprep.subr.mxu0 0.0
    %5524 = vmatpush1.msra.mxu0 %v5521
    %5525 = vmatprep.subr.mxu0 0.0
    %5526 = vmatpush1.msra.mxu0 0.0
    %5527 = vmatprep.subr.mxu0 0.0
    %5528 = vmatpush1.msra.mxu0 0.0
    %5529 = vmatprep.subr.mxu0 0.0
    %5530 = vmatpush1.msra.mxu0 0.0
    %5531 = vmatprep.subr.mxu0 0.0
    %5532 = vmatpush1.msra.mxu0 0.0
    %5533 = vmatprep.subr.mxu0 0.0
    %5534 = vmatpush1.msra.mxu0 0.0
    %5535 = vmatprep.subr.mxu0 0.0
    %5536 = vmatpush1.msra.mxu0 0.0
    %5537 = vmatprep.subr.mxu0 0.0
    %5538 = vmatpush1.msra.mxu0 0.0
    %5539 = vmatprep.subr.mxu0 0.0
    %5540 = vmatpush1.msra.mxu0 0.0
    %5541 = vmatprep.subr.mxu0 0.0
    %5542 = vmatpush1.msra.mxu0 0.0
    %5543 = vmatprep.subr.mxu0 0.0
    %5544 = vmatpush1.msra.mxu0 0.0
    %5545 = vmatprep.subr.mxu0 0.0
    %5546 = vmatpush1.msra.mxu0 0.0
    %5547 = vmatprep.subr.mxu0 0.0
    %5548 = vmatpush1.msra.mxu0 0.0
    %5549 = vmatprep.subr.mxu0 0.0
    %5550 = vmatpush1.msra.mxu0 0.0
    %5551 = vmatprep.subr.mxu0 0.0
    %5552 = vmatpush1.msra.mxu0 0.0
    %5553 = vmatprep.subr.mxu0 0.0
    %5554 = vmatpush1.msra.mxu0 0.0
    %5555 = vmatprep.subr.mxu0 0.0
    %5556 = vmatpush1.msra.mxu0 0.0
    %5557 = vmatprep.subr.mxu0 0.0
    %5558 = vmatpush1.msra.mxu0 0.0
    %5559 = vmatprep.subr.mxu0 0.0
    %5560 = vmatpush1.msra.mxu0 0.0
    %5561 = vmatprep.subr.mxu0 0.0
    %5562 = vmatpush1.msra.mxu0 0.0
    %5563 = vmatprep.subr.mxu0 0.0
    %5564 = vmatpush1.msra.mxu0 0.0
    %5565 = vmatprep.subr.mxu0 0.0
    %5566 = vmatpush1.msra.mxu0 0.0
    %5567 = vmatprep.subr.mxu0 0.0
    %5568 = vmatpush1.msra.mxu0 0.0
    %5569 = vmatprep.subr.mxu0 0.0
    %5570 = vmatpush1.msra.mxu0 0.0
    %5571 = vmatprep.subr.mxu0 0.0
    %5572 = vmatpush1.msra.mxu0 0.0
    %5573 = vmatprep.subr.mxu0 0.0
    %5574 = vmatpush1.msra.mxu0 0.0
    %5575 = vmatprep.subr.mxu0 0.0
    %5576 = vmatpush1.msra.mxu0 0.0
    %5577 = vmatprep.subr.mxu0 0.0
    %5578 = vmatpush1.msra.mxu0 0.0
    %5579 = vmatprep.subr.mxu0 0.0
    %5580 = vmatpush1.msra.mxu0 0.0
    %5581 = vmatprep.subr.mxu0 0.0
    %5582 = vmatpush1.msra.mxu0 0.0
    %5583 = vmatprep.subr.mxu0 0.0
    %5584 = vmatpush1.msra.mxu0 0.0
    %5585 = vmatprep.subr.mxu0 0.0
    %5586 = vmatpush1.msra.mxu0 0.0
    %5587 = vmatprep.mubr.f32.mxu0 0.0
    %5588 = vmatmul.mubr.f32.gmra.mrb[0].mxu0 %v637
    %v5589 = vpop.f32.mrb[0].mxu0
    %v5590 = vadd.f32 0.0, %v5589
    %v5591 = vpop.f32.mrb[0].mxu0
    %5592 = vmatprep.mubr.f32.mxu0 0.0
    %5593 = vmatmul.mubr.f32.gmra.mrb[0].mxu0 %v640
    %v5594 = vpop.f32.mrb[0].mxu0
    %v5595 = vadd.f32 0.0, %v5594
    %v5596 = vpop.f32.mrb[0].mxu0
    %5597 = vmatprep.mubr.f32.mxu0 0.0
    %5598 = vmatmul.mubr.f32.gmra.mrb[0].mxu0 %v643
    %v5599 = vpop.f32.mrb[0].mxu0
    %v5600 = vadd.f32 0.0, %v5599
    %v5601 = vpop.f32.mrb[0].mxu0
    %5602 = vmatprep.mubr.f32.mxu0 0.0
    %5603 = vmatmul.mubr.f32.gmra.mrb[0].mxu0 %v646
    %v5604 = vpop.f32.mrb[0].mxu0
    %v5605 = vadd.f32 0.0, %v5604
    %v5606 = vpop.f32.mrb[0].mxu0
    %5607 = vmatprep.mubr.f32.mxu0 0.0
    %5608 = vmatmul.mubr.f32.gmra.mrb[0].mxu0 %v649
    %v5609 = vpop.f32.mrb[0].mxu0
    %v5610 = vadd.f32 0.0, %v5609
    %v5611 = vpop.f32.mrb[0].mxu0
    %5612 = vmatprep.mubr.f32.mxu0 0.0
    %5613 = vmatmul.mubr.f32.gmra.mrb[0].mxu0 %v652
    %v5614 = vpop.f32.mrb[0].mxu0
    %v5615 = vadd.f32 0.0, %v5614
    %v5616 = vpop.f32.mrb[0].mxu0
    %5617 = vmatprep.mubr.f32.mxu0 0.0
    %5618 = vmatmul.mubr.f32.gmra.mrb[0].mxu0 %v655
    %v5619 = vpop.f32.mrb[0].mxu0
    %v5620 = vadd.f32 0.0, %v5619
    %v5621 = vpop.f32.mrb[0].mxu0
    %5622 = vmatprep.mubr.f32.mxu0 0.0
    %5623 = vmatmul.mubr.f32.gmra.mrb[0].mxu0 %v658
    %v5624 = vpop.f32.mrb[0].mxu0
    %v5625 = vadd.f32 0.0, %v5624
    %v5626 = vpop.f32.mrb[0].mxu0
    %5627 = vdwg.mxu0
    %v5628 = vsel %vm196, %v5590, -inf
    %v5629 = vrot.slane %v5628, 4
    %v5630 = vmax.f32 %v5628, %v5629
    %v5631 = vrot.slane %v5630, 2
    %v5632 = vmax.f32 %v5630, %v5631
    %v5633 = vrot.slane %v5632, 1
    %v5634 = vmax.f32 %v5632, %v5633
    %v5635 = vsel %vm196, %v5595, -inf
    %v5636 = vrot.slane %v5635, 4
    %v5637 = vmax.f32 %v5635, %v5636
    %v5638 = vrot.slane %v5637, 2
    %v5639 = vmax.f32 %v5637, %v5638
    %v5640 = vrot.slane %v5639, 1
    %v5641 = vmax.f32 %v5639, %v5640
    %v5642 = vsel %vm196, %v5600, -inf
    %v5643 = vrot.slane %v5642, 4
    %v5644 = vmax.f32 %v5642, %v5643
    %v5645 = vrot.slane %v5644, 2
    %v5646 = vmax.f32 %v5644, %v5645
    %v5647 = vrot.slane %v5646, 1
    %v5648 = vmax.f32 %v5646, %v5647
    %v5649 = vsel %vm196, %v5605, -inf
    %v5650 = vrot.slane %v5649, 4
    %v5651 = vmax.f32 %v5649, %v5650
    %v5652 = vrot.slane %v5651, 2
    %v5653 = vmax.f32 %v5651, %v5652
    %v5654 = vrot.slane %v5653, 1
    %v5655 = vmax.f32 %v5653, %v5654
    %v5656 = vsel %vm196, %v5610, -inf
    %v5657 = vrot.slane %v5656, 4
    %v5658 = vmax.f32 %v5656, %v5657
    %v5659 = vrot.slane %v5658, 2
    %v5660 = vmax.f32 %v5658, %v5659
    %v5661 = vrot.slane %v5660, 1
    %v5662 = vmax.f32 %v5660, %v5661
    %v5663 = vsel %vm196, %v5615, -inf
    %v5664 = vrot.slane %v5663, 4
    %v5665 = vmax.f32 %v5663, %v5664
    %v5666 = vrot.slane %v5665, 2
    %v5667 = vmax.f32 %v5665, %v5666
    %v5668 = vrot.slane %v5667, 1
    %v5669 = vmax.f32 %v5667, %v5668
    %v5670 = vsel %vm196, %v5620, -inf
    %v5671 = vrot.slane %v5670, 4
    %v5672 = vmax.f32 %v5670, %v5671
    %v5673 = vrot.slane %v5672, 2
    %v5674 = vmax.f32 %v5672, %v5673
    %v5675 = vrot.slane %v5674, 1
    %v5676 = vmax.f32 %v5674, %v5675
    %v5677 = vsel %vm196, %v5625, -inf
    %v5678 = vrot.slane %v5677, 4
    %v5679 = vmax.f32 %v5677, %v5678
    %v5680 = vrot.slane %v5679, 2
    %v5681 = vmax.f32 %v5679, %v5680
    %v5682 = vrot.slane %v5681, 1
    %v5683 = vmax.f32 %v5681, %v5682
    %v5684 = vsub.f32 %v5590, %v5634
    %v5685 = vsub.f32 %v5595, %v5641
    %v5686 = vsub.f32 %v5600, %v5648
    %v5687 = vsub.f32 %v5605, %v5655
    %v5688 = vsub.f32 %v5610, %v5662
    %v5689 = vsub.f32 %v5615, %v5669
    %v5690 = vsub.f32 %v5620, %v5676
    %v5691 = vsub.f32 %v5625, %v5683
    %v5692 = vmul.f32 %v5684, 1.442695
    %v5693 = vpow.pop %v5692
    %v5694 = vmul.f32 %v5685, 1.442695
    %v5695 = vpow.pop %v5694
    %v5696 = vmul.f32 %v5686, 1.442695
    %v5697 = vpow.pop %v5696
    %v5698 = vmul.f32 %v5687, 1.442695
    %v5699 = vpow.pop %v5698
    %v5700 = vmul.f32 %v5688, 1.442695
    %v5701 = vpow.pop %v5700
    %v5702 = vmul.f32 %v5689, 1.442695
    %v5703 = vpow.pop %v5702
    %v5704 = vmul.f32 %v5690, 1.442695
    %v5705 = vpow.pop %v5704
    %v5706 = vmul.f32 %v5691, 1.442695
    %v5707 = vpow.pop %v5706
    %v5708 = vsel %vm196, %v5693, 0.0
    %v5709 = vrot.slane %v5708, 4
    %v5710 = vadd.f32 %v5708, %v5709
    %v5711 = vrot.slane %v5710, 2
    %v5712 = vadd.f32 %v5710, %v5711
    %v5713 = vrot.slane %v5712, 1
    %v5714 = vadd.f32 %v5712, %v5713
    %v5715 = vsel %vm196, %v5695, 0.0
    %v5716 = vrot.slane %v5715, 4
    %v5717 = vadd.f32 %v5715, %v5716
    %v5718 = vrot.slane %v5717, 2
    %v5719 = vadd.f32 %v5717, %v5718
    %v5720 = vrot.slane %v5719, 1
    %v5721 = vadd.f32 %v5719, %v5720
    %v5722 = vsel %vm196, %v5697, 0.0
    %v5723 = vrot.slane %v5722, 4
    %v5724 = vadd.f32 %v5722, %v5723
    %v5725 = vrot.slane %v5724, 2
    %v5726 = vadd.f32 %v5724, %v5725
    %v5727 = vrot.slane %v5726, 1
    %v5728 = vadd.f32 %v5726, %v5727
    %v5729 = vsel %vm196, %v5699, 0.0
    %v5730 = vrot.slane %v5729, 4
    %v5731 = vadd.f32 %v5729, %v5730
    %v5732 = vrot.slane %v5731, 2
    %v5733 = vadd.f32 %v5731, %v5732
    %v5734 = vrot.slane %v5733, 1
    %v5735 = vadd.f32 %v5733, %v5734
    %v5736 = vsel %vm196, %v5701, 0.0
    %v5737 = vrot.slane %v5736, 4
    %v5738 = vadd.f32 %v5736, %v5737
    %v5739 = vrot.slane %v5738, 2
    %v5740 = vadd.f32 %v5738, %v5739
    %v5741 = vrot.slane %v5740, 1
    %v5742 = vadd.f32 %v5740, %v5741
    %v5743 = vsel %vm196, %v5703, 0.0
    %v5744 = vrot.slane %v5743, 4
    %v5745 = vadd.f32 %v5743, %v5744
    %v5746 = vrot.slane %v5745, 2
    %v5747 = vadd.f32 %v5745, %v5746
    %v5748 = vrot.slane %v5747, 1
    %v5749 = vadd.f32 %v5747, %v5748
    %v5750 = vsel %vm196, %v5705, 0.0
    %v5751 = vrot.slane %v5750, 4
    %v5752 = vadd.f32 %v5750, %v5751
    %v5753 = vrot.slane %v5752, 2
    %v5754 = vadd.f32 %v5752, %v5753
    %v5755 = vrot.slane %v5754, 1
    %v5756 = vadd.f32 %v5754, %v5755
    %v5757 = vsel %vm196, %v5707, 0.0
    %v5758 = vrot.slane %v5757, 4
    %v5759 = vadd.f32 %v5757, %v5758
    %v5760 = vrot.slane %v5759, 2
    %v5761 = vadd.f32 %v5759, %v5760
    %v5762 = vrot.slane %v5761, 1
    %v5763 = vadd.f32 %v5761, %v5762
    %v5764 = vrcp.pop %v5714
    %v5765 = vmul.f32 %v5693, %v5764
    %v5766 = vrcp.pop %v5721
    %v5767 = vmul.f32 %v5695, %v5766
    %v5768 = vrcp.pop %v5728
    %v5769 = vmul.f32 %v5697, %v5768
    %v5770 = vrcp.pop %v5735
    %v5771 = vmul.f32 %v5699, %v5770
    %v5772 = vrcp.pop %v5742
    %v5773 = vmul.f32 %v5701, %v5772
    %v5774 = vrcp.pop %v5749
    %v5775 = vmul.f32 %v5703, %v5774
    %v5776 = vrcp.pop %v5756
    %v5777 = vmul.f32 %v5705, %v5776
    %v5778 = vrcp.pop %v5763
    %v5779 = vmul.f32 %v5707, %v5778
    %v5781 = vsel %vm196, %v5765, 0
    %v5784 = vsel %vm196, %v5767, 0
    %v5787 = vsel %vm196, %v5769, 0
    %v5790 = vsel %vm196, %v5771, 0
    %v5793 = vsel %vm196, %v5773, 0
    %v5796 = vsel %vm196, %v5775, 0
    %v5799 = vsel %vm196, %v5777, 0
    %v5802 = vsel %vm196, %v5779, 0
    %5804 = vmatprep.subr.mxu0 0.0
    %5805 = vmatpush1.msra.mxu0 %v2479
    %5806 = vmatprep.subr.mxu0 0.0
    %5807 = vmatpush1.msra.mxu0 0.0
    %5808 = vmatprep.subr.mxu0 0.0
    %5809 = vmatpush1.msra.mxu0 0.0
    %5810 = vmatprep.subr.mxu0 0.0
    %5811 = vmatpush1.msra.mxu0 0.0
    %5812 = vmatprep.subr.mxu0 0.0
    %5813 = vmatpush1.msra.mxu0 0.0
    %5814 = vmatprep.subr.mxu0 0.0
    %5815 = vmatpush1.msra.mxu0 0.0
    %5816 = vmatprep.subr.mxu0 0.0
    %5817 = vmatpush1.msra.mxu0 0.0
    %5818 = vmatprep.subr.mxu0 0.0
    %5819 = vmatpush1.msra.mxu0 0.0
    %5820 = vmatprep.subr.mxu0 0.0
    %5821 = vmatpush1.msra.mxu0 0.0
    %5822 = vmatprep.subr.mxu0 0.0
    %5823 = vmatpush1.msra.mxu0 0.0
    %5824 = vmatprep.subr.mxu0 0.0
    %5825 = vmatpush1.msra.mxu0 0.0
    %5826 = vmatprep.subr.mxu0 0.0
    %5827 = vmatpush1.msra.mxu0 0.0
    %5828 = vmatprep.subr.mxu0 0.0
    %5829 = vmatpush1.msra.mxu0 0.0
    %5830 = vmatprep.subr.mxu0 0.0
    %5831 = vmatpush1.msra.mxu0 0.0
    %5832 = vmatprep.subr.mxu0 0.0
    %5833 = vmatpush1.msra.mxu0 0.0
    %5834 = vmatprep.subr.mxu0 0.0
    %5835 = vmatpush1.msra.mxu0 0.0
    %5836 = vmatprep.subr.mxu0 0.0
    %5837 = vmatpush1.msra.mxu0 0.0
    %5838 = vmatprep.subr.mxu0 0.0
    %5839 = vmatpush1.msra.mxu0 0.0
    %5840 = vmatprep.subr.mxu0 0.0
    %5841 = vmatpush1.msra.mxu0 0.0
    %5842 = vmatprep.subr.mxu0 0.0
    %5843 = vmatpush1.msra.mxu0 0.0
    %5844 = vmatprep.subr.mxu0 0.0
    %5845 = vmatpush1.msra.mxu0 0.0
    %5846 = vmatprep.subr.mxu0 0.0
    %5847 = vmatpush1.msra.mxu0 0.0
    %5848 = vmatprep.subr.mxu0 0.0
    %5849 = vmatpush1.msra.mxu0 0.0
    %5850 = vmatprep.subr.mxu0 0.0
    %5851 = vmatpush1.msra.mxu0 0.0
    %5852 = vmatprep.subr.mxu0 0.0
    %5853 = vmatpush1.msra.mxu0 0.0
    %5854 = vmatprep.subr.mxu0 0.0
    %5855 = vmatpush1.msra.mxu0 0.0
    %5856 = vmatprep.subr.mxu0 0.0
    %5857 = vmatpush1.msra.mxu0 0.0
    %5858 = vmatprep.subr.mxu0 0.0
    %5859 = vmatpush1.msra.mxu0 0.0
    %5860 = vmatprep.subr.mxu0 0.0
    %5861 = vmatpush1.msra.mxu0 0.0
    %5862 = vmatprep.subr.mxu0 0.0
    %5863 = vmatpush1.msra.mxu0 0.0
    %5864 = vmatprep.subr.mxu0 0.0
    %5865 = vmatpush1.msra.mxu0 0.0
    %5866 = vmatprep.subr.mxu0 0.0
    %5867 = vmatpush1.msra.mxu0 0.0
    %5868 = vmatprep.mubr.f32.mxu0 0.0
    %5869 = vmatmul.mubr.f32.gmra.mrb[0].mxu0 %v5781
    %v5870 = vpop.f32.mrb[0].mxu0
    %v5871 = vadd.f32 0.0, %v5870
    %v5872 = vpop.f32.mrb[0].mxu0
    %5873 = vmatprep.mubr.f32.mxu0 0.0
    %5874 = vmatmul.mubr.f32.gmra.mrb[0].mxu0 %v5784
    %v5875 = vpop.f32.mrb[0].mxu0
    %v5876 = vadd.f32 0.0, %v5875
    %v5877 = vpop.f32.mrb[0].mxu0
    %5878 = vmatprep.mubr.f32.mxu0 0.0
    %5879 = vmatmul.mubr.f32.gmra.mrb[0].mxu0 %v5787
    %v5880 = vpop.f32.mrb[0].mxu0
    %v5881 = vadd.f32 0.0, %v5880
    %v5882 = vpop.f32.mrb[0].mxu0
    %5883 = vmatprep.mubr.f32.mxu0 0.0
    %5884 = vmatmul.mubr.f32.gmra.mrb[0].mxu0 %v5790
    %v5885 = vpop.f32.mrb[0].mxu0
    %v5886 = vadd.f32 0.0, %v5885
    %v5887 = vpop.f32.mrb[0].mxu0
    %5888 = vmatprep.mubr.f32.mxu0 0.0
    %5889 = vmatmul.mubr.f32.gmra.mrb[0].mxu0 %v5793
    %v5890 = vpop.f32.mrb[0].mxu0
    %v5891 = vadd.f32 0.0, %v5890
    %v5892 = vpop.f32.mrb[0].mxu0
    %5893 = vmatprep.mubr.f32.mxu0 0.0
    %5894 = vmatmul.mubr.f32.gmra.mrb[0].mxu0 %v5796
    %v5895 = vpop.f32.mrb[0].mxu0
    %v5896 = vadd.f32 0.0, %v5895
    %v5897 = vpop.f32.mrb[0].mxu0
    %5898 = vmatprep.mubr.f32.mxu0 0.0
    %5899 = vmatmul.mubr.f32.gmra.mrb[0].mxu0 %v5799
    %v5900 = vpop.f32.mrb[0].mxu0
    %v5901 = vadd.f32 0.0, %v5900
    %v5902 = vpop.f32.mrb[0].mxu0
    %5903 = vmatprep.mubr.f32.mxu0 0.0
    %5904 = vmatmul.mubr.f32.gmra.mrb[0].mxu0 %v5802
    %v5905 = vpop.f32.mrb[0].mxu0
    %v5906 = vadd.f32 0.0, %v5905
    %v5907 = vpop.f32.mrb[0].mxu0
    %5908 = vdwg.mxu0
    %v5909 = vmul.f32 %v5871, %v2609
    %v5910 = vmul.f32 %v5876, %v2610
    %v5911 = vmul.f32 %v5881, %v2611
    %v5912 = vmul.f32 %v5886, %v2612
    %v5913 = vmul.f32 %v5891, %v2613
    %v5914 = vmul.f32 %v5896, %v2614
    %v5915 = vmul.f32 %v5901, %v2615
    %v5916 = vmul.f32 %v5906, %v2616
    %5917 = vrot.lane.b32.xlu0 %v5100, 112
    %v5918 = vpop.permute.xlu0 %5917
    %5919 = vrot.lane.b32.xlu0 %v5105, 112
    %v5920 = vpop.permute.xlu0 %5919
    %5921 = vrot.lane.b32.xlu0 %v5110, 112
    %v5922 = vpop.permute.xlu0 %5921
    %5923 = vrot.lane.b32.xlu0 %v5115, 112
    %v5924 = vpop.permute.xlu0 %5923
    %5925 = vrot.lane.b32.xlu0 %v5120, 112
    %v5926 = vpop.permute.xlu0 %5925
    %5927 = vrot.lane.b32.xlu0 %v5125, 112
    %v5928 = vpop.permute.xlu0 %5927
    %5929 = vrot.lane.b32.xlu0 %v5130, 112
    %v5930 = vpop.permute.xlu0 %5929
    %5931 = vrot.lane.b32.xlu0 %v5135, 112
    %v5932 = vpop.permute.xlu0 %5931
    %v5942 = vsel %vm1765, %v5909, 0
    %v5945 = vsel %vm1765, %v5910, 0
    %v5948 = vsel %vm1765, %v5911, 0
    %v5951 = vsel %vm1765, %v5912, 0
    %v5954 = vsel %vm1765, %v5913, 0
    %v5957 = vsel %vm1765, %v5914, 0
    %v5960 = vsel %vm1765, %v5915, 0
    %v5963 = vsel %vm1765, %v5916, 0
    %5965 = vmatprep.subr.mxu0 0.0
    %5966 = vmatpush1.msra.mxu0 %v5918
    %5967 = vmatprep.subr.mxu0 0.0
    %5968 = vmatpush1.msra.mxu0 %v5920
    %5969 = vmatprep.subr.mxu0 0.0
    %5970 = vmatpush1.msra.mxu0 %v5922
    %5971 = vmatprep.subr.mxu0 0.0
    %5972 = vmatpush1.msra.mxu0 %v5924
    %5973 = vmatprep.subr.mxu0 0.0
    %5974 = vmatpush1.msra.mxu0 %v5926
    %5975 = vmatprep.subr.mxu0 0.0
    %5976 = vmatpush1.msra.mxu0 %v5928
    %5977 = vmatprep.subr.mxu0 0.0
    %5978 = vmatpush1.msra.mxu0 %v5930
    %5979 = vmatprep.subr.mxu0 0.0
    %5980 = vmatpush1.msra.mxu0 %v5932
    %5981 = vmatprep.subr.mxu0 0.0
    %5982 = vmatpush1.msra.mxu0 0.0
    %5983 = vmatprep.subr.mxu0 0.0
    %5984 = vmatpush1.msra.mxu0 0.0
    %5985 = vmatprep.subr.mxu0 0.0
    %5986 = vmatpush1.msra.mxu0 0.0
    %5987 = vmatprep.subr.mxu0 0.0
    %5988 = vmatpush1.msra.mxu0 0.0
    %5989 = vmatprep.subr.mxu0 0.0
    %5990 = vmatpush1.msra.mxu0 0.0
    %5991 = vmatprep.subr.mxu0 0.0
    %5992 = vmatpush1.msra.mxu0 0.0
    %5993 = vmatprep.subr.mxu0 0.0
    %5994 = vmatpush1.msra.mxu0 0.0
    %5995 = vmatprep.subr.mxu0 0.0
    %5996 = vmatpush1.msra.mxu0 0.0
    %5997 = vmatprep.subr.mxu0 0.0
    %5998 = vmatpush1.msra.mxu0 0.0
    %5999 = vmatprep.subr.mxu0 0.0
    %6000 = vmatpush1.msra.mxu0 0.0
    %6001 = vmatprep.subr.mxu0 0.0
    %6002 = vmatpush1.msra.mxu0 0.0
    %6003 = vmatprep.subr.mxu0 0.0
    %6004 = vmatpush1.msra.mxu0 0.0
    %6005 = vmatprep.subr.mxu0 0.0
    %6006 = vmatpush1.msra.mxu0 0.0
    %6007 = vmatprep.subr.mxu0 0.0
    %6008 = vmatpush1.msra.mxu0 0.0
    %6009 = vmatprep.subr.mxu0 0.0
    %6010 = vmatpush1.msra.mxu0 0.0
    %6011 = vmatprep.subr.mxu0 0.0
    %6012 = vmatpush1.msra.mxu0 0.0
    %6013 = vmatprep.subr.mxu0 0.0
    %6014 = vmatpush1.msra.mxu0 0.0
    %6015 = vmatprep.subr.mxu0 0.0
    %6016 = vmatpush1.msra.mxu0 0.0
    %6017 = vmatprep.subr.mxu0 0.0
    %6018 = vmatpush1.msra.mxu0 0.0
    %6019 = vmatprep.subr.mxu0 0.0
    %6020 = vmatpush1.msra.mxu0 0.0
    %6021 = vmatprep.subr.mxu0 0.0
    %6022 = vmatpush1.msra.mxu0 0.0
    %6023 = vmatprep.subr.mxu0 0.0
    %6024 = vmatpush1.msra.mxu0 0.0
    %6025 = vmatprep.subr.mxu0 0.0
    %6026 = vmatpush1.msra.mxu0 0.0
    %6027 = vmatprep.subr.mxu0 0.0
    %6028 = vmatpush1.msra.mxu0 0.0
    %6029 = vmatprep.mubr.f32.mxu0 0.0
    %6030 = vmatmul.mubr.f32.gmra.mrb[0].mxu0 %v5942
    %v6031 = vpop.f32.mrb[0].mxu0
    %v6032 = vadd.f32 0.0, %v6031
    %v6033 = vpop.f32.mrb[0].mxu0
    %6034 = vmatprep.mubr.f32.mxu0 0.0
    %6035 = vmatmul.mubr.f32.gmra.mrb[0].mxu0 %v5945
    %v6036 = vpop.f32.mrb[0].mxu0
    %v6037 = vadd.f32 0.0, %v6036
    %v6038 = vpop.f32.mrb[0].mxu0
    %6039 = vmatprep.mubr.f32.mxu0 0.0
    %6040 = vmatmul.mubr.f32.gmra.mrb[0].mxu0 %v5948
    %v6041 = vpop.f32.mrb[0].mxu0
    %v6042 = vadd.f32 0.0, %v6041
    %v6043 = vpop.f32.mrb[0].mxu0
    %6044 = vmatprep.mubr.f32.mxu0 0.0
    %6045 = vmatmul.mubr.f32.gmra.mrb[0].mxu0 %v5951
    %v6046 = vpop.f32.mrb[0].mxu0
    %v6047 = vadd.f32 0.0, %v6046
    %v6048 = vpop.f32.mrb[0].mxu0
    %6049 = vmatprep.mubr.f32.mxu0 0.0
    %6050 = vmatmul.mubr.f32.gmra.mrb[0].mxu0 %v5954
    %v6051 = vpop.f32.mrb[0].mxu0
    %v6052 = vadd.f32 0.0, %v6051
    %v6053 = vpop.f32.mrb[0].mxu0
    %6054 = vmatprep.mubr.f32.mxu0 0.0
    %6055 = vmatmul.mubr.f32.gmra.mrb[0].mxu0 %v5957
    %v6056 = vpop.f32.mrb[0].mxu0
    %v6057 = vadd.f32 0.0, %v6056
    %v6058 = vpop.f32.mrb[0].mxu0
    %6059 = vmatprep.mubr.f32.mxu0 0.0
    %6060 = vmatmul.mubr.f32.gmra.mrb[0].mxu0 %v5960
    %v6061 = vpop.f32.mrb[0].mxu0
    %v6062 = vadd.f32 0.0, %v6061
    %v6063 = vpop.f32.mrb[0].mxu0
    %6064 = vmatprep.mubr.f32.mxu0 0.0
    %6065 = vmatmul.mubr.f32.gmra.mrb[0].mxu0 %v5963
    %v6066 = vpop.f32.mrb[0].mxu0
    %v6067 = vadd.f32 0.0, %v6066
    %v6068 = vpop.f32.mrb[0].mxu0
    %6069 = vdwg.mxu0
    %v6070 = vadd.f32 %v4991, %v6032
    %v6071 = vadd.f32 %v4992, %v6037
    %v6072 = vadd.f32 %v4993, %v6042
    %v6073 = vadd.f32 %v4994, %v6047
    %v6074 = vadd.f32 %v4995, %v6052
    %v6075 = vadd.f32 %v4996, %v6057
    %v6076 = vadd.f32 %v4997, %v6062
    %v6077 = vadd.f32 %v4998, %v6067
    %s6078 = scalar_lea.vmem %s17, 24
    %v6079 = vld [vmem:[%s6078] sm:$0xff]
    %s6080 = scalar_lea.vmem %s18, 24
    %v6081 = vld [vmem:[%s6080] sm:$0xff]
    %v6082 = vsel %vm196, %v6070, 0.0
    %6083 = vadd.xlane.f32.xlu0 %v6082
    %v6084 = vpop.xlane.xlu0 %6083
    %v6085 = vsel %vm196, %v6071, 0.0
    %6086 = vadd.xlane.f32.xlu0 %v6085
    %v6087 = vpop.xlane.xlu0 %6086
    %v6088 = vsel %vm196, %v6072, 0.0
    %6089 = vadd.xlane.f32.xlu0 %v6088
    %v6090 = vpop.xlane.xlu0 %6089
    %v6091 = vsel %vm196, %v6073, 0.0
    %6092 = vadd.xlane.f32.xlu0 %v6091
    %v6093 = vpop.xlane.xlu0 %6092
    %v6094 = vsel %vm196, %v6074, 0.0
    %6095 = vadd.xlane.f32.xlu0 %v6094
    %v6096 = vpop.xlane.xlu0 %6095
    %v6097 = vsel %vm196, %v6075, 0.0
    %6098 = vadd.xlane.f32.xlu0 %v6097
    %v6099 = vpop.xlane.xlu0 %6098
    %v6100 = vsel %vm196, %v6076, 0.0
    %6101 = vadd.xlane.f32.xlu0 %v6100
    %v6102 = vpop.xlane.xlu0 %6101
    %v6103 = vsel %vm196, %v6077, 0.0
    %6104 = vadd.xlane.f32.xlu0 %v6103
    %v6105 = vpop.xlane.xlu0 %6104
    %v6106 = vmul.f32 %v6084, %v1083
    %v6107 = vmul.f32 %v6087, %v1083
    %v6108 = vmul.f32 %v6090, %v1083
    %v6109 = vmul.f32 %v6093, %v1083
    %v6110 = vmul.f32 %v6096, %v1083
    %v6111 = vmul.f32 %v6099, %v1083
    %v6112 = vmul.f32 %v6102, %v1083
    %v6113 = vmul.f32 %v6105, %v1083
    %v6114 = vadd.f32 %v6106, %v6107
    %v6115 = vadd.f32 %v6114, %v6108
    %v6116 = vadd.f32 %v6115, %v6109
    %v6117 = vadd.f32 %v6116, %v6110
    %v6118 = vadd.f32 %v6117, %v6111
    %v6119 = vadd.f32 %v6118, %v6112
    %v6120 = vadd.f32 %v6119, %v6113
    %v6121 = vmul.f32 %v6120, %v1083
    %v6122 = vsub.f32 %v6070, %v6121
    %v6123 = vsub.f32 %v6071, %v6121
    %v6124 = vsub.f32 %v6072, %v6121
    %v6125 = vsub.f32 %v6073, %v6121
    %v6126 = vsub.f32 %v6074, %v6121
    %v6127 = vsub.f32 %v6075, %v6121
    %v6128 = vsub.f32 %v6076, %v6121
    %v6129 = vsub.f32 %v6077, %v6121
    %v6130 = vmul.f32 %v6122, %v6122
    %v6131 = vmul.f32 %v6123, %v6123
    %v6132 = vmul.f32 %v6124, %v6124
    %v6133 = vmul.f32 %v6125, %v6125
    %v6134 = vmul.f32 %v6126, %v6126
    %v6135 = vmul.f32 %v6127, %v6127
    %v6136 = vmul.f32 %v6128, %v6128
    %v6137 = vmul.f32 %v6129, %v6129
    %v6138 = vsel %vm196, %v6130, 0.0
    %6139 = vadd.xlane.f32.xlu0 %v6138
    %v6140 = vpop.xlane.xlu0 %6139
    %v6141 = vsel %vm196, %v6131, 0.0
    %6142 = vadd.xlane.f32.xlu0 %v6141
    %v6143 = vpop.xlane.xlu0 %6142
    %v6144 = vsel %vm196, %v6132, 0.0
    %6145 = vadd.xlane.f32.xlu0 %v6144
    %v6146 = vpop.xlane.xlu0 %6145
    %v6147 = vsel %vm196, %v6133, 0.0
    %6148 = vadd.xlane.f32.xlu0 %v6147
    %v6149 = vpop.xlane.xlu0 %6148
    %v6150 = vsel %vm196, %v6134, 0.0
    %6151 = vadd.xlane.f32.xlu0 %v6150
    %v6152 = vpop.xlane.xlu0 %6151
    %v6153 = vsel %vm196, %v6135, 0.0
    %6154 = vadd.xlane.f32.xlu0 %v6153
    %v6155 = vpop.xlane.xlu0 %6154
    %v6156 = vsel %vm196, %v6136, 0.0
    %6157 = vadd.xlane.f32.xlu0 %v6156
    %v6158 = vpop.xlane.xlu0 %6157
    %v6159 = vsel %vm196, %v6137, 0.0
    %6160 = vadd.xlane.f32.xlu0 %v6159
    %v6161 = vpop.xlane.xlu0 %6160
    %v6162 = vmul.f32 %v6140, %v1083
    %v6163 = vmul.f32 %v6143, %v1083
    %v6164 = vmul.f32 %v6146, %v1083
    %v6165 = vmul.f32 %v6149, %v1083
    %v6166 = vmul.f32 %v6152, %v1083
    %v6167 = vmul.f32 %v6155, %v1083
    %v6168 = vmul.f32 %v6158, %v1083
    %v6169 = vmul.f32 %v6161, %v1083
    %v6170 = vadd.f32 %v6162, %v6163
    %v6171 = vadd.f32 %v6170, %v6164
    %v6172 = vadd.f32 %v6171, %v6165
    %v6173 = vadd.f32 %v6172, %v6166
    %v6174 = vadd.f32 %v6173, %v6167
    %v6175 = vadd.f32 %v6174, %v6168
    %v6176 = vadd.f32 %v6175, %v6169
    %v6177 = vmul.f32 %v6176, %v1083
    %v6178 = vadd.f32 %v6177, 1e-05
    %v6179 = vrsqrt.pop %v6178
    %v6180 = vmul.f32 %v6122, %v6179
    %v6181 = vmul.f32 %v6123, %v6179
    %v6182 = vmul.f32 %v6124, %v6179
    %v6183 = vmul.f32 %v6125, %v6179
    %v6184 = vmul.f32 %v6126, %v6179
    %v6185 = vmul.f32 %v6127, %v6179
    %v6186 = vmul.f32 %v6128, %v6179
    %v6187 = vmul.f32 %v6129, %v6179
    %6189 = vset.pattern.permute.xlu0 0
    %6190 = vperm.xlu0 %6189, %v6079
    %v6191 = vpop.permute.xlu0 %6190
    %v6193 = vmul.f32 %v6180, %v6191
    %v6194 = vmul.f32 %v6181, %v6191
    %v6195 = vmul.f32 %v6182, %v6191
    %v6196 = vmul.f32 %v6183, %v6191
    %v6197 = vmul.f32 %v6184, %v6191
    %v6198 = vmul.f32 %v6185, %v6191
    %v6199 = vmul.f32 %v6186, %v6191
    %v6200 = vmul.f32 %v6187, %v6191
    %6202 = vset.pattern.permute.xlu0 0
    %6203 = vperm.xlu0 %6202, %v6081
    %v6204 = vpop.permute.xlu0 %6203
    %v6206 = vadd.f32 %v6193, %v6204
    %v6207 = vadd.f32 %v6194, %v6204
    %v6208 = vadd.f32 %v6195, %v6204
    %v6209 = vadd.f32 %v6196, %v6204
    %v6210 = vadd.f32 %v6197, %v6204
    %v6211 = vadd.f32 %v6198, %v6204
    %v6212 = vadd.f32 %v6199, %v6204
    %v6213 = vadd.f32 %v6200, %v6204
    %s6214 = scalar_lea.vmem %s21, 24
    %v6215 = vld [vmem:[%s6214] sm:$0xff]
    %s6216 = scalar_lea.vmem %s22, 3
    %v6217 = vld [vmem:[%s6216] sm:$0x1]
    %v6219 = vlaneseq
    %v6220 = vshrl.u32 %v6219, 7
    %v6221 = vsub.s32 0, %v6220
    %v6222 = vrot.slane %v6217, %v6221
    %v6225 = vsel %vm196, %v6206, 0
    %v6228 = vsel %vm196, %v6207, 0
    %v6231 = vsel %vm196, %v6208, 0
    %v6234 = vsel %vm196, %v6209, 0
    %v6237 = vsel %vm196, %v6210, 0
    %v6240 = vsel %vm196, %v6211, 0
    %v6243 = vsel %vm196, %v6212, 0
    %v6246 = vsel %vm196, %v6213, 0
    %6248 = vmatprep.subr.mxu0 0.0
    %6249 = vmatpush1.msra.mxu0 %v6215
    %6250 = vmatprep.subr.mxu0 0.0
    %6251 = vmatpush1.msra.mxu0 0.0
    %6252 = vmatprep.subr.mxu0 0.0
    %6253 = vmatpush1.msra.mxu0 0.0
    %6254 = vmatprep.subr.mxu0 0.0
    %6255 = vmatpush1.msra.mxu0 0.0
    %6256 = vmatprep.subr.mxu0 0.0
    %6257 = vmatpush1.msra.mxu0 0.0
    %6258 = vmatprep.subr.mxu0 0.0
    %6259 = vmatpush1.msra.mxu0 0.0
    %6260 = vmatprep.subr.mxu0 0.0
    %6261 = vmatpush1.msra.mxu0 0.0
    %6262 = vmatprep.subr.mxu0 0.0
    %6263 = vmatpush1.msra.mxu0 0.0
    %6264 = vmatprep.subr.mxu0 0.0
    %6265 = vmatpush1.msra.mxu0 0.0
    %6266 = vmatprep.subr.mxu0 0.0
    %6267 = vmatpush1.msra.mxu0 0.0
    %6268 = vmatprep.subr.mxu0 0.0
    %6269 = vmatpush1.msra.mxu0 0.0
    %6270 = vmatprep.subr.mxu0 0.0
    %6271 = vmatpush1.msra.mxu0 0.0
    %6272 = vmatprep.subr.mxu0 0.0
    %6273 = vmatpush1.msra.mxu0 0.0
    %6274 = vmatprep.subr.mxu0 0.0
    %6275 = vmatpush1.msra.mxu0 0.0
    %6276 = vmatprep.subr.mxu0 0.0
    %6277 = vmatpush1.msra.mxu0 0.0
    %6278 = vmatprep.subr.mxu0 0.0
    %6279 = vmatpush1.msra.mxu0 0.0
    %6280 = vmatprep.subr.mxu0 0.0
    %6281 = vmatpush1.msra.mxu0 0.0
    %6282 = vmatprep.subr.mxu0 0.0
    %6283 = vmatpush1.msra.mxu0 0.0
    %6284 = vmatprep.subr.mxu0 0.0
    %6285 = vmatpush1.msra.mxu0 0.0
    %6286 = vmatprep.subr.mxu0 0.0
    %6287 = vmatpush1.msra.mxu0 0.0
    %6288 = vmatprep.subr.mxu0 0.0
    %6289 = vmatpush1.msra.mxu0 0.0
    %6290 = vmatprep.subr.mxu0 0.0
    %6291 = vmatpush1.msra.mxu0 0.0
    %6292 = vmatprep.subr.mxu0 0.0
    %6293 = vmatpush1.msra.mxu0 0.0
    %6294 = vmatprep.subr.mxu0 0.0
    %6295 = vmatpush1.msra.mxu0 0.0
    %6296 = vmatprep.subr.mxu0 0.0
    %6297 = vmatpush1.msra.mxu0 0.0
    %6298 = vmatprep.subr.mxu0 0.0
    %6299 = vmatpush1.msra.mxu0 0.0
    %6300 = vmatprep.subr.mxu0 0.0
    %6301 = vmatpush1.msra.mxu0 0.0
    %6302 = vmatprep.subr.mxu0 0.0
    %6303 = vmatpush1.msra.mxu0 0.0
    %6304 = vmatprep.subr.mxu0 0.0
    %6305 = vmatpush1.msra.mxu0 0.0
    %6306 = vmatprep.subr.mxu0 0.0
    %6307 = vmatpush1.msra.mxu0 0.0
    %6308 = vmatprep.subr.mxu0 0.0
    %6309 = vmatpush1.msra.mxu0 0.0
    %6310 = vmatprep.subr.mxu0 0.0
    %6311 = vmatpush1.msra.mxu0 0.0
    %6312 = vmatprep.mubr.f32.mxu0 0.0
    %6313 = vmatmul.mubr.f32.gmra.mrb[0].mxu0 %v6225
    %v6314 = vpop.f32.mrb[0].mxu0
    %v6315 = vadd.f32 %v6222, %v6314
    %v6316 = vpop.f32.mrb[0].mxu0
    %6317 = vmatprep.mubr.f32.mxu0 0.0
    %6318 = vmatmul.mubr.f32.gmra.mrb[0].mxu0 %v6228
    %v6319 = vpop.f32.mrb[0].mxu0
    %v6320 = vadd.f32 %v6222, %v6319
    %v6321 = vpop.f32.mrb[0].mxu0
    %6322 = vmatprep.mubr.f32.mxu0 0.0
    %6323 = vmatmul.mubr.f32.gmra.mrb[0].mxu0 %v6231
    %v6324 = vpop.f32.mrb[0].mxu0
    %v6325 = vadd.f32 %v6222, %v6324
    %v6326 = vpop.f32.mrb[0].mxu0
    %6327 = vmatprep.mubr.f32.mxu0 0.0
    %6328 = vmatmul.mubr.f32.gmra.mrb[0].mxu0 %v6234
    %v6329 = vpop.f32.mrb[0].mxu0
    %v6330 = vadd.f32 %v6222, %v6329
    %v6331 = vpop.f32.mrb[0].mxu0
    %6332 = vmatprep.mubr.f32.mxu0 0.0
    %6333 = vmatmul.mubr.f32.gmra.mrb[0].mxu0 %v6237
    %v6334 = vpop.f32.mrb[0].mxu0
    %v6335 = vadd.f32 %v6222, %v6334
    %v6336 = vpop.f32.mrb[0].mxu0
    %6337 = vmatprep.mubr.f32.mxu0 0.0
    %6338 = vmatmul.mubr.f32.gmra.mrb[0].mxu0 %v6240
    %v6339 = vpop.f32.mrb[0].mxu0
    %v6340 = vadd.f32 %v6222, %v6339
    %v6341 = vpop.f32.mrb[0].mxu0
    %6342 = vmatprep.mubr.f32.mxu0 0.0
    %6343 = vmatmul.mubr.f32.gmra.mrb[0].mxu0 %v6243
    %v6344 = vpop.f32.mrb[0].mxu0
    %v6345 = vadd.f32 %v6222, %v6344
    %v6346 = vpop.f32.mrb[0].mxu0
    %6347 = vmatprep.mubr.f32.mxu0 0.0
    %6348 = vmatmul.mubr.f32.gmra.mrb[0].mxu0 %v6246
    %v6349 = vpop.f32.mrb[0].mxu0
    %v6350 = vadd.f32 %v6222, %v6349
    %v6351 = vpop.f32.mrb[0].mxu0
    %6352 = vdwg.mxu0
    %v6353 = vmax.f32 %v6315, 0.0
    %v6354 = vmax.f32 %v6320, 0.0
    %v6355 = vmax.f32 %v6325, 0.0
    %v6356 = vmax.f32 %v6330, 0.0
    %v6357 = vmax.f32 %v6335, 0.0
    %v6358 = vmax.f32 %v6340, 0.0
    %v6359 = vmax.f32 %v6345, 0.0
    %v6360 = vmax.f32 %v6350, 0.0
    %s6361 = scalar_lea.vmem %s23, 48
    %v6362 = vld [vmem:[%s6361] sm:$0xff]
    %v6363 = vld [vmem:[%s6361 + $0x8] sm:$0xff]
    %s6364 = scalar_lea.vmem %s24, 3
    %v6365 = vld [vmem:[%s6364] sm:$0x1]
    %v6367 = vlaneseq
    %v6368 = vshrl.u32 %v6367, 7
    %v6369 = vsub.s32 0, %v6368
    %v6370 = vrot.slane %v6365, %v6369
    %v6373 = vsel %vm1346, %v6353, 0
    %v6376 = vsel %vm1346, %v6354, 0
    %v6379 = vsel %vm1346, %v6355, 0
    %v6382 = vsel %vm1346, %v6356, 0
    %v6385 = vsel %vm1346, %v6357, 0
    %v6388 = vsel %vm1346, %v6358, 0
    %v6391 = vsel %vm1346, %v6359, 0
    %v6394 = vsel %vm1346, %v6360, 0
    %6396 = vmatprep.subr.mxu0 0.0
    %6397 = vmatpush1.msra.mxu0 %v6362
    %6398 = vmatprep.subr.mxu0 0.0
    %6399 = vmatpush1.msra.mxu0 %v6363
    %6400 = vmatprep.subr.mxu0 0.0
    %6401 = vmatpush1.msra.mxu0 0.0
    %6402 = vmatprep.subr.mxu0 0.0
    %6403 = vmatpush1.msra.mxu0 0.0
    %6404 = vmatprep.subr.mxu0 0.0
    %6405 = vmatpush1.msra.mxu0 0.0
    %6406 = vmatprep.subr.mxu0 0.0
    %6407 = vmatpush1.msra.mxu0 0.0
    %6408 = vmatprep.subr.mxu0 0.0
    %6409 = vmatpush1.msra.mxu0 0.0
    %6410 = vmatprep.subr.mxu0 0.0
    %6411 = vmatpush1.msra.mxu0 0.0
    %6412 = vmatprep.subr.mxu0 0.0
    %6413 = vmatpush1.msra.mxu0 0.0
    %6414 = vmatprep.subr.mxu0 0.0
    %6415 = vmatpush1.msra.mxu0 0.0
    %6416 = vmatprep.subr.mxu0 0.0
    %6417 = vmatpush1.msra.mxu0 0.0
    %6418 = vmatprep.subr.mxu0 0.0
    %6419 = vmatpush1.msra.mxu0 0.0
    %6420 = vmatprep.subr.mxu0 0.0
    %6421 = vmatpush1.msra.mxu0 0.0
    %6422 = vmatprep.subr.mxu0 0.0
    %6423 = vmatpush1.msra.mxu0 0.0
    %6424 = vmatprep.subr.mxu0 0.0
    %6425 = vmatpush1.msra.mxu0 0.0
    %6426 = vmatprep.subr.mxu0 0.0
    %6427 = vmatpush1.msra.mxu0 0.0
    %6428 = vmatprep.subr.mxu0 0.0
    %6429 = vmatpush1.msra.mxu0 0.0
    %6430 = vmatprep.subr.mxu0 0.0
    %6431 = vmatpush1.msra.mxu0 0.0
    %6432 = vmatprep.subr.mxu0 0.0
    %6433 = vmatpush1.msra.mxu0 0.0
    %6434 = vmatprep.subr.mxu0 0.0
    %6435 = vmatpush1.msra.mxu0 0.0
    %6436 = vmatprep.subr.mxu0 0.0
    %6437 = vmatpush1.msra.mxu0 0.0
    %6438 = vmatprep.subr.mxu0 0.0
    %6439 = vmatpush1.msra.mxu0 0.0
    %6440 = vmatprep.subr.mxu0 0.0
    %6441 = vmatpush1.msra.mxu0 0.0
    %6442 = vmatprep.subr.mxu0 0.0
    %6443 = vmatpush1.msra.mxu0 0.0
    %6444 = vmatprep.subr.mxu0 0.0
    %6445 = vmatpush1.msra.mxu0 0.0
    %6446 = vmatprep.subr.mxu0 0.0
    %6447 = vmatpush1.msra.mxu0 0.0
    %6448 = vmatprep.subr.mxu0 0.0
    %6449 = vmatpush1.msra.mxu0 0.0
    %6450 = vmatprep.subr.mxu0 0.0
    %6451 = vmatpush1.msra.mxu0 0.0
    %6452 = vmatprep.subr.mxu0 0.0
    %6453 = vmatpush1.msra.mxu0 0.0
    %6454 = vmatprep.subr.mxu0 0.0
    %6455 = vmatpush1.msra.mxu0 0.0
    %6456 = vmatprep.subr.mxu0 0.0
    %6457 = vmatpush1.msra.mxu0 0.0
    %6458 = vmatprep.subr.mxu0 0.0
    %6459 = vmatpush1.msra.mxu0 0.0
    %6460 = vmatprep.mubr.f32.mxu0 0.0
    %6461 = vmatmul.mubr.f32.gmra.mrb[0].mxu0 %v6373
    %v6462 = vpop.f32.mrb[0].mxu0
    %v6463 = vadd.f32 %v6370, %v6462
    %v6464 = vpop.f32.mrb[0].mxu0
    %6465 = vmatprep.mubr.f32.mxu0 0.0
    %6466 = vmatmul.mubr.f32.gmra.mrb[0].mxu0 %v6376
    %v6467 = vpop.f32.mrb[0].mxu0
    %v6468 = vadd.f32 %v6370, %v6467
    %v6469 = vpop.f32.mrb[0].mxu0
    %6470 = vmatprep.mubr.f32.mxu0 0.0
    %6471 = vmatmul.mubr.f32.gmra.mrb[0].mxu0 %v6379
    %v6472 = vpop.f32.mrb[0].mxu0
    %v6473 = vadd.f32 %v6370, %v6472
    %v6474 = vpop.f32.mrb[0].mxu0
    %6475 = vmatprep.mubr.f32.mxu0 0.0
    %6476 = vmatmul.mubr.f32.gmra.mrb[0].mxu0 %v6382
    %v6477 = vpop.f32.mrb[0].mxu0
    %v6478 = vadd.f32 %v6370, %v6477
    %v6479 = vpop.f32.mrb[0].mxu0
    %6480 = vmatprep.mubr.f32.mxu0 0.0
    %6481 = vmatmul.mubr.f32.gmra.mrb[0].mxu0 %v6385
    %v6482 = vpop.f32.mrb[0].mxu0
    %v6483 = vadd.f32 %v6370, %v6482
    %v6484 = vpop.f32.mrb[0].mxu0
    %6485 = vmatprep.mubr.f32.mxu0 0.0
    %6486 = vmatmul.mubr.f32.gmra.mrb[0].mxu0 %v6388
    %v6487 = vpop.f32.mrb[0].mxu0
    %v6488 = vadd.f32 %v6370, %v6487
    %v6489 = vpop.f32.mrb[0].mxu0
    %6490 = vmatprep.mubr.f32.mxu0 0.0
    %6491 = vmatmul.mubr.f32.gmra.mrb[0].mxu0 %v6391
    %v6492 = vpop.f32.mrb[0].mxu0
    %v6493 = vadd.f32 %v6370, %v6492
    %v6494 = vpop.f32.mrb[0].mxu0
    %6495 = vmatprep.mubr.f32.mxu0 0.0
    %6496 = vmatmul.mubr.f32.gmra.mrb[0].mxu0 %v6394
    %v6497 = vpop.f32.mrb[0].mxu0
    %v6498 = vadd.f32 %v6370, %v6497
    %v6499 = vpop.f32.mrb[0].mxu0
    %6500 = vdwg.mxu0
    %v6501 = vadd.f32 %v6206, %v6463
    %v6502 = vadd.f32 %v6207, %v6468
    %v6503 = vadd.f32 %v6208, %v6473
    %v6504 = vadd.f32 %v6209, %v6478
    %v6505 = vadd.f32 %v6210, %v6483
    %v6506 = vadd.f32 %v6211, %v6488
    %v6507 = vadd.f32 %v6212, %v6493
    %v6508 = vadd.f32 %v6213, %v6498
    %s6509 = scalar_lea.vmem %s19, 24
    %v6510 = vld [vmem:[%s6509] sm:$0xff]
    %s6511 = scalar_lea.vmem %s20, 24
    %v6512 = vld [vmem:[%s6511] sm:$0xff]
    %v6513 = vsel %vm196, %v6501, 0.0
    %6514 = vadd.xlane.f32.xlu0 %v6513
    %v6515 = vpop.xlane.xlu0 %6514
    %v6516 = vsel %vm196, %v6502, 0.0
    %6517 = vadd.xlane.f32.xlu0 %v6516
    %v6518 = vpop.xlane.xlu0 %6517
    %v6519 = vsel %vm196, %v6503, 0.0
    %6520 = vadd.xlane.f32.xlu0 %v6519
    %v6521 = vpop.xlane.xlu0 %6520
    %v6522 = vsel %vm196, %v6504, 0.0
    %6523 = vadd.xlane.f32.xlu0 %v6522
    %v6524 = vpop.xlane.xlu0 %6523
    %v6525 = vsel %vm196, %v6505, 0.0
    %6526 = vadd.xlane.f32.xlu0 %v6525
    %v6527 = vpop.xlane.xlu0 %6526
    %v6528 = vsel %vm196, %v6506, 0.0
    %6529 = vadd.xlane.f32.xlu0 %v6528
    %v6530 = vpop.xlane.xlu0 %6529
    %v6531 = vsel %vm196, %v6507, 0.0
    %6532 = vadd.xlane.f32.xlu0 %v6531
    %v6533 = vpop.xlane.xlu0 %6532
    %v6534 = vsel %vm196, %v6508, 0.0
    %6535 = vadd.xlane.f32.xlu0 %v6534
    %v6536 = vpop.xlane.xlu0 %6535
    %v6537 = vmul.f32 %v6515, %v1083
    %v6538 = vmul.f32 %v6518, %v1083
    %v6539 = vmul.f32 %v6521, %v1083
    %v6540 = vmul.f32 %v6524, %v1083
    %v6541 = vmul.f32 %v6527, %v1083
    %v6542 = vmul.f32 %v6530, %v1083
    %v6543 = vmul.f32 %v6533, %v1083
    %v6544 = vmul.f32 %v6536, %v1083
    %v6545 = vadd.f32 %v6537, %v6538
    %v6546 = vadd.f32 %v6545, %v6539
    %v6547 = vadd.f32 %v6546, %v6540
    %v6548 = vadd.f32 %v6547, %v6541
    %v6549 = vadd.f32 %v6548, %v6542
    %v6550 = vadd.f32 %v6549, %v6543
    %v6551 = vadd.f32 %v6550, %v6544
    %v6552 = vmul.f32 %v6551, %v1083
    %v6553 = vsub.f32 %v6501, %v6552
    %v6554 = vsub.f32 %v6502, %v6552
    %v6555 = vsub.f32 %v6503, %v6552
    %v6556 = vsub.f32 %v6504, %v6552
    %v6557 = vsub.f32 %v6505, %v6552
    %v6558 = vsub.f32 %v6506, %v6552
    %v6559 = vsub.f32 %v6507, %v6552
    %v6560 = vsub.f32 %v6508, %v6552
    %v6561 = vmul.f32 %v6553, %v6553
    %v6562 = vmul.f32 %v6554, %v6554
    %v6563 = vmul.f32 %v6555, %v6555
    %v6564 = vmul.f32 %v6556, %v6556
    %v6565 = vmul.f32 %v6557, %v6557
    %v6566 = vmul.f32 %v6558, %v6558
    %v6567 = vmul.f32 %v6559, %v6559
    %v6568 = vmul.f32 %v6560, %v6560
    %v6569 = vsel %vm196, %v6561, 0.0
    %6570 = vadd.xlane.f32.xlu0 %v6569
    %v6571 = vpop.xlane.xlu0 %6570
    %v6572 = vsel %vm196, %v6562, 0.0
    %6573 = vadd.xlane.f32.xlu0 %v6572
    %v6574 = vpop.xlane.xlu0 %6573
    %v6575 = vsel %vm196, %v6563, 0.0
    %6576 = vadd.xlane.f32.xlu0 %v6575
    %v6577 = vpop.xlane.xlu0 %6576
    %v6578 = vsel %vm196, %v6564, 0.0
    %6579 = vadd.xlane.f32.xlu0 %v6578
    %v6580 = vpop.xlane.xlu0 %6579
    %v6581 = vsel %vm196, %v6565, 0.0
    %6582 = vadd.xlane.f32.xlu0 %v6581
    %v6583 = vpop.xlane.xlu0 %6582
    %v6584 = vsel %vm196, %v6566, 0.0
    %6585 = vadd.xlane.f32.xlu0 %v6584
    %v6586 = vpop.xlane.xlu0 %6585
    %v6587 = vsel %vm196, %v6567, 0.0
    %6588 = vadd.xlane.f32.xlu0 %v6587
    %v6589 = vpop.xlane.xlu0 %6588
    %v6590 = vsel %vm196, %v6568, 0.0
    %6591 = vadd.xlane.f32.xlu0 %v6590
    %v6592 = vpop.xlane.xlu0 %6591
    %v6593 = vmul.f32 %v6571, %v1083
    %v6594 = vmul.f32 %v6574, %v1083
    %v6595 = vmul.f32 %v6577, %v1083
    %v6596 = vmul.f32 %v6580, %v1083
    %v6597 = vmul.f32 %v6583, %v1083
    %v6598 = vmul.f32 %v6586, %v1083
    %v6599 = vmul.f32 %v6589, %v1083
    %v6600 = vmul.f32 %v6592, %v1083
    %v6601 = vadd.f32 %v6593, %v6594
    %v6602 = vadd.f32 %v6601, %v6595
    %v6603 = vadd.f32 %v6602, %v6596
    %v6604 = vadd.f32 %v6603, %v6597
    %v6605 = vadd.f32 %v6604, %v6598
    %v6606 = vadd.f32 %v6605, %v6599
    %v6607 = vadd.f32 %v6606, %v6600
    %v6608 = vmul.f32 %v6607, %v1083
    %v6609 = vadd.f32 %v6608, 1e-05
    %v6610 = vrsqrt.pop %v6609
    %v6611 = vmul.f32 %v6553, %v6610
    %v6612 = vmul.f32 %v6554, %v6610
    %v6613 = vmul.f32 %v6555, %v6610
    %v6614 = vmul.f32 %v6556, %v6610
    %v6615 = vmul.f32 %v6557, %v6610
    %v6616 = vmul.f32 %v6558, %v6610
    %v6617 = vmul.f32 %v6559, %v6610
    %v6618 = vmul.f32 %v6560, %v6610
    %6620 = vset.pattern.permute.xlu0 0
    %6621 = vperm.xlu0 %6620, %v6510
    %v6622 = vpop.permute.xlu0 %6621
    %v6624 = vmul.f32 %v6611, %v6622
    %v6625 = vmul.f32 %v6612, %v6622
    %v6626 = vmul.f32 %v6613, %v6622
    %v6627 = vmul.f32 %v6614, %v6622
    %v6628 = vmul.f32 %v6615, %v6622
    %v6629 = vmul.f32 %v6616, %v6622
    %v6630 = vmul.f32 %v6617, %v6622
    %v6631 = vmul.f32 %v6618, %v6622
    %6633 = vset.pattern.permute.xlu0 0
    %6634 = vperm.xlu0 %6633, %v6512
    %v6635 = vpop.permute.xlu0 %6634
    %v6637 = vadd.f32 %v6624, %v6635
    %v6638 = vadd.f32 %v6625, %v6635
    %v6639 = vadd.f32 %v6626, %v6635
    %v6640 = vadd.f32 %v6627, %v6635
    %v6641 = vadd.f32 %v6628, %v6635
    %v6642 = vadd.f32 %v6629, %v6635
    %v6643 = vadd.f32 %v6630, %v6635
    %v6644 = vadd.f32 %v6631, %v6635
    %v6645 = vsel %vm196, %v6637, 0.0
    %v6646 = vsel %vm196, %v6638, 0.0
    %v6647 = vadd.f32 %v6645, %v6646
    %v6648 = vsel %vm196, %v6639, 0.0
    %v6649 = vadd.f32 %v6647, %v6648
    %v6650 = vsel %vm196, %v6640, 0.0
    %v6651 = vadd.f32 %v6649, %v6650
    %v6652 = vsel %vm196, %v6641, 0.0
    %v6653 = vadd.f32 %v6651, %v6652
    %v6654 = vsel %vm196, %v6642, 0.0
    %v6655 = vadd.f32 %v6653, %v6654
    %v6656 = vsel %vm196, %v6643, 0.0
    %v6657 = vadd.f32 %v6655, %v6656
    %v6658 = vsel %vm196, %v6644, 0.0
    %v6659 = vadd.f32 %v6657, %v6658
    %v6660 = vmul.f32 %v6659, %v1083
    %v6661 = vld [vmem:[%s25] sm:$0xff]
    %v6662 = vld [vmem:[#allocation2] sm:$0x1]
    %v6664 = vlaneseq
    %v6665 = vshrl.u32 %v6664, 7
    %v6666 = vsub.s32 0, %v6665
    %v6667 = vrot.slane %v6662, %v6666
    %v6670 = vsel %vm196, %v6660, 0
    %6672 = vmatprep.subr.mxu0 0.0
    %6673 = vmatpush1.msra.mxu0 %v6661
    %6674 = vmatprep.subr.mxu0 0.0
    %6675 = vmatpush1.msra.mxu0 0.0
    %6676 = vmatprep.subr.mxu0 0.0
    %6677 = vmatpush1.msra.mxu0 0.0
    %6678 = vmatprep.subr.mxu0 0.0
    %6679 = vmatpush1.msra.mxu0 0.0
    %6680 = vmatprep.subr.mxu0 0.0
    %6681 = vmatpush1.msra.mxu0 0.0
    %6682 = vmatprep.subr.mxu0 0.0
    %6683 = vmatpush1.msra.mxu0 0.0
    %6684 = vmatprep.subr.mxu0 0.0
    %6685 = vmatpush1.msra.mxu0 0.0
    %6686 = vmatprep.subr.mxu0 0.0
    %6687 = vmatpush1.msra.mxu0 0.0
    %6688 = vmatprep.subr.mxu0 0.0
    %6689 = vmatpush1.msra.mxu0 0.0
    %6690 = vmatprep.subr.mxu0 0.0
    %6691 = vmatpush1.msra.mxu0 0.0
    %6692 = vmatprep.subr.mxu0 0.0
    %6693 = vmatpush1.msra.mxu0 0.0
    %6694 = vmatprep.subr.mxu0 0.0
    %6695 = vmatpush1.msra.mxu0 0.0
    %6696 = vmatprep.subr.mxu0 0.0
    %6697 = vmatpush1.msra.mxu0 0.0
    %6698 = vmatprep.subr.mxu0 0.0
    %6699 = vmatpush1.msra.mxu0 0.0
    %6700 = vmatprep.subr.mxu0 0.0
    %6701 = vmatpush1.msra.mxu0 0.0
    %6702 = vmatprep.subr.mxu0 0.0
    %6703 = vmatpush1.msra.mxu0 0.0
    %6704 = vmatprep.subr.mxu0 0.0
    %6705 = vmatpush1.msra.mxu0 0.0
    %6706 = vmatprep.subr.mxu0 0.0
    %6707 = vmatpush1.msra.mxu0 0.0
    %6708 = vmatprep.subr.mxu0 0.0
    %6709 = vmatpush1.msra.mxu0 0.0
    %6710 = vmatprep.subr.mxu0 0.0
    %6711 = vmatpush1.msra.mxu0 0.0
    %6712 = vmatprep.subr.mxu0 0.0
    %6713 = vmatpush1.msra.mxu0 0.0
    %6714 = vmatprep.subr.mxu0 0.0
    %6715 = vmatpush1.msra.mxu0 0.0
    %6716 = vmatprep.subr.mxu0 0.0
    %6717 = vmatpush1.msra.mxu0 0.0
    %6718 = vmatprep.subr.mxu0 0.0
    %6719 = vmatpush1.msra.mxu0 0.0
    %6720 = vmatprep.subr.mxu0 0.0
    %6721 = vmatpush1.msra.mxu0 0.0
    %6722 = vmatprep.subr.mxu0 0.0
    %6723 = vmatpush1.msra.mxu0 0.0
    %6724 = vmatprep.subr.mxu0 0.0
    %6725 = vmatpush1.msra.mxu0 0.0
    %6726 = vmatprep.subr.mxu0 0.0
    %6727 = vmatpush1.msra.mxu0 0.0
    %6728 = vmatprep.subr.mxu0 0.0
    %6729 = vmatpush1.msra.mxu0 0.0
    %6730 = vmatprep.subr.mxu0 0.0
    %6731 = vmatpush1.msra.mxu0 0.0
    %6732 = vmatprep.subr.mxu0 0.0
    %6733 = vmatpush1.msra.mxu0 0.0
    %6734 = vmatprep.subr.mxu0 0.0
    %6735 = vmatpush1.msra.mxu0 0.0
    %6736 = vmatprep.mubr.f32.mxu0 0.0
    %6737 = vmatmul.mubr.f32.gmra.mrb[0].mxu0 %v6670
    %v6738 = vpop.f32.mrb[0].mxu0
    %v6739 = vadd.f32 %v6667, %v6738
    %v6740 = vpop.f32.mrb[0].mxu0
    %6741 = vdwg.mxu0
    %vm6742 = vcmask 7168
    %6743 = vst.msk [vmem:[%s27] sm:$0xff] %vm6742, %v6739
    // Predicated region
    $region114: #{graph_transformer_forward.1} parent=1 // pred_check
      _
    $region115: #{graph_transformer_forward.1} parent=1 // pred_check_branch
      %6745 = sbr.rel (0) target = $region117
    $region116: #{graph_transformer_forward.1} parent=1 // pred_region
      _
    $region117: #{graph_transformer_forward.1} parent=1 // pred_fallthru
      _
    // Predicated region
    $region118: #{graph_transformer_forward.1} parent=1 // pred_check
      _
    $region119: #{graph_transformer_forward.1} parent=1 // pred_check_branch
      %6747 = sbr.rel (0) target = $region121
    $region120: #{graph_transformer_forward.1} parent=1 // pred_region
      _
    $region121: #{graph_transformer_forward.1} parent=1 // pred_fallthru
      _
    %6748 = vsyncpa [#allocation4], 1

</llo_original>
